<compile_context>
chip_gen: v5e
topology: v5e:2x2
jax: 0.10.0
libtpu: 0.0.40
codegen_flags: <defaults>
</compile_context>

<pallas_src>
import functools

import jax
import jax.numpy as jnp
from jax import lax
from jax.experimental import pallas as pl
from jax.experimental.pallas import tpu as pltpu  # noqa: F401

# ----------------------------- config (small) --------------------------------
VOCAB = 100
MAX_POS = 64
HIDDEN = 32          # stands in for xlm.config.hidden_size (=2048 in real XLM)
N_HEADS = 8
FF_DIM = 64
N_XLM_LAYERS = 2     # synthetic small XLM stack
N_HEAD_LAYERS = 4    # nn.TransformerEncoder(num_layers=4)
NUM_LABELS = 3
BATCH = 2
SEQ = 8
LN_EPS_XLM = 1e-12
LN_EPS_TORCH = 1e-5


# ----------------------------- in-kernel helpers ------------------------------
def _ln(x, g, b, eps):
    mu = jnp.mean(x, axis=-1, keepdims=True)
    var = jnp.mean((x - mu) ** 2, axis=-1, keepdims=True)
    return (x - mu) * lax.rsqrt(var + eps) * g + b


def _softmax_lastdim(s):
    s = s - jnp.max(s, axis=-1, keepdims=True)
    p = jnp.exp(s)
    # EUP reciprocal: softmax divide is effectively free.
    return p * pl.reciprocal(jnp.sum(p, axis=-1, keepdims=True), approx=True)


def _fused_layer_math(x, kmask, wqkv, bqkv, wo, bo, ln1g, ln1b,
                      w1, b1, w2, b2, ln2g, ln2b, *,
                      n_blocks, rows_per_block, n_heads, attn_mode,
                      activation, eps):
    """One post-LN transformer encoder layer on flat tokens x: (N, H), N = n_blocks*rows_per_block.

    attn_mode="within": standard self-attention inside each contiguous block of
        `rows_per_block` rows (XLM backbone; kmask is a (n_blocks, rows_per_block)
        key keep-mask).
    attn_mode="across": the N rows are n_blocks contiguous blocks of
        rows_per_block parallel sequences; attention runs across blocks,
        row-by-row.  This is exactly nn.TransformerEncoder (batch_first=False)
        applied to (seq=n_blocks, batch=rows_per_block, H) data stored block-major.
    """
    n, H = x.shape
    hd = H // n_heads
    scale = 1.0 / float(hd) ** 0.5

    # Fused Q|K|V projection: one MXU pass, lane-dense (3H) output.
    qkv = jnp.dot(x, wqkv, preferred_element_type=jnp.float32) + bqkv      # (N, 3H)

    if attn_mode == "within":
        blk_outs = []
        for b in range(n_blocks):
            r = b * rows_per_block
            head_outs = []
            for h in range(n_heads):
                c = h * hd
                qh = qkv[r:r + rows_per_block, c:c + hd]                   # (S, hd)
                kh = qkv[r:r + rows_per_block, H + c:H + c + hd]
                vh = qkv[r:r + rows_per_block, 2 * H + c:2 * H + c + hd]
                s = lax.dot_general(qh, kh, (((1,), (1,)), ((), ())),
                                    preferred_element_type=jnp.float32) * scale
                if kmask is not None:
                    s = jnp.where(kmask[b:b + 1, :] > 0.0, s, -1e9)
                p = _softmax_lastdim(s)
                head_outs.append(jnp.dot(p, vh, preferred_element_type=jnp.float32))
            blk_outs.append(jnp.concatenate(head_outs, axis=-1))           # (S, H)
        a = jnp.concatenate(blk_outs, axis=0)                              # (N, H)
    else:  # "across"
        tok_outs = [[] for _ in range(n_blocks)]
        for h in range(n_heads):
            c = h * hd
            qs, ks, vs = [], [], []
            for t in range(n_blocks):
                r = t * rows_per_block
                qs.append(qkv[r:r + rows_per_block, c:c + hd])             # (G, hd)
                ks.append(qkv[r:r + rows_per_block, H + c:H + c + hd])
                vs.append(qkv[r:r + rows_per_block, 2 * H + c:2 * H + c + hd])
            for tq in range(n_blocks):
                # scores of query-token tq against every key-token, for all
                # rows_per_block sequences at once (row-wise dot products).
                sc = [jnp.sum(qs[tq] * ks[tk], axis=-1, keepdims=True) * scale
                      for tk in range(n_blocks)]                           # each (G, 1)
                m = sc[0]
                for s_ in sc[1:]:
                    m = jnp.maximum(m, s_)
                es = [jnp.exp(s_ - m) for s_ in sc]
                den = es[0]
                for e_ in es[1:]:
                    den = den + e_
                inv = pl.reciprocal(den, approx=True)
                o = es[0] * vs[0]
                for tk in range(1, n_blocks):
                    o = o + es[tk] * vs[tk]
                tok_outs[tq].append(o * inv)                               # (G, hd)
        a = jnp.concatenate(
            [jnp.concatenate(tok_outs[t], axis=-1) for t in range(n_blocks)], axis=0)

    # output projection + residual + LN1 (all fused, no HBM traffic)
    x = _ln(x + jnp.dot(a, wo, preferred_element_type=jnp.float32) + bo, ln1g, ln1b, eps)
    # FFN + residual + LN2
    f = jnp.dot(x, w1, preferred_element_type=jnp.float32) + b1
    if activation == "gelu":
        # tanh-approx gelu (EUP friendly); XLM uses erf-gelu, numerically close.
        f = jax.nn.gelu(f, approximate=True)
    else:
        f = jnp.maximum(f, 0.0)
    f = jnp.dot(f, w2, preferred_element_type=jnp.float32) + b2
    return _ln(x + f, ln2g, ln2b, eps)


# ----------------------------- Pallas kernels --------------------------------
def _embed_norm_kernel(x_ref, g_ref, b_ref, m_ref, o_ref, *, eps):
    x = _ln(x_ref[...].astype(jnp.float32), g_ref[...], b_ref[...], eps)
    o_ref[...] = (x * m_ref[...]).astype(o_ref.dtype)


def _encoder_layer_kernel(*refs, n_blocks, rows_per_block, n_heads, attn_mode,
                          activation, eps, use_key_mask, apply_token_mask):
    idx = 0
    x_ref = refs[idx]; idx += 1
    kmask_ref = None
    if use_key_mask:
        kmask_ref = refs[idx]; idx += 1
    tokmask_ref = None
    if apply_token_mask:
        tokmask_ref = refs[idx]; idx += 1
    (wqkv_ref, bqkv_ref, wo_ref, bo_ref, ln1g_ref, ln1b_ref,
     w1_ref, b1_ref, w2_ref, b2_ref, ln2g_ref, ln2b_ref, o_ref) = refs[idx:]

    kmask = kmask_ref[...] if use_key_mask else None
    y = _fused_layer_math(
        x_ref[...].astype(jnp.float32), kmask,
        wqkv_ref[...], bqkv_ref[...], wo_ref[...], bo_ref[...],
        ln1g_ref[...], ln1b_ref[...], w1_ref[...], b1_ref[...],
        w2_ref[...], b2_ref[...], ln2g_ref[...], ln2b_ref[...],
        n_blocks=n_blocks, rows_per_block=rows_per_block, n_heads=n_heads,
        attn_mode=attn_mode, activation=activation, eps=eps)
    if apply_token_mask:
        y = y * tokmask_ref[...]
    o_ref[...] = y.astype(o_ref.dtype)


def _encoder_layer_classifier_kernel(x_ref, wqkv_ref, bqkv_ref, wo_ref, bo_ref,
                                     ln1g_ref, ln1b_ref, w1_ref, b1_ref,
                                     w2_ref, b2_ref, ln2g_ref, ln2b_ref,
                                     clsw_ref, clsb_ref, o_ref, *,
                                     n_blocks, rows_per_block, n_heads, attn_mode,
                                     activation, eps):
    y = _fused_layer_math(
        x_ref[...].astype(jnp.float32), None,
        wqkv_ref[...], bqkv_ref[...], wo_ref[...], bo_ref[...],
        ln1g_ref[...], ln1b_ref[...], w1_ref[...], b1_ref[...],
        w2_ref[...], b2_ref[...], ln2g_ref[...], ln2b_ref[...],
        n_blocks=n_blocks, rows_per_block=rows_per_block, n_heads=n_heads,
        attn_mode=attn_mode, activation=activation, eps=eps)
    # pooled = transformer_outputs[:, 0, :]  ->  flat rows b*rows_per_block
    pooled = jnp.concatenate(
        [y[t * rows_per_block:t * rows_per_block + 1, :] for t in range(n_blocks)],
        axis=0)                                                            # (B, H)
    logits = (jnp.dot(pooled, clsw_ref[...], preferred_element_type=jnp.float32)
              + clsb_ref[...])
    o_ref[...] = logits.astype(o_ref.dtype)


# ----------------------------- wrappers ---------------------------------------
def embed_norm(x, g, b, tok_mask, *, eps):
    return pl.pallas_call(
        functools.partial(_embed_norm_kernel, eps=eps),
        out_shape=jax.ShapeDtypeStruct(x.shape, x.dtype),
    )(x, g, b, tok_mask)


def encoder_layer(x, layer, *, key_mask, tok_mask, n_blocks, rows_per_block,
                  attn_mode, activation, eps, use_key_mask, apply_token_mask):
    n, H = x.shape
    kernel = functools.partial(
        _encoder_layer_kernel, n_blocks=n_blocks, rows_per_block=rows_per_block,
        n_heads=N_HEADS, attn_mode=attn_mode, activation=activation, eps=eps,
        use_key_mask=use_key_mask, apply_token_mask=apply_token_mask)
    operands = [x]
    if use_key_mask:
        operands.append(key_mask)
    if apply_token_mask:
        operands.append(tok_mask)
    operands += [layer["wqkv"], layer["bqkv"], layer["wo"], layer["bo"],
                 layer["ln1_g"], layer["ln1_b"], layer["w1"], layer["b1"],
                 layer["w2"], layer["b2"], layer["ln2_g"], layer["ln2_b"]]
    return pl.pallas_call(
        kernel, out_shape=jax.ShapeDtypeStruct((n, H), x.dtype),
    )(*operands)


def encoder_layer_with_classifier(x, layer, cls_w, cls_b, *, n_blocks,
                                  rows_per_block, attn_mode, activation, eps):
    num_labels = cls_w.shape[1]
    kernel = functools.partial(
        _encoder_layer_classifier_kernel, n_blocks=n_blocks,
        rows_per_block=rows_per_block, n_heads=N_HEADS, attn_mode=attn_mode,
        activation=activation, eps=eps)
    return pl.pallas_call(
        kernel, out_shape=jax.ShapeDtypeStruct((n_blocks, num_labels), jnp.float32),
    )(x, layer["wqkv"], layer["bqkv"], layer["wo"], layer["bo"],
      layer["ln1_g"], layer["ln1_b"], layer["w1"], layer["b1"],
      layer["w2"], layer["b2"], layer["ln2_g"], layer["ln2_b"], cls_w, cls_b)


# ----------------------------- model forward ----------------------------------
def custom_xlm_forward(params, input_ids, attention_mask):
    B, S = input_ids.shape
    H = HIDDEN
    mask_f = attention_mask.astype(jnp.float32)          # (B, S) 1=keep
    tok_mask = mask_f.reshape(B * S, 1)                  # (B*S, 1)

    # --- XLM backbone (embeddings + post-LN stack, gelu FFN, eps=1e-12) ---
    # Token gather stays in XLA (single cheap op); everything downstream is Pallas.
    emb = params["word_emb"][input_ids] + params["pos_emb"][:S][None, :, :]
    x = emb.reshape(B * S, H)
    x = embed_norm(x, params["ln_emb_g"], params["ln_emb_b"], tok_mask, eps=LN_EPS_XLM)
    for layer in params["xlm_layers"]:
        x = encoder_layer(x, layer, key_mask=mask_f, tok_mask=tok_mask,
                          n_blocks=B, rows_per_block=S, attn_mode="within",
                          activation="gelu", eps=LN_EPS_XLM,
                          use_key_mask=True, apply_token_mask=True)

    # --- nn.TransformerEncoder head (batch_first=False semantics) ---
    # hidden_states (B, S, H) is interpreted by PyTorch as (seq=B, batch=S, H):
    # attention runs along the original batch axis, no mask, ReLU FFN, eps=1e-5.
    # "across" mode handles this directly on the b-major flat layout.
    logits = None
    for i, layer in enumerate(params["head_layers"]):
        if i < len(params["head_layers"]) - 1:
            x = encoder_layer(x, layer, key_mask=None, tok_mask=None,
                              n_blocks=B, rows_per_block=S, attn_mode="across",
                              activation="relu", eps=LN_EPS_TORCH,
                              use_key_mask=False, apply_token_mask=False)
        else:
            # last head layer fused with pooling ([:, 0, :]) and the Linear classifier
            logits = encoder_layer_with_classifier(
                x, layer, params["cls_w"], params["cls_b"],
                n_blocks=B, rows_per_block=S, attn_mode="across",
                activation="relu", eps=LN_EPS_TORCH)
    return logits                                        # (B, NUM_LABELS)


# ----------------------------- parameter init --------------------------------
def init_params(key):
    keys = iter(jax.random.split(key, 64))

    def w(shape, scale=0.02):
        return jax.random.normal(next(keys), shape, jnp.float32) * scale

    def enc_layer(ff_dim):
        return dict(
            wqkv=w((HIDDEN, 3 * HIDDEN)), bqkv=jnp.zeros((1, 3 * HIDDEN), jnp.float32),
            wo=w((HIDDEN, HIDDEN)), bo=jnp.zeros((1, HIDDEN), jnp.float32),
            w1=w((HIDDEN, ff_dim)), b1=jnp.zeros((1, ff_dim), jnp.float32),
            w2=w((ff_dim, HIDDEN)), b2=jnp.zeros((1, HIDDEN), jnp.float32),
            ln1_g=jnp.ones((1, HIDDEN), jnp.float32), ln1_b=jnp.zeros((1, HIDDEN), jnp.float32),
            ln2_g=jnp.ones((1, HIDDEN), jnp.float32), ln2_b=jnp.zeros((1, HIDDEN), jnp.float32),
        )

    return dict(
        word_emb=w((VOCAB, HIDDEN)),
        pos_emb=w((MAX_POS, HIDDEN)),
        ln_emb_g=jnp.ones((1, HIDDEN), jnp.float32),
        ln_emb_b=jnp.zeros((1, HIDDEN), jnp.float32),
        xlm_layers=[enc_layer(FF_DIM) for _ in range(N_XLM_LAYERS)],
        head_layers=[enc_layer(FF_DIM) for _ in range(N_HEAD_LAYERS)],
        cls_w=w((HIDDEN, NUM_LABELS)),
        cls_b=jnp.zeros((1, NUM_LABELS), jnp.float32),
    )


# ------------------------------------ main ------------------------------------
if __name__ == "__main__":
    key = jax.random.PRNGKey(0)
    pkey, ikey = jax.random.split(key)
    params = init_params(pkey)

    input_ids = jax.random.randint(ikey, (BATCH, SEQ), 0, VOCAB, dtype=jnp.int32)
    attention_mask = jnp.ones((BATCH, SEQ), jnp.int32)
    attention_mask = attention_mask.at[1, 5:].set(0)     # second example is padded

    # TODO(synk): pretrained 'xlm-mlm-en-2048' weights + requires_grad freezing are
    # training-time concerns; synthetic small-config weights are used here.
    forward = jax.jit(custom_xlm_forward)
    logits = forward(params, input_ids, attention_mask)
    logits = jax.block_until_ready(logits)
    assert logits.shape == (BATCH, NUM_LABELS)
    print("KERNEL_OK")
</pallas_src>

<mosaic_0001>
module attributes {stable_mosaic.version = 11 : i64} {
  func.func @_encoder_layer_kernel(%arg0: memref<16x32xf32, #tpu.memory_space<vmem>>, %arg1: memref<32x96xf32, #tpu.memory_space<vmem>>, %arg2: memref<1x96xf32, #tpu.memory_space<vmem>>, %arg3: memref<32x32xf32, #tpu.memory_space<vmem>>, %arg4: memref<1x32xf32, #tpu.memory_space<vmem>>, %arg5: memref<1x32xf32, #tpu.memory_space<vmem>>, %arg6: memref<1x32xf32, #tpu.memory_space<vmem>>, %arg7: memref<32x64xf32, #tpu.memory_space<vmem>>, %arg8: memref<1x64xf32, #tpu.memory_space<vmem>>, %arg9: memref<64x32xf32, #tpu.memory_space<vmem>>, %arg10: memref<1x32xf32, #tpu.memory_space<vmem>>, %arg11: memref<1x32xf32, #tpu.memory_space<vmem>>, %arg12: memref<1x32xf32, #tpu.memory_space<vmem>>, %arg13: memref<16x32xf32, #tpu.memory_space<vmem>>) attributes {dimension_semantics = [], scalar_prefetch = 0 : i64, scratch_operands = 0 : i64, tpu.core_type = #tpu.core_type<tc>} {
    %c0 = arith.constant 0 : index
    %c0_0 = arith.constant 0 : index
    %0 = vector.load %arg0[%c0, %c0_0] : memref<16x32xf32, #tpu.memory_space<vmem>>, vector<16x32xf32>
    %c0_1 = arith.constant 0 : index
    %c0_2 = arith.constant 0 : index
    %1 = vector.load %arg1[%c0_1, %c0_2] : memref<32x96xf32, #tpu.memory_space<vmem>>, vector<32x96xf32>
    %c0_3 = arith.constant 0 : index
    %c0_4 = arith.constant 0 : index
    %2 = vector.load %arg2[%c0_3, %c0_4] : memref<1x96xf32, #tpu.memory_space<vmem>>, vector<1x96xf32>
    %c0_5 = arith.constant 0 : index
    %c0_6 = arith.constant 0 : index
    %3 = vector.load %arg3[%c0_5, %c0_6] : memref<32x32xf32, #tpu.memory_space<vmem>>, vector<32x32xf32>
    %c0_7 = arith.constant 0 : index
    %c0_8 = arith.constant 0 : index
    %4 = vector.load %arg4[%c0_7, %c0_8] : memref<1x32xf32, #tpu.memory_space<vmem>>, vector<1x32xf32>
    %c0_9 = arith.constant 0 : index
    %c0_10 = arith.constant 0 : index
    %5 = vector.load %arg5[%c0_9, %c0_10] : memref<1x32xf32, #tpu.memory_space<vmem>>, vector<1x32xf32>
    %c0_11 = arith.constant 0 : index
    %c0_12 = arith.constant 0 : index
    %6 = vector.load %arg6[%c0_11, %c0_12] : memref<1x32xf32, #tpu.memory_space<vmem>>, vector<1x32xf32>
    %c0_13 = arith.constant 0 : index
    %c0_14 = arith.constant 0 : index
    %7 = vector.load %arg7[%c0_13, %c0_14] : memref<32x64xf32, #tpu.memory_space<vmem>>, vector<32x64xf32>
    %c0_15 = arith.constant 0 : index
    %c0_16 = arith.constant 0 : index
    %8 = vector.load %arg8[%c0_15, %c0_16] : memref<1x64xf32, #tpu.memory_space<vmem>>, vector<1x64xf32>
    %c0_17 = arith.constant 0 : index
    %c0_18 = arith.constant 0 : index
    %9 = vector.load %arg9[%c0_17, %c0_18] : memref<64x32xf32, #tpu.memory_space<vmem>>, vector<64x32xf32>
    %c0_19 = arith.constant 0 : index
    %c0_20 = arith.constant 0 : index
    %10 = vector.load %arg10[%c0_19, %c0_20] : memref<1x32xf32, #tpu.memory_space<vmem>>, vector<1x32xf32>
    %c0_21 = arith.constant 0 : index
    %c0_22 = arith.constant 0 : index
    %11 = vector.load %arg11[%c0_21, %c0_22] : memref<1x32xf32, #tpu.memory_space<vmem>>, vector<1x32xf32>
    %c0_23 = arith.constant 0 : index
    %c0_24 = arith.constant 0 : index
    %12 = vector.load %arg12[%c0_23, %c0_24] : memref<1x32xf32, #tpu.memory_space<vmem>>, vector<1x32xf32>
    %cst = arith.constant dense<0.000000e+00> : vector<16x96xf32>
    %13 = tpu.matmul %0, %1, %cst {dimension_numbers = #tpu.dot_dimension_numbers<[1], [0], [0], [1], [0, 0, 1, 1], [], []>} : vector<16x32xf32>, vector<32x96xf32>, vector<16x96xf32> -> vector<16x96xf32>
    %14 = vector.broadcast %2 : vector<1x96xf32> to vector<16x96xf32>
    %15 = arith.addf %13, %14 : vector<16x96xf32>
    %16 = vector.extract_strided_slice %15 {offsets = [0, 0], sizes = [8, 4], strides = [1, 1]} : vector<16x96xf32> to vector<8x4xf32>
    %17 = vector.extract_strided_slice %15 {offsets = [0, 32], sizes = [8, 4], strides = [1, 1]} : vector<16x96xf32> to vector<8x4xf32>
    %18 = vector.extract_strided_slice %15 {offsets = [0, 64], sizes = [8, 4], strides = [1, 1]} : vector<16x96xf32> to vector<8x4xf32>
    %19 = vector.extract_strided_slice %15 {offsets = [8, 0], sizes = [8, 4], strides = [1, 1]} : vector<16x96xf32> to vector<8x4xf32>
    %20 = vector.extract_strided_slice %15 {offsets = [8, 32], sizes = [8, 4], strides = [1, 1]} : vector<16x96xf32> to vector<8x4xf32>
    %21 = vector.extract_strided_slice %15 {offsets = [8, 64], sizes = [8, 4], strides = [1, 1]} : vector<16x96xf32> to vector<8x4xf32>
    %22 = arith.mulf %16, %17 : vector<8x4xf32>
    %cst_25 = arith.constant dense<0.000000e+00> : vector<8xf32>
    %23 = vector.multi_reduction <add>, %22, %cst_25 [1] : vector<8x4xf32> to vector<8xf32>
    %24 = vector.shape_cast %23 : vector<8xf32> to vector<8x1xf32>
    %cst_26 = arith.constant 5.000000e-01 : f32
    %25 = vector.broadcast %cst_26 : f32 to vector<8x1xf32>
    %26 = arith.mulf %24, %25 : vector<8x1xf32>
    %27 = arith.mulf %16, %20 : vector<8x4xf32>
    %cst_27 = arith.constant dense<0.000000e+00> : vector<8xf32>
    %28 = vector.multi_reduction <add>, %27, %cst_27 [1] : vector<8x4xf32> to vector<8xf32>
    %29 = vector.shape_cast %28 : vector<8xf32> to vector<8x1xf32>
    %cst_28 = arith.constant 5.000000e-01 : f32
    %30 = vector.broadcast %cst_28 : f32 to vector<8x1xf32>
    %31 = arith.mulf %29, %30 : vector<8x1xf32>
    %32 = arith.maximumf %26, %31 : vector<8x1xf32>
    %33 = arith.subf %26, %32 : vector<8x1xf32>
    %34 = math.exp %33 : vector<8x1xf32>
    %35 = arith.subf %31, %32 : vector<8x1xf32>
    %36 = math.exp %35 : vector<8x1xf32>
    %37 = arith.addf %34, %36 : vector<8x1xf32>
    %38 = tpu.reciprocal %37 {approx = true} : vector<8x1xf32> -> vector<8x1xf32>
    %39 = vector.broadcast %34 : vector<8x1xf32> to vector<8x4xf32>
    %40 = arith.mulf %39, %18 : vector<8x4xf32>
    %41 = vector.broadcast %36 : vector<8x1xf32> to vector<8x4xf32>
    %42 = arith.mulf %41, %21 : vector<8x4xf32>
    %43 = arith.addf %40, %42 : vector<8x4xf32>
    %44 = vector.broadcast %38 : vector<8x1xf32> to vector<8x4xf32>
    %45 = arith.mulf %43, %44 : vector<8x4xf32>
    %46 = arith.mulf %19, %17 : vector<8x4xf32>
    %cst_29 = arith.constant dense<0.000000e+00> : vector<8xf32>
    %47 = vector.multi_reduction <add>, %46, %cst_29 [1] : vector<8x4xf32> to vector<8xf32>
    %48 = vector.shape_cast %47 : vector<8xf32> to vector<8x1xf32>
    %cst_30 = arith.constant 5.000000e-01 : f32
    %49 = vector.broadcast %cst_30 : f32 to vector<8x1xf32>
    %50 = arith.mulf %48, %49 : vector<8x1xf32>
    %51 = arith.mulf %19, %20 : vector<8x4xf32>
    %cst_31 = arith.constant dense<0.000000e+00> : vector<8xf32>
    %52 = vector.multi_reduction <add>, %51, %cst_31 [1] : vector<8x4xf32> to vector<8xf32>
    %53 = vector.shape_cast %52 : vector<8xf32> to vector<8x1xf32>
    %cst_32 = arith.constant 5.000000e-01 : f32
    %54 = vector.broadcast %cst_32 : f32 to vector<8x1xf32>
    %55 = arith.mulf %53, %54 : vector<8x1xf32>
    %56 = arith.maximumf %50, %55 : vector<8x1xf32>
    %57 = arith.subf %50, %56 : vector<8x1xf32>
    %58 = math.exp %57 : vector<8x1xf32>
    %59 = arith.subf %55, %56 : vector<8x1xf32>
    %60 = math.exp %59 : vector<8x1xf32>
    %61 = arith.addf %58, %60 : vector<8x1xf32>
    %62 = tpu.reciprocal %61 {approx = true} : vector<8x1xf32> -> vector<8x1xf32>
    %63 = vector.broadcast %58 : vector<8x1xf32> to vector<8x4xf32>
    %64 = arith.mulf %63, %18 : vector<8x4xf32>
    %65 = vector.broadcast %60 : vector<8x1xf32> to vector<8x4xf32>
    %66 = arith.mulf %65, %21 : vector<8x4xf32>
    %67 = arith.addf %64, %66 : vector<8x4xf32>
    %68 = vector.broadcast %62 : vector<8x1xf32> to vector<8x4xf32>
    %69 = arith.mulf %67, %68 : vector<8x4xf32>
    %70 = vector.extract_strided_slice %15 {offsets = [0, 4], sizes = [8, 4], strides = [1, 1]} : vector<16x96xf32> to vector<8x4xf32>
    %71 = vector.extract_strided_slice %15 {offsets = [0, 36], sizes = [8, 4], strides = [1, 1]} : vector<16x96xf32> to vector<8x4xf32>
    %72 = vector.extract_strided_slice %15 {offsets = [0, 68], sizes = [8, 4], strides = [1, 1]} : vector<16x96xf32> to vector<8x4xf32>
    %73 = vector.extract_strided_slice %15 {offsets = [8, 4], sizes = [8, 4], strides = [1, 1]} : vector<16x96xf32> to vector<8x4xf32>
    %74 = vector.extract_strided_slice %15 {offsets = [8, 36], sizes = [8, 4], strides = [1, 1]} : vector<16x96xf32> to vector<8x4xf32>
    %75 = vector.extract_strided_slice %15 {offsets = [8, 68], sizes = [8, 4], strides = [1, 1]} : vector<16x96xf32> to vector<8x4xf32>
    %76 = arith.mulf %70, %71 : vector<8x4xf32>
    %cst_33 = arith.constant dense<0.000000e+00> : vector<8xf32>
    %77 = vector.multi_reduction <add>, %76, %cst_33 [1] : vector<8x4xf32> to vector<8xf32>
    %78 = vector.shape_cast %77 : vector<8xf32> to vector<8x1xf32>
    %cst_34 = arith.constant 5.000000e-01 : f32
    %79 = vector.broadcast %cst_34 : f32 to vector<8x1xf32>
    %80 = arith.mulf %78, %79 : vector<8x1xf32>
    %81 = arith.mulf %70, %74 : vector<8x4xf32>
    %cst_35 = arith.constant dense<0.000000e+00> : vector<8xf32>
    %82 = vector.multi_reduction <add>, %81, %cst_35 [1] : vector<8x4xf32> to vector<8xf32>
    %83 = vector.shape_cast %82 : vector<8xf32> to vector<8x1xf32>
    %cst_36 = arith.constant 5.000000e-01 : f32
    %84 = vector.broadcast %cst_36 : f32 to vector<8x1xf32>
    %85 = arith.mulf %83, %84 : vector<8x1xf32>
    %86 = arith.maximumf %80, %85 : vector<8x1xf32>
    %87 = arith.subf %80, %86 : vector<8x1xf32>
    %88 = math.exp %87 : vector<8x1xf32>
    %89 = arith.subf %85, %86 : vector<8x1xf32>
    %90 = math.exp %89 : vector<8x1xf32>
    %91 = arith.addf %88, %90 : vector<8x1xf32>
    %92 = tpu.reciprocal %91 {approx = true} : vector<8x1xf32> -> vector<8x1xf32>
    %93 = vector.broadcast %88 : vector<8x1xf32> to vector<8x4xf32>
    %94 = arith.mulf %93, %72 : vector<8x4xf32>
    %95 = vector.broadcast %90 : vector<8x1xf32> to vector<8x4xf32>
    %96 = arith.mulf %95, %75 : vector<8x4xf32>
    %97 = arith.addf %94, %96 : vector<8x4xf32>
    %98 = vector.broadcast %92 : vector<8x1xf32> to vector<8x4xf32>
    %99 = arith.mulf %97, %98 : vector<8x4xf32>
    %100 = arith.mulf %73, %71 : vector<8x4xf32>
    %cst_37 = arith.constant dense<0.000000e+00> : vector<8xf32>
    %101 = vector.multi_reduction <add>, %100, %cst_37 [1] : vector<8x4xf32> to vector<8xf32>
    %102 = vector.shape_cast %101 : vector<8xf32> to vector<8x1xf32>
    %cst_38 = arith.constant 5.000000e-01 : f32
    %103 = vector.broadcast %cst_38 : f32 to vector<8x1xf32>
    %104 = arith.mulf %102, %103 : vector<8x1xf32>
    %105 = arith.mulf %73, %74 : vector<8x4xf32>
    %cst_39 = arith.constant dense<0.000000e+00> : vector<8xf32>
    %106 = vector.multi_reduction <add>, %105, %cst_39 [1] : vector<8x4xf32> to vector<8xf32>
    %107 = vector.shape_cast %106 : vector<8xf32> to vector<8x1xf32>
    %cst_40 = arith.constant 5.000000e-01 : f32
    %108 = vector.broadcast %cst_40 : f32 to vector<8x1xf32>
    %109 = arith.mulf %107, %108 : vector<8x1xf32>
    %110 = arith.maximumf %104, %109 : vector<8x1xf32>
    %111 = arith.subf %104, %110 : vector<8x1xf32>
    %112 = math.exp %111 : vector<8x1xf32>
    %113 = arith.subf %109, %110 : vector<8x1xf32>
    %114 = math.exp %113 : vector<8x1xf32>
    %115 = arith.addf %112, %114 : vector<8x1xf32>
    %116 = tpu.reciprocal %115 {approx = true} : vector<8x1xf32> -> vector<8x1xf32>
    %117 = vector.broadcast %112 : vector<8x1xf32> to vector<8x4xf32>
    %118 = arith.mulf %117, %72 : vector<8x4xf32>
    %119 = vector.broadcast %114 : vector<8x1xf32> to vector<8x4xf32>
    %120 = arith.mulf %119, %75 : vector<8x4xf32>
    %121 = arith.addf %118, %120 : vector<8x4xf32>
    %122 = vector.broadcast %116 : vector<8x1xf32> to vector<8x4xf32>
    %123 = arith.mulf %121, %122 : vector<8x4xf32>
    %124 = vector.extract_strided_slice %15 {offsets = [0, 8], sizes = [8, 4], strides = [1, 1]} : vector<16x96xf32> to vector<8x4xf32>
    %125 = vector.extract_strided_slice %15 {offsets = [0, 40], sizes = [8, 4], strides = [1, 1]} : vector<16x96xf32> to vector<8x4xf32>
    %126 = vector.extract_strided_slice %15 {offsets = [0, 72], sizes = [8, 4], strides = [1, 1]} : vector<16x96xf32> to vector<8x4xf32>
    %127 = vector.extract_strided_slice %15 {offsets = [8, 8], sizes = [8, 4], strides = [1, 1]} : vector<16x96xf32> to vector<8x4xf32>
    %128 = vector.extract_strided_slice %15 {offsets = [8, 40], sizes = [8, 4], strides = [1, 1]} : vector<16x96xf32> to vector<8x4xf32>
    %129 = vector.extract_strided_slice %15 {offsets = [8, 72], sizes = [8, 4], strides = [1, 1]} : vector<16x96xf32> to vector<8x4xf32>
    %130 = arith.mulf %124, %125 : vector<8x4xf32>
    %cst_41 = arith.constant dense<0.000000e+00> : vector<8xf32>
    %131 = vector.multi_reduction <add>, %130, %cst_41 [1] : vector<8x4xf32> to vector<8xf32>
    %132 = vector.shape_cast %131 : vector<8xf32> to vector<8x1xf32>
    %cst_42 = arith.constant 5.000000e-01 : f32
    %133 = vector.broadcast %cst_42 : f32 to vector<8x1xf32>
    %134 = arith.mulf %132, %133 : vector<8x1xf32>
    %135 = arith.mulf %124, %128 : vector<8x4xf32>
    %cst_43 = arith.constant dense<0.000000e+00> : vector<8xf32>
    %136 = vector.multi_reduction <add>, %135, %cst_43 [1] : vector<8x4xf32> to vector<8xf32>
    %137 = vector.shape_cast %136 : vector<8xf32> to vector<8x1xf32>
    %cst_44 = arith.constant 5.000000e-01 : f32
    %138 = vector.broadcast %cst_44 : f32 to vector<8x1xf32>
    %139 = arith.mulf %137, %138 : vector<8x1xf32>
    %140 = arith.maximumf %134, %139 : vector<8x1xf32>
    %141 = arith.subf %134, %140 : vector<8x1xf32>
    %142 = math.exp %141 : vector<8x1xf32>
    %143 = arith.subf %139, %140 : vector<8x1xf32>
    %144 = math.exp %143 : vector<8x1xf32>
    %145 = arith.addf %142, %144 : vector<8x1xf32>
    %146 = tpu.reciprocal %145 {approx = true} : vector<8x1xf32> -> vector<8x1xf32>
    %147 = vector.broadcast %142 : vector<8x1xf32> to vector<8x4xf32>
    %148 = arith.mulf %147, %126 : vector<8x4xf32>
    %149 = vector.broadcast %144 : vector<8x1xf32> to vector<8x4xf32>
    %150 = arith.mulf %149, %129 : vector<8x4xf32>
    %151 = arith.addf %148, %150 : vector<8x4xf32>
    %152 = vector.broadcast %146 : vector<8x1xf32> to vector<8x4xf32>
    %153 = arith.mulf %151, %152 : vector<8x4xf32>
    %154 = arith.mulf %127, %125 : vector<8x4xf32>
    %cst_45 = arith.constant dense<0.000000e+00> : vector<8xf32>
    %155 = vector.multi_reduction <add>, %154, %cst_45 [1] : vector<8x4xf32> to vector<8xf32>
    %156 = vector.shape_cast %155 : vector<8xf32> to vector<8x1xf32>
    %cst_46 = arith.constant 5.000000e-01 : f32
    %157 = vector.broadcast %cst_46 : f32 to vector<8x1xf32>
    %158 = arith.mulf %156, %157 : vector<8x1xf32>
    %159 = arith.mulf %127, %128 : vector<8x4xf32>
    %cst_47 = arith.constant dense<0.000000e+00> : vector<8xf32>
    %160 = vector.multi_reduction <add>, %159, %cst_47 [1] : vector<8x4xf32> to vector<8xf32>
    %161 = vector.shape_cast %160 : vector<8xf32> to vector<8x1xf32>
    %cst_48 = arith.constant 5.000000e-01 : f32
    %162 = vector.broadcast %cst_48 : f32 to vector<8x1xf32>
    %163 = arith.mulf %161, %162 : vector<8x1xf32>
    %164 = arith.maximumf %158, %163 : vector<8x1xf32>
    %165 = arith.subf %158, %164 : vector<8x1xf32>
    %166 = math.exp %165 : vector<8x1xf32>
    %167 = arith.subf %163, %164 : vector<8x1xf32>
    %168 = math.exp %167 : vector<8x1xf32>
    %169 = arith.addf %166, %168 : vector<8x1xf32>
    %170 = tpu.reciprocal %169 {approx = true} : vector<8x1xf32> -> vector<8x1xf32>
    %171 = vector.broadcast %166 : vector<8x1xf32> to vector<8x4xf32>
    %172 = arith.mulf %171, %126 : vector<8x4xf32>
    %173 = vector.broadcast %168 : vector<8x1xf32> to vector<8x4xf32>
    %174 = arith.mulf %173, %129 : vector<8x4xf32>
    %175 = arith.addf %172, %174 : vector<8x4xf32>
    %176 = vector.broadcast %170 : vector<8x1xf32> to vector<8x4xf32>
    %177 = arith.mulf %175, %176 : vector<8x4xf32>
    %178 = vector.extract_strided_slice %15 {offsets = [0, 12], sizes = [8, 4], strides = [1, 1]} : vector<16x96xf32> to vector<8x4xf32>
    %179 = vector.extract_strided_slice %15 {offsets = [0, 44], sizes = [8, 4], strides = [1, 1]} : vector<16x96xf32> to vector<8x4xf32>
    %180 = vector.extract_strided_slice %15 {offsets = [0, 76], sizes = [8, 4], strides = [1, 1]} : vector<16x96xf32> to vector<8x4xf32>
    %181 = vector.extract_strided_slice %15 {offsets = [8, 12], sizes = [8, 4], strides = [1, 1]} : vector<16x96xf32> to vector<8x4xf32>
    %182 = vector.extract_strided_slice %15 {offsets = [8, 44], sizes = [8, 4], strides = [1, 1]} : vector<16x96xf32> to vector<8x4xf32>
    %183 = vector.extract_strided_slice %15 {offsets = [8, 76], sizes = [8, 4], strides = [1, 1]} : vector<16x96xf32> to vector<8x4xf32>
    %184 = arith.mulf %178, %179 : vector<8x4xf32>
    %cst_49 = arith.constant dense<0.000000e+00> : vector<8xf32>
    %185 = vector.multi_reduction <add>, %184, %cst_49 [1] : vector<8x4xf32> to vector<8xf32>
    %186 = vector.shape_cast %185 : vector<8xf32> to vector<8x1xf32>
    %cst_50 = arith.constant 5.000000e-01 : f32
    %187 = vector.broadcast %cst_50 : f32 to vector<8x1xf32>
    %188 = arith.mulf %186, %187 : vector<8x1xf32>
    %189 = arith.mulf %178, %182 : vector<8x4xf32>
    %cst_51 = arith.constant dense<0.000000e+00> : vector<8xf32>
    %190 = vector.multi_reduction <add>, %189, %cst_51 [1] : vector<8x4xf32> to vector<8xf32>
    %191 = vector.shape_cast %190 : vector<8xf32> to vector<8x1xf32>
    %cst_52 = arith.constant 5.000000e-01 : f32
    %192 = vector.broadcast %cst_52 : f32 to vector<8x1xf32>
    %193 = arith.mulf %191, %192 : vector<8x1xf32>
    %194 = arith.maximumf %188, %193 : vector<8x1xf32>
    %195 = arith.subf %188, %194 : vector<8x1xf32>
    %196 = math.exp %195 : vector<8x1xf32>
    %197 = arith.subf %193, %194 : vector<8x1xf32>
    %198 = math.exp %197 : vector<8x1xf32>
    %199 = arith.addf %196, %198 : vector<8x1xf32>
    %200 = tpu.reciprocal %199 {approx = true} : vector<8x1xf32> -> vector<8x1xf32>
    %201 = vector.broadcast %196 : vector<8x1xf32> to vector<8x4xf32>
    %202 = arith.mulf %201, %180 : vector<8x4xf32>
    %203 = vector.broadcast %198 : vector<8x1xf32> to vector<8x4xf32>
    %204 = arith.mulf %203, %183 : vector<8x4xf32>
    %205 = arith.addf %202, %204 : vector<8x4xf32>
    %206 = vector.broadcast %200 : vector<8x1xf32> to vector<8x4xf32>
    %207 = arith.mulf %205, %206 : vector<8x4xf32>
    %208 = arith.mulf %181, %179 : vector<8x4xf32>
    %cst_53 = arith.constant dense<0.000000e+00> : vector<8xf32>
    %209 = vector.multi_reduction <add>, %208, %cst_53 [1] : vector<8x4xf32> to vector<8xf32>
    %210 = vector.shape_cast %209 : vector<8xf32> to vector<8x1xf32>
    %cst_54 = arith.constant 5.000000e-01 : f32
    %211 = vector.broadcast %cst_54 : f32 to vector<8x1xf32>
    %212 = arith.mulf %210, %211 : vector<8x1xf32>
    %213 = arith.mulf %181, %182 : vector<8x4xf32>
    %cst_55 = arith.constant dense<0.000000e+00> : vector<8xf32>
    %214 = vector.multi_reduction <add>, %213, %cst_55 [1] : vector<8x4xf32> to vector<8xf32>
    %215 = vector.shape_cast %214 : vector<8xf32> to vector<8x1xf32>
    %cst_56 = arith.constant 5.000000e-01 : f32
    %216 = vector.broadcast %cst_56 : f32 to vector<8x1xf32>
    %217 = arith.mulf %215, %216 : vector<8x1xf32>
    %218 = arith.maximumf %212, %217 : vector<8x1xf32>
    %219 = arith.subf %212, %218 : vector<8x1xf32>
    %220 = math.exp %219 : vector<8x1xf32>
    %221 = arith.subf %217, %218 : vector<8x1xf32>
    %222 = math.exp %221 : vector<8x1xf32>
    %223 = arith.addf %220, %222 : vector<8x1xf32>
    %224 = tpu.reciprocal %223 {approx = true} : vector<8x1xf32> -> vector<8x1xf32>
    %225 = vector.broadcast %220 : vector<8x1xf32> to vector<8x4xf32>
    %226 = arith.mulf %225, %180 : vector<8x4xf32>
    %227 = vector.broadcast %222 : vector<8x1xf32> to vector<8x4xf32>
    %228 = arith.mulf %227, %183 : vector<8x4xf32>
    %229 = arith.addf %226, %228 : vector<8x4xf32>
    %230 = vector.broadcast %224 : vector<8x1xf32> to vector<8x4xf32>
    %231 = arith.mulf %229, %230 : vector<8x4xf32>
    %232 = vector.extract_strided_slice %15 {offsets = [0, 16], sizes = [8, 4], strides = [1, 1]} : vector<16x96xf32> to vector<8x4xf32>
    %233 = vector.extract_strided_slice %15 {offsets = [0, 48], sizes = [8, 4], strides = [1, 1]} : vector<16x96xf32> to vector<8x4xf32>
    %234 = vector.extract_strided_slice %15 {offsets = [0, 80], sizes = [8, 4], strides = [1, 1]} : vector<16x96xf32> to vector<8x4xf32>
    %235 = vector.extract_strided_slice %15 {offsets = [8, 16], sizes = [8, 4], strides = [1, 1]} : vector<16x96xf32> to vector<8x4xf32>
    %236 = vector.extract_strided_slice %15 {offsets = [8, 48], sizes = [8, 4], strides = [1, 1]} : vector<16x96xf32> to vector<8x4xf32>
    %237 = vector.extract_strided_slice %15 {offsets = [8, 80], sizes = [8, 4], strides = [1, 1]} : vector<16x96xf32> to vector<8x4xf32>
    %238 = arith.mulf %232, %233 : vector<8x4xf32>
    %cst_57 = arith.constant dense<0.000000e+00> : vector<8xf32>
    %239 = vector.multi_reduction <add>, %238, %cst_57 [1] : vector<8x4xf32> to vector<8xf32>
    %240 = vector.shape_cast %239 : vector<8xf32> to vector<8x1xf32>
    %cst_58 = arith.constant 5.000000e-01 : f32
    %241 = vector.broadcast %cst_58 : f32 to vector<8x1xf32>
    %242 = arith.mulf %240, %241 : vector<8x1xf32>
    %243 = arith.mulf %232, %236 : vector<8x4xf32>
    %cst_59 = arith.constant dense<0.000000e+00> : vector<8xf32>
    %244 = vector.multi_reduction <add>, %243, %cst_59 [1] : vector<8x4xf32> to vector<8xf32>
    %245 = vector.shape_cast %244 : vector<8xf32> to vector<8x1xf32>
    %cst_60 = arith.constant 5.000000e-01 : f32
    %246 = vector.broadcast %cst_60 : f32 to vector<8x1xf32>
    %247 = arith.mulf %245, %246 : vector<8x1xf32>
    %248 = arith.maximumf %242, %247 : vector<8x1xf32>
    %249 = arith.subf %242, %248 : vector<8x1xf32>
    %250 = math.exp %249 : vector<8x1xf32>
    %251 = arith.subf %247, %248 : vector<8x1xf32>
    %252 = math.exp %251 : vector<8x1xf32>
    %253 = arith.addf %250, %252 : vector<8x1xf32>
    %254 = tpu.reciprocal %253 {approx = true} : vector<8x1xf32> -> vector<8x1xf32>
    %255 = vector.broadcast %250 : vector<8x1xf32> to vector<8x4xf32>
    %256 = arith.mulf %255, %234 : vector<8x4xf32>
    %257 = vector.broadcast %252 : vector<8x1xf32> to vector<8x4xf32>
    %258 = arith.mulf %257, %237 : vector<8x4xf32>
    %259 = arith.addf %256, %258 : vector<8x4xf32>
    %260 = vector.broadcast %254 : vector<8x1xf32> to vector<8x4xf32>
    %261 = arith.mulf %259, %260 : vector<8x4xf32>
    %262 = arith.mulf %235, %233 : vector<8x4xf32>
    %cst_61 = arith.constant dense<0.000000e+00> : vector<8xf32>
    %263 = vector.multi_reduction <add>, %262, %cst_61 [1] : vector<8x4xf32> to vector<8xf32>
    %264 = vector.shape_cast %263 : vector<8xf32> to vector<8x1xf32>
    %cst_62 = arith.constant 5.000000e-01 : f32
    %265 = vector.broadcast %cst_62 : f32 to vector<8x1xf32>
    %266 = arith.mulf %264, %265 : vector<8x1xf32>
    %267 = arith.mulf %235, %236 : vector<8x4xf32>
    %cst_63 = arith.constant dense<0.000000e+00> : vector<8xf32>
    %268 = vector.multi_reduction <add>, %267, %cst_63 [1] : vector<8x4xf32> to vector<8xf32>
    %269 = vector.shape_cast %268 : vector<8xf32> to vector<8x1xf32>
    %cst_64 = arith.constant 5.000000e-01 : f32
    %270 = vector.broadcast %cst_64 : f32 to vector<8x1xf32>
    %271 = arith.mulf %269, %270 : vector<8x1xf32>
    %272 = arith.maximumf %266, %271 : vector<8x1xf32>
    %273 = arith.subf %266, %272 : vector<8x1xf32>
    %274 = math.exp %273 : vector<8x1xf32>
    %275 = arith.subf %271, %272 : vector<8x1xf32>
    %276 = math.exp %275 : vector<8x1xf32>
    %277 = arith.addf %274, %276 : vector<8x1xf32>
    %278 = tpu.reciprocal %277 {approx = true} : vector<8x1xf32> -> vector<8x1xf32>
    %279 = vector.broadcast %274 : vector<8x1xf32> to vector<8x4xf32>
    %280 = arith.mulf %279, %234 : vector<8x4xf32>
    %281 = vector.broadcast %276 : vector<8x1xf32> to vector<8x4xf32>
    %282 = arith.mulf %281, %237 : vector<8x4xf32>
    %283 = arith.addf %280, %282 : vector<8x4xf32>
    %284 = vector.broadcast %278 : vector<8x1xf32> to vector<8x4xf32>
    %285 = arith.mulf %283, %284 : vector<8x4xf32>
    %286 = vector.extract_strided_slice %15 {offsets = [0, 20], sizes = [8, 4], strides = [1, 1]} : vector<16x96xf32> to vector<8x4xf32>
    %287 = vector.extract_strided_slice %15 {offsets = [0, 52], sizes = [8, 4], strides = [1, 1]} : vector<16x96xf32> to vector<8x4xf32>
    %288 = vector.extract_strided_slice %15 {offsets = [0, 84], sizes = [8, 4], strides = [1, 1]} : vector<16x96xf32> to vector<8x4xf32>
    %289 = vector.extract_strided_slice %15 {offsets = [8, 20], sizes = [8, 4], strides = [1, 1]} : vector<16x96xf32> to vector<8x4xf32>
    %290 = vector.extract_strided_slice %15 {offsets = [8, 52], sizes = [8, 4], strides = [1, 1]} : vector<16x96xf32> to vector<8x4xf32>
    %291 = vector.extract_strided_slice %15 {offsets = [8, 84], sizes = [8, 4], strides = [1, 1]} : vector<16x96xf32> to vector<8x4xf32>
    %292 = arith.mulf %286, %287 : vector<8x4xf32>
    %cst_65 = arith.constant dense<0.000000e+00> : vector<8xf32>
    %293 = vector.multi_reduction <add>, %292, %cst_65 [1] : vector<8x4xf32> to vector<8xf32>
    %294 = vector.shape_cast %293 : vector<8xf32> to vector<8x1xf32>
    %cst_66 = arith.constant 5.000000e-01 : f32
    %295 = vector.broadcast %cst_66 : f32 to vector<8x1xf32>
    %296 = arith.mulf %294, %295 : vector<8x1xf32>
    %297 = arith.mulf %286, %290 : vector<8x4xf32>
    %cst_67 = arith.constant dense<0.000000e+00> : vector<8xf32>
    %298 = vector.multi_reduction <add>, %297, %cst_67 [1] : vector<8x4xf32> to vector<8xf32>
    %299 = vector.shape_cast %298 : vector<8xf32> to vector<8x1xf32>
    %cst_68 = arith.constant 5.000000e-01 : f32
    %300 = vector.broadcast %cst_68 : f32 to vector<8x1xf32>
    %301 = arith.mulf %299, %300 : vector<8x1xf32>
    %302 = arith.maximumf %296, %301 : vector<8x1xf32>
    %303 = arith.subf %296, %302 : vector<8x1xf32>
    %304 = math.exp %303 : vector<8x1xf32>
    %305 = arith.subf %301, %302 : vector<8x1xf32>
    %306 = math.exp %305 : vector<8x1xf32>
    %307 = arith.addf %304, %306 : vector<8x1xf32>
    %308 = tpu.reciprocal %307 {approx = true} : vector<8x1xf32> -> vector<8x1xf32>
    %309 = vector.broadcast %304 : vector<8x1xf32> to vector<8x4xf32>
    %310 = arith.mulf %309, %288 : vector<8x4xf32>
    %311 = vector.broadcast %306 : vector<8x1xf32> to vector<8x4xf32>
    %312 = arith.mulf %311, %291 : vector<8x4xf32>
    %313 = arith.addf %310, %312 : vector<8x4xf32>
    %314 = vector.broadcast %308 : vector<8x1xf32> to vector<8x4xf32>
    %315 = arith.mulf %313, %314 : vector<8x4xf32>
    %316 = arith.mulf %289, %287 : vector<8x4xf32>
    %cst_69 = arith.constant dense<0.000000e+00> : vector<8xf32>
    %317 = vector.multi_reduction <add>, %316, %cst_69 [1] : vector<8x4xf32> to vector<8xf32>
    %318 = vector.shape_cast %317 : vector<8xf32> to vector<8x1xf32>
    %cst_70 = arith.constant 5.000000e-01 : f32
    %319 = vector.broadcast %cst_70 : f32 to vector<8x1xf32>
    %320 = arith.mulf %318, %319 : vector<8x1xf32>
    %321 = arith.mulf %289, %290 : vector<8x4xf32>
    %cst_71 = arith.constant dense<0.000000e+00> : vector<8xf32>
    %322 = vector.multi_reduction <add>, %321, %cst_71 [1] : vector<8x4xf32> to vector<8xf32>
    %323 = vector.shape_cast %322 : vector<8xf32> to vector<8x1xf32>
    %cst_72 = arith.constant 5.000000e-01 : f32
    %324 = vector.broadcast %cst_72 : f32 to vector<8x1xf32>
    %325 = arith.mulf %323, %324 : vector<8x1xf32>
    %326 = arith.maximumf %320, %325 : vector<8x1xf32>
    %327 = arith.subf %320, %326 : vector<8x1xf32>
    %328 = math.exp %327 : vector<8x1xf32>
    %329 = arith.subf %325, %326 : vector<8x1xf32>
    %330 = math.exp %329 : vector<8x1xf32>
    %331 = arith.addf %328, %330 : vector<8x1xf32>
    %332 = tpu.reciprocal %331 {approx = true} : vector<8x1xf32> -> vector<8x1xf32>
    %333 = vector.broadcast %328 : vector<8x1xf32> to vector<8x4xf32>
    %334 = arith.mulf %333, %288 : vector<8x4xf32>
    %335 = vector.broadcast %330 : vector<8x1xf32> to vector<8x4xf32>
    %336 = arith.mulf %335, %291 : vector<8x4xf32>
    %337 = arith.addf %334, %336 : vector<8x4xf32>
    %338 = vector.broadcast %332 : vector<8x1xf32> to vector<8x4xf32>
    %339 = arith.mulf %337, %338 : vector<8x4xf32>
    %340 = vector.extract_strided_slice %15 {offsets = [0, 24], sizes = [8, 4], strides = [1, 1]} : vector<16x96xf32> to vector<8x4xf32>
    %341 = vector.extract_strided_slice %15 {offsets = [0, 56], sizes = [8, 4], strides = [1, 1]} : vector<16x96xf32> to vector<8x4xf32>
    %342 = vector.extract_strided_slice %15 {offsets = [0, 88], sizes = [8, 4], strides = [1, 1]} : vector<16x96xf32> to vector<8x4xf32>
    %343 = vector.extract_strided_slice %15 {offsets = [8, 24], sizes = [8, 4], strides = [1, 1]} : vector<16x96xf32> to vector<8x4xf32>
    %344 = vector.extract_strided_slice %15 {offsets = [8, 56], sizes = [8, 4], strides = [1, 1]} : vector<16x96xf32> to vector<8x4xf32>
    %345 = vector.extract_strided_slice %15 {offsets = [8, 88], sizes = [8, 4], strides = [1, 1]} : vector<16x96xf32> to vector<8x4xf32>
    %346 = arith.mulf %340, %341 : vector<8x4xf32>
    %cst_73 = arith.constant dense<0.000000e+00> : vector<8xf32>
    %347 = vector.multi_reduction <add>, %346, %cst_73 [1] : vector<8x4xf32> to vector<8xf32>
    %348 = vector.shape_cast %347 : vector<8xf32> to vector<8x1xf32>
    %cst_74 = arith.constant 5.000000e-01 : f32
    %349 = vector.broadcast %cst_74 : f32 to vector<8x1xf32>
    %350 = arith.mulf %348, %349 : vector<8x1xf32>
    %351 = arith.mulf %340, %344 : vector<8x4xf32>
    %cst_75 = arith.constant dense<0.000000e+00> : vector<8xf32>
    %352 = vector.multi_reduction <add>, %351, %cst_75 [1] : vector<8x4xf32> to vector<8xf32>
    %353 = vector.shape_cast %352 : vector<8xf32> to vector<8x1xf32>
    %cst_76 = arith.constant 5.000000e-01 : f32
    %354 = vector.broadcast %cst_76 : f32 to vector<8x1xf32>
    %355 = arith.mulf %353, %354 : vector<8x1xf32>
    %356 = arith.maximumf %350, %355 : vector<8x1xf32>
    %357 = arith.subf %350, %356 : vector<8x1xf32>
    %358 = math.exp %357 : vector<8x1xf32>
    %359 = arith.subf %355, %356 : vector<8x1xf32>
    %360 = math.exp %359 : vector<8x1xf32>
    %361 = arith.addf %358, %360 : vector<8x1xf32>
    %362 = tpu.reciprocal %361 {approx = true} : vector<8x1xf32> -> vector<8x1xf32>
    %363 = vector.broadcast %358 : vector<8x1xf32> to vector<8x4xf32>
    %364 = arith.mulf %363, %342 : vector<8x4xf32>
    %365 = vector.broadcast %360 : vector<8x1xf32> to vector<8x4xf32>
    %366 = arith.mulf %365, %345 : vector<8x4xf32>
    %367 = arith.addf %364, %366 : vector<8x4xf32>
    %368 = vector.broadcast %362 : vector<8x1xf32> to vector<8x4xf32>
    %369 = arith.mulf %367, %368 : vector<8x4xf32>
    %370 = arith.mulf %343, %341 : vector<8x4xf32>
    %cst_77 = arith.constant dense<0.000000e+00> : vector<8xf32>
    %371 = vector.multi_reduction <add>, %370, %cst_77 [1] : vector<8x4xf32> to vector<8xf32>
    %372 = vector.shape_cast %371 : vector<8xf32> to vector<8x1xf32>
    %cst_78 = arith.constant 5.000000e-01 : f32
    %373 = vector.broadcast %cst_78 : f32 to vector<8x1xf32>
    %374 = arith.mulf %372, %373 : vector<8x1xf32>
    %375 = arith.mulf %343, %344 : vector<8x4xf32>
    %cst_79 = arith.constant dense<0.000000e+00> : vector<8xf32>
    %376 = vector.multi_reduction <add>, %375, %cst_79 [1] : vector<8x4xf32> to vector<8xf32>
    %377 = vector.shape_cast %376 : vector<8xf32> to vector<8x1xf32>
    %cst_80 = arith.constant 5.000000e-01 : f32
    %378 = vector.broadcast %cst_80 : f32 to vector<8x1xf32>
    %379 = arith.mulf %377, %378 : vector<8x1xf32>
    %380 = arith.maximumf %374, %379 : vector<8x1xf32>
    %381 = arith.subf %374, %380 : vector<8x1xf32>
    %382 = math.exp %381 : vector<8x1xf32>
    %383 = arith.subf %379, %380 : vector<8x1xf32>
    %384 = math.exp %383 : vector<8x1xf32>
    %385 = arith.addf %382, %384 : vector<8x1xf32>
    %386 = tpu.reciprocal %385 {approx = true} : vector<8x1xf32> -> vector<8x1xf32>
    %387 = vector.broadcast %382 : vector<8x1xf32> to vector<8x4xf32>
    %388 = arith.mulf %387, %342 : vector<8x4xf32>
    %389 = vector.broadcast %384 : vector<8x1xf32> to vector<8x4xf32>
    %390 = arith.mulf %389, %345 : vector<8x4xf32>
    %391 = arith.addf %388, %390 : vector<8x4xf32>
    %392 = vector.broadcast %386 : vector<8x1xf32> to vector<8x4xf32>
    %393 = arith.mulf %391, %392 : vector<8x4xf32>
    %394 = vector.extract_strided_slice %15 {offsets = [0, 28], sizes = [8, 4], strides = [1, 1]} : vector<16x96xf32> to vector<8x4xf32>
    %395 = vector.extract_strided_slice %15 {offsets = [0, 60], sizes = [8, 4], strides = [1, 1]} : vector<16x96xf32> to vector<8x4xf32>
    %396 = vector.extract_strided_slice %15 {offsets = [0, 92], sizes = [8, 4], strides = [1, 1]} : vector<16x96xf32> to vector<8x4xf32>
    %397 = vector.extract_strided_slice %15 {offsets = [8, 28], sizes = [8, 4], strides = [1, 1]} : vector<16x96xf32> to vector<8x4xf32>
    %398 = vector.extract_strided_slice %15 {offsets = [8, 60], sizes = [8, 4], strides = [1, 1]} : vector<16x96xf32> to vector<8x4xf32>
    %399 = vector.extract_strided_slice %15 {offsets = [8, 92], sizes = [8, 4], strides = [1, 1]} : vector<16x96xf32> to vector<8x4xf32>
    %400 = arith.mulf %394, %395 : vector<8x4xf32>
    %cst_81 = arith.constant dense<0.000000e+00> : vector<8xf32>
    %401 = vector.multi_reduction <add>, %400, %cst_81 [1] : vector<8x4xf32> to vector<8xf32>
    %402 = vector.shape_cast %401 : vector<8xf32> to vector<8x1xf32>
    %cst_82 = arith.constant 5.000000e-01 : f32
    %403 = vector.broadcast %cst_82 : f32 to vector<8x1xf32>
    %404 = arith.mulf %402, %403 : vector<8x1xf32>
    %405 = arith.mulf %394, %398 : vector<8x4xf32>
    %cst_83 = arith.constant dense<0.000000e+00> : vector<8xf32>
    %406 = vector.multi_reduction <add>, %405, %cst_83 [1] : vector<8x4xf32> to vector<8xf32>
    %407 = vector.shape_cast %406 : vector<8xf32> to vector<8x1xf32>
    %cst_84 = arith.constant 5.000000e-01 : f32
    %408 = vector.broadcast %cst_84 : f32 to vector<8x1xf32>
    %409 = arith.mulf %407, %408 : vector<8x1xf32>
    %410 = arith.maximumf %404, %409 : vector<8x1xf32>
    %411 = arith.subf %404, %410 : vector<8x1xf32>
    %412 = math.exp %411 : vector<8x1xf32>
    %413 = arith.subf %409, %410 : vector<8x1xf32>
    %414 = math.exp %413 : vector<8x1xf32>
    %415 = arith.addf %412, %414 : vector<8x1xf32>
    %416 = tpu.reciprocal %415 {approx = true} : vector<8x1xf32> -> vector<8x1xf32>
    %417 = vector.broadcast %412 : vector<8x1xf32> to vector<8x4xf32>
    %418 = arith.mulf %417, %396 : vector<8x4xf32>
    %419 = vector.broadcast %414 : vector<8x1xf32> to vector<8x4xf32>
    %420 = arith.mulf %419, %399 : vector<8x4xf32>
    %421 = arith.addf %418, %420 : vector<8x4xf32>
    %422 = vector.broadcast %416 : vector<8x1xf32> to vector<8x4xf32>
    %423 = arith.mulf %421, %422 : vector<8x4xf32>
    %424 = arith.mulf %397, %395 : vector<8x4xf32>
    %cst_85 = arith.constant dense<0.000000e+00> : vector<8xf32>
    %425 = vector.multi_reduction <add>, %424, %cst_85 [1] : vector<8x4xf32> to vector<8xf32>
    %426 = vector.shape_cast %425 : vector<8xf32> to vector<8x1xf32>
    %cst_86 = arith.constant 5.000000e-01 : f32
    %427 = vector.broadcast %cst_86 : f32 to vector<8x1xf32>
    %428 = arith.mulf %426, %427 : vector<8x1xf32>
    %429 = arith.mulf %397, %398 : vector<8x4xf32>
    %cst_87 = arith.constant dense<0.000000e+00> : vector<8xf32>
    %430 = vector.multi_reduction <add>, %429, %cst_87 [1] : vector<8x4xf32> to vector<8xf32>
    %431 = vector.shape_cast %430 : vector<8xf32> to vector<8x1xf32>
    %cst_88 = arith.constant 5.000000e-01 : f32
    %432 = vector.broadcast %cst_88 : f32 to vector<8x1xf32>
    %433 = arith.mulf %431, %432 : vector<8x1xf32>
    %434 = arith.maximumf %428, %433 : vector<8x1xf32>
    %435 = arith.subf %428, %434 : vector<8x1xf32>
    %436 = math.exp %435 : vector<8x1xf32>
    %437 = arith.subf %433, %434 : vector<8x1xf32>
    %438 = math.exp %437 : vector<8x1xf32>
    %439 = arith.addf %436, %438 : vector<8x1xf32>
    %440 = tpu.reciprocal %439 {approx = true} : vector<8x1xf32> -> vector<8x1xf32>
    %441 = vector.broadcast %436 : vector<8x1xf32> to vector<8x4xf32>
    %442 = arith.mulf %441, %396 : vector<8x4xf32>
    %443 = vector.broadcast %438 : vector<8x1xf32> to vector<8x4xf32>
    %444 = arith.mulf %443, %399 : vector<8x4xf32>
    %445 = arith.addf %442, %444 : vector<8x4xf32>
    %446 = vector.broadcast %440 : vector<8x1xf32> to vector<8x4xf32>
    %447 = arith.mulf %445, %446 : vector<8x4xf32>
    %448 = tpu.concatenate %45, %99, %153, %207, %261, %315, %369, %423 in 1 : vector<8x4xf32>, vector<8x4xf32>, vector<8x4xf32>, vector<8x4xf32>, vector<8x4xf32>, vector<8x4xf32>, vector<8x4xf32>, vector<8x4xf32> -> vector<8x32xf32>
    %449 = tpu.concatenate %69, %123, %177, %231, %285, %339, %393, %447 in 1 : vector<8x4xf32>, vector<8x4xf32>, vector<8x4xf32>, vector<8x4xf32>, vector<8x4xf32>, vector<8x4xf32>, vector<8x4xf32>, vector<8x4xf32> -> vector<8x32xf32>
    %450 = tpu.concatenate %448, %449 in 0 : vector<8x32xf32>, vector<8x32xf32> -> vector<16x32xf32>
    %cst_89 = arith.constant dense<0.000000e+00> : vector<16x32xf32>
    %451 = tpu.matmul %450, %3, %cst_89 {dimension_numbers = #tpu.dot_dimension_numbers<[1], [0], [0], [1], [0, 0, 1, 1], [], []>} : vector<16x32xf32>, vector<32x32xf32>, vector<16x32xf32> -> vector<16x32xf32>
    %452 = arith.addf %0, %451 : vector<16x32xf32>
    %453 = vector.broadcast %4 : vector<1x32xf32> to vector<16x32xf32>
    %454 = arith.addf %452, %453 : vector<16x32xf32>
    %cst_90 = arith.constant dense<0.000000e+00> : vector<16xf32>
    %455 = vector.multi_reduction <add>, %454, %cst_90 [1] : vector<16x32xf32> to vector<16xf32>
    %456 = vector.shape_cast %455 : vector<16xf32> to vector<16x1xf32>
    %cst_91 = arith.constant 3.200000e+01 : f32
    %457 = vector.broadcast %cst_91 : f32 to vector<16x1xf32>
    %458 = arith.divf %456, %457 : vector<16x1xf32>
    %459 = vector.broadcast %458 : vector<16x1xf32> to vector<16x32xf32>
    %460 = arith.subf %454, %459 : vector<16x32xf32>
    %461 = arith.mulf %460, %460 : vector<16x32xf32>
    %cst_92 = arith.constant dense<0.000000e+00> : vector<16xf32>
    %462 = vector.multi_reduction <add>, %461, %cst_92 [1] : vector<16x32xf32> to vector<16xf32>
    %463 = vector.shape_cast %462 : vector<16xf32> to vector<16x1xf32>
    %cst_93 = arith.constant 3.200000e+01 : f32
    %464 = vector.broadcast %cst_93 : f32 to vector<16x1xf32>
    %465 = arith.divf %463, %464 : vector<16x1xf32>
    %466 = vector.broadcast %458 : vector<16x1xf32> to vector<16x32xf32>
    %467 = arith.subf %454, %466 : vector<16x32xf32>
    %cst_94 = arith.constant 9.99999974E-6 : f32
    %468 = vector.broadcast %cst_94 : f32 to vector<16x1xf32>
    %469 = arith.addf %465, %468 : vector<16x1xf32>
    %470 = math.rsqrt %469 : vector<16x1xf32>
    %471 = vector.broadcast %470 : vector<16x1xf32> to vector<16x32xf32>
    %472 = arith.mulf %467, %471 : vector<16x32xf32>
    %473 = vector.broadcast %5 : vector<1x32xf32> to vector<16x32xf32>
    %474 = arith.mulf %472, %473 : vector<16x32xf32>
    %475 = vector.broadcast %6 : vector<1x32xf32> to vector<16x32xf32>
    %476 = arith.addf %474, %475 : vector<16x32xf32>
    %cst_95 = arith.constant dense<0.000000e+00> : vector<16x64xf32>
    %477 = tpu.matmul %476, %7, %cst_95 {dimension_numbers = #tpu.dot_dimension_numbers<[1], [0], [0], [1], [0, 0, 1, 1], [], []>} : vector<16x32xf32>, vector<32x64xf32>, vector<16x64xf32> -> vector<16x64xf32>
    %478 = vector.broadcast %8 : vector<1x64xf32> to vector<16x64xf32>
    %479 = arith.addf %477, %478 : vector<16x64xf32>
    %cst_96 = arith.constant 0.000000e+00 : f32
    %480 = vector.broadcast %cst_96 : f32 to vector<16x64xf32>
    %481 = arith.maximumf %479, %480 : vector<16x64xf32>
    %cst_97 = arith.constant dense<0.000000e+00> : vector<16x32xf32>
    %482 = tpu.matmul %481, %9, %cst_97 {dimension_numbers = #tpu.dot_dimension_numbers<[1], [0], [0], [1], [0, 0, 1, 1], [], []>} : vector<16x64xf32>, vector<64x32xf32>, vector<16x32xf32> -> vector<16x32xf32>
    %483 = vector.broadcast %10 : vector<1x32xf32> to vector<16x32xf32>
    %484 = arith.addf %482, %483 : vector<16x32xf32>
    %485 = arith.addf %476, %484 : vector<16x32xf32>
    %cst_98 = arith.constant dense<0.000000e+00> : vector<16xf32>
    %486 = vector.multi_reduction <add>, %485, %cst_98 [1] : vector<16x32xf32> to vector<16xf32>
    %487 = vector.shape_cast %486 : vector<16xf32> to vector<16x1xf32>
    %cst_99 = arith.constant 3.200000e+01 : f32
    %488 = vector.broadcast %cst_99 : f32 to vector<16x1xf32>
    %489 = arith.divf %487, %488 : vector<16x1xf32>
    %490 = vector.broadcast %489 : vector<16x1xf32> to vector<16x32xf32>
    %491 = arith.subf %485, %490 : vector<16x32xf32>
    %492 = arith.mulf %491, %491 : vector<16x32xf32>
    %cst_100 = arith.constant dense<0.000000e+00> : vector<16xf32>
    %493 = vector.multi_reduction <add>, %492, %cst_100 [1] : vector<16x32xf32> to vector<16xf32>
    %494 = vector.shape_cast %493 : vector<16xf32> to vector<16x1xf32>
    %cst_101 = arith.constant 3.200000e+01 : f32
    %495 = vector.broadcast %cst_101 : f32 to vector<16x1xf32>
    %496 = arith.divf %494, %495 : vector<16x1xf32>
    %497 = vector.broadcast %489 : vector<16x1xf32> to vector<16x32xf32>
    %498 = arith.subf %485, %497 : vector<16x32xf32>
    %cst_102 = arith.constant 9.99999974E-6 : f32
    %499 = vector.broadcast %cst_102 : f32 to vector<16x1xf32>
    %500 = arith.addf %496, %499 : vector<16x1xf32>
    %501 = math.rsqrt %500 : vector<16x1xf32>
    %502 = vector.broadcast %501 : vector<16x1xf32> to vector<16x32xf32>
    %503 = arith.mulf %498, %502 : vector<16x32xf32>
    %504 = vector.broadcast %11 : vector<1x32xf32> to vector<16x32xf32>
    %505 = arith.mulf %503, %504 : vector<16x32xf32>
    %506 = vector.broadcast %12 : vector<1x32xf32> to vector<16x32xf32>
    %507 = arith.addf %505, %506 : vector<16x32xf32>
    %c0_103 = arith.constant 0 : index
    %c0_104 = arith.constant 0 : index
    %508 = vector.load %arg13[%c0_103, %c0_104] : memref<16x32xf32, #tpu.memory_space<vmem>>, vector<16x32xf32>
    tpu.vector_store %arg13[%c0_103, %c0_104], %507 {strides = array<i32>} : memref<16x32xf32, #tpu.memory_space<vmem>>, vector<16x32xf32>,
    return
  }
}

module attributes {stable_mosaic.version = 11 : i64} {
  func.func @_embed_norm_kernel(%arg0: memref<16x32xf32, #tpu.memory_space<vmem>>, %arg1: memref<1x32xf32, #tpu.memory_space<vmem>>, %arg2: memref<1x32xf32, #tpu.memory_space<vmem>>, %arg3: memref<16x1xf32, #tpu.memory_space<vmem>>, %arg4: memref<16x32xf32, #tpu.memory_space<vmem>>) attributes {dimension_semantics = [], scalar_prefetch = 0 : i64, scratch_operands = 0 : i64, tpu.core_type = #tpu.core_type<tc>} {
    %c0 = arith.constant 0 : index
    %c0_0 = arith.constant 0 : index
    %0 = vector.load %arg0[%c0, %c0_0] : memref<16x32xf32, #tpu.memory_space<vmem>>, vector<16x32xf32>
    %c0_1 = arith.constant 0 : index
    %c0_2 = arith.constant 0 : index
    %1 = vector.load %arg1[%c0_1, %c0_2] : memref<1x32xf32, #tpu.memory_space<vmem>>, vector<1x32xf32>
    %c0_3 = arith.constant 0 : index
    %c0_4 = arith.constant 0 : index
    %2 = vector.load %arg2[%c0_3, %c0_4] : memref<1x32xf32, #tpu.memory_space<vmem>>, vector<1x32xf32>
    %cst = arith.constant dense<0.000000e+00> : vector<16xf32>
    %3 = vector.multi_reduction <add>, %0, %cst [1] : vector<16x32xf32> to vector<16xf32>
    %4 = vector.shape_cast %3 : vector<16xf32> to vector<16x1xf32>
    %cst_5 = arith.constant 3.200000e+01 : f32
    %5 = vector.broadcast %cst_5 : f32 to vector<16x1xf32>
    %6 = arith.divf %4, %5 : vector<16x1xf32>
    %7 = vector.broadcast %6 : vector<16x1xf32> to vector<16x32xf32>
    %8 = arith.subf %0, %7 : vector<16x32xf32>
    %9 = arith.mulf %8, %8 : vector<16x32xf32>
    %cst_6 = arith.constant dense<0.000000e+00> : vector<16xf32>
    %10 = vector.multi_reduction <add>, %9, %cst_6 [1] : vector<16x32xf32> to vector<16xf32>
    %11 = vector.shape_cast %10 : vector<16xf32> to vector<16x1xf32>
    %cst_7 = arith.constant 3.200000e+01 : f32
    %12 = vector.broadcast %cst_7 : f32 to vector<16x1xf32>
    %13 = arith.divf %11, %12 : vector<16x1xf32>
    %14 = vector.broadcast %6 : vector<16x1xf32> to vector<16x32xf32>
    %15 = arith.subf %0, %14 : vector<16x32xf32>
    %cst_8 = arith.constant 9.99999996E-13 : f32
    %16 = vector.broadcast %cst_8 : f32 to vector<16x1xf32>
    %17 = arith.addf %13, %16 : vector<16x1xf32>
    %18 = math.rsqrt %17 : vector<16x1xf32>
    %19 = vector.broadcast %18 : vector<16x1xf32> to vector<16x32xf32>
    %20 = arith.mulf %15, %19 : vector<16x32xf32>
    %21 = vector.broadcast %1 : vector<1x32xf32> to vector<16x32xf32>
    %22 = arith.mulf %20, %21 : vector<16x32xf32>
    %23 = vector.broadcast %2 : vector<1x32xf32> to vector<16x32xf32>
    %24 = arith.addf %22, %23 : vector<16x32xf32>
    %c0_9 = arith.constant 0 : index
    %c0_10 = arith.constant 0 : index
    %25 = vector.load %arg3[%c0_9, %c0_10] : memref<16x1xf32, #tpu.memory_space<vmem>>, vector<16x1xf32>
    %26 = vector.broadcast %25 : vector<16x1xf32> to vector<16x32xf32>
    %27 = arith.mulf %24, %26 : vector<16x32xf32>
    %c0_11 = arith.constant 0 : index
    %c0_12 = arith.constant 0 : index
    %28 = vector.load %arg4[%c0_11, %c0_12] : memref<16x32xf32, #tpu.memory_space<vmem>>, vector<16x32xf32>
    tpu.vector_store %arg4[%c0_11, %c0_12], %27 {strides = array<i32>} : memref<16x32xf32, #tpu.memory_space<vmem>>, vector<16x32xf32>,
    return
  }
}

module attributes {stable_mosaic.version = 11 : i64} {
  func.func @_encoder_layer_kernel(%arg0: memref<16x32xf32, #tpu.memory_space<vmem>>, %arg1: memref<2x8xf32, #tpu.memory_space<vmem>>, %arg2: memref<16x1xf32, #tpu.memory_space<vmem>>, %arg3: memref<32x96xf32, #tpu.memory_space<vmem>>, %arg4: memref<1x96xf32, #tpu.memory_space<vmem>>, %arg5: memref<32x32xf32, #tpu.memory_space<vmem>>, %arg6: memref<1x32xf32, #tpu.memory_space<vmem>>, %arg7: memref<1x32xf32, #tpu.memory_space<vmem>>, %arg8: memref<1x32xf32, #tpu.memory_space<vmem>>, %arg9: memref<32x64xf32, #tpu.memory_space<vmem>>, %arg10: memref<1x64xf32, #tpu.memory_space<vmem>>, %arg11: memref<64x32xf32, #tpu.memory_space<vmem>>, %arg12: memref<1x32xf32, #tpu.memory_space<vmem>>, %arg13: memref<1x32xf32, #tpu.memory_space<vmem>>, %arg14: memref<1x32xf32, #tpu.memory_space<vmem>>, %arg15: memref<16x32xf32, #tpu.memory_space<vmem>>) attributes {dimension_semantics = [], scalar_prefetch = 0 : i64, scratch_operands = 0 : i64, tpu.core_type = #tpu.core_type<tc>} {
    %c0 = arith.constant 0 : index
    %c0_0 = arith.constant 0 : index
    %0 = vector.load %arg1[%c0, %c0_0] : memref<2x8xf32, #tpu.memory_space<vmem>>, vector<2x8xf32>
    %c0_1 = arith.constant 0 : index
    %c0_2 = arith.constant 0 : index
    %1 = vector.load %arg0[%c0_1, %c0_2] : memref<16x32xf32, #tpu.memory_space<vmem>>, vector<16x32xf32>
    %c0_3 = arith.constant 0 : index
    %c0_4 = arith.constant 0 : index
    %2 = vector.load %arg3[%c0_3, %c0_4] : memref<32x96xf32, #tpu.memory_space<vmem>>, vector<32x96xf32>
    %c0_5 = arith.constant 0 : index
    %c0_6 = arith.constant 0 : index
    %3 = vector.load %arg4[%c0_5, %c0_6] : memref<1x96xf32, #tpu.memory_space<vmem>>, vector<1x96xf32>
    %c0_7 = arith.constant 0 : index
    %c0_8 = arith.constant 0 : index
    %4 = vector.load %arg5[%c0_7, %c0_8] : memref<32x32xf32, #tpu.memory_space<vmem>>, vector<32x32xf32>
    %c0_9 = arith.constant 0 : index
    %c0_10 = arith.constant 0 : index
    %5 = vector.load %arg6[%c0_9, %c0_10] : memref<1x32xf32, #tpu.memory_space<vmem>>, vector<1x32xf32>
    %c0_11 = arith.constant 0 : index
    %c0_12 = arith.constant 0 : index
    %6 = vector.load %arg7[%c0_11, %c0_12] : memref<1x32xf32, #tpu.memory_space<vmem>>, vector<1x32xf32>
    %c0_13 = arith.constant 0 : index
    %c0_14 = arith.constant 0 : index
    %7 = vector.load %arg8[%c0_13, %c0_14] : memref<1x32xf32, #tpu.memory_space<vmem>>, vector<1x32xf32>
    %c0_15 = arith.constant 0 : index
    %c0_16 = arith.constant 0 : index
    %8 = vector.load %arg9[%c0_15, %c0_16] : memref<32x64xf32, #tpu.memory_space<vmem>>, vector<32x64xf32>
    %c0_17 = arith.constant 0 : index
    %c0_18 = arith.constant 0 : index
    %9 = vector.load %arg10[%c0_17, %c0_18] : memref<1x64xf32, #tpu.memory_space<vmem>>, vector<1x64xf32>
    %c0_19 = arith.constant 0 : index
    %c0_20 = arith.constant 0 : index
    %10 = vector.load %arg11[%c0_19, %c0_20] : memref<64x32xf32, #tpu.memory_space<vmem>>, vector<64x32xf32>
    %c0_21 = arith.constant 0 : index
    %c0_22 = arith.constant 0 : index
    %11 = vector.load %arg12[%c0_21, %c0_22] : memref<1x32xf32, #tpu.memory_space<vmem>>, vector<1x32xf32>
    %c0_23 = arith.constant 0 : index
    %c0_24 = arith.constant 0 : index
    %12 = vector.load %arg13[%c0_23, %c0_24] : memref<1x32xf32, #tpu.memory_space<vmem>>, vector<1x32xf32>
    %c0_25 = arith.constant 0 : index
    %c0_26 = arith.constant 0 : index
    %13 = vector.load %arg14[%c0_25, %c0_26] : memref<1x32xf32, #tpu.memory_space<vmem>>, vector<1x32xf32>
    %cst = arith.constant dense<0.000000e+00> : vector<16x96xf32>
    %14 = tpu.matmul %1, %2, %cst {dimension_numbers = #tpu.dot_dimension_numbers<[1], [0], [0], [1], [0, 0, 1, 1], [], []>} : vector<16x32xf32>, vector<32x96xf32>, vector<16x96xf32> -> vector<16x96xf32>
    %15 = vector.broadcast %3 : vector<1x96xf32> to vector<16x96xf32>
    %16 = arith.addf %14, %15 : vector<16x96xf32>
    %17 = vector.extract_strided_slice %16 {offsets = [0, 0], sizes = [8, 4], strides = [1, 1]} : vector<16x96xf32> to vector<8x4xf32>
    %18 = vector.extract_strided_slice %16 {offsets = [0, 32], sizes = [8, 4], strides = [1, 1]} : vector<16x96xf32> to vector<8x4xf32>
    %19 = vector.extract_strided_slice %16 {offsets = [0, 64], sizes = [8, 4], strides = [1, 1]} : vector<16x96xf32> to vector<8x4xf32>
    %cst_27 = arith.constant dense<0.000000e+00> : vector<8x8xf32>
    %20 = tpu.matmul %17, %18, %cst_27 {dimension_numbers = #tpu.dot_dimension_numbers<[1], [1], [0], [0], [0, 0, 1, 0], [], []>} : vector<8x4xf32>, vector<8x4xf32>, vector<8x8xf32> -> vector<8x8xf32>
    %cst_28 = arith.constant 5.000000e-01 : f32
    %21 = vector.broadcast %cst_28 : f32 to vector<8x8xf32>
    %22 = arith.mulf %20, %21 : vector<8x8xf32>
    %23 = vector.extract_strided_slice %0 {offsets = [0, 0], sizes = [1, 8], strides = [1, 1]} : vector<2x8xf32> to vector<1x8xf32>
    %cst_29 = arith.constant 0.000000e+00 : f32
    %24 = vector.broadcast %cst_29 : f32 to vector<1x8xf32>
    %25 = arith.cmpf ogt, %23, %24 : vector<1x8xf32>
    %cst_30 = arith.constant -1.000000e+09 : f32
    %26 = vector.shape_cast %25 : vector<1x8xi1> to vector<1x8xi1>
    %27 = vector.broadcast %26 : vector<1x8xi1> to vector<8x8xi1>
    %28 = vector.broadcast %cst_30 : f32 to vector<8x8xf32>
    %29 = arith.select %27, %22, %28 : vector<8x8xi1>, vector<8x8xf32>
    %cst_31 = arith.constant dense<0xFF800000> : vector<8xf32>
    %30 = vector.multi_reduction <maximumf>, %29, %cst_31 [1] : vector<8x8xf32> to vector<8xf32>
    %31 = vector.shape_cast %30 : vector<8xf32> to vector<8x1xf32>
    %32 = vector.broadcast %31 : vector<8x1xf32> to vector<8x8xf32>
    %33 = arith.subf %29, %32 : vector<8x8xf32>
    %34 = math.exp %33 : vector<8x8xf32>
    %cst_32 = arith.constant dense<0.000000e+00> : vector<8xf32>
    %35 = vector.multi_reduction <add>, %34, %cst_32 [1] : vector<8x8xf32> to vector<8xf32>
    %36 = vector.shape_cast %35 : vector<8xf32> to vector<8x1xf32>
    %37 = tpu.reciprocal %36 {approx = true} : vector<8x1xf32> -> vector<8x1xf32>
    %38 = vector.broadcast %37 : vector<8x1xf32> to vector<8x8xf32>
    %39 = arith.mulf %34, %38 : vector<8x8xf32>
    %cst_33 = arith.constant dense<0.000000e+00> : vector<8x4xf32>
    %40 = tpu.matmul %39, %19, %cst_33 {dimension_numbers = #tpu.dot_dimension_numbers<[1], [0], [0], [1], [0, 0, 1, 1], [], []>} : vector<8x8xf32>, vector<8x4xf32>, vector<8x4xf32> -> vector<8x4xf32>
    %41 = vector.extract_strided_slice %16 {offsets = [0, 4], sizes = [8, 4], strides = [1, 1]} : vector<16x96xf32> to vector<8x4xf32>
    %42 = vector.extract_strided_slice %16 {offsets = [0, 36], sizes = [8, 4], strides = [1, 1]} : vector<16x96xf32> to vector<8x4xf32>
    %43 = vector.extract_strided_slice %16 {offsets = [0, 68], sizes = [8, 4], strides = [1, 1]} : vector<16x96xf32> to vector<8x4xf32>
    %cst_34 = arith.constant dense<0.000000e+00> : vector<8x8xf32>
    %44 = tpu.matmul %41, %42, %cst_34 {dimension_numbers = #tpu.dot_dimension_numbers<[1], [1], [0], [0], [0, 0, 1, 0], [], []>} : vector<8x4xf32>, vector<8x4xf32>, vector<8x8xf32> -> vector<8x8xf32>
    %cst_35 = arith.constant 5.000000e-01 : f32
    %45 = vector.broadcast %cst_35 : f32 to vector<8x8xf32>
    %46 = arith.mulf %44, %45 : vector<8x8xf32>
    %47 = vector.extract_strided_slice %0 {offsets = [0, 0], sizes = [1, 8], strides = [1, 1]} : vector<2x8xf32> to vector<1x8xf32>
    %cst_36 = arith.constant 0.000000e+00 : f32
    %48 = vector.broadcast %cst_36 : f32 to vector<1x8xf32>
    %49 = arith.cmpf ogt, %47, %48 : vector<1x8xf32>
    %cst_37 = arith.constant -1.000000e+09 : f32
    %50 = vector.shape_cast %49 : vector<1x8xi1> to vector<1x8xi1>
    %51 = vector.broadcast %50 : vector<1x8xi1> to vector<8x8xi1>
    %52 = vector.broadcast %cst_37 : f32 to vector<8x8xf32>
    %53 = arith.select %51, %46, %52 : vector<8x8xi1>, vector<8x8xf32>
    %cst_38 = arith.constant dense<0xFF800000> : vector<8xf32>
    %54 = vector.multi_reduction <maximumf>, %53, %cst_38 [1] : vector<8x8xf32> to vector<8xf32>
    %55 = vector.shape_cast %54 : vector<8xf32> to vector<8x1xf32>
    %56 = vector.broadcast %55 : vector<8x1xf32> to vector<8x8xf32>
    %57 = arith.subf %53, %56 : vector<8x8xf32>
    %58 = math.exp %57 : vector<8x8xf32>
    %cst_39 = arith.constant dense<0.000000e+00> : vector<8xf32>
    %59 = vector.multi_reduction <add>, %58, %cst_39 [1] : vector<8x8xf32> to vector<8xf32>
    %60 = vector.shape_cast %59 : vector<8xf32> to vector<8x1xf32>
    %61 = tpu.reciprocal %60 {approx = true} : vector<8x1xf32> -> vector<8x1xf32>
    %62 = vector.broadcast %61 : vector<8x1xf32> to vector<8x8xf32>
    %63 = arith.mulf %58, %62 : vector<8x8xf32>
    %cst_40 = arith.constant dense<0.000000e+00> : vector<8x4xf32>
    %64 = tpu.matmul %63, %43, %cst_40 {dimension_numbers = #tpu.dot_dimension_numbers<[1], [0], [0], [1], [0, 0, 1, 1], [], []>} : vector<8x8xf32>, vector<8x4xf32>, vector<8x4xf32> -> vector<8x4xf32>
    %65 = vector.extract_strided_slice %16 {offsets = [0, 8], sizes = [8, 4], strides = [1, 1]} : vector<16x96xf32> to vector<8x4xf32>
    %66 = vector.extract_strided_slice %16 {offsets = [0, 40], sizes = [8, 4], strides = [1, 1]} : vector<16x96xf32> to vector<8x4xf32>
    %67 = vector.extract_strided_slice %16 {offsets = [0, 72], sizes = [8, 4], strides = [1, 1]} : vector<16x96xf32> to vector<8x4xf32>
    %cst_41 = arith.constant dense<0.000000e+00> : vector<8x8xf32>
    %68 = tpu.matmul %65, %66, %cst_41 {dimension_numbers = #tpu.dot_dimension_numbers<[1], [1], [0], [0], [0, 0, 1, 0], [], []>} : vector<8x4xf32>, vector<8x4xf32>, vector<8x8xf32> -> vector<8x8xf32>
    %cst_42 = arith.constant 5.000000e-01 : f32
    %69 = vector.broadcast %cst_42 : f32 to vector<8x8xf32>
    %70 = arith.mulf %68, %69 : vector<8x8xf32>
    %71 = vector.extract_strided_slice %0 {offsets = [0, 0], sizes = [1, 8], strides = [1, 1]} : vector<2x8xf32> to vector<1x8xf32>
    %cst_43 = arith.constant 0.000000e+00 : f32
    %72 = vector.broadcast %cst_43 : f32 to vector<1x8xf32>
    %73 = arith.cmpf ogt, %71, %72 : vector<1x8xf32>
    %cst_44 = arith.constant -1.000000e+09 : f32
    %74 = vector.shape_cast %73 : vector<1x8xi1> to vector<1x8xi1>
    %75 = vector.broadcast %74 : vector<1x8xi1> to vector<8x8xi1>
    %76 = vector.broadcast %cst_44 : f32 to vector<8x8xf32>
    %77 = arith.select %75, %70, %76 : vector<8x8xi1>, vector<8x8xf32>
    %cst_45 = arith.constant dense<0xFF800000> : vector<8xf32>
    %78 = vector.multi_reduction <maximumf>, %77, %cst_45 [1] : vector<8x8xf32> to vector<8xf32>
    %79 = vector.shape_cast %78 : vector<8xf32> to vector<8x1xf32>
    %80 = vector.broadcast %79 : vector<8x1xf32> to vector<8x8xf32>
    %81 = arith.subf %77, %80 : vector<8x8xf32>
    %82 = math.exp %81 : vector<8x8xf32>
    %cst_46 = arith.constant dense<0.000000e+00> : vector<8xf32>
    %83 = vector.multi_reduction <add>, %82, %cst_46 [1] : vector<8x8xf32> to vector<8xf32>
    %84 = vector.shape_cast %83 : vector<8xf32> to vector<8x1xf32>
    %85 = tpu.reciprocal %84 {approx = true} : vector<8x1xf32> -> vector<8x1xf32>
    %86 = vector.broadcast %85 : vector<8x1xf32> to vector<8x8xf32>
    %87 = arith.mulf %82, %86 : vector<8x8xf32>
    %cst_47 = arith.constant dense<0.000000e+00> : vector<8x4xf32>
    %88 = tpu.matmul %87, %67, %cst_47 {dimension_numbers = #tpu.dot_dimension_numbers<[1], [0], [0], [1], [0, 0, 1, 1], [], []>} : vector<8x8xf32>, vector<8x4xf32>, vector<8x4xf32> -> vector<8x4xf32>
    %89 = vector.extract_strided_slice %16 {offsets = [0, 12], sizes = [8, 4], strides = [1, 1]} : vector<16x96xf32> to vector<8x4xf32>
    %90 = vector.extract_strided_slice %16 {offsets = [0, 44], sizes = [8, 4], strides = [1, 1]} : vector<16x96xf32> to vector<8x4xf32>
    %91 = vector.extract_strided_slice %16 {offsets = [0, 76], sizes = [8, 4], strides = [1, 1]} : vector<16x96xf32> to vector<8x4xf32>
    %cst_48 = arith.constant dense<0.000000e+00> : vector<8x8xf32>
    %92 = tpu.matmul %89, %90, %cst_48 {dimension_numbers = #tpu.dot_dimension_numbers<[1], [1], [0], [0], [0, 0, 1, 0], [], []>} : vector<8x4xf32>, vector<8x4xf32>, vector<8x8xf32> -> vector<8x8xf32>
    %cst_49 = arith.constant 5.000000e-01 : f32
    %93 = vector.broadcast %cst_49 : f32 to vector<8x8xf32>
    %94 = arith.mulf %92, %93 : vector<8x8xf32>
    %95 = vector.extract_strided_slice %0 {offsets = [0, 0], sizes = [1, 8], strides = [1, 1]} : vector<2x8xf32> to vector<1x8xf32>
    %cst_50 = arith.constant 0.000000e+00 : f32
    %96 = vector.broadcast %cst_50 : f32 to vector<1x8xf32>
    %97 = arith.cmpf ogt, %95, %96 : vector<1x8xf32>
    %cst_51 = arith.constant -1.000000e+09 : f32
    %98 = vector.shape_cast %97 : vector<1x8xi1> to vector<1x8xi1>
    %99 = vector.broadcast %98 : vector<1x8xi1> to vector<8x8xi1>
    %100 = vector.broadcast %cst_51 : f32 to vector<8x8xf32>
    %101 = arith.select %99, %94, %100 : vector<8x8xi1>, vector<8x8xf32>
    %cst_52 = arith.constant dense<0xFF800000> : vector<8xf32>
    %102 = vector.multi_reduction <maximumf>, %101, %cst_52 [1] : vector<8x8xf32> to vector<8xf32>
    %103 = vector.shape_cast %102 : vector<8xf32> to vector<8x1xf32>
    %104 = vector.broadcast %103 : vector<8x1xf32> to vector<8x8xf32>
    %105 = arith.subf %101, %104 : vector<8x8xf32>
    %106 = math.exp %105 : vector<8x8xf32>
    %cst_53 = arith.constant dense<0.000000e+00> : vector<8xf32>
    %107 = vector.multi_reduction <add>, %106, %cst_53 [1] : vector<8x8xf32> to vector<8xf32>
    %108 = vector.shape_cast %107 : vector<8xf32> to vector<8x1xf32>
    %109 = tpu.reciprocal %108 {approx = true} : vector<8x1xf32> -> vector<8x1xf32>
    %110 = vector.broadcast %109 : vector<8x1xf32> to vector<8x8xf32>
    %111 = arith.mulf %106, %110 : vector<8x8xf32>
    %cst_54 = arith.constant dense<0.000000e+00> : vector<8x4xf32>
    %112 = tpu.matmul %111, %91, %cst_54 {dimension_numbers = #tpu.dot_dimension_numbers<[1], [0], [0], [1], [0, 0, 1, 1], [], []>} : vector<8x8xf32>, vector<8x4xf32>, vector<8x4xf32> -> vector<8x4xf32>
    %113 = vector.extract_strided_slice %16 {offsets = [0, 16], sizes = [8, 4], strides = [1, 1]} : vector<16x96xf32> to vector<8x4xf32>
    %114 = vector.extract_strided_slice %16 {offsets = [0, 48], sizes = [8, 4], strides = [1, 1]} : vector<16x96xf32> to vector<8x4xf32>
    %115 = vector.extract_strided_slice %16 {offsets = [0, 80], sizes = [8, 4], strides = [1, 1]} : vector<16x96xf32> to vector<8x4xf32>
    %cst_55 = arith.constant dense<0.000000e+00> : vector<8x8xf32>
    %116 = tpu.matmul %113, %114, %cst_55 {dimension_numbers = #tpu.dot_dimension_numbers<[1], [1], [0], [0], [0, 0, 1, 0], [], []>} : vector<8x4xf32>, vector<8x4xf32>, vector<8x8xf32> -> vector<8x8xf32>
    %cst_56 = arith.constant 5.000000e-01 : f32
    %117 = vector.broadcast %cst_56 : f32 to vector<8x8xf32>
    %118 = arith.mulf %116, %117 : vector<8x8xf32>
    %119 = vector.extract_strided_slice %0 {offsets = [0, 0], sizes = [1, 8], strides = [1, 1]} : vector<2x8xf32> to vector<1x8xf32>
    %cst_57 = arith.constant 0.000000e+00 : f32
    %120 = vector.broadcast %cst_57 : f32 to vector<1x8xf32>
    %121 = arith.cmpf ogt, %119, %120 : vector<1x8xf32>
    %cst_58 = arith.constant -1.000000e+09 : f32
    %122 = vector.shape_cast %121 : vector<1x8xi1> to vector<1x8xi1>
    %123 = vector.broadcast %122 : vector<1x8xi1> to vector<8x8xi1>
    %124 = vector.broadcast %cst_58 : f32 to vector<8x8xf32>
    %125 = arith.select %123, %118, %124 : vector<8x8xi1>, vector<8x8xf32>
    %cst_59 = arith.constant dense<0xFF800000> : vector<8xf32>
    %126 = vector.multi_reduction <maximumf>, %125, %cst_59 [1] : vector<8x8xf32> to vector<8xf32>
    %127 = vector.shape_cast %126 : vector<8xf32> to vector<8x1xf32>
    %128 = vector.broadcast %127 : vector<8x1xf32> to vector<8x8xf32>
    %129 = arith.subf %125, %128 : vector<8x8xf32>
    %130 = math.exp %129 : vector<8x8xf32>
    %cst_60 = arith.constant dense<0.000000e+00> : vector<8xf32>
    %131 = vector.multi_reduction <add>, %130, %cst_60 [1] : vector<8x8xf32> to vector<8xf32>
    %132 = vector.shape_cast %131 : vector<8xf32> to vector<8x1xf32>
    %133 = tpu.reciprocal %132 {approx = true} : vector<8x1xf32> -> vector<8x1xf32>
    %134 = vector.broadcast %133 : vector<8x1xf32> to vector<8x8xf32>
    %135 = arith.mulf %130, %134 : vector<8x8xf32>
    %cst_61 = arith.constant dense<0.000000e+00> : vector<8x4xf32>
    %136 = tpu.matmul %135, %115, %cst_61 {dimension_numbers = #tpu.dot_dimension_numbers<[1], [0], [0], [1], [0, 0, 1, 1], [], []>} : vector<8x8xf32>, vector<8x4xf32>, vector<8x4xf32> -> vector<8x4xf32>
    %137 = vector.extract_strided_slice %16 {offsets = [0, 20], sizes = [8, 4], strides = [1, 1]} : vector<16x96xf32> to vector<8x4xf32>
    %138 = vector.extract_strided_slice %16 {offsets = [0, 52], sizes = [8, 4], strides = [1, 1]} : vector<16x96xf32> to vector<8x4xf32>
    %139 = vector.extract_strided_slice %16 {offsets = [0, 84], sizes = [8, 4], strides = [1, 1]} : vector<16x96xf32> to vector<8x4xf32>
    %cst_62 = arith.constant dense<0.000000e+00> : vector<8x8xf32>
    %140 = tpu.matmul %137, %138, %cst_62 {dimension_numbers = #tpu.dot_dimension_numbers<[1], [1], [0], [0], [0, 0, 1, 0], [], []>} : vector<8x4xf32>, vector<8x4xf32>, vector<8x8xf32> -> vector<8x8xf32>
    %cst_63 = arith.constant 5.000000e-01 : f32
    %141 = vector.broadcast %cst_63 : f32 to vector<8x8xf32>
    %142 = arith.mulf %140, %141 : vector<8x8xf32>
    %143 = vector.extract_strided_slice %0 {offsets = [0, 0], sizes = [1, 8], strides = [1, 1]} : vector<2x8xf32> to vector<1x8xf32>
    %cst_64 = arith.constant 0.000000e+00 : f32
    %144 = vector.broadcast %cst_64 : f32 to vector<1x8xf32>
    %145 = arith.cmpf ogt, %143, %144 : vector<1x8xf32>
    %cst_65 = arith.constant -1.000000e+09 : f32
    %146 = vector.shape_cast %145 : vector<1x8xi1> to vector<1x8xi1>
    %147 = vector.broadcast %146 : vector<1x8xi1> to vector<8x8xi1>
    %148 = vector.broadcast %cst_65 : f32 to vector<8x8xf32>
    %149 = arith.select %147, %142, %148 : vector<8x8xi1>, vector<8x8xf32>
    %cst_66 = arith.constant dense<0xFF800000> : vector<8xf32>
    %150 = vector.multi_reduction <maximumf>, %149, %cst_66 [1] : vector<8x8xf32> to vector<8xf32>
    %151 = vector.shape_cast %150 : vector<8xf32> to vector<8x1xf32>
    %152 = vector.broadcast %151 : vector<8x1xf32> to vector<8x8xf32>
    %153 = arith.subf %149, %152 : vector<8x8xf32>
    %154 = math.exp %153 : vector<8x8xf32>
    %cst_67 = arith.constant dense<0.000000e+00> : vector<8xf32>
    %155 = vector.multi_reduction <add>, %154, %cst_67 [1] : vector<8x8xf32> to vector<8xf32>
    %156 = vector.shape_cast %155 : vector<8xf32> to vector<8x1xf32>
    %157 = tpu.reciprocal %156 {approx = true} : vector<8x1xf32> -> vector<8x1xf32>
    %158 = vector.broadcast %157 : vector<8x1xf32> to vector<8x8xf32>
    %159 = arith.mulf %154, %158 : vector<8x8xf32>
    %cst_68 = arith.constant dense<0.000000e+00> : vector<8x4xf32>
    %160 = tpu.matmul %159, %139, %cst_68 {dimension_numbers = #tpu.dot_dimension_numbers<[1], [0], [0], [1], [0, 0, 1, 1], [], []>} : vector<8x8xf32>, vector<8x4xf32>, vector<8x4xf32> -> vector<8x4xf32>
    %161 = vector.extract_strided_slice %16 {offsets = [0, 24], sizes = [8, 4], strides = [1, 1]} : vector<16x96xf32> to vector<8x4xf32>
    %162 = vector.extract_strided_slice %16 {offsets = [0, 56], sizes = [8, 4], strides = [1, 1]} : vector<16x96xf32> to vector<8x4xf32>
    %163 = vector.extract_strided_slice %16 {offsets = [0, 88], sizes = [8, 4], strides = [1, 1]} : vector<16x96xf32> to vector<8x4xf32>
    %cst_69 = arith.constant dense<0.000000e+00> : vector<8x8xf32>
    %164 = tpu.matmul %161, %162, %cst_69 {dimension_numbers = #tpu.dot_dimension_numbers<[1], [1], [0], [0], [0, 0, 1, 0], [], []>} : vector<8x4xf32>, vector<8x4xf32>, vector<8x8xf32> -> vector<8x8xf32>
    %cst_70 = arith.constant 5.000000e-01 : f32
    %165 = vector.broadcast %cst_70 : f32 to vector<8x8xf32>
    %166 = arith.mulf %164, %165 : vector<8x8xf32>
    %167 = vector.extract_strided_slice %0 {offsets = [0, 0], sizes = [1, 8], strides = [1, 1]} : vector<2x8xf32> to vector<1x8xf32>
    %cst_71 = arith.constant 0.000000e+00 : f32
    %168 = vector.broadcast %cst_71 : f32 to vector<1x8xf32>
    %169 = arith.cmpf ogt, %167, %168 : vector<1x8xf32>
    %cst_72 = arith.constant -1.000000e+09 : f32
    %170 = vector.shape_cast %169 : vector<1x8xi1> to vector<1x8xi1>
    %171 = vector.broadcast %170 : vector<1x8xi1> to vector<8x8xi1>
    %172 = vector.broadcast %cst_72 : f32 to vector<8x8xf32>
    %173 = arith.select %171, %166, %172 : vector<8x8xi1>, vector<8x8xf32>
    %cst_73 = arith.constant dense<0xFF800000> : vector<8xf32>
    %174 = vector.multi_reduction <maximumf>, %173, %cst_73 [1] : vector<8x8xf32> to vector<8xf32>
    %175 = vector.shape_cast %174 : vector<8xf32> to vector<8x1xf32>
    %176 = vector.broadcast %175 : vector<8x1xf32> to vector<8x8xf32>
    %177 = arith.subf %173, %176 : vector<8x8xf32>
    %178 = math.exp %177 : vector<8x8xf32>
    %cst_74 = arith.constant dense<0.000000e+00> : vector<8xf32>
    %179 = vector.multi_reduction <add>, %178, %cst_74 [1] : vector<8x8xf32> to vector<8xf32>
    %180 = vector.shape_cast %179 : vector<8xf32> to vector<8x1xf32>
    %181 = tpu.reciprocal %180 {approx = true} : vector<8x1xf32> -> vector<8x1xf32>
    %182 = vector.broadcast %181 : vector<8x1xf32> to vector<8x8xf32>
    %183 = arith.mulf %178, %182 : vector<8x8xf32>
    %cst_75 = arith.constant dense<0.000000e+00> : vector<8x4xf32>
    %184 = tpu.matmul %183, %163, %cst_75 {dimension_numbers = #tpu.dot_dimension_numbers<[1], [0], [0], [1], [0, 0, 1, 1], [], []>} : vector<8x8xf32>, vector<8x4xf32>, vector<8x4xf32> -> vector<8x4xf32>
    %185 = vector.extract_strided_slice %16 {offsets = [0, 28], sizes = [8, 4], strides = [1, 1]} : vector<16x96xf32> to vector<8x4xf32>
    %186 = vector.extract_strided_slice %16 {offsets = [0, 60], sizes = [8, 4], strides = [1, 1]} : vector<16x96xf32> to vector<8x4xf32>
    %187 = vector.extract_strided_slice %16 {offsets = [0, 92], sizes = [8, 4], strides = [1, 1]} : vector<16x96xf32> to vector<8x4xf32>
    %cst_76 = arith.constant dense<0.000000e+00> : vector<8x8xf32>
    %188 = tpu.matmul %185, %186, %cst_76 {dimension_numbers = #tpu.dot_dimension_numbers<[1], [1], [0], [0], [0, 0, 1, 0], [], []>} : vector<8x4xf32>, vector<8x4xf32>, vector<8x8xf32> -> vector<8x8xf32>
    %cst_77 = arith.constant 5.000000e-01 : f32
    %189 = vector.broadcast %cst_77 : f32 to vector<8x8xf32>
    %190 = arith.mulf %188, %189 : vector<8x8xf32>
    %191 = vector.extract_strided_slice %0 {offsets = [0, 0], sizes = [1, 8], strides = [1, 1]} : vector<2x8xf32> to vector<1x8xf32>
    %cst_78 = arith.constant 0.000000e+00 : f32
    %192 = vector.broadcast %cst_78 : f32 to vector<1x8xf32>
    %193 = arith.cmpf ogt, %191, %192 : vector<1x8xf32>
    %cst_79 = arith.constant -1.000000e+09 : f32
    %194 = vector.shape_cast %193 : vector<1x8xi1> to vector<1x8xi1>
    %195 = vector.broadcast %194 : vector<1x8xi1> to vector<8x8xi1>
    %196 = vector.broadcast %cst_79 : f32 to vector<8x8xf32>
    %197 = arith.select %195, %190, %196 : vector<8x8xi1>, vector<8x8xf32>
    %cst_80 = arith.constant dense<0xFF800000> : vector<8xf32>
    %198 = vector.multi_reduction <maximumf>, %197, %cst_80 [1] : vector<8x8xf32> to vector<8xf32>
    %199 = vector.shape_cast %198 : vector<8xf32> to vector<8x1xf32>
    %200 = vector.broadcast %199 : vector<8x1xf32> to vector<8x8xf32>
    %201 = arith.subf %197, %200 : vector<8x8xf32>
    %202 = math.exp %201 : vector<8x8xf32>
    %cst_81 = arith.constant dense<0.000000e+00> : vector<8xf32>
    %203 = vector.multi_reduction <add>, %202, %cst_81 [1] : vector<8x8xf32> to vector<8xf32>
    %204 = vector.shape_cast %203 : vector<8xf32> to vector<8x1xf32>
    %205 = tpu.reciprocal %204 {approx = true} : vector<8x1xf32> -> vector<8x1xf32>
    %206 = vector.broadcast %205 : vector<8x1xf32> to vector<8x8xf32>
    %207 = arith.mulf %202, %206 : vector<8x8xf32>
    %cst_82 = arith.constant dense<0.000000e+00> : vector<8x4xf32>
    %208 = tpu.matmul %207, %187, %cst_82 {dimension_numbers = #tpu.dot_dimension_numbers<[1], [0], [0], [1], [0, 0, 1, 1], [], []>} : vector<8x8xf32>, vector<8x4xf32>, vector<8x4xf32> -> vector<8x4xf32>
    %209 = tpu.concatenate %40, %64, %88, %112, %136, %160, %184, %208 in 1 : vector<8x4xf32>, vector<8x4xf32>, vector<8x4xf32>, vector<8x4xf32>, vector<8x4xf32>, vector<8x4xf32>, vector<8x4xf32>, vector<8x4xf32> -> vector<8x32xf32>
    %210 = vector.extract_strided_slice %16 {offsets = [8, 0], sizes = [8, 4], strides = [1, 1]} : vector<16x96xf32> to vector<8x4xf32>
    %211 = vector.extract_strided_slice %16 {offsets = [8, 32], sizes = [8, 4], strides = [1, 1]} : vector<16x96xf32> to vector<8x4xf32>
    %212 = vector.extract_strided_slice %16 {offsets = [8, 64], sizes = [8, 4], strides = [1, 1]} : vector<16x96xf32> to vector<8x4xf32>
    %cst_83 = arith.constant dense<0.000000e+00> : vector<8x8xf32>
    %213 = tpu.matmul %210, %211, %cst_83 {dimension_numbers = #tpu.dot_dimension_numbers<[1], [1], [0], [0], [0, 0, 1, 0], [], []>} : vector<8x4xf32>, vector<8x4xf32>, vector<8x8xf32> -> vector<8x8xf32>
    %cst_84 = arith.constant 5.000000e-01 : f32
    %214 = vector.broadcast %cst_84 : f32 to vector<8x8xf32>
    %215 = arith.mulf %213, %214 : vector<8x8xf32>
    %216 = vector.extract_strided_slice %0 {offsets = [1, 0], sizes = [1, 8], strides = [1, 1]} : vector<2x8xf32> to vector<1x8xf32>
    %cst_85 = arith.constant 0.000000e+00 : f32
    %217 = vector.broadcast %cst_85 : f32 to vector<1x8xf32>
    %218 = arith.cmpf ogt, %216, %217 : vector<1x8xf32>
    %cst_86 = arith.constant -1.000000e+09 : f32
    %219 = vector.shape_cast %218 : vector<1x8xi1> to vector<1x8xi1>
    %220 = vector.broadcast %219 : vector<1x8xi1> to vector<8x8xi1>
    %221 = vector.broadcast %cst_86 : f32 to vector<8x8xf32>
    %222 = arith.select %220, %215, %221 : vector<8x8xi1>, vector<8x8xf32>
    %cst_87 = arith.constant dense<0xFF800000> : vector<8xf32>
    %223 = vector.multi_reduction <maximumf>, %222, %cst_87 [1] : vector<8x8xf32> to vector<8xf32>
    %224 = vector.shape_cast %223 : vector<8xf32> to vector<8x1xf32>
    %225 = vector.broadcast %224 : vector<8x1xf32> to vector<8x8xf32>
    %226 = arith.subf %222, %225 : vector<8x8xf32>
    %227 = math.exp %226 : vector<8x8xf32>
    %cst_88 = arith.constant dense<0.000000e+00> : vector<8xf32>
    %228 = vector.multi_reduction <add>, %227, %cst_88 [1] : vector<8x8xf32> to vector<8xf32>
    %229 = vector.shape_cast %228 : vector<8xf32> to vector<8x1xf32>
    %230 = tpu.reciprocal %229 {approx = true} : vector<8x1xf32> -> vector<8x1xf32>
    %231 = vector.broadcast %230 : vector<8x1xf32> to vector<8x8xf32>
    %232 = arith.mulf %227, %231 : vector<8x8xf32>
    %cst_89 = arith.constant dense<0.000000e+00> : vector<8x4xf32>
    %233 = tpu.matmul %232, %212, %cst_89 {dimension_numbers = #tpu.dot_dimension_numbers<[1], [0], [0], [1], [0, 0, 1, 1], [], []>} : vector<8x8xf32>, vector<8x4xf32>, vector<8x4xf32> -> vector<8x4xf32>
    %234 = vector.extract_strided_slice %16 {offsets = [8, 4], sizes = [8, 4], strides = [1, 1]} : vector<16x96xf32> to vector<8x4xf32>
    %235 = vector.extract_strided_slice %16 {offsets = [8, 36], sizes = [8, 4], strides = [1, 1]} : vector<16x96xf32> to vector<8x4xf32>
    %236 = vector.extract_strided_slice %16 {offsets = [8, 68], sizes = [8, 4], strides = [1, 1]} : vector<16x96xf32> to vector<8x4xf32>
    %cst_90 = arith.constant dense<0.000000e+00> : vector<8x8xf32>
    %237 = tpu.matmul %234, %235, %cst_90 {dimension_numbers = #tpu.dot_dimension_numbers<[1], [1], [0], [0], [0, 0, 1, 0], [], []>} : vector<8x4xf32>, vector<8x4xf32>, vector<8x8xf32> -> vector<8x8xf32>
    %cst_91 = arith.constant 5.000000e-01 : f32
    %238 = vector.broadcast %cst_91 : f32 to vector<8x8xf32>
    %239 = arith.mulf %237, %238 : vector<8x8xf32>
    %240 = vector.extract_strided_slice %0 {offsets = [1, 0], sizes = [1, 8], strides = [1, 1]} : vector<2x8xf32> to vector<1x8xf32>
    %cst_92 = arith.constant 0.000000e+00 : f32
    %241 = vector.broadcast %cst_92 : f32 to vector<1x8xf32>
    %242 = arith.cmpf ogt, %240, %241 : vector<1x8xf32>
    %cst_93 = arith.constant -1.000000e+09 : f32
    %243 = vector.shape_cast %242 : vector<1x8xi1> to vector<1x8xi1>
    %244 = vector.broadcast %243 : vector<1x8xi1> to vector<8x8xi1>
    %245 = vector.broadcast %cst_93 : f32 to vector<8x8xf32>
    %246 = arith.select %244, %239, %245 : vector<8x8xi1>, vector<8x8xf32>
    %cst_94 = arith.constant dense<0xFF800000> : vector<8xf32>
    %247 = vector.multi_reduction <maximumf>, %246, %cst_94 [1] : vector<8x8xf32> to vector<8xf32>
    %248 = vector.shape_cast %247 : vector<8xf32> to vector<8x1xf32>
    %249 = vector.broadcast %248 : vector<8x1xf32> to vector<8x8xf32>
    %250 = arith.subf %246, %249 : vector<8x8xf32>
    %251 = math.exp %250 : vector<8x8xf32>
    %cst_95 = arith.constant dense<0.000000e+00> : vector<8xf32>
    %252 = vector.multi_reduction <add>, %251, %cst_95 [1] : vector<8x8xf32> to vector<8xf32>
    %253 = vector.shape_cast %252 : vector<8xf32> to vector<8x1xf32>
    %254 = tpu.reciprocal %253 {approx = true} : vector<8x1xf32> -> vector<8x1xf32>
    %255 = vector.broadcast %254 : vector<8x1xf32> to vector<8x8xf32>
    %256 = arith.mulf %251, %255 : vector<8x8xf32>
    %cst_96 = arith.constant dense<0.000000e+00> : vector<8x4xf32>
    %257 = tpu.matmul %256, %236, %cst_96 {dimension_numbers = #tpu.dot_dimension_numbers<[1], [0], [0], [1], [0, 0, 1, 1], [], []>} : vector<8x8xf32>, vector<8x4xf32>, vector<8x4xf32> -> vector<8x4xf32>
    %258 = vector.extract_strided_slice %16 {offsets = [8, 8], sizes = [8, 4], strides = [1, 1]} : vector<16x96xf32> to vector<8x4xf32>
    %259 = vector.extract_strided_slice %16 {offsets = [8, 40], sizes = [8, 4], strides = [1, 1]} : vector<16x96xf32> to vector<8x4xf32>
    %260 = vector.extract_strided_slice %16 {offsets = [8, 72], sizes = [8, 4], strides = [1, 1]} : vector<16x96xf32> to vector<8x4xf32>
    %cst_97 = arith.constant dense<0.000000e+00> : vector<8x8xf32>
    %261 = tpu.matmul %258, %259, %cst_97 {dimension_numbers = #tpu.dot_dimension_numbers<[1], [1], [0], [0], [0, 0, 1, 0], [], []>} : vector<8x4xf32>, vector<8x4xf32>, vector<8x8xf32> -> vector<8x8xf32>
    %cst_98 = arith.constant 5.000000e-01 : f32
    %262 = vector.broadcast %cst_98 : f32 to vector<8x8xf32>
    %263 = arith.mulf %261, %262 : vector<8x8xf32>
    %264 = vector.extract_strided_slice %0 {offsets = [1, 0], sizes = [1, 8], strides = [1, 1]} : vector<2x8xf32> to vector<1x8xf32>
    %cst_99 = arith.constant 0.000000e+00 : f32
    %265 = vector.broadcast %cst_99 : f32 to vector<1x8xf32>
    %266 = arith.cmpf ogt, %264, %265 : vector<1x8xf32>
    %cst_100 = arith.constant -1.000000e+09 : f32
    %267 = vector.shape_cast %266 : vector<1x8xi1> to vector<1x8xi1>
    %268 = vector.broadcast %267 : vector<1x8xi1> to vector<8x8xi1>
    %269 = vector.broadcast %cst_100 : f32 to vector<8x8xf32>
    %270 = arith.select %268, %263, %269 : vector<8x8xi1>, vector<8x8xf32>
    %cst_101 = arith.constant dense<0xFF800000> : vector<8xf32>
    %271 = vector.multi_reduction <maximumf>, %270, %cst_101 [1] : vector<8x8xf32> to vector<8xf32>
    %272 = vector.shape_cast %271 : vector<8xf32> to vector<8x1xf32>
    %273 = vector.broadcast %272 : vector<8x1xf32> to vector<8x8xf32>
    %274 = arith.subf %270, %273 : vector<8x8xf32>
    %275 = math.exp %274 : vector<8x8xf32>
    %cst_102 = arith.constant dense<0.000000e+00> : vector<8xf32>
    %276 = vector.multi_reduction <add>, %275, %cst_102 [1] : vector<8x8xf32> to vector<8xf32>
    %277 = vector.shape_cast %276 : vector<8xf32> to vector<8x1xf32>
    %278 = tpu.reciprocal %277 {approx = true} : vector<8x1xf32> -> vector<8x1xf32>
    %279 = vector.broadcast %278 : vector<8x1xf32> to vector<8x8xf32>
    %280 = arith.mulf %275, %279 : vector<8x8xf32>
    %cst_103 = arith.constant dense<0.000000e+00> : vector<8x4xf32>
    %281 = tpu.matmul %280, %260, %cst_103 {dimension_numbers = #tpu.dot_dimension_numbers<[1], [0], [0], [1], [0, 0, 1, 1], [], []>} : vector<8x8xf32>, vector<8x4xf32>, vector<8x4xf32> -> vector<8x4xf32>
    %282 = vector.extract_strided_slice %16 {offsets = [8, 12], sizes = [8, 4], strides = [1, 1]} : vector<16x96xf32> to vector<8x4xf32>
    %283 = vector.extract_strided_slice %16 {offsets = [8, 44], sizes = [8, 4], strides = [1, 1]} : vector<16x96xf32> to vector<8x4xf32>
    %284 = vector.extract_strided_slice %16 {offsets = [8, 76], sizes = [8, 4], strides = [1, 1]} : vector<16x96xf32> to vector<8x4xf32>
    %cst_104 = arith.constant dense<0.000000e+00> : vector<8x8xf32>
    %285 = tpu.matmul %282, %283, %cst_104 {dimension_numbers = #tpu.dot_dimension_numbers<[1], [1], [0], [0], [0, 0, 1, 0], [], []>} : vector<8x4xf32>, vector<8x4xf32>, vector<8x8xf32> -> vector<8x8xf32>
    %cst_105 = arith.constant 5.000000e-01 : f32
    %286 = vector.broadcast %cst_105 : f32 to vector<8x8xf32>
    %287 = arith.mulf %285, %286 : vector<8x8xf32>
    %288 = vector.extract_strided_slice %0 {offsets = [1, 0], sizes = [1, 8], strides = [1, 1]} : vector<2x8xf32> to vector<1x8xf32>
    %cst_106 = arith.constant 0.000000e+00 : f32
    %289 = vector.broadcast %cst_106 : f32 to vector<1x8xf32>
    %290 = arith.cmpf ogt, %288, %289 : vector<1x8xf32>
    %cst_107 = arith.constant -1.000000e+09 : f32
    %291 = vector.shape_cast %290 : vector<1x8xi1> to vector<1x8xi1>
    %292 = vector.broadcast %291 : vector<1x8xi1> to vector<8x8xi1>
    %293 = vector.broadcast %cst_107 : f32 to vector<8x8xf32>
    %294 = arith.select %292, %287, %293 : vector<8x8xi1>, vector<8x8xf32>
    %cst_108 = arith.constant dense<0xFF800000> : vector<8xf32>
    %295 = vector.multi_reduction <maximumf>, %294, %cst_108 [1] : vector<8x8xf32> to vector<8xf32>
    %296 = vector.shape_cast %295 : vector<8xf32> to vector<8x1xf32>
    %297 = vector.broadcast %296 : vector<8x1xf32> to vector<8x8xf32>
    %298 = arith.subf %294, %297 : vector<8x8xf32>
    %299 = math.exp %298 : vector<8x8xf32>
    %cst_109 = arith.constant dense<0.000000e+00> : vector<8xf32>
    %300 = vector.multi_reduction <add>, %299, %cst_109 [1] : vector<8x8xf32> to vector<8xf32>
    %301 = vector.shape_cast %300 : vector<8xf32> to vector<8x1xf32>
    %302 = tpu.reciprocal %301 {approx = true} : vector<8x1xf32> -> vector<8x1xf32>
    %303 = vector.broadcast %302 : vector<8x1xf32> to vector<8x8xf32>
    %304 = arith.mulf %299, %303 : vector<8x8xf32>
    %cst_110 = arith.constant dense<0.000000e+00> : vector<8x4xf32>
    %305 = tpu.matmul %304, %284, %cst_110 {dimension_numbers = #tpu.dot_dimension_numbers<[1], [0], [0], [1], [0, 0, 1, 1], [], []>} : vector<8x8xf32>, vector<8x4xf32>, vector<8x4xf32> -> vector<8x4xf32>
    %306 = vector.extract_strided_slice %16 {offsets = [8, 16], sizes = [8, 4], strides = [1, 1]} : vector<16x96xf32> to vector<8x4xf32>
    %307 = vector.extract_strided_slice %16 {offsets = [8, 48], sizes = [8, 4], strides = [1, 1]} : vector<16x96xf32> to vector<8x4xf32>
    %308 = vector.extract_strided_slice %16 {offsets = [8, 80], sizes = [8, 4], strides = [1, 1]} : vector<16x96xf32> to vector<8x4xf32>
    %cst_111 = arith.constant dense<0.000000e+00> : vector<8x8xf32>
    %309 = tpu.matmul %306, %307, %cst_111 {dimension_numbers = #tpu.dot_dimension_numbers<[1], [1], [0], [0], [0, 0, 1, 0], [], []>} : vector<8x4xf32>, vector<8x4xf32>, vector<8x8xf32> -> vector<8x8xf32>
    %cst_112 = arith.constant 5.000000e-01 : f32
    %310 = vector.broadcast %cst_112 : f32 to vector<8x8xf32>
    %311 = arith.mulf %309, %310 : vector<8x8xf32>
    %312 = vector.extract_strided_slice %0 {offsets = [1, 0], sizes = [1, 8], strides = [1, 1]} : vector<2x8xf32> to vector<1x8xf32>
    %cst_113 = arith.constant 0.000000e+00 : f32
    %313 = vector.broadcast %cst_113 : f32 to vector<1x8xf32>
    %314 = arith.cmpf ogt, %312, %313 : vector<1x8xf32>
    %cst_114 = arith.constant -1.000000e+09 : f32
    %315 = vector.shape_cast %314 : vector<1x8xi1> to vector<1x8xi1>
    %316 = vector.broadcast %315 : vector<1x8xi1> to vector<8x8xi1>
    %317 = vector.broadcast %cst_114 : f32 to vector<8x8xf32>
    %318 = arith.select %316, %311, %317 : vector<8x8xi1>, vector<8x8xf32>
    %cst_115 = arith.constant dense<0xFF800000> : vector<8xf32>
    %319 = vector.multi_reduction <maximumf>, %318, %cst_115 [1] : vector<8x8xf32> to vector<8xf32>
    %320 = vector.shape_cast %319 : vector<8xf32> to vector<8x1xf32>
    %321 = vector.broadcast %320 : vector<8x1xf32> to vector<8x8xf32>
    %322 = arith.subf %318, %321 : vector<8x8xf32>
    %323 = math.exp %322 : vector<8x8xf32>
    %cst_116 = arith.constant dense<0.000000e+00> : vector<8xf32>
    %324 = vector.multi_reduction <add>, %323, %cst_116 [1] : vector<8x8xf32> to vector<8xf32>
    %325 = vector.shape_cast %324 : vector<8xf32> to vector<8x1xf32>
    %326 = tpu.reciprocal %325 {approx = true} : vector<8x1xf32> -> vector<8x1xf32>
    %327 = vector.broadcast %326 : vector<8x1xf32> to vector<8x8xf32>
    %328 = arith.mulf %323, %327 : vector<8x8xf32>
    %cst_117 = arith.constant dense<0.000000e+00> : vector<8x4xf32>
    %329 = tpu.matmul %328, %308, %cst_117 {dimension_numbers = #tpu.dot_dimension_numbers<[1], [0], [0], [1], [0, 0, 1, 1], [], []>} : vector<8x8xf32>, vector<8x4xf32>, vector<8x4xf32> -> vector<8x4xf32>
    %330 = vector.extract_strided_slice %16 {offsets = [8, 20], sizes = [8, 4], strides = [1, 1]} : vector<16x96xf32> to vector<8x4xf32>
    %331 = vector.extract_strided_slice %16 {offsets = [8, 52], sizes = [8, 4], strides = [1, 1]} : vector<16x96xf32> to vector<8x4xf32>
    %332 = vector.extract_strided_slice %16 {offsets = [8, 84], sizes = [8, 4], strides = [1, 1]} : vector<16x96xf32> to vector<8x4xf32>
    %cst_118 = arith.constant dense<0.000000e+00> : vector<8x8xf32>
    %333 = tpu.matmul %330, %331, %cst_118 {dimension_numbers = #tpu.dot_dimension_numbers<[1], [1], [0], [0], [0, 0, 1, 0], [], []>} : vector<8x4xf32>, vector<8x4xf32>, vector<8x8xf32> -> vector<8x8xf32>
    %cst_119 = arith.constant 5.000000e-01 : f32
    %334 = vector.broadcast %cst_119 : f32 to vector<8x8xf32>
    %335 = arith.mulf %333, %334 : vector<8x8xf32>
    %336 = vector.extract_strided_slice %0 {offsets = [1, 0], sizes = [1, 8], strides = [1, 1]} : vector<2x8xf32> to vector<1x8xf32>
    %cst_120 = arith.constant 0.000000e+00 : f32
    %337 = vector.broadcast %cst_120 : f32 to vector<1x8xf32>
    %338 = arith.cmpf ogt, %336, %337 : vector<1x8xf32>
    %cst_121 = arith.constant -1.000000e+09 : f32
    %339 = vector.shape_cast %338 : vector<1x8xi1> to vector<1x8xi1>
    %340 = vector.broadcast %339 : vector<1x8xi1> to vector<8x8xi1>
    %341 = vector.broadcast %cst_121 : f32 to vector<8x8xf32>
    %342 = arith.select %340, %335, %341 : vector<8x8xi1>, vector<8x8xf32>
    %cst_122 = arith.constant dense<0xFF800000> : vector<8xf32>
    %343 = vector.multi_reduction <maximumf>, %342, %cst_122 [1] : vector<8x8xf32> to vector<8xf32>
    %344 = vector.shape_cast %343 : vector<8xf32> to vector<8x1xf32>
    %345 = vector.broadcast %344 : vector<8x1xf32> to vector<8x8xf32>
    %346 = arith.subf %342, %345 : vector<8x8xf32>
    %347 = math.exp %346 : vector<8x8xf32>
    %cst_123 = arith.constant dense<0.000000e+00> : vector<8xf32>
    %348 = vector.multi_reduction <add>, %347, %cst_123 [1] : vector<8x8xf32> to vector<8xf32>
    %349 = vector.shape_cast %348 : vector<8xf32> to vector<8x1xf32>
    %350 = tpu.reciprocal %349 {approx = true} : vector<8x1xf32> -> vector<8x1xf32>
    %351 = vector.broadcast %350 : vector<8x1xf32> to vector<8x8xf32>
    %352 = arith.mulf %347, %351 : vector<8x8xf32>
    %cst_124 = arith.constant dense<0.000000e+00> : vector<8x4xf32>
    %353 = tpu.matmul %352, %332, %cst_124 {dimension_numbers = #tpu.dot_dimension_numbers<[1], [0], [0], [1], [0, 0, 1, 1], [], []>} : vector<8x8xf32>, vector<8x4xf32>, vector<8x4xf32> -> vector<8x4xf32>
    %354 = vector.extract_strided_slice %16 {offsets = [8, 24], sizes = [8, 4], strides = [1, 1]} : vector<16x96xf32> to vector<8x4xf32>
    %355 = vector.extract_strided_slice %16 {offsets = [8, 56], sizes = [8, 4], strides = [1, 1]} : vector<16x96xf32> to vector<8x4xf32>
    %356 = vector.extract_strided_slice %16 {offsets = [8, 88], sizes = [8, 4], strides = [1, 1]} : vector<16x96xf32> to vector<8x4xf32>
    %cst_125 = arith.constant dense<0.000000e+00> : vector<8x8xf32>
    %357 = tpu.matmul %354, %355, %cst_125 {dimension_numbers = #tpu.dot_dimension_numbers<[1], [1], [0], [0], [0, 0, 1, 0], [], []>} : vector<8x4xf32>, vector<8x4xf32>, vector<8x8xf32> -> vector<8x8xf32>
    %cst_126 = arith.constant 5.000000e-01 : f32
    %358 = vector.broadcast %cst_126 : f32 to vector<8x8xf32>
    %359 = arith.mulf %357, %358 : vector<8x8xf32>
    %360 = vector.extract_strided_slice %0 {offsets = [1, 0], sizes = [1, 8], strides = [1, 1]} : vector<2x8xf32> to vector<1x8xf32>
    %cst_127 = arith.constant 0.000000e+00 : f32
    %361 = vector.broadcast %cst_127 : f32 to vector<1x8xf32>
    %362 = arith.cmpf ogt, %360, %361 : vector<1x8xf32>
    %cst_128 = arith.constant -1.000000e+09 : f32
    %363 = vector.shape_cast %362 : vector<1x8xi1> to vector<1x8xi1>
    %364 = vector.broadcast %363 : vector<1x8xi1> to vector<8x8xi1>
    %365 = vector.broadcast %cst_128 : f32 to vector<8x8xf32>
    %366 = arith.select %364, %359, %365 : vector<8x8xi1>, vector<8x8xf32>
    %cst_129 = arith.constant dense<0xFF800000> : vector<8xf32>
    %367 = vector.multi_reduction <maximumf>, %366, %cst_129 [1] : vector<8x8xf32> to vector<8xf32>
    %368 = vector.shape_cast %367 : vector<8xf32> to vector<8x1xf32>
    %369 = vector.broadcast %368 : vector<8x1xf32> to vector<8x8xf32>
    %370 = arith.subf %366, %369 : vector<8x8xf32>
    %371 = math.exp %370 : vector<8x8xf32>
    %cst_130 = arith.constant dense<0.000000e+00> : vector<8xf32>
    %372 = vector.multi_reduction <add>, %371, %cst_130 [1] : vector<8x8xf32> to vector<8xf32>
    %373 = vector.shape_cast %372 : vector<8xf32> to vector<8x1xf32>
    %374 = tpu.reciprocal %373 {approx = true} : vector<8x1xf32> -> vector<8x1xf32>
    %375 = vector.broadcast %374 : vector<8x1xf32> to vector<8x8xf32>
    %376 = arith.mulf %371, %375 : vector<8x8xf32>
    %cst_131 = arith.constant dense<0.000000e+00> : vector<8x4xf32>
    %377 = tpu.matmul %376, %356, %cst_131 {dimension_numbers = #tpu.dot_dimension_numbers<[1], [0], [0], [1], [0, 0, 1, 1], [], []>} : vector<8x8xf32>, vector<8x4xf32>, vector<8x4xf32> -> vector<8x4xf32>
    %378 = vector.extract_strided_slice %16 {offsets = [8, 28], sizes = [8, 4], strides = [1, 1]} : vector<16x96xf32> to vector<8x4xf32>
    %379 = vector.extract_strided_slice %16 {offsets = [8, 60], sizes = [8, 4], strides = [1, 1]} : vector<16x96xf32> to vector<8x4xf32>
    %380 = vector.extract_strided_slice %16 {offsets = [8, 92], sizes = [8, 4], strides = [1, 1]} : vector<16x96xf32> to vector<8x4xf32>
    %cst_132 = arith.constant dense<0.000000e+00> : vector<8x8xf32>
    %381 = tpu.matmul %378, %379, %cst_132 {dimension_numbers = #tpu.dot_dimension_numbers<[1], [1], [0], [0], [0, 0, 1, 0], [], []>} : vector<8x4xf32>, vector<8x4xf32>, vector<8x8xf32> -> vector<8x8xf32>
    %cst_133 = arith.constant 5.000000e-01 : f32
    %382 = vector.broadcast %cst_133 : f32 to vector<8x8xf32>
    %383 = arith.mulf %381, %382 : vector<8x8xf32>
    %384 = vector.extract_strided_slice %0 {offsets = [1, 0], sizes = [1, 8], strides = [1, 1]} : vector<2x8xf32> to vector<1x8xf32>
    %cst_134 = arith.constant 0.000000e+00 : f32
    %385 = vector.broadcast %cst_134 : f32 to vector<1x8xf32>
    %386 = arith.cmpf ogt, %384, %385 : vector<1x8xf32>
    %cst_135 = arith.constant -1.000000e+09 : f32
    %387 = vector.shape_cast %386 : vector<1x8xi1> to vector<1x8xi1>
    %388 = vector.broadcast %387 : vector<1x8xi1> to vector<8x8xi1>
    %389 = vector.broadcast %cst_135 : f32 to vector<8x8xf32>
    %390 = arith.select %388, %383, %389 : vector<8x8xi1>, vector<8x8xf32>
    %cst_136 = arith.constant dense<0xFF800000> : vector<8xf32>
    %391 = vector.multi_reduction <maximumf>, %390, %cst_136 [1] : vector<8x8xf32> to vector<8xf32>
    %392 = vector.shape_cast %391 : vector<8xf32> to vector<8x1xf32>
    %393 = vector.broadcast %392 : vector<8x1xf32> to vector<8x8xf32>
    %394 = arith.subf %390, %393 : vector<8x8xf32>
    %395 = math.exp %394 : vector<8x8xf32>
    %cst_137 = arith.constant dense<0.000000e+00> : vector<8xf32>
    %396 = vector.multi_reduction <add>, %395, %cst_137 [1] : vector<8x8xf32> to vector<8xf32>
    %397 = vector.shape_cast %396 : vector<8xf32> to vector<8x1xf32>
    %398 = tpu.reciprocal %397 {approx = true} : vector<8x1xf32> -> vector<8x1xf32>
    %399 = vector.broadcast %398 : vector<8x1xf32> to vector<8x8xf32>
    %400 = arith.mulf %395, %399 : vector<8x8xf32>
    %cst_138 = arith.constant dense<0.000000e+00> : vector<8x4xf32>
    %401 = tpu.matmul %400, %380, %cst_138 {dimension_numbers = #tpu.dot_dimension_numbers<[1], [0], [0], [1], [0, 0, 1, 1], [], []>} : vector<8x8xf32>, vector<8x4xf32>, vector<8x4xf32> -> vector<8x4xf32>
    %402 = tpu.concatenate %233, %257, %281, %305, %329, %353, %377, %401 in 1 : vector<8x4xf32>, vector<8x4xf32>, vector<8x4xf32>, vector<8x4xf32>, vector<8x4xf32>, vector<8x4xf32>, vector<8x4xf32>, vector<8x4xf32> -> vector<8x32xf32>
    %403 = tpu.concatenate %209, %402 in 0 : vector<8x32xf32>, vector<8x32xf32> -> vector<16x32xf32>
    %cst_139 = arith.constant dense<0.000000e+00> : vector<16x32xf32>
    %404 = tpu.matmul %403, %4, %cst_139 {dimension_numbers = #tpu.dot_dimension_numbers<[1], [0], [0], [1], [0, 0, 1, 1], [], []>} : vector<16x32xf32>, vector<32x32xf32>, vector<16x32xf32> -> vector<16x32xf32>
    %405 = arith.addf %1, %404 : vector<16x32xf32>
    %406 = vector.broadcast %5 : vector<1x32xf32> to vector<16x32xf32>
    %407 = arith.addf %405, %406 : vector<16x32xf32>
    %cst_140 = arith.constant dense<0.000000e+00> : vector<16xf32>
    %408 = vector.multi_reduction <add>, %407, %cst_140 [1] : vector<16x32xf32> to vector<16xf32>
    %409 = vector.shape_cast %408 : vector<16xf32> to vector<16x1xf32>
    %cst_141 = arith.constant 3.200000e+01 : f32
    %410 = vector.broadcast %cst_141 : f32 to vector<16x1xf32>
    %411 = arith.divf %409, %410 : vector<16x1xf32>
    %412 = vector.broadcast %411 : vector<16x1xf32> to vector<16x32xf32>
    %413 = arith.subf %407, %412 : vector<16x32xf32>
    %414 = arith.mulf %413, %413 : vector<16x32xf32>
    %cst_142 = arith.constant dense<0.000000e+00> : vector<16xf32>
    %415 = vector.multi_reduction <add>, %414, %cst_142 [1] : vector<16x32xf32> to vector<16xf32>
    %416 = vector.shape_cast %415 : vector<16xf32> to vector<16x1xf32>
    %cst_143 = arith.constant 3.200000e+01 : f32
    %417 = vector.broadcast %cst_143 : f32 to vector<16x1xf32>
    %418 = arith.divf %416, %417 : vector<16x1xf32>
    %419 = vector.broadcast %411 : vector<16x1xf32> to vector<16x32xf32>
    %420 = arith.subf %407, %419 : vector<16x32xf32>
    %cst_144 = arith.constant 9.99999996E-13 : f32
    %421 = vector.broadcast %cst_144 : f32 to vector<16x1xf32>
    %422 = arith.addf %418, %421 : vector<16x1xf32>
    %423 = math.rsqrt %422 : vector<16x1xf32>
    %424 = vector.broadcast %423 : vector<16x1xf32> to vector<16x32xf32>
    %425 = arith.mulf %420, %424 : vector<16x32xf32>
    %426 = vector.broadcast %6 : vector<1x32xf32> to vector<16x32xf32>
    %427 = arith.mulf %425, %426 : vector<16x32xf32>
    %428 = vector.broadcast %7 : vector<1x32xf32> to vector<16x32xf32>
    %429 = arith.addf %427, %428 : vector<16x32xf32>
    %cst_145 = arith.constant dense<0.000000e+00> : vector<16x64xf32>
    %430 = tpu.matmul %429, %8, %cst_145 {dimension_numbers = #tpu.dot_dimension_numbers<[1], [0], [0], [1], [0, 0, 1, 1], [], []>} : vector<16x32xf32>, vector<32x64xf32>, vector<16x64xf32> -> vector<16x64xf32>
    %431 = vector.broadcast %9 : vector<1x64xf32> to vector<16x64xf32>
    %432 = arith.addf %430, %431 : vector<16x64xf32>
    %433 = arith.mulf %432, %432 : vector<16x64xf32>
    %434 = arith.mulf %432, %433 : vector<16x64xf32>
    %cst_146 = arith.constant 4.471500e-02 : f32
    %435 = vector.broadcast %cst_146 : f32 to vector<16x64xf32>
    %436 = arith.mulf %435, %434 : vector<16x64xf32>
    %437 = arith.addf %432, %436 : vector<16x64xf32>
    %cst_147 = arith.constant 0.797884583 : f32
    %438 = vector.broadcast %cst_147 : f32 to vector<16x64xf32>
    %439 = arith.mulf %438, %437 : vector<16x64xf32>
    %440 = math.tanh %439 : vector<16x64xf32>
    %cst_148 = arith.constant 1.000000e+00 : f32
    %441 = vector.broadcast %cst_148 : f32 to vector<16x64xf32>
    %442 = arith.addf %441, %440 : vector<16x64xf32>
    %cst_149 = arith.constant 5.000000e-01 : f32
    %443 = vector.broadcast %cst_149 : f32 to vector<16x64xf32>
    %444 = arith.mulf %443, %442 : vector<16x64xf32>
    %445 = arith.mulf %432, %444 : vector<16x64xf32>
    %cst_150 = arith.constant dense<0.000000e+00> : vector<16x32xf32>
    %446 = tpu.matmul %445, %10, %cst_150 {dimension_numbers = #tpu.dot_dimension_numbers<[1], [0], [0], [1], [0, 0, 1, 1], [], []>} : vector<16x64xf32>, vector<64x32xf32>, vector<16x32xf32> -> vector<16x32xf32>
    %447 = vector.broadcast %11 : vector<1x32xf32> to vector<16x32xf32>
    %448 = arith.addf %446, %447 : vector<16x32xf32>
    %449 = arith.addf %429, %448 : vector<16x32xf32>
    %cst_151 = arith.constant dense<0.000000e+00> : vector<16xf32>
    %450 = vector.multi_reduction <add>, %449, %cst_151 [1] : vector<16x32xf32> to vector<16xf32>
    %451 = vector.shape_cast %450 : vector<16xf32> to vector<16x1xf32>
    %cst_152 = arith.constant 3.200000e+01 : f32
    %452 = vector.broadcast %cst_152 : f32 to vector<16x1xf32>
    %453 = arith.divf %451, %452 : vector<16x1xf32>
    %454 = vector.broadcast %453 : vector<16x1xf32> to vector<16x32xf32>
    %455 = arith.subf %449, %454 : vector<16x32xf32>
    %456 = arith.mulf %455, %455 : vector<16x32xf32>
    %cst_153 = arith.constant dense<0.000000e+00> : vector<16xf32>
    %457 = vector.multi_reduction <add>, %456, %cst_153 [1] : vector<16x32xf32> to vector<16xf32>
    %458 = vector.shape_cast %457 : vector<16xf32> to vector<16x1xf32>
    %cst_154 = arith.constant 3.200000e+01 : f32
    %459 = vector.broadcast %cst_154 : f32 to vector<16x1xf32>
    %460 = arith.divf %458, %459 : vector<16x1xf32>
    %461 = vector.broadcast %453 : vector<16x1xf32> to vector<16x32xf32>
    %462 = arith.subf %449, %461 : vector<16x32xf32>
    %cst_155 = arith.constant 9.99999996E-13 : f32
    %463 = vector.broadcast %cst_155 : f32 to vector<16x1xf32>
    %464 = arith.addf %460, %463 : vector<16x1xf32>
    %465 = math.rsqrt %464 : vector<16x1xf32>
    %466 = vector.broadcast %465 : vector<16x1xf32> to vector<16x32xf32>
    %467 = arith.mulf %462, %466 : vector<16x32xf32>
    %468 = vector.broadcast %12 : vector<1x32xf32> to vector<16x32xf32>
    %469 = arith.mulf %467, %468 : vector<16x32xf32>
    %470 = vector.broadcast %13 : vector<1x32xf32> to vector<16x32xf32>
    %471 = arith.addf %469, %470 : vector<16x32xf32>
    %c0_156 = arith.constant 0 : index
    %c0_157 = arith.constant 0 : index
    %472 = vector.load %arg2[%c0_156, %c0_157] : memref<16x1xf32, #tpu.memory_space<vmem>>, vector<16x1xf32>
    %473 = vector.broadcast %472 : vector<16x1xf32> to vector<16x32xf32>
    %474 = arith.mulf %471, %473 : vector<16x32xf32>
    %c0_158 = arith.constant 0 : index
    %c0_159 = arith.constant 0 : index
    %475 = vector.load %arg15[%c0_158, %c0_159] : memref<16x32xf32, #tpu.memory_space<vmem>>, vector<16x32xf32>
    tpu.vector_store %arg15[%c0_158, %c0_159], %474 {strides = array<i32>} : memref<16x32xf32, #tpu.memory_space<vmem>>, vector<16x32xf32>,
    return
  }
}

module attributes {stable_mosaic.version = 11 : i64} {
  func.func @_encoder_layer_kernel(%arg0: memref<16x32xf32, #tpu.memory_space<vmem>>, %arg1: memref<32x96xf32, #tpu.memory_space<vmem>>, %arg2: memref<1x96xf32, #tpu.memory_space<vmem>>, %arg3: memref<32x32xf32, #tpu.memory_space<vmem>>, %arg4: memref<1x32xf32, #tpu.memory_space<vmem>>, %arg5: memref<1x32xf32, #tpu.memory_space<vmem>>, %arg6: memref<1x32xf32, #tpu.memory_space<vmem>>, %arg7: memref<32x64xf32, #tpu.memory_space<vmem>>, %arg8: memref<1x64xf32, #tpu.memory_space<vmem>>, %arg9: memref<64x32xf32, #tpu.memory_space<vmem>>, %arg10: memref<1x32xf32, #tpu.memory_space<vmem>>, %arg11: memref<1x32xf32, #tpu.memory_space<vmem>>, %arg12: memref<1x32xf32, #tpu.memory_space<vmem>>, %arg13: memref<16x32xf32, #tpu.memory_space<vmem>>) attributes {dimension_semantics = [], scalar_prefetch = 0 : i64, scratch_operands = 0 : i64, tpu.core_type = #tpu.core_type<tc>} {
    %c0 = arith.constant 0 : index
    %c0_0 = arith.constant 0 : index
    %0 = vector.load %arg0[%c0, %c0_0] : memref<16x32xf32, #tpu.memory_space<vmem>>, vector<16x32xf32>
    %c0_1 = arith.constant 0 : index
    %c0_2 = arith.constant 0 : index
    %1 = vector.load %arg1[%c0_1, %c0_2] : memref<32x96xf32, #tpu.memory_space<vmem>>, vector<32x96xf32>
    %c0_3 = arith.constant 0 : index
    %c0_4 = arith.constant 0 : index
    %2 = vector.load %arg2[%c0_3, %c0_4] : memref<1x96xf32, #tpu.memory_space<vmem>>, vector<1x96xf32>
    %c0_5 = arith.constant 0 : index
    %c0_6 = arith.constant 0 : index
    %3 = vector.load %arg3[%c0_5, %c0_6] : memref<32x32xf32, #tpu.memory_space<vmem>>, vector<32x32xf32>
    %c0_7 = arith.constant 0 : index
    %c0_8 = arith.constant 0 : index
    %4 = vector.load %arg4[%c0_7, %c0_8] : memref<1x32xf32, #tpu.memory_space<vmem>>, vector<1x32xf32>
    %c0_9 = arith.constant 0 : index
    %c0_10 = arith.constant 0 : index
    %5 = vector.load %arg5[%c0_9, %c0_10] : memref<1x32xf32, #tpu.memory_space<vmem>>, vector<1x32xf32>
    %c0_11 = arith.constant 0 : index
    %c0_12 = arith.constant 0 : index
    %6 = vector.load %arg6[%c0_11, %c0_12] : memref<1x32xf32, #tpu.memory_space<vmem>>, vector<1x32xf32>
    %c0_13 = arith.constant 0 : index
    %c0_14 = arith.constant 0 : index
    %7 = vector.load %arg7[%c0_13, %c0_14] : memref<32x64xf32, #tpu.memory_space<vmem>>, vector<32x64xf32>
    %c0_15 = arith.constant 0 : index
    %c0_16 = arith.constant 0 : index
    %8 = vector.load %arg8[%c0_15, %c0_16] : memref<1x64xf32, #tpu.memory_space<vmem>>, vector<1x64xf32>
    %c0_17 = arith.constant 0 : index
    %c0_18 = arith.constant 0 : index
    %9 = vector.load %arg9[%c0_17, %c0_18] : memref<64x32xf32, #tpu.memory_space<vmem>>, vector<64x32xf32>
    %c0_19 = arith.constant 0 : index
    %c0_20 = arith.constant 0 : index
    %10 = vector.load %arg10[%c0_19, %c0_20] : memref<1x32xf32, #tpu.memory_space<vmem>>, vector<1x32xf32>
    %c0_21 = arith.constant 0 : index
    %c0_22 = arith.constant 0 : index
    %11 = vector.load %arg11[%c0_21, %c0_22] : memref<1x32xf32, #tpu.memory_space<vmem>>, vector<1x32xf32>
    %c0_23 = arith.constant 0 : index
    %c0_24 = arith.constant 0 : index
    %12 = vector.load %arg12[%c0_23, %c0_24] : memref<1x32xf32, #tpu.memory_space<vmem>>, vector<1x32xf32>
    %cst = arith.constant dense<0.000000e+00> : vector<16x96xf32>
    %13 = tpu.matmul %0, %1, %cst {dimension_numbers = #tpu.dot_dimension_numbers<[1], [0], [0], [1], [0, 0, 1, 1], [], []>} : vector<16x32xf32>, vector<32x96xf32>, vector<16x96xf32> -> vector<16x96xf32>
    %14 = vector.broadcast %2 : vector<1x96xf32> to vector<16x96xf32>
    %15 = arith.addf %13, %14 : vector<16x96xf32>
    %16 = vector.extract_strided_slice %15 {offsets = [0, 0], sizes = [8, 4], strides = [1, 1]} : vector<16x96xf32> to vector<8x4xf32>
    %17 = vector.extract_strided_slice %15 {offsets = [0, 32], sizes = [8, 4], strides = [1, 1]} : vector<16x96xf32> to vector<8x4xf32>
    %18 = vector.extract_strided_slice %15 {offsets = [0, 64], sizes = [8, 4], strides = [1, 1]} : vector<16x96xf32> to vector<8x4xf32>
    %19 = vector.extract_strided_slice %15 {offsets = [8, 0], sizes = [8, 4], strides = [1, 1]} : vector<16x96xf32> to vector<8x4xf32>
    %20 = vector.extract_strided_slice %15 {offsets = [8, 32], sizes = [8, 4], strides = [1, 1]} : vector<16x96xf32> to vector<8x4xf32>
    %21 = vector.extract_strided_slice %15 {offsets = [8, 64], sizes = [8, 4], strides = [1, 1]} : vector<16x96xf32> to vector<8x4xf32>
    %22 = arith.mulf %16, %17 : vector<8x4xf32>
    %cst_25 = arith.constant dense<0.000000e+00> : vector<8xf32>
    %23 = vector.multi_reduction <add>, %22, %cst_25 [1] : vector<8x4xf32> to vector<8xf32>
    %24 = vector.shape_cast %23 : vector<8xf32> to vector<8x1xf32>
    %cst_26 = arith.constant 5.000000e-01 : f32
    %25 = vector.broadcast %cst_26 : f32 to vector<8x1xf32>
    %26 = arith.mulf %24, %25 : vector<8x1xf32>
    %27 = arith.mulf %16, %20 : vector<8x4xf32>
    %cst_27 = arith.constant dense<0.000000e+00> : vector<8xf32>
    %28 = vector.multi_reduction <add>, %27, %cst_27 [1] : vector<8x4xf32> to vector<8xf32>
    %29 = vector.shape_cast %28 : vector<8xf32> to vector<8x1xf32>
    %cst_28 = arith.constant 5.000000e-01 : f32
    %30 = vector.broadcast %cst_28 : f32 to vector<8x1xf32>
    %31 = arith.mulf %29, %30 : vector<8x1xf32>
    %32 = arith.maximumf %26, %31 : vector<8x1xf32>
    %33 = arith.subf %26, %32 : vector<8x1xf32>
    %34 = math.exp %33 : vector<8x1xf32>
    %35 = arith.subf %31, %32 : vector<8x1xf32>
    %36 = math.exp %35 : vector<8x1xf32>
    %37 = arith.addf %34, %36 : vector<8x1xf32>
    %38 = tpu.reciprocal %37 {approx = true} : vector<8x1xf32> -> vector<8x1xf32>
    %39 = vector.broadcast %34 : vector<8x1xf32> to vector<8x4xf32>
    %40 = arith.mulf %39, %18 : vector<8x4xf32>
    %41 = vector.broadcast %36 : vector<8x1xf32> to vector<8x4xf32>
    %42 = arith.mulf %41, %21 : vector<8x4xf32>
    %43 = arith.addf %40, %42 : vector<8x4xf32>
    %44 = vector.broadcast %38 : vector<8x1xf32> to vector<8x4xf32>
    %45 = arith.mulf %43, %44 : vector<8x4xf32>
    %46 = arith.mulf %19, %17 : vector<8x4xf32>
    %cst_29 = arith.constant dense<0.000000e+00> : vector<8xf32>
    %47 = vector.multi_reduction <add>, %46, %cst_29 [1] : vector<8x4xf32> to vector<8xf32>
    %48 = vector.shape_cast %47 : vector<8xf32> to vector<8x1xf32>
    %cst_30 = arith.constant 5.000000e-01 : f32
    %49 = vector.broadcast %cst_30 : f32 to vector<8x1xf32>
    %50 = arith.mulf %48, %49 : vector<8x1xf32>
    %51 = arith.mulf %19, %20 : vector<8x4xf32>
    %cst_31 = arith.constant dense<0.000000e+00> : vector<8xf32>
    %52 = vector.multi_reduction <add>, %51, %cst_31 [1] : vector<8x4xf32> to vector<8xf32>
    %53 = vector.shape_cast %52 : vector<8xf32> to vector<8x1xf32>
    %cst_32 = arith.constant 5.000000e-01 : f32
    %54 = vector.broadcast %cst_32 : f32 to vector<8x1xf32>
    %55 = arith.mulf %53, %54 : vector<8x1xf32>
    %56 = arith.maximumf %50, %55 : vector<8x1xf32>
    %57 = arith.subf %50, %56 : vector<8x1xf32>
    %58 = math.exp %57 : vector<8x1xf32>
    %59 = arith.subf %55, %56 : vector<8x1xf32>
    %60 = math.exp %59 : vector<8x1xf32>
    %61 = arith.addf %58, %60 : vector<8x1xf32>
    %62 = tpu.reciprocal %61 {approx = true} : vector<8x1xf32> -> vector<8x1xf32>
    %63 = vector.broadcast %58 : vector<8x1xf32> to vector<8x4xf32>
    %64 = arith.mulf %63, %18 : vector<8x4xf32>
    %65 = vector.broadcast %60 : vector<8x1xf32> to vector<8x4xf32>
    %66 = arith.mulf %65, %21 : vector<8x4xf32>
    %67 = arith.addf %64, %66 : vector<8x4xf32>
    %68 = vector.broadcast %62 : vector<8x1xf32> to vector<8x4xf32>
    %69 = arith.mulf %67, %68 : vector<8x4xf32>
    %70 = vector.extract_strided_slice %15 {offsets = [0, 4], sizes = [8, 4], strides = [1, 1]} : vector<16x96xf32> to vector<8x4xf32>
    %71 = vector.extract_strided_slice %15 {offsets = [0, 36], sizes = [8, 4], strides = [1, 1]} : vector<16x96xf32> to vector<8x4xf32>
    %72 = vector.extract_strided_slice %15 {offsets = [0, 68], sizes = [8, 4], strides = [1, 1]} : vector<16x96xf32> to vector<8x4xf32>
    %73 = vector.extract_strided_slice %15 {offsets = [8, 4], sizes = [8, 4], strides = [1, 1]} : vector<16x96xf32> to vector<8x4xf32>
    %74 = vector.extract_strided_slice %15 {offsets = [8, 36], sizes = [8, 4], strides = [1, 1]} : vector<16x96xf32> to vector<8x4xf32>
    %75 = vector.extract_strided_slice %15 {offsets = [8, 68], sizes = [8, 4], strides = [1, 1]} : vector<16x96xf32> to vector<8x4xf32>
    %76 = arith.mulf %70, %71 : vector<8x4xf32>
    %cst_33 = arith.constant dense<0.000000e+00> : vector<8xf32>
    %77 = vector.multi_reduction <add>, %76, %cst_33 [1] : vector<8x4xf32> to vector<8xf32>
    %78 = vector.shape_cast %77 : vector<8xf32> to vector<8x1xf32>
    %cst_34 = arith.constant 5.000000e-01 : f32
    %79 = vector.broadcast %cst_34 : f32 to vector<8x1xf32>
    %80 = arith.mulf %78, %79 : vector<8x1xf32>
    %81 = arith.mulf %70, %74 : vector<8x4xf32>
    %cst_35 = arith.constant dense<0.000000e+00> : vector<8xf32>
    %82 = vector.multi_reduction <add>, %81, %cst_35 [1] : vector<8x4xf32> to vector<8xf32>
    %83 = vector.shape_cast %82 : vector<8xf32> to vector<8x1xf32>
    %cst_36 = arith.constant 5.000000e-01 : f32
    %84 = vector.broadcast %cst_36 : f32 to vector<8x1xf32>
    %85 = arith.mulf %83, %84 : vector<8x1xf32>
    %86 = arith.maximumf %80, %85 : vector<8x1xf32>
    %87 = arith.subf %80, %86 : vector<8x1xf32>
    %88 = math.exp %87 : vector<8x1xf32>
    %89 = arith.subf %85, %86 : vector<8x1xf32>
    %90 = math.exp %89 : vector<8x1xf32>
    %91 = arith.addf %88, %90 : vector<8x1xf32>
    %92 = tpu.reciprocal %91 {approx = true} : vector<8x1xf32> -> vector<8x1xf32>
    %93 = vector.broadcast %88 : vector<8x1xf32> to vector<8x4xf32>
    %94 = arith.mulf %93, %72 : vector<8x4xf32>
    %95 = vector.broadcast %90 : vector<8x1xf32> to vector<8x4xf32>
    %96 = arith.mulf %95, %75 : vector<8x4xf32>
    %97 = arith.addf %94, %96 : vector<8x4xf32>
    %98 = vector.broadcast %92 : vector<8x1xf32> to vector<8x4xf32>
    %99 = arith.mulf %97, %98 : vector<8x4xf32>
    %100 = arith.mulf %73, %71 : vector<8x4xf32>
    %cst_37 = arith.constant dense<0.000000e+00> : vector<8xf32>
    %101 = vector.multi_reduction <add>, %100, %cst_37 [1] : vector<8x4xf32> to vector<8xf32>
    %102 = vector.shape_cast %101 : vector<8xf32> to vector<8x1xf32>
    %cst_38 = arith.constant 5.000000e-01 : f32
    %103 = vector.broadcast %cst_38 : f32 to vector<8x1xf32>
    %104 = arith.mulf %102, %103 : vector<8x1xf32>
    %105 = arith.mulf %73, %74 : vector<8x4xf32>
    %cst_39 = arith.constant dense<0.000000e+00> : vector<8xf32>
    %106 = vector.multi_reduction <add>, %105, %cst_39 [1] : vector<8x4xf32> to vector<8xf32>
    %107 = vector.shape_cast %106 : vector<8xf32> to vector<8x1xf32>
    %cst_40 = arith.constant 5.000000e-01 : f32
    %108 = vector.broadcast %cst_40 : f32 to vector<8x1xf32>
    %109 = arith.mulf %107, %108 : vector<8x1xf32>
    %110 = arith.maximumf %104, %109 : vector<8x1xf32>
    %111 = arith.subf %104, %110 : vector<8x1xf32>
    %112 = math.exp %111 : vector<8x1xf32>
    %113 = arith.subf %109, %110 : vector<8x1xf32>
    %114 = math.exp %113 : vector<8x1xf32>
    %115 = arith.addf %112, %114 : vector<8x1xf32>
    %116 = tpu.reciprocal %115 {approx = true} : vector<8x1xf32> -> vector<8x1xf32>
    %117 = vector.broadcast %112 : vector<8x1xf32> to vector<8x4xf32>
    %118 = arith.mulf %117, %72 : vector<8x4xf32>
    %119 = vector.broadcast %114 : vector<8x1xf32> to vector<8x4xf32>
    %120 = arith.mulf %119, %75 : vector<8x4xf32>
    %121 = arith.addf %118, %120 : vector<8x4xf32>
    %122 = vector.broadcast %116 : vector<8x1xf32> to vector<8x4xf32>
    %123 = arith.mulf %121, %122 : vector<8x4xf32>
    %124 = vector.extract_strided_slice %15 {offsets = [0, 8], sizes = [8, 4], strides = [1, 1]} : vector<16x96xf32> to vector<8x4xf32>
    %125 = vector.extract_strided_slice %15 {offsets = [0, 40], sizes = [8, 4], strides = [1, 1]} : vector<16x96xf32> to vector<8x4xf32>
    %126 = vector.extract_strided_slice %15 {offsets = [0, 72], sizes = [8, 4], strides = [1, 1]} : vector<16x96xf32> to vector<8x4xf32>
    %127 = vector.extract_strided_slice %15 {offsets = [8, 8], sizes = [8, 4], strides = [1, 1]} : vector<16x96xf32> to vector<8x4xf32>
    %128 = vector.extract_strided_slice %15 {offsets = [8, 40], sizes = [8, 4], strides = [1, 1]} : vector<16x96xf32> to vector<8x4xf32>
    %129 = vector.extract_strided_slice %15 {offsets = [8, 72], sizes = [8, 4], strides = [1, 1]} : vector<16x96xf32> to vector<8x4xf32>
    %130 = arith.mulf %124, %125 : vector<8x4xf32>
    %cst_41 = arith.constant dense<0.000000e+00> : vector<8xf32>
    %131 = vector.multi_reduction <add>, %130, %cst_41 [1] : vector<8x4xf32> to vector<8xf32>
    %132 = vector.shape_cast %131 : vector<8xf32> to vector<8x1xf32>
    %cst_42 = arith.constant 5.000000e-01 : f32
    %133 = vector.broadcast %cst_42 : f32 to vector<8x1xf32>
    %134 = arith.mulf %132, %133 : vector<8x1xf32>
    %135 = arith.mulf %124, %128 : vector<8x4xf32>
    %cst_43 = arith.constant dense<0.000000e+00> : vector<8xf32>
    %136 = vector.multi_reduction <add>, %135, %cst_43 [1] : vector<8x4xf32> to vector<8xf32>
    %137 = vector.shape_cast %136 : vector<8xf32> to vector<8x1xf32>
    %cst_44 = arith.constant 5.000000e-01 : f32
    %138 = vector.broadcast %cst_44 : f32 to vector<8x1xf32>
    %139 = arith.mulf %137, %138 : vector<8x1xf32>
    %140 = arith.maximumf %134, %139 : vector<8x1xf32>
    %141 = arith.subf %134, %140 : vector<8x1xf32>
    %142 = math.exp %141 : vector<8x1xf32>
    %143 = arith.subf %139, %140 : vector<8x1xf32>
    %144 = math.exp %143 : vector<8x1xf32>
    %145 = arith.addf %142, %144 : vector<8x1xf32>
    %146 = tpu.reciprocal %145 {approx = true} : vector<8x1xf32> -> vector<8x1xf32>
    %147 = vector.broadcast %142 : vector<8x1xf32> to vector<8x4xf32>
    %148 = arith.mulf %147, %126 : vector<8x4xf32>
    %149 = vector.broadcast %144 : vector<8x1xf32> to vector<8x4xf32>
    %150 = arith.mulf %149, %129 : vector<8x4xf32>
    %151 = arith.addf %148, %150 : vector<8x4xf32>
    %152 = vector.broadcast %146 : vector<8x1xf32> to vector<8x4xf32>
    %153 = arith.mulf %151, %152 : vector<8x4xf32>
    %154 = arith.mulf %127, %125 : vector<8x4xf32>
    %cst_45 = arith.constant dense<0.000000e+00> : vector<8xf32>
    %155 = vector.multi_reduction <add>, %154, %cst_45 [1] : vector<8x4xf32> to vector<8xf32>
    %156 = vector.shape_cast %155 : vector<8xf32> to vector<8x1xf32>
    %cst_46 = arith.constant 5.000000e-01 : f32
    %157 = vector.broadcast %cst_46 : f32 to vector<8x1xf32>
    %158 = arith.mulf %156, %157 : vector<8x1xf32>
    %159 = arith.mulf %127, %128 : vector<8x4xf32>
    %cst_47 = arith.constant dense<0.000000e+00> : vector<8xf32>
    %160 = vector.multi_reduction <add>, %159, %cst_47 [1] : vector<8x4xf32> to vector<8xf32>
    %161 = vector.shape_cast %160 : vector<8xf32> to vector<8x1xf32>
    %cst_48 = arith.constant 5.000000e-01 : f32
    %162 = vector.broadcast %cst_48 : f32 to vector<8x1xf32>
    %163 = arith.mulf %161, %162 : vector<8x1xf32>
    %164 = arith.maximumf %158, %163 : vector<8x1xf32>
    %165 = arith.subf %158, %164 : vector<8x1xf32>
    %166 = math.exp %165 : vector<8x1xf32>
    %167 = arith.subf %163, %164 : vector<8x1xf32>
    %168 = math.exp %167 : vector<8x1xf32>
    %169 = arith.addf %166, %168 : vector<8x1xf32>
    %170 = tpu.reciprocal %169 {approx = true} : vector<8x1xf32> -> vector<8x1xf32>
    %171 = vector.broadcast %166 : vector<8x1xf32> to vector<8x4xf32>
    %172 = arith.mulf %171, %126 : vector<8x4xf32>
    %173 = vector.broadcast %168 : vector<8x1xf32> to vector<8x4xf32>
    %174 = arith.mulf %173, %129 : vector<8x4xf32>
    %175 = arith.addf %172, %174 : vector<8x4xf32>
    %176 = vector.broadcast %170 : vector<8x1xf32> to vector<8x4xf32>
    %177 = arith.mulf %175, %176 : vector<8x4xf32>
    %178 = vector.extract_strided_slice %15 {offsets = [0, 12], sizes = [8, 4], strides = [1, 1]} : vector<16x96xf32> to vector<8x4xf32>
    %179 = vector.extract_strided_slice %15 {offsets = [0, 44], sizes = [8, 4], strides = [1, 1]} : vector<16x96xf32> to vector<8x4xf32>
    %180 = vector.extract_strided_slice %15 {offsets = [0, 76], sizes = [8, 4], strides = [1, 1]} : vector<16x96xf32> to vector<8x4xf32>
    %181 = vector.extract_strided_slice %15 {offsets = [8, 12], sizes = [8, 4], strides = [1, 1]} : vector<16x96xf32> to vector<8x4xf32>
    %182 = vector.extract_strided_slice %15 {offsets = [8, 44], sizes = [8, 4], strides = [1, 1]} : vector<16x96xf32> to vector<8x4xf32>
    %183 = vector.extract_strided_slice %15 {offsets = [8, 76], sizes = [8, 4], strides = [1, 1]} : vector<16x96xf32> to vector<8x4xf32>
    %184 = arith.mulf %178, %179 : vector<8x4xf32>
    %cst_49 = arith.constant dense<0.000000e+00> : vector<8xf32>
    %185 = vector.multi_reduction <add>, %184, %cst_49 [1] : vector<8x4xf32> to vector<8xf32>
    %186 = vector.shape_cast %185 : vector<8xf32> to vector<8x1xf32>
    %cst_50 = arith.constant 5.000000e-01 : f32
    %187 = vector.broadcast %cst_50 : f32 to vector<8x1xf32>
    %188 = arith.mulf %186, %187 : vector<8x1xf32>
    %189 = arith.mulf %178, %182 : vector<8x4xf32>
    %cst_51 = arith.constant dense<0.000000e+00> : vector<8xf32>
    %190 = vector.multi_reduction <add>, %189, %cst_51 [1] : vector<8x4xf32> to vector<8xf32>
    %191 = vector.shape_cast %190 : vector<8xf32> to vector<8x1xf32>
    %cst_52 = arith.constant 5.000000e-01 : f32
    %192 = vector.broadcast %cst_52 : f32 to vector<8x1xf32>
    %193 = arith.mulf %191, %192 : vector<8x1xf32>
    %194 = arith.maximumf %188, %193 : vector<8x1xf32>
    %195 = arith.subf %188, %194 : vector<8x1xf32>
    %196 = math.exp %195 : vector<8x1xf32>
    %197 = arith.subf %193, %194 : vector<8x1xf32>
    %198 = math.exp %197 : vector<8x1xf32>
    %199 = arith.addf %196, %198 : vector<8x1xf32>
    %200 = tpu.reciprocal %199 {approx = true} : vector<8x1xf32> -> vector<8x1xf32>
    %201 = vector.broadcast %196 : vector<8x1xf32> to vector<8x4xf32>
    %202 = arith.mulf %201, %180 : vector<8x4xf32>
    %203 = vector.broadcast %198 : vector<8x1xf32> to vector<8x4xf32>
    %204 = arith.mulf %203, %183 : vector<8x4xf32>
    %205 = arith.addf %202, %204 : vector<8x4xf32>
    %206 = vector.broadcast %200 : vector<8x1xf32> to vector<8x4xf32>
    %207 = arith.mulf %205, %206 : vector<8x4xf32>
    %208 = arith.mulf %181, %179 : vector<8x4xf32>
    %cst_53 = arith.constant dense<0.000000e+00> : vector<8xf32>
    %209 = vector.multi_reduction <add>, %208, %cst_53 [1] : vector<8x4xf32> to vector<8xf32>
    %210 = vector.shape_cast %209 : vector<8xf32> to vector<8x1xf32>
    %cst_54 = arith.constant 5.000000e-01 : f32
    %211 = vector.broadcast %cst_54 : f32 to vector<8x1xf32>
    %212 = arith.mulf %210, %211 : vector<8x1xf32>
    %213 = arith.mulf %181, %182 : vector<8x4xf32>
    %cst_55 = arith.constant dense<0.000000e+00> : vector<8xf32>
    %214 = vector.multi_reduction <add>, %213, %cst_55 [1] : vector<8x4xf32> to vector<8xf32>
    %215 = vector.shape_cast %214 : vector<8xf32> to vector<8x1xf32>
    %cst_56 = arith.constant 5.000000e-01 : f32
    %216 = vector.broadcast %cst_56 : f32 to vector<8x1xf32>
    %217 = arith.mulf %215, %216 : vector<8x1xf32>
    %218 = arith.maximumf %212, %217 : vector<8x1xf32>
    %219 = arith.subf %212, %218 : vector<8x1xf32>
    %220 = math.exp %219 : vector<8x1xf32>
    %221 = arith.subf %217, %218 : vector<8x1xf32>
    %222 = math.exp %221 : vector<8x1xf32>
    %223 = arith.addf %220, %222 : vector<8x1xf32>
    %224 = tpu.reciprocal %223 {approx = true} : vector<8x1xf32> -> vector<8x1xf32>
    %225 = vector.broadcast %220 : vector<8x1xf32> to vector<8x4xf32>
    %226 = arith.mulf %225, %180 : vector<8x4xf32>
    %227 = vector.broadcast %222 : vector<8x1xf32> to vector<8x4xf32>
    %228 = arith.mulf %227, %183 : vector<8x4xf32>
    %229 = arith.addf %226, %228 : vector<8x4xf32>
    %230 = vector.broadcast %224 : vector<8x1xf32> to vector<8x4xf32>
    %231 = arith.mulf %229, %230 : vector<8x4xf32>
    %232 = vector.extract_strided_slice %15 {offsets = [0, 16], sizes = [8, 4], strides = [1, 1]} : vector<16x96xf32> to vector<8x4xf32>
    %233 = vector.extract_strided_slice %15 {offsets = [0, 48], sizes = [8, 4], strides = [1, 1]} : vector<16x96xf32> to vector<8x4xf32>
    %234 = vector.extract_strided_slice %15 {offsets = [0, 80], sizes = [8, 4], strides = [1, 1]} : vector<16x96xf32> to vector<8x4xf32>
    %235 = vector.extract_strided_slice %15 {offsets = [8, 16], sizes = [8, 4], strides = [1, 1]} : vector<16x96xf32> to vector<8x4xf32>
    %236 = vector.extract_strided_slice %15 {offsets = [8, 48], sizes = [8, 4], strides = [1, 1]} : vector<16x96xf32> to vector<8x4xf32>
    %237 = vector.extract_strided_slice %15 {offsets = [8, 80], sizes = [8, 4], strides = [1, 1]} : vector<16x96xf32> to vector<8x4xf32>
    %238 = arith.mulf %232, %233 : vector<8x4xf32>
    %cst_57 = arith.constant dense<0.000000e+00> : vector<8xf32>
    %239 = vector.multi_reduction <add>, %238, %cst_57 [1] : vector<8x4xf32> to vector<8xf32>
    %240 = vector.shape_cast %239 : vector<8xf32> to vector<8x1xf32>
    %cst_58 = arith.constant 5.000000e-01 : f32
    %241 = vector.broadcast %cst_58 : f32 to vector<8x1xf32>
    %242 = arith.mulf %240, %241 : vector<8x1xf32>
    %243 = arith.mulf %232, %236 : vector<8x4xf32>
    %cst_59 = arith.constant dense<0.000000e+00> : vector<8xf32>
    %244 = vector.multi_reduction <add>, %243, %cst_59 [1] : vector<8x4xf32> to vector<8xf32>
    %245 = vector.shape_cast %244 : vector<8xf32> to vector<8x1xf32>
    %cst_60 = arith.constant 5.000000e-01 : f32
    %246 = vector.broadcast %cst_60 : f32 to vector<8x1xf32>
    %247 = arith.mulf %245, %246 : vector<8x1xf32>
    %248 = arith.maximumf %242, %247 : vector<8x1xf32>
    %249 = arith.subf %242, %248 : vector<8x1xf32>
    %250 = math.exp %249 : vector<8x1xf32>
    %251 = arith.subf %247, %248 : vector<8x1xf32>
    %252 = math.exp %251 : vector<8x1xf32>
    %253 = arith.addf %250, %252 : vector<8x1xf32>
    %254 = tpu.reciprocal %253 {approx = true} : vector<8x1xf32> -> vector<8x1xf32>
    %255 = vector.broadcast %250 : vector<8x1xf32> to vector<8x4xf32>
    %256 = arith.mulf %255, %234 : vector<8x4xf32>
    %257 = vector.broadcast %252 : vector<8x1xf32> to vector<8x4xf32>
    %258 = arith.mulf %257, %237 : vector<8x4xf32>
    %259 = arith.addf %256, %258 : vector<8x4xf32>
    %260 = vector.broadcast %254 : vector<8x1xf32> to vector<8x4xf32>
    %261 = arith.mulf %259, %260 : vector<8x4xf32>
    %262 = arith.mulf %235, %233 : vector<8x4xf32>
    %cst_61 = arith.constant dense<0.000000e+00> : vector<8xf32>
    %263 = vector.multi_reduction <add>, %262, %cst_61 [1] : vector<8x4xf32> to vector<8xf32>
    %264 = vector.shape_cast %263 : vector<8xf32> to vector<8x1xf32>
    %cst_62 = arith.constant 5.000000e-01 : f32
    %265 = vector.broadcast %cst_62 : f32 to vector<8x1xf32>
    %266 = arith.mulf %264, %265 : vector<8x1xf32>
    %267 = arith.mulf %235, %236 : vector<8x4xf32>
    %cst_63 = arith.constant dense<0.000000e+00> : vector<8xf32>
    %268 = vector.multi_reduction <add>, %267, %cst_63 [1] : vector<8x4xf32> to vector<8xf32>
    %269 = vector.shape_cast %268 : vector<8xf32> to vector<8x1xf32>
    %cst_64 = arith.constant 5.000000e-01 : f32
    %270 = vector.broadcast %cst_64 : f32 to vector<8x1xf32>
    %271 = arith.mulf %269, %270 : vector<8x1xf32>
    %272 = arith.maximumf %266, %271 : vector<8x1xf32>
    %273 = arith.subf %266, %272 : vector<8x1xf32>
    %274 = math.exp %273 : vector<8x1xf32>
    %275 = arith.subf %271, %272 : vector<8x1xf32>
    %276 = math.exp %275 : vector<8x1xf32>
    %277 = arith.addf %274, %276 : vector<8x1xf32>
    %278 = tpu.reciprocal %277 {approx = true} : vector<8x1xf32> -> vector<8x1xf32>
    %279 = vector.broadcast %274 : vector<8x1xf32> to vector<8x4xf32>
    %280 = arith.mulf %279, %234 : vector<8x4xf32>
    %281 = vector.broadcast %276 : vector<8x1xf32> to vector<8x4xf32>
    %282 = arith.mulf %281, %237 : vector<8x4xf32>
    %283 = arith.addf %280, %282 : vector<8x4xf32>
    %284 = vector.broadcast %278 : vector<8x1xf32> to vector<8x4xf32>
    %285 = arith.mulf %283, %284 : vector<8x4xf32>
    %286 = vector.extract_strided_slice %15 {offsets = [0, 20], sizes = [8, 4], strides = [1, 1]} : vector<16x96xf32> to vector<8x4xf32>
    %287 = vector.extract_strided_slice %15 {offsets = [0, 52], sizes = [8, 4], strides = [1, 1]} : vector<16x96xf32> to vector<8x4xf32>
    %288 = vector.extract_strided_slice %15 {offsets = [0, 84], sizes = [8, 4], strides = [1, 1]} : vector<16x96xf32> to vector<8x4xf32>
    %289 = vector.extract_strided_slice %15 {offsets = [8, 20], sizes = [8, 4], strides = [1, 1]} : vector<16x96xf32> to vector<8x4xf32>
    %290 = vector.extract_strided_slice %15 {offsets = [8, 52], sizes = [8, 4], strides = [1, 1]} : vector<16x96xf32> to vector<8x4xf32>
    %291 = vector.extract_strided_slice %15 {offsets = [8, 84], sizes = [8, 4], strides = [1, 1]} : vector<16x96xf32> to vector<8x4xf32>
    %292 = arith.mulf %286, %287 : vector<8x4xf32>
    %cst_65 = arith.constant dense<0.000000e+00> : vector<8xf32>
    %293 = vector.multi_reduction <add>, %292, %cst_65 [1] : vector<8x4xf32> to vector<8xf32>
    %294 = vector.shape_cast %293 : vector<8xf32> to vector<8x1xf32>
    %cst_66 = arith.constant 5.000000e-01 : f32
    %295 = vector.broadcast %cst_66 : f32 to vector<8x1xf32>
    %296 = arith.mulf %294, %295 : vector<8x1xf32>
    %297 = arith.mulf %286, %290 : vector<8x4xf32>
    %cst_67 = arith.constant dense<0.000000e+00> : vector<8xf32>
    %298 = vector.multi_reduction <add>, %297, %cst_67 [1] : vector<8x4xf32> to vector<8xf32>
    %299 = vector.shape_cast %298 : vector<8xf32> to vector<8x1xf32>
    %cst_68 = arith.constant 5.000000e-01 : f32
    %300 = vector.broadcast %cst_68 : f32 to vector<8x1xf32>
    %301 = arith.mulf %299, %300 : vector<8x1xf32>
    %302 = arith.maximumf %296, %301 : vector<8x1xf32>
    %303 = arith.subf %296, %302 : vector<8x1xf32>
    %304 = math.exp %303 : vector<8x1xf32>
    %305 = arith.subf %301, %302 : vector<8x1xf32>
    %306 = math.exp %305 : vector<8x1xf32>
    %307 = arith.addf %304, %306 : vector<8x1xf32>
    %308 = tpu.reciprocal %307 {approx = true} : vector<8x1xf32> -> vector<8x1xf32>
    %309 = vector.broadcast %304 : vector<8x1xf32> to vector<8x4xf32>
    %310 = arith.mulf %309, %288 : vector<8x4xf32>
    %311 = vector.broadcast %306 : vector<8x1xf32> to vector<8x4xf32>
    %312 = arith.mulf %311, %291 : vector<8x4xf32>
    %313 = arith.addf %310, %312 : vector<8x4xf32>
    %314 = vector.broadcast %308 : vector<8x1xf32> to vector<8x4xf32>
    %315 = arith.mulf %313, %314 : vector<8x4xf32>
    %316 = arith.mulf %289, %287 : vector<8x4xf32>
    %cst_69 = arith.constant dense<0.000000e+00> : vector<8xf32>
    %317 = vector.multi_reduction <add>, %316, %cst_69 [1] : vector<8x4xf32> to vector<8xf32>
    %318 = vector.shape_cast %317 : vector<8xf32> to vector<8x1xf32>
    %cst_70 = arith.constant 5.000000e-01 : f32
    %319 = vector.broadcast %cst_70 : f32 to vector<8x1xf32>
    %320 = arith.mulf %318, %319 : vector<8x1xf32>
    %321 = arith.mulf %289, %290 : vector<8x4xf32>
    %cst_71 = arith.constant dense<0.000000e+00> : vector<8xf32>
    %322 = vector.multi_reduction <add>, %321, %cst_71 [1] : vector<8x4xf32> to vector<8xf32>
    %323 = vector.shape_cast %322 : vector<8xf32> to vector<8x1xf32>
    %cst_72 = arith.constant 5.000000e-01 : f32
    %324 = vector.broadcast %cst_72 : f32 to vector<8x1xf32>
    %325 = arith.mulf %323, %324 : vector<8x1xf32>
    %326 = arith.maximumf %320, %325 : vector<8x1xf32>
    %327 = arith.subf %320, %326 : vector<8x1xf32>
    %328 = math.exp %327 : vector<8x1xf32>
    %329 = arith.subf %325, %326 : vector<8x1xf32>
    %330 = math.exp %329 : vector<8x1xf32>
    %331 = arith.addf %328, %330 : vector<8x1xf32>
    %332 = tpu.reciprocal %331 {approx = true} : vector<8x1xf32> -> vector<8x1xf32>
    %333 = vector.broadcast %328 : vector<8x1xf32> to vector<8x4xf32>
    %334 = arith.mulf %333, %288 : vector<8x4xf32>
    %335 = vector.broadcast %330 : vector<8x1xf32> to vector<8x4xf32>
    %336 = arith.mulf %335, %291 : vector<8x4xf32>
    %337 = arith.addf %334, %336 : vector<8x4xf32>
    %338 = vector.broadcast %332 : vector<8x1xf32> to vector<8x4xf32>
    %339 = arith.mulf %337, %338 : vector<8x4xf32>
    %340 = vector.extract_strided_slice %15 {offsets = [0, 24], sizes = [8, 4], strides = [1, 1]} : vector<16x96xf32> to vector<8x4xf32>
    %341 = vector.extract_strided_slice %15 {offsets = [0, 56], sizes = [8, 4], strides = [1, 1]} : vector<16x96xf32> to vector<8x4xf32>
    %342 = vector.extract_strided_slice %15 {offsets = [0, 88], sizes = [8, 4], strides = [1, 1]} : vector<16x96xf32> to vector<8x4xf32>
    %343 = vector.extract_strided_slice %15 {offsets = [8, 24], sizes = [8, 4], strides = [1, 1]} : vector<16x96xf32> to vector<8x4xf32>
    %344 = vector.extract_strided_slice %15 {offsets = [8, 56], sizes = [8, 4], strides = [1, 1]} : vector<16x96xf32> to vector<8x4xf32>
    %345 = vector.extract_strided_slice %15 {offsets = [8, 88], sizes = [8, 4], strides = [1, 1]} : vector<16x96xf32> to vector<8x4xf32>
    %346 = arith.mulf %340, %341 : vector<8x4xf32>
    %cst_73 = arith.constant dense<0.000000e+00> : vector<8xf32>
    %347 = vector.multi_reduction <add>, %346, %cst_73 [1] : vector<8x4xf32> to vector<8xf32>
    %348 = vector.shape_cast %347 : vector<8xf32> to vector<8x1xf32>
    %cst_74 = arith.constant 5.000000e-01 : f32
    %349 = vector.broadcast %cst_74 : f32 to vector<8x1xf32>
    %350 = arith.mulf %348, %349 : vector<8x1xf32>
    %351 = arith.mulf %340, %344 : vector<8x4xf32>
    %cst_75 = arith.constant dense<0.000000e+00> : vector<8xf32>
    %352 = vector.multi_reduction <add>, %351, %cst_75 [1] : vector<8x4xf32> to vector<8xf32>
    %353 = vector.shape_cast %352 : vector<8xf32> to vector<8x1xf32>
    %cst_76 = arith.constant 5.000000e-01 : f32
    %354 = vector.broadcast %cst_76 : f32 to vector<8x1xf32>
    %355 = arith.mulf %353, %354 : vector<8x1xf32>
    %356 = arith.maximumf %350, %355 : vector<8x1xf32>
    %357 = arith.subf %350, %356 : vector<8x1xf32>
    %358 = math.exp %357 : vector<8x1xf32>
    %359 = arith.subf %355, %356 : vector<8x1xf32>
    %360 = math.exp %359 : vector<8x1xf32>
    %361 = arith.addf %358, %360 : vector<8x1xf32>
    %362 = tpu.reciprocal %361 {approx = true} : vector<8x1xf32> -> vector<8x1xf32>
    %363 = vector.broadcast %358 : vector<8x1xf32> to vector<8x4xf32>
    %364 = arith.mulf %363, %342 : vector<8x4xf32>
    %365 = vector.broadcast %360 : vector<8x1xf32> to vector<8x4xf32>
    %366 = arith.mulf %365, %345 : vector<8x4xf32>
    %367 = arith.addf %364, %366 : vector<8x4xf32>
    %368 = vector.broadcast %362 : vector<8x1xf32> to vector<8x4xf32>
    %369 = arith.mulf %367, %368 : vector<8x4xf32>
    %370 = arith.mulf %343, %341 : vector<8x4xf32>
    %cst_77 = arith.constant dense<0.000000e+00> : vector<8xf32>
    %371 = vector.multi_reduction <add>, %370, %cst_77 [1] : vector<8x4xf32> to vector<8xf32>
    %372 = vector.shape_cast %371 : vector<8xf32> to vector<8x1xf32>
    %cst_78 = arith.constant 5.000000e-01 : f32
    %373 = vector.broadcast %cst_78 : f32 to vector<8x1xf32>
    %374 = arith.mulf %372, %373 : vector<8x1xf32>
    %375 = arith.mulf %343, %344 : vector<8x4xf32>
    %cst_79 = arith.constant dense<0.000000e+00> : vector<8xf32>
    %376 = vector.multi_reduction <add>, %375, %cst_79 [1] : vector<8x4xf32> to vector<8xf32>
    %377 = vector.shape_cast %376 : vector<8xf32> to vector<8x1xf32>
    %cst_80 = arith.constant 5.000000e-01 : f32
    %378 = vector.broadcast %cst_80 : f32 to vector<8x1xf32>
    %379 = arith.mulf %377, %378 : vector<8x1xf32>
    %380 = arith.maximumf %374, %379 : vector<8x1xf32>
    %381 = arith.subf %374, %380 : vector<8x1xf32>
    %382 = math.exp %381 : vector<8x1xf32>
    %383 = arith.subf %379, %380 : vector<8x1xf32>
    %384 = math.exp %383 : vector<8x1xf32>
    %385 = arith.addf %382, %384 : vector<8x1xf32>
    %386 = tpu.reciprocal %385 {approx = true} : vector<8x1xf32> -> vector<8x1xf32>
    %387 = vector.broadcast %382 : vector<8x1xf32> to vector<8x4xf32>
    %388 = arith.mulf %387, %342 : vector<8x4xf32>
    %389 = vector.broadcast %384 : vector<8x1xf32> to vector<8x4xf32>
    %390 = arith.mulf %389, %345 : vector<8x4xf32>
    %391 = arith.addf %388, %390 : vector<8x4xf32>
    %392 = vector.broadcast %386 : vector<8x1xf32> to vector<8x4xf32>
    %393 = arith.mulf %391, %392 : vector<8x4xf32>
    %394 = vector.extract_strided_slice %15 {offsets = [0, 28], sizes = [8, 4], strides = [1, 1]} : vector<16x96xf32> to vector<8x4xf32>
    %395 = vector.extract_strided_slice %15 {offsets = [0, 60], sizes = [8, 4], strides = [1, 1]} : vector<16x96xf32> to vector<8x4xf32>
    %396 = vector.extract_strided_slice %15 {offsets = [0, 92], sizes = [8, 4], strides = [1, 1]} : vector<16x96xf32> to vector<8x4xf32>
    %397 = vector.extract_strided_slice %15 {offsets = [8, 28], sizes = [8, 4], strides = [1, 1]} : vector<16x96xf32> to vector<8x4xf32>
    %398 = vector.extract_strided_slice %15 {offsets = [8, 60], sizes = [8, 4], strides = [1, 1]} : vector<16x96xf32> to vector<8x4xf32>
    %399 = vector.extract_strided_slice %15 {offsets = [8, 92], sizes = [8, 4], strides = [1, 1]} : vector<16x96xf32> to vector<8x4xf32>
    %400 = arith.mulf %394, %395 : vector<8x4xf32>
    %cst_81 = arith.constant dense<0.000000e+00> : vector<8xf32>
    %401 = vector.multi_reduction <add>, %400, %cst_81 [1] : vector<8x4xf32> to vector<8xf32>
    %402 = vector.shape_cast %401 : vector<8xf32> to vector<8x1xf32>
    %cst_82 = arith.constant 5.000000e-01 : f32
    %403 = vector.broadcast %cst_82 : f32 to vector<8x1xf32>
    %404 = arith.mulf %402, %403 : vector<8x1xf32>
    %405 = arith.mulf %394, %398 : vector<8x4xf32>
    %cst_83 = arith.constant dense<0.000000e+00> : vector<8xf32>
    %406 = vector.multi_reduction <add>, %405, %cst_83 [1] : vector<8x4xf32> to vector<8xf32>
    %407 = vector.shape_cast %406 : vector<8xf32> to vector<8x1xf32>
    %cst_84 = arith.constant 5.000000e-01 : f32
    %408 = vector.broadcast %cst_84 : f32 to vector<8x1xf32>
    %409 = arith.mulf %407, %408 : vector<8x1xf32>
    %410 = arith.maximumf %404, %409 : vector<8x1xf32>
    %411 = arith.subf %404, %410 : vector<8x1xf32>
    %412 = math.exp %411 : vector<8x1xf32>
    %413 = arith.subf %409, %410 : vector<8x1xf32>
    %414 = math.exp %413 : vector<8x1xf32>
    %415 = arith.addf %412, %414 : vector<8x1xf32>
    %416 = tpu.reciprocal %415 {approx = true} : vector<8x1xf32> -> vector<8x1xf32>
    %417 = vector.broadcast %412 : vector<8x1xf32> to vector<8x4xf32>
    %418 = arith.mulf %417, %396 : vector<8x4xf32>
    %419 = vector.broadcast %414 : vector<8x1xf32> to vector<8x4xf32>
    %420 = arith.mulf %419, %399 : vector<8x4xf32>
    %421 = arith.addf %418, %420 : vector<8x4xf32>
    %422 = vector.broadcast %416 : vector<8x1xf32> to vector<8x4xf32>
    %423 = arith.mulf %421, %422 : vector<8x4xf32>
    %424 = arith.mulf %397, %395 : vector<8x4xf32>
    %cst_85 = arith.constant dense<0.000000e+00> : vector<8xf32>
    %425 = vector.multi_reduction <add>, %424, %cst_85 [1] : vector<8x4xf32> to vector<8xf32>
    %426 = vector.shape_cast %425 : vector<8xf32> to vector<8x1xf32>
    %cst_86 = arith.constant 5.000000e-01 : f32
    %427 = vector.broadcast %cst_86 : f32 to vector<8x1xf32>
    %428 = arith.mulf %426, %427 : vector<8x1xf32>
    %429 = arith.mulf %397, %398 : vector<8x4xf32>
    %cst_87 = arith.constant dense<0.000000e+00> : vector<8xf32>
    %430 = vector.multi_reduction <add>, %429, %cst_87 [1] : vector<8x4xf32> to vector<8xf32>
    %431 = vector.shape_cast %430 : vector<8xf32> to vector<8x1xf32>
    %cst_88 = arith.constant 5.000000e-01 : f32
    %432 = vector.broadcast %cst_88 : f32 to vector<8x1xf32>
    %433 = arith.mulf %431, %432 : vector<8x1xf32>
    %434 = arith.maximumf %428, %433 : vector<8x1xf32>
    %435 = arith.subf %428, %434 : vector<8x1xf32>
    %436 = math.exp %435 : vector<8x1xf32>
    %437 = arith.subf %433, %434 : vector<8x1xf32>
    %438 = math.exp %437 : vector<8x1xf32>
    %439 = arith.addf %436, %438 : vector<8x1xf32>
    %440 = tpu.reciprocal %439 {approx = true} : vector<8x1xf32> -> vector<8x1xf32>
    %441 = vector.broadcast %436 : vector<8x1xf32> to vector<8x4xf32>
    %442 = arith.mulf %441, %396 : vector<8x4xf32>
    %443 = vector.broadcast %438 : vector<8x1xf32> to vector<8x4xf32>
    %444 = arith.mulf %443, %399 : vector<8x4xf32>
    %445 = arith.addf %442, %444 : vector<8x4xf32>
    %446 = vector.broadcast %440 : vector<8x1xf32> to vector<8x4xf32>
    %447 = arith.mulf %445, %446 : vector<8x4xf32>
    %448 = tpu.concatenate %45, %99, %153, %207, %261, %315, %369, %423 in 1 : vector<8x4xf32>, vector<8x4xf32>, vector<8x4xf32>, vector<8x4xf32>, vector<8x4xf32>, vector<8x4xf32>, vector<8x4xf32>, vector<8x4xf32> -> vector<8x32xf32>
    %449 = tpu.concatenate %69, %123, %177, %231, %285, %339, %393, %447 in 1 : vector<8x4xf32>, vector<8x4xf32>, vector<8x4xf32>, vector<8x4xf32>, vector<8x4xf32>, vector<8x4xf32>, vector<8x4xf32>, vector<8x4xf32> -> vector<8x32xf32>
    %450 = tpu.concatenate %448, %449 in 0 : vector<8x32xf32>, vector<8x32xf32> -> vector<16x32xf32>
    %cst_89 = arith.constant dense<0.000000e+00> : vector<16x32xf32>
    %451 = tpu.matmul %450, %3, %cst_89 {dimension_numbers = #tpu.dot_dimension_numbers<[1], [0], [0], [1], [0, 0, 1, 1], [], []>} : vector<16x32xf32>, vector<32x32xf32>, vector<16x32xf32> -> vector<16x32xf32>
    %452 = arith.addf %0, %451 : vector<16x32xf32>
    %453 = vector.broadcast %4 : vector<1x32xf32> to vector<16x32xf32>
    %454 = arith.addf %452, %453 : vector<16x32xf32>
    %cst_90 = arith.constant dense<0.000000e+00> : vector<16xf32>
    %455 = vector.multi_reduction <add>, %454, %cst_90 [1] : vector<16x32xf32> to vector<16xf32>
    %456 = vector.shape_cast %455 : vector<16xf32> to vector<16x1xf32>
    %cst_91 = arith.constant 3.200000e+01 : f32
    %457 = vector.broadcast %cst_91 : f32 to vector<16x1xf32>
    %458 = arith.divf %456, %457 : vector<16x1xf32>
    %459 = vector.broadcast %458 : vector<16x1xf32> to vector<16x32xf32>
    %460 = arith.subf %454, %459 : vector<16x32xf32>
    %461 = arith.mulf %460, %460 : vector<16x32xf32>
    %cst_92 = arith.constant dense<0.000000e+00> : vector<16xf32>
    %462 = vector.multi_reduction <add>, %461, %cst_92 [1] : vector<16x32xf32> to vector<16xf32>
    %463 = vector.shape_cast %462 : vector<16xf32> to vector<16x1xf32>
    %cst_93 = arith.constant 3.200000e+01 : f32
    %464 = vector.broadcast %cst_93 : f32 to vector<16x1xf32>
    %465 = arith.divf %463, %464 : vector<16x1xf32>
    %466 = vector.broadcast %458 : vector<16x1xf32> to vector<16x32xf32>
    %467 = arith.subf %454, %466 : vector<16x32xf32>
    %cst_94 = arith.constant 9.99999974E-6 : f32
    %468 = vector.broadcast %cst_94 : f32 to vector<16x1xf32>
    %469 = arith.addf %465, %468 : vector<16x1xf32>
    %470 = math.rsqrt %469 : vector<16x1xf32>
    %471 = vector.broadcast %470 : vector<16x1xf32> to vector<16x32xf32>
    %472 = arith.mulf %467, %471 : vector<16x32xf32>
    %473 = vector.broadcast %5 : vector<1x32xf32> to vector<16x32xf32>
    %474 = arith.mulf %472, %473 : vector<16x32xf32>
    %475 = vector.broadcast %6 : vector<1x32xf32> to vector<16x32xf32>
    %476 = arith.addf %474, %475 : vector<16x32xf32>
    %cst_95 = arith.constant dense<0.000000e+00> : vector<16x64xf32>
    %477 = tpu.matmul %476, %7, %cst_95 {dimension_numbers = #tpu.dot_dimension_numbers<[1], [0], [0], [1], [0, 0, 1, 1], [], []>} : vector<16x32xf32>, vector<32x64xf32>, vector<16x64xf32> -> vector<16x64xf32>
    %478 = vector.broadcast %8 : vector<1x64xf32> to vector<16x64xf32>
    %479 = arith.addf %477, %478 : vector<16x64xf32>
    %cst_96 = arith.constant 0.000000e+00 : f32
    %480 = vector.broadcast %cst_96 : f32 to vector<16x64xf32>
    %481 = arith.maximumf %479, %480 : vector<16x64xf32>
    %cst_97 = arith.constant dense<0.000000e+00> : vector<16x32xf32>
    %482 = tpu.matmul %481, %9, %cst_97 {dimension_numbers = #tpu.dot_dimension_numbers<[1], [0], [0], [1], [0, 0, 1, 1], [], []>} : vector<16x64xf32>, vector<64x32xf32>, vector<16x32xf32> -> vector<16x32xf32>
    %483 = vector.broadcast %10 : vector<1x32xf32> to vector<16x32xf32>
    %484 = arith.addf %482, %483 : vector<16x32xf32>
    %485 = arith.addf %476, %484 : vector<16x32xf32>
    %cst_98 = arith.constant dense<0.000000e+00> : vector<16xf32>
    %486 = vector.multi_reduction <add>, %485, %cst_98 [1] : vector<16x32xf32> to vector<16xf32>
    %487 = vector.shape_cast %486 : vector<16xf32> to vector<16x1xf32>
    %cst_99 = arith.constant 3.200000e+01 : f32
    %488 = vector.broadcast %cst_99 : f32 to vector<16x1xf32>
    %489 = arith.divf %487, %488 : vector<16x1xf32>
    %490 = vector.broadcast %489 : vector<16x1xf32> to vector<16x32xf32>
    %491 = arith.subf %485, %490 : vector<16x32xf32>
    %492 = arith.mulf %491, %491 : vector<16x32xf32>
    %cst_100 = arith.constant dense<0.000000e+00> : vector<16xf32>
    %493 = vector.multi_reduction <add>, %492, %cst_100 [1] : vector<16x32xf32> to vector<16xf32>
    %494 = vector.shape_cast %493 : vector<16xf32> to vector<16x1xf32>
    %cst_101 = arith.constant 3.200000e+01 : f32
    %495 = vector.broadcast %cst_101 : f32 to vector<16x1xf32>
    %496 = arith.divf %494, %495 : vector<16x1xf32>
    %497 = vector.broadcast %489 : vector<16x1xf32> to vector<16x32xf32>
    %498 = arith.subf %485, %497 : vector<16x32xf32>
    %cst_102 = arith.constant 9.99999974E-6 : f32
    %499 = vector.broadcast %cst_102 : f32 to vector<16x1xf32>
    %500 = arith.addf %496, %499 : vector<16x1xf32>
    %501 = math.rsqrt %500 : vector<16x1xf32>
    %502 = vector.broadcast %501 : vector<16x1xf32> to vector<16x32xf32>
    %503 = arith.mulf %498, %502 : vector<16x32xf32>
    %504 = vector.broadcast %11 : vector<1x32xf32> to vector<16x32xf32>
    %505 = arith.mulf %503, %504 : vector<16x32xf32>
    %506 = vector.broadcast %12 : vector<1x32xf32> to vector<16x32xf32>
    %507 = arith.addf %505, %506 : vector<16x32xf32>
    %c0_103 = arith.constant 0 : index
    %c0_104 = arith.constant 0 : index
    %508 = vector.load %arg13[%c0_103, %c0_104] : memref<16x32xf32, #tpu.memory_space<vmem>>, vector<16x32xf32>
    tpu.vector_store %arg13[%c0_103, %c0_104], %507 {strides = array<i32>} : memref<16x32xf32, #tpu.memory_space<vmem>>, vector<16x32xf32>,
    return
  }
}

module attributes {stable_mosaic.version = 11 : i64} {
  func.func @_encoder_layer_classifier_kernel(%arg0: memref<16x32xf32, #tpu.memory_space<vmem>>, %arg1: memref<32x96xf32, #tpu.memory_space<vmem>>, %arg2: memref<1x96xf32, #tpu.memory_space<vmem>>, %arg3: memref<32x32xf32, #tpu.memory_space<vmem>>, %arg4: memref<1x32xf32, #tpu.memory_space<vmem>>, %arg5: memref<1x32xf32, #tpu.memory_space<vmem>>, %arg6: memref<1x32xf32, #tpu.memory_space<vmem>>, %arg7: memref<32x64xf32, #tpu.memory_space<vmem>>, %arg8: memref<1x64xf32, #tpu.memory_space<vmem>>, %arg9: memref<64x32xf32, #tpu.memory_space<vmem>>, %arg10: memref<1x32xf32, #tpu.memory_space<vmem>>, %arg11: memref<1x32xf32, #tpu.memory_space<vmem>>, %arg12: memref<1x32xf32, #tpu.memory_space<vmem>>, %arg13: memref<32x3xf32, #tpu.memory_space<vmem>>, %arg14: memref<1x3xf32, #tpu.memory_space<vmem>>, %arg15: memref<2x3xf32, #tpu.memory_space<vmem>>) attributes {dimension_semantics = [], scalar_prefetch = 0 : i64, scratch_operands = 0 : i64, tpu.core_type = #tpu.core_type<tc>} {
    %c0 = arith.constant 0 : index
    %c0_0 = arith.constant 0 : index
    %0 = vector.load %arg0[%c0, %c0_0] : memref<16x32xf32, #tpu.memory_space<vmem>>, vector<16x32xf32>
    %c0_1 = arith.constant 0 : index
    %c0_2 = arith.constant 0 : index
    %1 = vector.load %arg1[%c0_1, %c0_2] : memref<32x96xf32, #tpu.memory_space<vmem>>, vector<32x96xf32>
    %c0_3 = arith.constant 0 : index
    %c0_4 = arith.constant 0 : index
    %2 = vector.load %arg2[%c0_3, %c0_4] : memref<1x96xf32, #tpu.memory_space<vmem>>, vector<1x96xf32>
    %c0_5 = arith.constant 0 : index
    %c0_6 = arith.constant 0 : index
    %3 = vector.load %arg3[%c0_5, %c0_6] : memref<32x32xf32, #tpu.memory_space<vmem>>, vector<32x32xf32>
    %c0_7 = arith.constant 0 : index
    %c0_8 = arith.constant 0 : index
    %4 = vector.load %arg4[%c0_7, %c0_8] : memref<1x32xf32, #tpu.memory_space<vmem>>, vector<1x32xf32>
    %c0_9 = arith.constant 0 : index
    %c0_10 = arith.constant 0 : index
    %5 = vector.load %arg5[%c0_9, %c0_10] : memref<1x32xf32, #tpu.memory_space<vmem>>, vector<1x32xf32>
    %c0_11 = arith.constant 0 : index
    %c0_12 = arith.constant 0 : index
    %6 = vector.load %arg6[%c0_11, %c0_12] : memref<1x32xf32, #tpu.memory_space<vmem>>, vector<1x32xf32>
    %c0_13 = arith.constant 0 : index
    %c0_14 = arith.constant 0 : index
    %7 = vector.load %arg7[%c0_13, %c0_14] : memref<32x64xf32, #tpu.memory_space<vmem>>, vector<32x64xf32>
    %c0_15 = arith.constant 0 : index
    %c0_16 = arith.constant 0 : index
    %8 = vector.load %arg8[%c0_15, %c0_16] : memref<1x64xf32, #tpu.memory_space<vmem>>, vector<1x64xf32>
    %c0_17 = arith.constant 0 : index
    %c0_18 = arith.constant 0 : index
    %9 = vector.load %arg9[%c0_17, %c0_18] : memref<64x32xf32, #tpu.memory_space<vmem>>, vector<64x32xf32>
    %c0_19 = arith.constant 0 : index
    %c0_20 = arith.constant 0 : index
    %10 = vector.load %arg10[%c0_19, %c0_20] : memref<1x32xf32, #tpu.memory_space<vmem>>, vector<1x32xf32>
    %c0_21 = arith.constant 0 : index
    %c0_22 = arith.constant 0 : index
    %11 = vector.load %arg11[%c0_21, %c0_22] : memref<1x32xf32, #tpu.memory_space<vmem>>, vector<1x32xf32>
    %c0_23 = arith.constant 0 : index
    %c0_24 = arith.constant 0 : index
    %12 = vector.load %arg12[%c0_23, %c0_24] : memref<1x32xf32, #tpu.memory_space<vmem>>, vector<1x32xf32>
    %cst = arith.constant dense<0.000000e+00> : vector<16x96xf32>
    %13 = tpu.matmul %0, %1, %cst {dimension_numbers = #tpu.dot_dimension_numbers<[1], [0], [0], [1], [0, 0, 1, 1], [], []>} : vector<16x32xf32>, vector<32x96xf32>, vector<16x96xf32> -> vector<16x96xf32>
    %14 = vector.broadcast %2 : vector<1x96xf32> to vector<16x96xf32>
    %15 = arith.addf %13, %14 : vector<16x96xf32>
    %16 = vector.extract_strided_slice %15 {offsets = [0, 0], sizes = [8, 4], strides = [1, 1]} : vector<16x96xf32> to vector<8x4xf32>
    %17 = vector.extract_strided_slice %15 {offsets = [0, 32], sizes = [8, 4], strides = [1, 1]} : vector<16x96xf32> to vector<8x4xf32>
    %18 = vector.extract_strided_slice %15 {offsets = [0, 64], sizes = [8, 4], strides = [1, 1]} : vector<16x96xf32> to vector<8x4xf32>
    %19 = vector.extract_strided_slice %15 {offsets = [8, 0], sizes = [8, 4], strides = [1, 1]} : vector<16x96xf32> to vector<8x4xf32>
    %20 = vector.extract_strided_slice %15 {offsets = [8, 32], sizes = [8, 4], strides = [1, 1]} : vector<16x96xf32> to vector<8x4xf32>
    %21 = vector.extract_strided_slice %15 {offsets = [8, 64], sizes = [8, 4], strides = [1, 1]} : vector<16x96xf32> to vector<8x4xf32>
    %22 = arith.mulf %16, %17 : vector<8x4xf32>
    %cst_25 = arith.constant dense<0.000000e+00> : vector<8xf32>
    %23 = vector.multi_reduction <add>, %22, %cst_25 [1] : vector<8x4xf32> to vector<8xf32>
    %24 = vector.shape_cast %23 : vector<8xf32> to vector<8x1xf32>
    %cst_26 = arith.constant 5.000000e-01 : f32
    %25 = vector.broadcast %cst_26 : f32 to vector<8x1xf32>
    %26 = arith.mulf %24, %25 : vector<8x1xf32>
    %27 = arith.mulf %16, %20 : vector<8x4xf32>
    %cst_27 = arith.constant dense<0.000000e+00> : vector<8xf32>
    %28 = vector.multi_reduction <add>, %27, %cst_27 [1] : vector<8x4xf32> to vector<8xf32>
    %29 = vector.shape_cast %28 : vector<8xf32> to vector<8x1xf32>
    %cst_28 = arith.constant 5.000000e-01 : f32
    %30 = vector.broadcast %cst_28 : f32 to vector<8x1xf32>
    %31 = arith.mulf %29, %30 : vector<8x1xf32>
    %32 = arith.maximumf %26, %31 : vector<8x1xf32>
    %33 = arith.subf %26, %32 : vector<8x1xf32>
    %34 = math.exp %33 : vector<8x1xf32>
    %35 = arith.subf %31, %32 : vector<8x1xf32>
    %36 = math.exp %35 : vector<8x1xf32>
    %37 = arith.addf %34, %36 : vector<8x1xf32>
    %38 = tpu.reciprocal %37 {approx = true} : vector<8x1xf32> -> vector<8x1xf32>
    %39 = vector.broadcast %34 : vector<8x1xf32> to vector<8x4xf32>
    %40 = arith.mulf %39, %18 : vector<8x4xf32>
    %41 = vector.broadcast %36 : vector<8x1xf32> to vector<8x4xf32>
    %42 = arith.mulf %41, %21 : vector<8x4xf32>
    %43 = arith.addf %40, %42 : vector<8x4xf32>
    %44 = vector.broadcast %38 : vector<8x1xf32> to vector<8x4xf32>
    %45 = arith.mulf %43, %44 : vector<8x4xf32>
    %46 = arith.mulf %19, %17 : vector<8x4xf32>
    %cst_29 = arith.constant dense<0.000000e+00> : vector<8xf32>
    %47 = vector.multi_reduction <add>, %46, %cst_29 [1] : vector<8x4xf32> to vector<8xf32>
    %48 = vector.shape_cast %47 : vector<8xf32> to vector<8x1xf32>
    %cst_30 = arith.constant 5.000000e-01 : f32
    %49 = vector.broadcast %cst_30 : f32 to vector<8x1xf32>
    %50 = arith.mulf %48, %49 : vector<8x1xf32>
    %51 = arith.mulf %19, %20 : vector<8x4xf32>
    %cst_31 = arith.constant dense<0.000000e+00> : vector<8xf32>
    %52 = vector.multi_reduction <add>, %51, %cst_31 [1] : vector<8x4xf32> to vector<8xf32>
    %53 = vector.shape_cast %52 : vector<8xf32> to vector<8x1xf32>
    %cst_32 = arith.constant 5.000000e-01 : f32
    %54 = vector.broadcast %cst_32 : f32 to vector<8x1xf32>
    %55 = arith.mulf %53, %54 : vector<8x1xf32>
    %56 = arith.maximumf %50, %55 : vector<8x1xf32>
    %57 = arith.subf %50, %56 : vector<8x1xf32>
    %58 = math.exp %57 : vector<8x1xf32>
    %59 = arith.subf %55, %56 : vector<8x1xf32>
    %60 = math.exp %59 : vector<8x1xf32>
    %61 = arith.addf %58, %60 : vector<8x1xf32>
    %62 = tpu.reciprocal %61 {approx = true} : vector<8x1xf32> -> vector<8x1xf32>
    %63 = vector.broadcast %58 : vector<8x1xf32> to vector<8x4xf32>
    %64 = arith.mulf %63, %18 : vector<8x4xf32>
    %65 = vector.broadcast %60 : vector<8x1xf32> to vector<8x4xf32>
    %66 = arith.mulf %65, %21 : vector<8x4xf32>
    %67 = arith.addf %64, %66 : vector<8x4xf32>
    %68 = vector.broadcast %62 : vector<8x1xf32> to vector<8x4xf32>
    %69 = arith.mulf %67, %68 : vector<8x4xf32>
    %70 = vector.extract_strided_slice %15 {offsets = [0, 4], sizes = [8, 4], strides = [1, 1]} : vector<16x96xf32> to vector<8x4xf32>
    %71 = vector.extract_strided_slice %15 {offsets = [0, 36], sizes = [8, 4], strides = [1, 1]} : vector<16x96xf32> to vector<8x4xf32>
    %72 = vector.extract_strided_slice %15 {offsets = [0, 68], sizes = [8, 4], strides = [1, 1]} : vector<16x96xf32> to vector<8x4xf32>
    %73 = vector.extract_strided_slice %15 {offsets = [8, 4], sizes = [8, 4], strides = [1, 1]} : vector<16x96xf32> to vector<8x4xf32>
    %74 = vector.extract_strided_slice %15 {offsets = [8, 36], sizes = [8, 4], strides = [1, 1]} : vector<16x96xf32> to vector<8x4xf32>
    %75 = vector.extract_strided_slice %15 {offsets = [8, 68], sizes = [8, 4], strides = [1, 1]} : vector<16x96xf32> to vector<8x4xf32>
    %76 = arith.mulf %70, %71 : vector<8x4xf32>
    %cst_33 = arith.constant dense<0.000000e+00> : vector<8xf32>
    %77 = vector.multi_reduction <add>, %76, %cst_33 [1] : vector<8x4xf32> to vector<8xf32>
    %78 = vector.shape_cast %77 : vector<8xf32> to vector<8x1xf32>
    %cst_34 = arith.constant 5.000000e-01 : f32
    %79 = vector.broadcast %cst_34 : f32 to vector<8x1xf32>
    %80 = arith.mulf %78, %79 : vector<8x1xf32>
    %81 = arith.mulf %70, %74 : vector<8x4xf32>
    %cst_35 = arith.constant dense<0.000000e+00> : vector<8xf32>
    %82 = vector.multi_reduction <add>, %81, %cst_35 [1] : vector<8x4xf32> to vector<8xf32>
    %83 = vector.shape_cast %82 : vector<8xf32> to vector<8x1xf32>
    %cst_36 = arith.constant 5.000000e-01 : f32
    %84 = vector.broadcast %cst_36 : f32 to vector<8x1xf32>
    %85 = arith.mulf %83, %84 : vector<8x1xf32>
    %86 = arith.maximumf %80, %85 : vector<8x1xf32>
    %87 = arith.subf %80, %86 : vector<8x1xf32>
    %88 = math.exp %87 : vector<8x1xf32>
    %89 = arith.subf %85, %86 : vector<8x1xf32>
    %90 = math.exp %89 : vector<8x1xf32>
    %91 = arith.addf %88, %90 : vector<8x1xf32>
    %92 = tpu.reciprocal %91 {approx = true} : vector<8x1xf32> -> vector<8x1xf32>
    %93 = vector.broadcast %88 : vector<8x1xf32> to vector<8x4xf32>
    %94 = arith.mulf %93, %72 : vector<8x4xf32>
    %95 = vector.broadcast %90 : vector<8x1xf32> to vector<8x4xf32>
    %96 = arith.mulf %95, %75 : vector<8x4xf32>
    %97 = arith.addf %94, %96 : vector<8x4xf32>
    %98 = vector.broadcast %92 : vector<8x1xf32> to vector<8x4xf32>
    %99 = arith.mulf %97, %98 : vector<8x4xf32>
    %100 = arith.mulf %73, %71 : vector<8x4xf32>
    %cst_37 = arith.constant dense<0.000000e+00> : vector<8xf32>
    %101 = vector.multi_reduction <add>, %100, %cst_37 [1] : vector<8x4xf32> to vector<8xf32>
    %102 = vector.shape_cast %101 : vector<8xf32> to vector<8x1xf32>
    %cst_38 = arith.constant 5.000000e-01 : f32
    %103 = vector.broadcast %cst_38 : f32 to vector<8x1xf32>
    %104 = arith.mulf %102, %103 : vector<8x1xf32>
    %105 = arith.mulf %73, %74 : vector<8x4xf32>
    %cst_39 = arith.constant dense<0.000000e+00> : vector<8xf32>
    %106 = vector.multi_reduction <add>, %105, %cst_39 [1] : vector<8x4xf32> to vector<8xf32>
    %107 = vector.shape_cast %106 : vector<8xf32> to vector<8x1xf32>
    %cst_40 = arith.constant 5.000000e-01 : f32
    %108 = vector.broadcast %cst_40 : f32 to vector<8x1xf32>
    %109 = arith.mulf %107, %108 : vector<8x1xf32>
    %110 = arith.maximumf %104, %109 : vector<8x1xf32>
    %111 = arith.subf %104, %110 : vector<8x1xf32>
    %112 = math.exp %111 : vector<8x1xf32>
    %113 = arith.subf %109, %110 : vector<8x1xf32>
    %114 = math.exp %113 : vector<8x1xf32>
    %115 = arith.addf %112, %114 : vector<8x1xf32>
    %116 = tpu.reciprocal %115 {approx = true} : vector<8x1xf32> -> vector<8x1xf32>
    %117 = vector.broadcast %112 : vector<8x1xf32> to vector<8x4xf32>
    %118 = arith.mulf %117, %72 : vector<8x4xf32>
    %119 = vector.broadcast %114 : vector<8x1xf32> to vector<8x4xf32>
    %120 = arith.mulf %119, %75 : vector<8x4xf32>
    %121 = arith.addf %118, %120 : vector<8x4xf32>
    %122 = vector.broadcast %116 : vector<8x1xf32> to vector<8x4xf32>
    %123 = arith.mulf %121, %122 : vector<8x4xf32>
    %124 = vector.extract_strided_slice %15 {offsets = [0, 8], sizes = [8, 4], strides = [1, 1]} : vector<16x96xf32> to vector<8x4xf32>
    %125 = vector.extract_strided_slice %15 {offsets = [0, 40], sizes = [8, 4], strides = [1, 1]} : vector<16x96xf32> to vector<8x4xf32>
    %126 = vector.extract_strided_slice %15 {offsets = [0, 72], sizes = [8, 4], strides = [1, 1]} : vector<16x96xf32> to vector<8x4xf32>
    %127 = vector.extract_strided_slice %15 {offsets = [8, 8], sizes = [8, 4], strides = [1, 1]} : vector<16x96xf32> to vector<8x4xf32>
    %128 = vector.extract_strided_slice %15 {offsets = [8, 40], sizes = [8, 4], strides = [1, 1]} : vector<16x96xf32> to vector<8x4xf32>
    %129 = vector.extract_strided_slice %15 {offsets = [8, 72], sizes = [8, 4], strides = [1, 1]} : vector<16x96xf32> to vector<8x4xf32>
    %130 = arith.mulf %124, %125 : vector<8x4xf32>
    %cst_41 = arith.constant dense<0.000000e+00> : vector<8xf32>
    %131 = vector.multi_reduction <add>, %130, %cst_41 [1] : vector<8x4xf32> to vector<8xf32>
    %132 = vector.shape_cast %131 : vector<8xf32> to vector<8x1xf32>
    %cst_42 = arith.constant 5.000000e-01 : f32
    %133 = vector.broadcast %cst_42 : f32 to vector<8x1xf32>
    %134 = arith.mulf %132, %133 : vector<8x1xf32>
    %135 = arith.mulf %124, %128 : vector<8x4xf32>
    %cst_43 = arith.constant dense<0.000000e+00> : vector<8xf32>
    %136 = vector.multi_reduction <add>, %135, %cst_43 [1] : vector<8x4xf32> to vector<8xf32>
    %137 = vector.shape_cast %136 : vector<8xf32> to vector<8x1xf32>
    %cst_44 = arith.constant 5.000000e-01 : f32
    %138 = vector.broadcast %cst_44 : f32 to vector<8x1xf32>
    %139 = arith.mulf %137, %138 : vector<8x1xf32>
    %140 = arith.maximumf %134, %139 : vector<8x1xf32>
    %141 = arith.subf %134, %140 : vector<8x1xf32>
    %142 = math.exp %141 : vector<8x1xf32>
    %143 = arith.subf %139, %140 : vector<8x1xf32>
    %144 = math.exp %143 : vector<8x1xf32>
    %145 = arith.addf %142, %144 : vector<8x1xf32>
    %146 = tpu.reciprocal %145 {approx = true} : vector<8x1xf32> -> vector<8x1xf32>
    %147 = vector.broadcast %142 : vector<8x1xf32> to vector<8x4xf32>
    %148 = arith.mulf %147, %126 : vector<8x4xf32>
    %149 = vector.broadcast %144 : vector<8x1xf32> to vector<8x4xf32>
    %150 = arith.mulf %149, %129 : vector<8x4xf32>
    %151 = arith.addf %148, %150 : vector<8x4xf32>
    %152 = vector.broadcast %146 : vector<8x1xf32> to vector<8x4xf32>
    %153 = arith.mulf %151, %152 : vector<8x4xf32>
    %154 = arith.mulf %127, %125 : vector<8x4xf32>
    %cst_45 = arith.constant dense<0.000000e+00> : vector<8xf32>
    %155 = vector.multi_reduction <add>, %154, %cst_45 [1] : vector<8x4xf32> to vector<8xf32>
    %156 = vector.shape_cast %155 : vector<8xf32> to vector<8x1xf32>
    %cst_46 = arith.constant 5.000000e-01 : f32
    %157 = vector.broadcast %cst_46 : f32 to vector<8x1xf32>
    %158 = arith.mulf %156, %157 : vector<8x1xf32>
    %159 = arith.mulf %127, %128 : vector<8x4xf32>
    %cst_47 = arith.constant dense<0.000000e+00> : vector<8xf32>
    %160 = vector.multi_reduction <add>, %159, %cst_47 [1] : vector<8x4xf32> to vector<8xf32>
    %161 = vector.shape_cast %160 : vector<8xf32> to vector<8x1xf32>
    %cst_48 = arith.constant 5.000000e-01 : f32
    %162 = vector.broadcast %cst_48 : f32 to vector<8x1xf32>
    %163 = arith.mulf %161, %162 : vector<8x1xf32>
    %164 = arith.maximumf %158, %163 : vector<8x1xf32>
    %165 = arith.subf %158, %164 : vector<8x1xf32>
    %166 = math.exp %165 : vector<8x1xf32>
    %167 = arith.subf %163, %164 : vector<8x1xf32>
    %168 = math.exp %167 : vector<8x1xf32>
    %169 = arith.addf %166, %168 : vector<8x1xf32>
    %170 = tpu.reciprocal %169 {approx = true} : vector<8x1xf32> -> vector<8x1xf32>
    %171 = vector.broadcast %166 : vector<8x1xf32> to vector<8x4xf32>
    %172 = arith.mulf %171, %126 : vector<8x4xf32>
    %173 = vector.broadcast %168 : vector<8x1xf32> to vector<8x4xf32>
    %174 = arith.mulf %173, %129 : vector<8x4xf32>
    %175 = arith.addf %172, %174 : vector<8x4xf32>
    %176 = vector.broadcast %170 : vector<8x1xf32> to vector<8x4xf32>
    %177 = arith.mulf %175, %176 : vector<8x4xf32>
    %178 = vector.extract_strided_slice %15 {offsets = [0, 12], sizes = [8, 4], strides = [1, 1]} : vector<16x96xf32> to vector<8x4xf32>
    %179 = vector.extract_strided_slice %15 {offsets = [0, 44], sizes = [8, 4], strides = [1, 1]} : vector<16x96xf32> to vector<8x4xf32>
    %180 = vector.extract_strided_slice %15 {offsets = [0, 76], sizes = [8, 4], strides = [1, 1]} : vector<16x96xf32> to vector<8x4xf32>
    %181 = vector.extract_strided_slice %15 {offsets = [8, 12], sizes = [8, 4], strides = [1, 1]} : vector<16x96xf32> to vector<8x4xf32>
    %182 = vector.extract_strided_slice %15 {offsets = [8, 44], sizes = [8, 4], strides = [1, 1]} : vector<16x96xf32> to vector<8x4xf32>
    %183 = vector.extract_strided_slice %15 {offsets = [8, 76], sizes = [8, 4], strides = [1, 1]} : vector<16x96xf32> to vector<8x4xf32>
    %184 = arith.mulf %178, %179 : vector<8x4xf32>
    %cst_49 = arith.constant dense<0.000000e+00> : vector<8xf32>
    %185 = vector.multi_reduction <add>, %184, %cst_49 [1] : vector<8x4xf32> to vector<8xf32>
    %186 = vector.shape_cast %185 : vector<8xf32> to vector<8x1xf32>
    %cst_50 = arith.constant 5.000000e-01 : f32
    %187 = vector.broadcast %cst_50 : f32 to vector<8x1xf32>
    %188 = arith.mulf %186, %187 : vector<8x1xf32>
    %189 = arith.mulf %178, %182 : vector<8x4xf32>
    %cst_51 = arith.constant dense<0.000000e+00> : vector<8xf32>
    %190 = vector.multi_reduction <add>, %189, %cst_51 [1] : vector<8x4xf32> to vector<8xf32>
    %191 = vector.shape_cast %190 : vector<8xf32> to vector<8x1xf32>
    %cst_52 = arith.constant 5.000000e-01 : f32
    %192 = vector.broadcast %cst_52 : f32 to vector<8x1xf32>
    %193 = arith.mulf %191, %192 : vector<8x1xf32>
    %194 = arith.maximumf %188, %193 : vector<8x1xf32>
    %195 = arith.subf %188, %194 : vector<8x1xf32>
    %196 = math.exp %195 : vector<8x1xf32>
    %197 = arith.subf %193, %194 : vector<8x1xf32>
    %198 = math.exp %197 : vector<8x1xf32>
    %199 = arith.addf %196, %198 : vector<8x1xf32>
    %200 = tpu.reciprocal %199 {approx = true} : vector<8x1xf32> -> vector<8x1xf32>
    %201 = vector.broadcast %196 : vector<8x1xf32> to vector<8x4xf32>
    %202 = arith.mulf %201, %180 : vector<8x4xf32>
    %203 = vector.broadcast %198 : vector<8x1xf32> to vector<8x4xf32>
    %204 = arith.mulf %203, %183 : vector<8x4xf32>
    %205 = arith.addf %202, %204 : vector<8x4xf32>
    %206 = vector.broadcast %200 : vector<8x1xf32> to vector<8x4xf32>
    %207 = arith.mulf %205, %206 : vector<8x4xf32>
    %208 = arith.mulf %181, %179 : vector<8x4xf32>
    %cst_53 = arith.constant dense<0.000000e+00> : vector<8xf32>
    %209 = vector.multi_reduction <add>, %208, %cst_53 [1] : vector<8x4xf32> to vector<8xf32>
    %210 = vector.shape_cast %209 : vector<8xf32> to vector<8x1xf32>
    %cst_54 = arith.constant 5.000000e-01 : f32
    %211 = vector.broadcast %cst_54 : f32 to vector<8x1xf32>
    %212 = arith.mulf %210, %211 : vector<8x1xf32>
    %213 = arith.mulf %181, %182 : vector<8x4xf32>
    %cst_55 = arith.constant dense<0.000000e+00> : vector<8xf32>
    %214 = vector.multi_reduction <add>, %213, %cst_55 [1] : vector<8x4xf32> to vector<8xf32>
    %215 = vector.shape_cast %214 : vector<8xf32> to vector<8x1xf32>
    %cst_56 = arith.constant 5.000000e-01 : f32
    %216 = vector.broadcast %cst_56 : f32 to vector<8x1xf32>
    %217 = arith.mulf %215, %216 : vector<8x1xf32>
    %218 = arith.maximumf %212, %217 : vector<8x1xf32>
    %219 = arith.subf %212, %218 : vector<8x1xf32>
    %220 = math.exp %219 : vector<8x1xf32>
    %221 = arith.subf %217, %218 : vector<8x1xf32>
    %222 = math.exp %221 : vector<8x1xf32>
    %223 = arith.addf %220, %222 : vector<8x1xf32>
    %224 = tpu.reciprocal %223 {approx = true} : vector<8x1xf32> -> vector<8x1xf32>
    %225 = vector.broadcast %220 : vector<8x1xf32> to vector<8x4xf32>
    %226 = arith.mulf %225, %180 : vector<8x4xf32>
    %227 = vector.broadcast %222 : vector<8x1xf32> to vector<8x4xf32>
    %228 = arith.mulf %227, %183 : vector<8x4xf32>
    %229 = arith.addf %226, %228 : vector<8x4xf32>
    %230 = vector.broadcast %224 : vector<8x1xf32> to vector<8x4xf32>
    %231 = arith.mulf %229, %230 : vector<8x4xf32>
    %232 = vector.extract_strided_slice %15 {offsets = [0, 16], sizes = [8, 4], strides = [1, 1]} : vector<16x96xf32> to vector<8x4xf32>
    %233 = vector.extract_strided_slice %15 {offsets = [0, 48], sizes = [8, 4], strides = [1, 1]} : vector<16x96xf32> to vector<8x4xf32>
    %234 = vector.extract_strided_slice %15 {offsets = [0, 80], sizes = [8, 4], strides = [1, 1]} : vector<16x96xf32> to vector<8x4xf32>
    %235 = vector.extract_strided_slice %15 {offsets = [8, 16], sizes = [8, 4], strides = [1, 1]} : vector<16x96xf32> to vector<8x4xf32>
    %236 = vector.extract_strided_slice %15 {offsets = [8, 48], sizes = [8, 4], strides = [1, 1]} : vector<16x96xf32> to vector<8x4xf32>
    %237 = vector.extract_strided_slice %15 {offsets = [8, 80], sizes = [8, 4], strides = [1, 1]} : vector<16x96xf32> to vector<8x4xf32>
    %238 = arith.mulf %232, %233 : vector<8x4xf32>
    %cst_57 = arith.constant dense<0.000000e+00> : vector<8xf32>
    %239 = vector.multi_reduction <add>, %238, %cst_57 [1] : vector<8x4xf32> to vector<8xf32>
    %240 = vector.shape_cast %239 : vector<8xf32> to vector<8x1xf32>
    %cst_58 = arith.constant 5.000000e-01 : f32
    %241 = vector.broadcast %cst_58 : f32 to vector<8x1xf32>
    %242 = arith.mulf %240, %241 : vector<8x1xf32>
    %243 = arith.mulf %232, %236 : vector<8x4xf32>
    %cst_59 = arith.constant dense<0.000000e+00> : vector<8xf32>
    %244 = vector.multi_reduction <add>, %243, %cst_59 [1] : vector<8x4xf32> to vector<8xf32>
    %245 = vector.shape_cast %244 : vector<8xf32> to vector<8x1xf32>
    %cst_60 = arith.constant 5.000000e-01 : f32
    %246 = vector.broadcast %cst_60 : f32 to vector<8x1xf32>
    %247 = arith.mulf %245, %246 : vector<8x1xf32>
    %248 = arith.maximumf %242, %247 : vector<8x1xf32>
    %249 = arith.subf %242, %248 : vector<8x1xf32>
    %250 = math.exp %249 : vector<8x1xf32>
    %251 = arith.subf %247, %248 : vector<8x1xf32>
    %252 = math.exp %251 : vector<8x1xf32>
    %253 = arith.addf %250, %252 : vector<8x1xf32>
    %254 = tpu.reciprocal %253 {approx = true} : vector<8x1xf32> -> vector<8x1xf32>
    %255 = vector.broadcast %250 : vector<8x1xf32> to vector<8x4xf32>
    %256 = arith.mulf %255, %234 : vector<8x4xf32>
    %257 = vector.broadcast %252 : vector<8x1xf32> to vector<8x4xf32>
    %258 = arith.mulf %257, %237 : vector<8x4xf32>
    %259 = arith.addf %256, %258 : vector<8x4xf32>
    %260 = vector.broadcast %254 : vector<8x1xf32> to vector<8x4xf32>
    %261 = arith.mulf %259, %260 : vector<8x4xf32>
    %262 = arith.mulf %235, %233 : vector<8x4xf32>
    %cst_61 = arith.constant dense<0.000000e+00> : vector<8xf32>
    %263 = vector.multi_reduction <add>, %262, %cst_61 [1] : vector<8x4xf32> to vector<8xf32>
    %264 = vector.shape_cast %263 : vector<8xf32> to vector<8x1xf32>
    %cst_62 = arith.constant 5.000000e-01 : f32
    %265 = vector.broadcast %cst_62 : f32 to vector<8x1xf32>
    %266 = arith.mulf %264, %265 : vector<8x1xf32>
    %267 = arith.mulf %235, %236 : vector<8x4xf32>
    %cst_63 = arith.constant dense<0.000000e+00> : vector<8xf32>
    %268 = vector.multi_reduction <add>, %267, %cst_63 [1] : vector<8x4xf32> to vector<8xf32>
    %269 = vector.shape_cast %268 : vector<8xf32> to vector<8x1xf32>
    %cst_64 = arith.constant 5.000000e-01 : f32
    %270 = vector.broadcast %cst_64 : f32 to vector<8x1xf32>
    %271 = arith.mulf %269, %270 : vector<8x1xf32>
    %272 = arith.maximumf %266, %271 : vector<8x1xf32>
    %273 = arith.subf %266, %272 : vector<8x1xf32>
    %274 = math.exp %273 : vector<8x1xf32>
    %275 = arith.subf %271, %272 : vector<8x1xf32>
    %276 = math.exp %275 : vector<8x1xf32>
    %277 = arith.addf %274, %276 : vector<8x1xf32>
    %278 = tpu.reciprocal %277 {approx = true} : vector<8x1xf32> -> vector<8x1xf32>
    %279 = vector.broadcast %274 : vector<8x1xf32> to vector<8x4xf32>
    %280 = arith.mulf %279, %234 : vector<8x4xf32>
    %281 = vector.broadcast %276 : vector<8x1xf32> to vector<8x4xf32>
    %282 = arith.mulf %281, %237 : vector<8x4xf32>
    %283 = arith.addf %280, %282 : vector<8x4xf32>
    %284 = vector.broadcast %278 : vector<8x1xf32> to vector<8x4xf32>
    %285 = arith.mulf %283, %284 : vector<8x4xf32>
    %286 = vector.extract_strided_slice %15 {offsets = [0, 20], sizes = [8, 4], strides = [1, 1]} : vector<16x96xf32> to vector<8x4xf32>
    %287 = vector.extract_strided_slice %15 {offsets = [0, 52], sizes = [8, 4], strides = [1, 1]} : vector<16x96xf32> to vector<8x4xf32>
    %288 = vector.extract_strided_slice %15 {offsets = [0, 84], sizes = [8, 4], strides = [1, 1]} : vector<16x96xf32> to vector<8x4xf32>
    %289 = vector.extract_strided_slice %15 {offsets = [8, 20], sizes = [8, 4], strides = [1, 1]} : vector<16x96xf32> to vector<8x4xf32>
    %290 = vector.extract_strided_slice %15 {offsets = [8, 52], sizes = [8, 4], strides = [1, 1]} : vector<16x96xf32> to vector<8x4xf32>
    %291 = vector.extract_strided_slice %15 {offsets = [8, 84], sizes = [8, 4], strides = [1, 1]} : vector<16x96xf32> to vector<8x4xf32>
    %292 = arith.mulf %286, %287 : vector<8x4xf32>
    %cst_65 = arith.constant dense<0.000000e+00> : vector<8xf32>
    %293 = vector.multi_reduction <add>, %292, %cst_65 [1] : vector<8x4xf32> to vector<8xf32>
    %294 = vector.shape_cast %293 : vector<8xf32> to vector<8x1xf32>
    %cst_66 = arith.constant 5.000000e-01 : f32
    %295 = vector.broadcast %cst_66 : f32 to vector<8x1xf32>
    %296 = arith.mulf %294, %295 : vector<8x1xf32>
    %297 = arith.mulf %286, %290 : vector<8x4xf32>
    %cst_67 = arith.constant dense<0.000000e+00> : vector<8xf32>
    %298 = vector.multi_reduction <add>, %297, %cst_67 [1] : vector<8x4xf32> to vector<8xf32>
    %299 = vector.shape_cast %298 : vector<8xf32> to vector<8x1xf32>
    %cst_68 = arith.constant 5.000000e-01 : f32
    %300 = vector.broadcast %cst_68 : f32 to vector<8x1xf32>
    %301 = arith.mulf %299, %300 : vector<8x1xf32>
    %302 = arith.maximumf %296, %301 : vector<8x1xf32>
    %303 = arith.subf %296, %302 : vector<8x1xf32>
    %304 = math.exp %303 : vector<8x1xf32>
    %305 = arith.subf %301, %302 : vector<8x1xf32>
    %306 = math.exp %305 : vector<8x1xf32>
    %307 = arith.addf %304, %306 : vector<8x1xf32>
    %308 = tpu.reciprocal %307 {approx = true} : vector<8x1xf32> -> vector<8x1xf32>
    %309 = vector.broadcast %304 : vector<8x1xf32> to vector<8x4xf32>
    %310 = arith.mulf %309, %288 : vector<8x4xf32>
    %311 = vector.broadcast %306 : vector<8x1xf32> to vector<8x4xf32>
    %312 = arith.mulf %311, %291 : vector<8x4xf32>
    %313 = arith.addf %310, %312 : vector<8x4xf32>
    %314 = vector.broadcast %308 : vector<8x1xf32> to vector<8x4xf32>
    %315 = arith.mulf %313, %314 : vector<8x4xf32>
    %316 = arith.mulf %289, %287 : vector<8x4xf32>
    %cst_69 = arith.constant dense<0.000000e+00> : vector<8xf32>
    %317 = vector.multi_reduction <add>, %316, %cst_69 [1] : vector<8x4xf32> to vector<8xf32>
    %318 = vector.shape_cast %317 : vector<8xf32> to vector<8x1xf32>
    %cst_70 = arith.constant 5.000000e-01 : f32
    %319 = vector.broadcast %cst_70 : f32 to vector<8x1xf32>
    %320 = arith.mulf %318, %319 : vector<8x1xf32>
    %321 = arith.mulf %289, %290 : vector<8x4xf32>
    %cst_71 = arith.constant dense<0.000000e+00> : vector<8xf32>
    %322 = vector.multi_reduction <add>, %321, %cst_71 [1] : vector<8x4xf32> to vector<8xf32>
    %323 = vector.shape_cast %322 : vector<8xf32> to vector<8x1xf32>
    %cst_72 = arith.constant 5.000000e-01 : f32
    %324 = vector.broadcast %cst_72 : f32 to vector<8x1xf32>
    %325 = arith.mulf %323, %324 : vector<8x1xf32>
    %326 = arith.maximumf %320, %325 : vector<8x1xf32>
    %327 = arith.subf %320, %326 : vector<8x1xf32>
    %328 = math.exp %327 : vector<8x1xf32>
    %329 = arith.subf %325, %326 : vector<8x1xf32>
    %330 = math.exp %329 : vector<8x1xf32>
    %331 = arith.addf %328, %330 : vector<8x1xf32>
    %332 = tpu.reciprocal %331 {approx = true} : vector<8x1xf32> -> vector<8x1xf32>
    %333 = vector.broadcast %328 : vector<8x1xf32> to vector<8x4xf32>
    %334 = arith.mulf %333, %288 : vector<8x4xf32>
    %335 = vector.broadcast %330 : vector<8x1xf32> to vector<8x4xf32>
    %336 = arith.mulf %335, %291 : vector<8x4xf32>
    %337 = arith.addf %334, %336 : vector<8x4xf32>
    %338 = vector.broadcast %332 : vector<8x1xf32> to vector<8x4xf32>
    %339 = arith.mulf %337, %338 : vector<8x4xf32>
    %340 = vector.extract_strided_slice %15 {offsets = [0, 24], sizes = [8, 4], strides = [1, 1]} : vector<16x96xf32> to vector<8x4xf32>
    %341 = vector.extract_strided_slice %15 {offsets = [0, 56], sizes = [8, 4], strides = [1, 1]} : vector<16x96xf32> to vector<8x4xf32>
    %342 = vector.extract_strided_slice %15 {offsets = [0, 88], sizes = [8, 4], strides = [1, 1]} : vector<16x96xf32> to vector<8x4xf32>
    %343 = vector.extract_strided_slice %15 {offsets = [8, 24], sizes = [8, 4], strides = [1, 1]} : vector<16x96xf32> to vector<8x4xf32>
    %344 = vector.extract_strided_slice %15 {offsets = [8, 56], sizes = [8, 4], strides = [1, 1]} : vector<16x96xf32> to vector<8x4xf32>
    %345 = vector.extract_strided_slice %15 {offsets = [8, 88], sizes = [8, 4], strides = [1, 1]} : vector<16x96xf32> to vector<8x4xf32>
    %346 = arith.mulf %340, %341 : vector<8x4xf32>
    %cst_73 = arith.constant dense<0.000000e+00> : vector<8xf32>
    %347 = vector.multi_reduction <add>, %346, %cst_73 [1] : vector<8x4xf32> to vector<8xf32>
    %348 = vector.shape_cast %347 : vector<8xf32> to vector<8x1xf32>
    %cst_74 = arith.constant 5.000000e-01 : f32
    %349 = vector.broadcast %cst_74 : f32 to vector<8x1xf32>
    %350 = arith.mulf %348, %349 : vector<8x1xf32>
    %351 = arith.mulf %340, %344 : vector<8x4xf32>
    %cst_75 = arith.constant dense<0.000000e+00> : vector<8xf32>
    %352 = vector.multi_reduction <add>, %351, %cst_75 [1] : vector<8x4xf32> to vector<8xf32>
    %353 = vector.shape_cast %352 : vector<8xf32> to vector<8x1xf32>
    %cst_76 = arith.constant 5.000000e-01 : f32
    %354 = vector.broadcast %cst_76 : f32 to vector<8x1xf32>
    %355 = arith.mulf %353, %354 : vector<8x1xf32>
    %356 = arith.maximumf %350, %355 : vector<8x1xf32>
    %357 = arith.subf %350, %356 : vector<8x1xf32>
    %358 = math.exp %357 : vector<8x1xf32>
    %359 = arith.subf %355, %356 : vector<8x1xf32>
    %360 = math.exp %359 : vector<8x1xf32>
    %361 = arith.addf %358, %360 : vector<8x1xf32>
    %362 = tpu.reciprocal %361 {approx = true} : vector<8x1xf32> -> vector<8x1xf32>
    %363 = vector.broadcast %358 : vector<8x1xf32> to vector<8x4xf32>
    %364 = arith.mulf %363, %342 : vector<8x4xf32>
    %365 = vector.broadcast %360 : vector<8x1xf32> to vector<8x4xf32>
    %366 = arith.mulf %365, %345 : vector<8x4xf32>
    %367 = arith.addf %364, %366 : vector<8x4xf32>
    %368 = vector.broadcast %362 : vector<8x1xf32> to vector<8x4xf32>
    %369 = arith.mulf %367, %368 : vector<8x4xf32>
    %370 = arith.mulf %343, %341 : vector<8x4xf32>
    %cst_77 = arith.constant dense<0.000000e+00> : vector<8xf32>
    %371 = vector.multi_reduction <add>, %370, %cst_77 [1] : vector<8x4xf32> to vector<8xf32>
    %372 = vector.shape_cast %371 : vector<8xf32> to vector<8x1xf32>
    %cst_78 = arith.constant 5.000000e-01 : f32
    %373 = vector.broadcast %cst_78 : f32 to vector<8x1xf32>
    %374 = arith.mulf %372, %373 : vector<8x1xf32>
    %375 = arith.mulf %343, %344 : vector<8x4xf32>
    %cst_79 = arith.constant dense<0.000000e+00> : vector<8xf32>
    %376 = vector.multi_reduction <add>, %375, %cst_79 [1] : vector<8x4xf32> to vector<8xf32>
    %377 = vector.shape_cast %376 : vector<8xf32> to vector<8x1xf32>
    %cst_80 = arith.constant 5.000000e-01 : f32
    %378 = vector.broadcast %cst_80 : f32 to vector<8x1xf32>
    %379 = arith.mulf %377, %378 : vector<8x1xf32>
    %380 = arith.maximumf %374, %379 : vector<8x1xf32>
    %381 = arith.subf %374, %380 : vector<8x1xf32>
    %382 = math.exp %381 : vector<8x1xf32>
    %383 = arith.subf %379, %380 : vector<8x1xf32>
    %384 = math.exp %383 : vector<8x1xf32>
    %385 = arith.addf %382, %384 : vector<8x1xf32>
    %386 = tpu.reciprocal %385 {approx = true} : vector<8x1xf32> -> vector<8x1xf32>
    %387 = vector.broadcast %382 : vector<8x1xf32> to vector<8x4xf32>
    %388 = arith.mulf %387, %342 : vector<8x4xf32>
    %389 = vector.broadcast %384 : vector<8x1xf32> to vector<8x4xf32>
    %390 = arith.mulf %389, %345 : vector<8x4xf32>
    %391 = arith.addf %388, %390 : vector<8x4xf32>
    %392 = vector.broadcast %386 : vector<8x1xf32> to vector<8x4xf32>
    %393 = arith.mulf %391, %392 : vector<8x4xf32>
    %394 = vector.extract_strided_slice %15 {offsets = [0, 28], sizes = [8, 4], strides = [1, 1]} : vector<16x96xf32> to vector<8x4xf32>
    %395 = vector.extract_strided_slice %15 {offsets = [0, 60], sizes = [8, 4], strides = [1, 1]} : vector<16x96xf32> to vector<8x4xf32>
    %396 = vector.extract_strided_slice %15 {offsets = [0, 92], sizes = [8, 4], strides = [1, 1]} : vector<16x96xf32> to vector<8x4xf32>
    %397 = vector.extract_strided_slice %15 {offsets = [8, 28], sizes = [8, 4], strides = [1, 1]} : vector<16x96xf32> to vector<8x4xf32>
    %398 = vector.extract_strided_slice %15 {offsets = [8, 60], sizes = [8, 4], strides = [1, 1]} : vector<16x96xf32> to vector<8x4xf32>
    %399 = vector.extract_strided_slice %15 {offsets = [8, 92], sizes = [8, 4], strides = [1, 1]} : vector<16x96xf32> to vector<8x4xf32>
    %400 = arith.mulf %394, %395 : vector<8x4xf32>
    %cst_81 = arith.constant dense<0.000000e+00> : vector<8xf32>
    %401 = vector.multi_reduction <add>, %400, %cst_81 [1] : vector<8x4xf32> to vector<8xf32>
    %402 = vector.shape_cast %401 : vector<8xf32> to vector<8x1xf32>
    %cst_82 = arith.constant 5.000000e-01 : f32
    %403 = vector.broadcast %cst_82 : f32 to vector<8x1xf32>
    %404 = arith.mulf %402, %403 : vector<8x1xf32>
    %405 = arith.mulf %394, %398 : vector<8x4xf32>
    %cst_83 = arith.constant dense<0.000000e+00> : vector<8xf32>
    %406 = vector.multi_reduction <add>, %405, %cst_83 [1] : vector<8x4xf32> to vector<8xf32>
    %407 = vector.shape_cast %406 : vector<8xf32> to vector<8x1xf32>
    %cst_84 = arith.constant 5.000000e-01 : f32
    %408 = vector.broadcast %cst_84 : f32 to vector<8x1xf32>
    %409 = arith.mulf %407, %408 : vector<8x1xf32>
    %410 = arith.maximumf %404, %409 : vector<8x1xf32>
    %411 = arith.subf %404, %410 : vector<8x1xf32>
    %412 = math.exp %411 : vector<8x1xf32>
    %413 = arith.subf %409, %410 : vector<8x1xf32>
    %414 = math.exp %413 : vector<8x1xf32>
    %415 = arith.addf %412, %414 : vector<8x1xf32>
    %416 = tpu.reciprocal %415 {approx = true} : vector<8x1xf32> -> vector<8x1xf32>
    %417 = vector.broadcast %412 : vector<8x1xf32> to vector<8x4xf32>
    %418 = arith.mulf %417, %396 : vector<8x4xf32>
    %419 = vector.broadcast %414 : vector<8x1xf32> to vector<8x4xf32>
    %420 = arith.mulf %419, %399 : vector<8x4xf32>
    %421 = arith.addf %418, %420 : vector<8x4xf32>
    %422 = vector.broadcast %416 : vector<8x1xf32> to vector<8x4xf32>
    %423 = arith.mulf %421, %422 : vector<8x4xf32>
    %424 = arith.mulf %397, %395 : vector<8x4xf32>
    %cst_85 = arith.constant dense<0.000000e+00> : vector<8xf32>
    %425 = vector.multi_reduction <add>, %424, %cst_85 [1] : vector<8x4xf32> to vector<8xf32>
    %426 = vector.shape_cast %425 : vector<8xf32> to vector<8x1xf32>
    %cst_86 = arith.constant 5.000000e-01 : f32
    %427 = vector.broadcast %cst_86 : f32 to vector<8x1xf32>
    %428 = arith.mulf %426, %427 : vector<8x1xf32>
    %429 = arith.mulf %397, %398 : vector<8x4xf32>
    %cst_87 = arith.constant dense<0.000000e+00> : vector<8xf32>
    %430 = vector.multi_reduction <add>, %429, %cst_87 [1] : vector<8x4xf32> to vector<8xf32>
    %431 = vector.shape_cast %430 : vector<8xf32> to vector<8x1xf32>
    %cst_88 = arith.constant 5.000000e-01 : f32
    %432 = vector.broadcast %cst_88 : f32 to vector<8x1xf32>
    %433 = arith.mulf %431, %432 : vector<8x1xf32>
    %434 = arith.maximumf %428, %433 : vector<8x1xf32>
    %435 = arith.subf %428, %434 : vector<8x1xf32>
    %436 = math.exp %435 : vector<8x1xf32>
    %437 = arith.subf %433, %434 : vector<8x1xf32>
    %438 = math.exp %437 : vector<8x1xf32>
    %439 = arith.addf %436, %438 : vector<8x1xf32>
    %440 = tpu.reciprocal %439 {approx = true} : vector<8x1xf32> -> vector<8x1xf32>
    %441 = vector.broadcast %436 : vector<8x1xf32> to vector<8x4xf32>
    %442 = arith.mulf %441, %396 : vector<8x4xf32>
    %443 = vector.broadcast %438 : vector<8x1xf32> to vector<8x4xf32>
    %444 = arith.mulf %443, %399 : vector<8x4xf32>
    %445 = arith.addf %442, %444 : vector<8x4xf32>
    %446 = vector.broadcast %440 : vector<8x1xf32> to vector<8x4xf32>
    %447 = arith.mulf %445, %446 : vector<8x4xf32>
    %448 = tpu.concatenate %45, %99, %153, %207, %261, %315, %369, %423 in 1 : vector<8x4xf32>, vector<8x4xf32>, vector<8x4xf32>, vector<8x4xf32>, vector<8x4xf32>, vector<8x4xf32>, vector<8x4xf32>, vector<8x4xf32> -> vector<8x32xf32>
    %449 = tpu.concatenate %69, %123, %177, %231, %285, %339, %393, %447 in 1 : vector<8x4xf32>, vector<8x4xf32>, vector<8x4xf32>, vector<8x4xf32>, vector<8x4xf32>, vector<8x4xf32>, vector<8x4xf32>, vector<8x4xf32> -> vector<8x32xf32>
    %450 = tpu.concatenate %448, %449 in 0 : vector<8x32xf32>, vector<8x32xf32> -> vector<16x32xf32>
    %cst_89 = arith.constant dense<0.000000e+00> : vector<16x32xf32>
    %451 = tpu.matmul %450, %3, %cst_89 {dimension_numbers = #tpu.dot_dimension_numbers<[1], [0], [0], [1], [0, 0, 1, 1], [], []>} : vector<16x32xf32>, vector<32x32xf32>, vector<16x32xf32> -> vector<16x32xf32>
    %452 = arith.addf %0, %451 : vector<16x32xf32>
    %453 = vector.broadcast %4 : vector<1x32xf32> to vector<16x32xf32>
    %454 = arith.addf %452, %453 : vector<16x32xf32>
    %cst_90 = arith.constant dense<0.000000e+00> : vector<16xf32>
    %455 = vector.multi_reduction <add>, %454, %cst_90 [1] : vector<16x32xf32> to vector<16xf32>
    %456 = vector.shape_cast %455 : vector<16xf32> to vector<16x1xf32>
    %cst_91 = arith.constant 3.200000e+01 : f32
    %457 = vector.broadcast %cst_91 : f32 to vector<16x1xf32>
    %458 = arith.divf %456, %457 : vector<16x1xf32>
    %459 = vector.broadcast %458 : vector<16x1xf32> to vector<16x32xf32>
    %460 = arith.subf %454, %459 : vector<16x32xf32>
    %461 = arith.mulf %460, %460 : vector<16x32xf32>
    %cst_92 = arith.constant dense<0.000000e+00> : vector<16xf32>
    %462 = vector.multi_reduction <add>, %461, %cst_92 [1] : vector<16x32xf32> to vector<16xf32>
    %463 = vector.shape_cast %462 : vector<16xf32> to vector<16x1xf32>
    %cst_93 = arith.constant 3.200000e+01 : f32
    %464 = vector.broadcast %cst_93 : f32 to vector<16x1xf32>
    %465 = arith.divf %463, %464 : vector<16x1xf32>
    %466 = vector.broadcast %458 : vector<16x1xf32> to vector<16x32xf32>
    %467 = arith.subf %454, %466 : vector<16x32xf32>
    %cst_94 = arith.constant 9.99999974E-6 : f32
    %468 = vector.broadcast %cst_94 : f32 to vector<16x1xf32>
    %469 = arith.addf %465, %468 : vector<16x1xf32>
    %470 = math.rsqrt %469 : vector<16x1xf32>
    %471 = vector.broadcast %470 : vector<16x1xf32> to vector<16x32xf32>
    %472 = arith.mulf %467, %471 : vector<16x32xf32>
    %473 = vector.broadcast %5 : vector<1x32xf32> to vector<16x32xf32>
    %474 = arith.mulf %472, %473 : vector<16x32xf32>
    %475 = vector.broadcast %6 : vector<1x32xf32> to vector<16x32xf32>
    %476 = arith.addf %474, %475 : vector<16x32xf32>
    %cst_95 = arith.constant dense<0.000000e+00> : vector<16x64xf32>
    %477 = tpu.matmul %476, %7, %cst_95 {dimension_numbers = #tpu.dot_dimension_numbers<[1], [0], [0], [1], [0, 0, 1, 1], [], []>} : vector<16x32xf32>, vector<32x64xf32>, vector<16x64xf32> -> vector<16x64xf32>
    %478 = vector.broadcast %8 : vector<1x64xf32> to vector<16x64xf32>
    %479 = arith.addf %477, %478 : vector<16x64xf32>
    %cst_96 = arith.constant 0.000000e+00 : f32
    %480 = vector.broadcast %cst_96 : f32 to vector<16x64xf32>
    %481 = arith.maximumf %479, %480 : vector<16x64xf32>
    %cst_97 = arith.constant dense<0.000000e+00> : vector<16x32xf32>
    %482 = tpu.matmul %481, %9, %cst_97 {dimension_numbers = #tpu.dot_dimension_numbers<[1], [0], [0], [1], [0, 0, 1, 1], [], []>} : vector<16x64xf32>, vector<64x32xf32>, vector<16x32xf32> -> vector<16x32xf32>
    %483 = vector.broadcast %10 : vector<1x32xf32> to vector<16x32xf32>
    %484 = arith.addf %482, %483 : vector<16x32xf32>
    %485 = arith.addf %476, %484 : vector<16x32xf32>
    %cst_98 = arith.constant dense<0.000000e+00> : vector<16xf32>
    %486 = vector.multi_reduction <add>, %485, %cst_98 [1] : vector<16x32xf32> to vector<16xf32>
    %487 = vector.shape_cast %486 : vector<16xf32> to vector<16x1xf32>
    %cst_99 = arith.constant 3.200000e+01 : f32
    %488 = vector.broadcast %cst_99 : f32 to vector<16x1xf32>
    %489 = arith.divf %487, %488 : vector<16x1xf32>
    %490 = vector.broadcast %489 : vector<16x1xf32> to vector<16x32xf32>
    %491 = arith.subf %485, %490 : vector<16x32xf32>
    %492 = arith.mulf %491, %491 : vector<16x32xf32>
    %cst_100 = arith.constant dense<0.000000e+00> : vector<16xf32>
    %493 = vector.multi_reduction <add>, %492, %cst_100 [1] : vector<16x32xf32> to vector<16xf32>
    %494 = vector.shape_cast %493 : vector<16xf32> to vector<16x1xf32>
    %cst_101 = arith.constant 3.200000e+01 : f32
    %495 = vector.broadcast %cst_101 : f32 to vector<16x1xf32>
    %496 = arith.divf %494, %495 : vector<16x1xf32>
    %497 = vector.broadcast %489 : vector<16x1xf32> to vector<16x32xf32>
    %498 = arith.subf %485, %497 : vector<16x32xf32>
    %cst_102 = arith.constant 9.99999974E-6 : f32
    %499 = vector.broadcast %cst_102 : f32 to vector<16x1xf32>
    %500 = arith.addf %496, %499 : vector<16x1xf32>
    %501 = math.rsqrt %500 : vector<16x1xf32>
    %502 = vector.broadcast %501 : vector<16x1xf32> to vector<16x32xf32>
    %503 = arith.mulf %498, %502 : vector<16x32xf32>
    %504 = vector.broadcast %11 : vector<1x32xf32> to vector<16x32xf32>
    %505 = arith.mulf %503, %504 : vector<16x32xf32>
    %506 = vector.broadcast %12 : vector<1x32xf32> to vector<16x32xf32>
    %507 = arith.addf %505, %506 : vector<16x32xf32>
    %508 = vector.extract_strided_slice %507 {offsets = [0, 0], sizes = [1, 32], strides = [1, 1]} : vector<16x32xf32> to vector<1x32xf32>
    %509 = vector.extract_strided_slice %507 {offsets = [8, 0], sizes = [1, 32], strides = [1, 1]} : vector<16x32xf32> to vector<1x32xf32>
    %510 = tpu.concatenate %508, %509 in 0 : vector<1x32xf32>, vector<1x32xf32> -> vector<2x32xf32>
    %c0_103 = arith.constant 0 : index
    %c0_104 = arith.constant 0 : index
    %511 = vector.load %arg13[%c0_103, %c0_104] : memref<32x3xf32, #tpu.memory_space<vmem>>, vector<32x3xf32>
    %cst_105 = arith.constant dense<0.000000e+00> : vector<2x3xf32>
    %512 = tpu.matmul %510, %511, %cst_105 {dimension_numbers = #tpu.dot_dimension_numbers<[1], [0], [0], [1], [0, 0, 1, 1], [], []>} : vector<2x32xf32>, vector<32x3xf32>, vector<2x3xf32> -> vector<2x3xf32>
    %c0_106 = arith.constant 0 : index
    %c0_107 = arith.constant 0 : index
    %513 = vector.load %arg14[%c0_106, %c0_107] : memref<1x3xf32, #tpu.memory_space<vmem>>, vector<1x3xf32>
    %514 = vector.broadcast %513 : vector<1x3xf32> to vector<2x3xf32>
    %515 = arith.addf %512, %514 : vector<2x3xf32>
    %c0_108 = arith.constant 0 : index
    %c0_109 = arith.constant 0 : index
    %516 = vector.load %arg15[%c0_108, %c0_109] : memref<2x3xf32, #tpu.memory_space<vmem>>, vector<2x3xf32>
    tpu.vector_store %arg15[%c0_108, %c0_109], %515 {strides = array<i32>} : memref<2x3xf32, #tpu.memory_space<vmem>>, vector<2x3xf32>,
    return
  }
}

</mosaic_0001>

<llo_original>
// kernel: custom_xlm_forward.7
$region0: #{custom_xlm_forward.7}
  #allocation0 [shape = 'u32[]', space=smem, size = 0x4, offset = 0x4, fixed_abs, tag = 'smem constant byte address 0x4 - core index']
  #allocation1 [shape = 'u32[72,128]{1,0:T(1,128)}', space=vmem, size = 0x9000, scoped, tag = 'internal scratch']
  %s0 = inlined_call_operand.vmem [shape: f32[16,32], index: 0, kind: input, shape index: {}]
  %s1 = inlined_call_operand.vmem [shape: f32[1,32], index: 1, kind: input, shape index: {}]
  %s2 = inlined_call_operand.vmem [shape: f32[1,32], index: 2, kind: input, shape index: {}]
  %s3 = inlined_call_operand.vmem [shape: f32[16,1], index: 3, kind: input, shape index: {}]
  %s4 = inlined_call_operand.vmem [shape: f32[16,32], index: 4, kind: output, shape index: {}]
  %s5 = sld [smem:[#allocation0]]
  $region26: #{custom_xlm_forward.7} parent=0
    _
  %s7 = ssub.s32 1, %s5
  %s8 = scalar_select 0, %s7, %s5
  // Predicated region
  $region2: #{custom_xlm_forward.7} parent=0 // pred_check
    _
  $region3: #{custom_xlm_forward.7} parent=0 // pred_check_branch
    %10 = sbr.rel (0) target = $region5
  $region4: #{custom_xlm_forward.7} parent=0 // pred_region
    _
  $region5: #{custom_xlm_forward.7} parent=0 // pred_fallthru
    _
  // Predicated region
  $region6: #{custom_xlm_forward.7} parent=0 // pred_check
    _
  $region7: #{custom_xlm_forward.7} parent=0 // pred_check_branch
    %12 = sbr.rel (0) target = $region9
  $region8: #{custom_xlm_forward.7} parent=0 // pred_region
    _
  $region9: #{custom_xlm_forward.7} parent=0 // pred_fallthru
    _
  // Predicated region
  $region10: #{custom_xlm_forward.7} parent=0 // pred_check
    _
  $region11: #{custom_xlm_forward.7} parent=0 // pred_check_branch
    %14 = sbr.rel (0) target = $region13
  $region12: #{custom_xlm_forward.7} parent=0 // pred_region
    _
  $region13: #{custom_xlm_forward.7} parent=0 // pred_fallthru
    _
  // Predicated region
  $region14: #{custom_xlm_forward.7} parent=0 // pred_check
    _
  $region15: #{custom_xlm_forward.7} parent=0 // pred_check_branch
    %16 = sbr.rel (0) target = $region17
  $region16: #{custom_xlm_forward.7} parent=0 // pred_region
    _
  $region17: #{custom_xlm_forward.7} parent=0 // pred_fallthru
    _
  %v17 = vld [vmem:[%s0] sm:$0xff]
  %v18 = vld [vmem:[%s0 + $0x8] sm:$0xff]
  %v19 = vld [vmem:[%s1] sm:$0x1]
  %v20 = vld [vmem:[%s2] sm:$0x1]
  %vm21 = vcmask 261120
  %v22 = vsel %vm21, %v17, 0.0
  %23 = vadd.xlane.f32.xlu0 %v22
  %v24 = vpop.xlane.xlu0 %23
  %v25 = vsel %vm21, %v18, 0.0
  %26 = vadd.xlane.f32.xlu0 %v25
  %v27 = vpop.xlane.xlu0 %26
  %v28 = vrcp.pop 32.0
  %v29 = vmul.f32 32.0, %v28
  %v30 = vsub.f32 1.0, %v29
  %v31 = vmul.f32 %v28, %v30
  %v32 = vadd.f32 %v28, %v31
  %vm33 = vweird.f32 %v28
  %v34 = vsel %vm33, %v28, %v32
  %v35 = vmul.f32 %v24, %v34
  %v36 = vmul.f32 %v27, %v34
  %v37 = vsub.f32 %v17, %v35
  %v38 = vsub.f32 %v18, %v36
  %v39 = vmul.f32 %v37, %v37
  %v40 = vmul.f32 %v38, %v38
  %v41 = vsel %vm21, %v39, 0.0
  %42 = vadd.xlane.f32.xlu0 %v41
  %v43 = vpop.xlane.xlu0 %42
  %v44 = vsel %vm21, %v40, 0.0
  %45 = vadd.xlane.f32.xlu0 %v44
  %v46 = vpop.xlane.xlu0 %45
  %v47 = vmul.f32 %v43, %v34
  %v48 = vmul.f32 %v46, %v34
  %v49 = vadd.f32 %v47, 1e-12
  %v50 = vadd.f32 %v48, 1e-12
  %v51 = vrsqrt.pop %v49
  %v52 = vmul.f32 %v51, %v49
  %v53 = vmul.f32 %v52, %v51
  %v54 = vmul.f32 0.5, %v53
  %v55 = vsub.f32 1.5, %v54
  %v56 = vmul.f32 %v51, %v55
  %vm57 = vweird.f32 %v49
  %vm58 = vweird.f32 %v51
  %vm59 = vmor %vm57, %vm58
  %v60 = vsel %vm59, %v51, %v56
  %v61 = vrsqrt.pop %v50
  %v62 = vmul.f32 %v61, %v50
  %v63 = vmul.f32 %v62, %v61
  %v64 = vmul.f32 0.5, %v63
  %v65 = vsub.f32 1.5, %v64
  %v66 = vmul.f32 %v61, %v65
  %vm67 = vweird.f32 %v50
  %vm68 = vweird.f32 %v61
  %vm69 = vmor %vm67, %vm68
  %v70 = vsel %vm69, %v61, %v66
  %v71 = vmul.f32 %v37, %v60
  %v72 = vmul.f32 %v38, %v70
  %v74 = vperm.slane %v19, 0
  %v76 = vmul.f32 %v71, %v74
  %v77 = vmul.f32 %v72, %v74
  %v79 = vperm.slane %v20, 0
  %v81 = vadd.f32 %v76, %v79
  %v82 = vadd.f32 %v77, %v79
  %v83 = vld [vmem:[%s3] sm:$0xff]
  %v84 = vld [vmem:[%s3 + $0x8] sm:$0xff]
  %86 = vset.pattern.permute.xlu0 0
  %87 = vperm.xlu0 %86, %v83
  %v88 = vpop.permute.xlu0 %87
  %91 = vset.pattern.permute.xlu0 0
  %92 = vperm.xlu0 %91, %v84
  %v93 = vpop.permute.xlu0 %92
  %v95 = vmul.f32 %v81, %v88
  %v96 = vmul.f32 %v82, %v93
  %97 = vst.msk [vmem:[%s4] sm:$0xff] %vm21, %v95
  %98 = vst.msk [vmem:[%s4 + $0x8] sm:$0xff] %vm21, %v96
  // Predicated region
  $region18: #{custom_xlm_forward.7} parent=0 // pred_check
    _
  $region19: #{custom_xlm_forward.7} parent=0 // pred_check_branch
    %100 = sbr.rel (0) target = $region21
  $region20: #{custom_xlm_forward.7} parent=0 // pred_region
    _
  $region21: #{custom_xlm_forward.7} parent=0 // pred_fallthru
    _
  // Predicated region
  $region22: #{custom_xlm_forward.7} parent=0 // pred_check
    _
  $region23: #{custom_xlm_forward.7} parent=0 // pred_check_branch
    %102 = sbr.rel (0) target = $region25
  $region24: #{custom_xlm_forward.7} parent=0 // pred_region
    _
  $region25: #{custom_xlm_forward.7} parent=0 // pred_fallthru
    _

// kernel: custom_xlm_forward.10
$region0: #{custom_xlm_forward.10}
  #allocation0 [shape = 'u32[]', space=smem, size = 0x4, offset = 0x4, fixed_abs, tag = 'smem constant byte address 0x4 - core index']
  #allocation1 [shape = 'u32[72,128]{1,0:T(1,128)}', space=vmem, size = 0x9000, scoped, tag = 'internal scratch']
  %s0 = inlined_call_operand.vmem [shape: f32[16,32], index: 0, kind: input, shape index: {}]
  %s1 = inlined_call_operand.vmem [shape: f32[32,96], index: 1, kind: input, shape index: {}]
  %s2 = inlined_call_operand.vmem [shape: f32[1,96], index: 2, kind: input, shape index: {}]
  %s3 = inlined_call_operand.vmem [shape: f32[32,32], index: 3, kind: input, shape index: {}]
  %s4 = inlined_call_operand.vmem [shape: f32[1,32], index: 4, kind: input, shape index: {}]
  %s5 = inlined_call_operand.vmem [shape: f32[1,32], index: 5, kind: input, shape index: {}]
  %s6 = inlined_call_operand.vmem [shape: f32[1,32], index: 6, kind: input, shape index: {}]
  %s7 = inlined_call_operand.vmem [shape: f32[32,64], index: 7, kind: input, shape index: {}]
  %s8 = inlined_call_operand.vmem [shape: f32[1,64], index: 8, kind: input, shape index: {}]
  %s9 = inlined_call_operand.vmem [shape: f32[64,32], index: 9, kind: input, shape index: {}]
  %s10 = inlined_call_operand.hbm [shape: f32[1,32], index: 10, kind: input, shape index: {}]
  %s11 = inlined_call_operand.hbm [shape: f32[1,32], index: 11, kind: input, shape index: {}]
  %s12 = inlined_call_operand.hbm [shape: f32[1,32], index: 12, kind: input, shape index: {}]
  %s13 = inlined_call_operand.vmem [shape: f32[16,32], index: 13, kind: output, shape index: {}]
  %s14 = sld [smem:[#allocation0]]
  $region74: #{custom_xlm_forward.10} parent=0
    _
  %s16 = ssub.s32 1, %s14
  %s17 = scalar_select 0, %s16, %s14
  $region1: #{custom_xlm_forward.10} parent=0
    #allocation2 [shape = 'u8[512]{0}', space=vmem, size = 0x400, scoped, tag = 'input window, operand 10, single buffered']
    #allocation3 [shape = 's32[1]{0}', space=sflag, size = 0x4, scoped, tag = 'scoped memory for custom_xlm_forward.10']
    #allocation4 [shape = 'u8[512]{0}', space=vmem, size = 0x400, scoped, tag = 'input window, operand 11, single buffered']
    #allocation5 [shape = 's32[1]{0}', space=sflag, size = 0x4, scoped, tag = 'scoped memory for custom_xlm_forward.10']
    #allocation6 [shape = 'u8[512]{0}', space=vmem, size = 0x400, scoped, tag = 'input window, operand 12, single buffered']
    %18 = vsyncpa [#allocation3], 0
    %19 = vsyncpa [#allocation5], 0
    // Predicated region
    $region2: #{custom_xlm_forward.10} parent=1 // pred_check
      _
    $region3: #{custom_xlm_forward.10} parent=1 // pred_check_branch
      %21 = sbr.rel (0) target = $region5
    $region4: #{custom_xlm_forward.10} parent=1 // pred_region
      _
    $region5: #{custom_xlm_forward.10} parent=1 // pred_fallthru
      _
    // Predicated region
    $region6: #{custom_xlm_forward.10} parent=1 // pred_check
      _
    $region7: #{custom_xlm_forward.10} parent=1 // pred_check_branch
      %23 = sbr.rel (0) target = $region9
    $region8: #{custom_xlm_forward.10} parent=1 // pred_region
      _
    $region9: #{custom_xlm_forward.10} parent=1 // pred_fallthru
      _
    // Predicated region
    $region10: #{custom_xlm_forward.10} parent=1 // pred_check
      _
    $region11: #{custom_xlm_forward.10} parent=1 // pred_check_branch
      %25 = sbr.rel (0) target = $region13
    $region12: #{custom_xlm_forward.10} parent=1 // pred_region
      _
    $region13: #{custom_xlm_forward.10} parent=1 // pred_fallthru
      _
    // Predicated region
    $region14: #{custom_xlm_forward.10} parent=1 // pred_check
      _
    $region15: #{custom_xlm_forward.10} parent=1 // pred_check_branch
      %27 = sbr.rel (0) target = $region17
    $region16: #{custom_xlm_forward.10} parent=1 // pred_region
      _
    $region17: #{custom_xlm_forward.10} parent=1 // pred_fallthru
      _
    // Predicated region
    $region18: #{custom_xlm_forward.10} parent=1 // pred_check
      _
    $region19: #{custom_xlm_forward.10} parent=1 // pred_check_branch
      %29 = sbr.rel (0) target = $region21
    $region20: #{custom_xlm_forward.10} parent=1 // pred_region
      _
    $region21: #{custom_xlm_forward.10} parent=1 // pred_fallthru
      _
    // Predicated region
    $region22: #{custom_xlm_forward.10} parent=1 // pred_check
      _
    $region23: #{custom_xlm_forward.10} parent=1 // pred_check_branch
      %31 = sbr.rel (0) target = $region25
    $region24: #{custom_xlm_forward.10} parent=1 // pred_region
      _
    $region25: #{custom_xlm_forward.10} parent=1 // pred_fallthru
      _
    // Predicated region
    $region26: #{custom_xlm_forward.10} parent=1 // pred_check
      _
    $region27: #{custom_xlm_forward.10} parent=1 // pred_check_branch
      %33 = sbr.rel (0) target = $region29
    $region28: #{custom_xlm_forward.10} parent=1 // pred_region
      _
    $region29: #{custom_xlm_forward.10} parent=1 // pred_fallthru
      _
    // Predicated region
    $region30: #{custom_xlm_forward.10} parent=1 // pred_check
      _
    $region31: #{custom_xlm_forward.10} parent=1 // pred_check_branch
      %35 = sbr.rel (0) target = $region33
    $region32: #{custom_xlm_forward.10} parent=1 // pred_region
      _
    $region33: #{custom_xlm_forward.10} parent=1 // pred_fallthru
      _
    // Predicated region
    $region34: #{custom_xlm_forward.10} parent=1 // pred_check
      _
    $region35: #{custom_xlm_forward.10} parent=1 // pred_check_branch
      %37 = sbr.rel (0) target = $region37
    $region36: #{custom_xlm_forward.10} parent=1 // pred_region
      _
    $region37: #{custom_xlm_forward.10} parent=1 // pred_fallthru
      _
    // Predicated region
    $region38: #{custom_xlm_forward.10} parent=1 // pred_check
      _
    $region39: #{custom_xlm_forward.10} parent=1 // pred_check_branch
      %39 = sbr.rel (0) target = $region41
    $region40: #{custom_xlm_forward.10} parent=1 // pred_region
      _
    $region41: #{custom_xlm_forward.10} parent=1 // pred_fallthru
      _
    // Predicated region
    $region42: #{custom_xlm_forward.10} parent=1 // pred_check
      _
    $region43: #{custom_xlm_forward.10} parent=1 // pred_check_branch
      %41 = sbr.rel (0) target = $region45
    $region44: #{custom_xlm_forward.10} parent=1 // pred_region
      %43 = vsyncadd [#allocation3], 0
      %s45 = sshll.u32 %s10, 4
      %s46 = int_to_ptr.hbm [resolvable:$true] %s45
      %s47 = sshll.u32 [#allocation2], 4
      %s48 = int_to_ptr.vmem [resolvable:$true] %s47
      %50 = dma.hbm_to_vmem [thread:$0]  %s46, 16, %s48, [#allocation3]
    $region45: #{custom_xlm_forward.10} parent=1 // pred_fallthru
      _
    // Predicated region
    $region46: #{custom_xlm_forward.10} parent=1 // pred_check
      _
    $region47: #{custom_xlm_forward.10} parent=1 // pred_check_branch
      %52 = sbr.rel (0) target = $region49
    $region48: #{custom_xlm_forward.10} parent=1 // pred_region
      %54 = vsyncadd [#allocation5], 0
      %s56 = sshll.u32 %s11, 4
      %s57 = int_to_ptr.hbm [resolvable:$true] %s56
      %s58 = sshll.u32 [#allocation4], 4
      %s59 = int_to_ptr.vmem [resolvable:$true] %s58
      %61 = dma.hbm_to_vmem [thread:$0]  %s57, 16, %s59, [#allocation5]
    $region49: #{custom_xlm_forward.10} parent=1 // pred_fallthru
      _
    // Predicated region
    $region50: #{custom_xlm_forward.10} parent=1 // pred_check
      _
    $region51: #{custom_xlm_forward.10} parent=1 // pred_check_branch
      %63 = sbr.rel (0) target = $region53
    $region52: #{custom_xlm_forward.10} parent=1 // pred_region
      %65 = vsyncadd [#allocation5], 0
      %s67 = sshll.u32 %s12, 4
      %s68 = int_to_ptr.hbm [resolvable:$true] %s67
      %s69 = sshll.u32 [#allocation6], 4
      %s70 = int_to_ptr.vmem [resolvable:$true] %s69
      %72 = dma.hbm_to_vmem [thread:$0]  %s68, 16, %s70, [#allocation5]
    $region53: #{custom_xlm_forward.10} parent=1 // pred_fallthru
      _
    // Predicated region
    $region54: #{custom_xlm_forward.10} parent=1 // pred_check
      _
    $region55: #{custom_xlm_forward.10} parent=1 // pred_check_branch
      %74 = sbr.rel (0) target = $region57
    $region56: #{custom_xlm_forward.10} parent=1 // pred_region
      %76 = dma.done [#allocation3], 16
    $region57: #{custom_xlm_forward.10} parent=1 // pred_fallthru
      _
    // Predicated region
    $region58: #{custom_xlm_forward.10} parent=1 // pred_check
      _
    $region59: #{custom_xlm_forward.10} parent=1 // pred_check_branch
      %78 = sbr.rel (0) target = $region61
    $region60: #{custom_xlm_forward.10} parent=1 // pred_region
      %80 = dma.done [#allocation5], 16
    $region61: #{custom_xlm_forward.10} parent=1 // pred_fallthru
      _
    // Predicated region
    $region62: #{custom_xlm_forward.10} parent=1 // pred_check
      _
    $region63: #{custom_xlm_forward.10} parent=1 // pred_check_branch
      %82 = sbr.rel (0) target = $region65
    $region64: #{custom_xlm_forward.10} parent=1 // pred_region
      %84 = dma.done [#allocation5], 16
    $region65: #{custom_xlm_forward.10} parent=1 // pred_fallthru
      _
    %v85 = vld [vmem:[%s0] sm:$0xff]
    %v86 = vld [vmem:[%s0 + $0x8] sm:$0xff]
    %v87 = vld [vmem:[%s1] sm:$0xff]
    %v88 = vld [vmem:[%s1 + $0x8] sm:$0xff]
    %v89 = vld [vmem:[%s1 + $0x10] sm:$0xff]
    %v90 = vld [vmem:[%s1 + $0x18] sm:$0xff]
    %v91 = vld [vmem:[%s2] sm:$0x1]
    %v92 = vld [vmem:[%s3] sm:$0xff]
    %v93 = vld [vmem:[%s3 + $0x8] sm:$0xff]
    %v94 = vld [vmem:[%s3 + $0x10] sm:$0xff]
    %v95 = vld [vmem:[%s3 + $0x18] sm:$0xff]
    %v96 = vld [vmem:[%s4] sm:$0x1]
    %v97 = vld [vmem:[%s5] sm:$0x1]
    %v98 = vld [vmem:[%s6] sm:$0x1]
    %v99 = vld [vmem:[%s7] sm:$0xff]
    %v100 = vld [vmem:[%s7 + $0x8] sm:$0xff]
    %v101 = vld [vmem:[%s7 + $0x10] sm:$0xff]
    %v102 = vld [vmem:[%s7 + $0x18] sm:$0xff]
    %v103 = vld [vmem:[%s8] sm:$0x1]
    %v104 = vld [vmem:[%s9] sm:$0xff]
    %v105 = vld [vmem:[%s9 + $0x8] sm:$0xff]
    %v106 = vld [vmem:[%s9 + $0x10] sm:$0xff]
    %v107 = vld [vmem:[%s9 + $0x18] sm:$0xff]
    %v108 = vld [vmem:[%s9 + $0x20] sm:$0xff]
    %v109 = vld [vmem:[%s9 + $0x28] sm:$0xff]
    %v110 = vld [vmem:[%s9 + $0x30] sm:$0xff]
    %v111 = vld [vmem:[%s9 + $0x38] sm:$0xff]
    %v112 = vld [vmem:[#allocation2] sm:$0x1]
    %v113 = vld [vmem:[#allocation4] sm:$0x1]
    %v114 = vld [vmem:[#allocation6] sm:$0x1]
    %v116 = vperm.slane %v91, 0
    %vm118 = vcmask 261120
    %v120 = vsel %vm118, %v85, 0
    %v123 = vsel %vm118, %v86, 0
    %125 = vmatpush.msra.mxu0 0.0
    %126 = vmatpush.msra.mxu0 0.0
    %127 = vmatpush.msra.mxu0 0.0
    %128 = vmatpush.msra.mxu0 0.0
    %129 = vmatpush.msra.mxu0 0.0
    %130 = vmatpush.msra.mxu0 0.0
    %131 = vmatpush.msra.mxu0 0.0
    %132 = vmatpush.msra.mxu0 0.0
    %133 = vmatpush.msra.mxu0 0.0
    %134 = vmatpush.msra.mxu0 0.0
    %135 = vmatpush.msra.mxu0 0.0
    %136 = vmatpush.msra.mxu0 0.0
    %137 = vmatpush.msra.mxu0 %v90
    %138 = vmatpush.msra.mxu0 %v89
    %139 = vmatpush.msra.mxu0 %v88
    %140 = vmatpush.msra.mxu0 %v87
    %141 = vmatmul.f32.gmra.mxu0 %v120
    %v142 = vpop.f32.mrf.mxu0
    %v143 = vadd.f32 %v116, %v142
    %144 = vmatmul.f32.gmra.mxu0 %v123
    %v145 = vpop.f32.mrf.mxu0
    %v146 = vadd.f32 %v116, %v145
    %147 = vdwg.mxu0
    %149 = vrot.lane.b32.xlu0 %v143, 96
    %v150 = vpop.permute.xlu0 %149
    %v152 = vmul.f32 %v143, %v150
    %vm153 = vcmask 31744
    %v154 = vsel %vm153, %v152, 0.0
    %155 = vadd.xlane.f32.xlu0 %v154
    %v156 = vpop.xlane.xlu0 %155
    %v157 = vmul.f32 %v156, 0.5
    %159 = vrot.lane.b32.xlu0 %v146, 96
    %v160 = vpop.permute.xlu0 %159
    %v162 = vmul.f32 %v143, %v160
    %v163 = vsel %vm153, %v162, 0.0
    %164 = vadd.xlane.f32.xlu0 %v163
    %v165 = vpop.xlane.xlu0 %164
    %v166 = vmul.f32 %v165, 0.5
    %v167 = vmax.f32 %v157, %v166
    %v168 = vsub.f32 %v157, %v167
    %v169 = vmul.f32 %v168, 1.442695
    %v170 = vpow.pop %v169
    %v171 = vsub.f32 %v166, %v167
    %v172 = vmul.f32 %v171, 1.442695
    %v173 = vpow.pop %v172
    %v174 = vadd.f32 %v170, %v173
    %v175 = vrcp.pop %v174
    %v176 = vmul.f32 %v170, %v143
    %v177 = vmul.f32 %v173, %v146
    %v178 = vadd.f32 %v176, %v177
    %v179 = vmul.f32 %v178, %v175
    %v180 = vmul.f32 %v146, %v150
    %v181 = vsel %vm153, %v180, 0.0
    %182 = vadd.xlane.f32.xlu0 %v181
    %v183 = vpop.xlane.xlu0 %182
    %v184 = vmul.f32 %v183, 0.5
    %v185 = vmul.f32 %v146, %v160
    %v186 = vsel %vm153, %v185, 0.0
    %187 = vadd.xlane.f32.xlu0 %v186
    %v188 = vpop.xlane.xlu0 %187
    %v189 = vmul.f32 %v188, 0.5
    %v190 = vmax.f32 %v184, %v189
    %v191 = vsub.f32 %v184, %v190
    %v192 = vmul.f32 %v191, 1.442695
    %v193 = vpow.pop %v192
    %v194 = vsub.f32 %v189, %v190
    %v195 = vmul.f32 %v194, 1.442695
    %v196 = vpow.pop %v195
    %v197 = vadd.f32 %v193, %v196
    %v198 = vrcp.pop %v197
    %v199 = vmul.f32 %v193, %v143
    %v200 = vmul.f32 %v196, %v146
    %v201 = vadd.f32 %v199, %v200
    %v202 = vmul.f32 %v201, %v198
    %204 = vrot.lane.b32.xlu0 %v152, 124
    %v205 = vpop.permute.xlu0 %204
    %v207 = vsel %vm153, %v205, 0.0
    %208 = vadd.xlane.f32.xlu0 %v207
    %v209 = vpop.xlane.xlu0 %208
    %v210 = vmul.f32 %v209, 0.5
    %212 = vrot.lane.b32.xlu0 %v162, 124
    %v213 = vpop.permute.xlu0 %212
    %v215 = vsel %vm153, %v213, 0.0
    %216 = vadd.xlane.f32.xlu0 %v215
    %v217 = vpop.xlane.xlu0 %216
    %v218 = vmul.f32 %v217, 0.5
    %v219 = vmax.f32 %v210, %v218
    %v220 = vsub.f32 %v210, %v219
    %v221 = vmul.f32 %v220, 1.442695
    %v222 = vpow.pop %v221
    %v223 = vsub.f32 %v218, %v219
    %v224 = vmul.f32 %v223, 1.442695
    %v225 = vpow.pop %v224
    %v226 = vadd.f32 %v222, %v225
    %v227 = vrcp.pop %v226
    %v228 = vmul.f32 %v222, %v143
    %v229 = vmul.f32 %v225, %v146
    %v230 = vadd.f32 %v228, %v229
    %v231 = vmul.f32 %v230, %v227
    %233 = vrot.lane.b32.xlu0 %v180, 124
    %v234 = vpop.permute.xlu0 %233
    %v236 = vsel %vm153, %v234, 0.0
    %237 = vadd.xlane.f32.xlu0 %v236
    %v238 = vpop.xlane.xlu0 %237
    %v239 = vmul.f32 %v238, 0.5
    %241 = vrot.lane.b32.xlu0 %v185, 124
    %v242 = vpop.permute.xlu0 %241
    %v244 = vsel %vm153, %v242, 0.0
    %245 = vadd.xlane.f32.xlu0 %v244
    %v246 = vpop.xlane.xlu0 %245
    %v247 = vmul.f32 %v246, 0.5
    %v248 = vmax.f32 %v239, %v247
    %v249 = vsub.f32 %v239, %v248
    %v250 = vmul.f32 %v249, 1.442695
    %v251 = vpow.pop %v250
    %v252 = vsub.f32 %v247, %v248
    %v253 = vmul.f32 %v252, 1.442695
    %v254 = vpow.pop %v253
    %v255 = vadd.f32 %v251, %v254
    %v256 = vrcp.pop %v255
    %v257 = vmul.f32 %v251, %v143
    %v258 = vmul.f32 %v254, %v146
    %v259 = vadd.f32 %v257, %v258
    %v260 = vmul.f32 %v259, %v256
    %261 = vrot.lane.b32.xlu0 %v152, 120
    %v262 = vpop.permute.xlu0 %261
    %v264 = vsel %vm153, %v262, 0.0
    %265 = vadd.xlane.f32.xlu0 %v264
    %v266 = vpop.xlane.xlu0 %265
    %v267 = vmul.f32 %v266, 0.5
    %268 = vrot.lane.b32.xlu0 %v162, 120
    %v269 = vpop.permute.xlu0 %268
    %v271 = vsel %vm153, %v269, 0.0
    %272 = vadd.xlane.f32.xlu0 %v271
    %v273 = vpop.xlane.xlu0 %272
    %v274 = vmul.f32 %v273, 0.5
    %v275 = vmax.f32 %v267, %v274
    %v276 = vsub.f32 %v267, %v275
    %v277 = vmul.f32 %v276, 1.442695
    %v278 = vpow.pop %v277
    %v279 = vsub.f32 %v274, %v275
    %v280 = vmul.f32 %v279, 1.442695
    %v281 = vpow.pop %v280
    %v282 = vadd.f32 %v278, %v281
    %v283 = vrcp.pop %v282
    %v284 = vmul.f32 %v278, %v143
    %v285 = vmul.f32 %v281, %v146
    %v286 = vadd.f32 %v284, %v285
    %v287 = vmul.f32 %v286, %v283
    %288 = vrot.lane.b32.xlu0 %v180, 120
    %v289 = vpop.permute.xlu0 %288
    %v291 = vsel %vm153, %v289, 0.0
    %292 = vadd.xlane.f32.xlu0 %v291
    %v293 = vpop.xlane.xlu0 %292
    %v294 = vmul.f32 %v293, 0.5
    %295 = vrot.lane.b32.xlu0 %v185, 120
    %v296 = vpop.permute.xlu0 %295
    %v298 = vsel %vm153, %v296, 0.0
    %299 = vadd.xlane.f32.xlu0 %v298
    %v300 = vpop.xlane.xlu0 %299
    %v301 = vmul.f32 %v300, 0.5
    %v302 = vmax.f32 %v294, %v301
    %v303 = vsub.f32 %v294, %v302
    %v304 = vmul.f32 %v303, 1.442695
    %v305 = vpow.pop %v304
    %v306 = vsub.f32 %v301, %v302
    %v307 = vmul.f32 %v306, 1.442695
    %v308 = vpow.pop %v307
    %v309 = vadd.f32 %v305, %v308
    %v310 = vrcp.pop %v309
    %v311 = vmul.f32 %v305, %v143
    %v312 = vmul.f32 %v308, %v146
    %v313 = vadd.f32 %v311, %v312
    %v314 = vmul.f32 %v313, %v310
    %315 = vrot.lane.b32.xlu0 %v152, 116
    %v316 = vpop.permute.xlu0 %315
    %v318 = vsel %vm153, %v316, 0.0
    %319 = vadd.xlane.f32.xlu0 %v318
    %v320 = vpop.xlane.xlu0 %319
    %v321 = vmul.f32 %v320, 0.5
    %322 = vrot.lane.b32.xlu0 %v162, 116
    %v323 = vpop.permute.xlu0 %322
    %v325 = vsel %vm153, %v323, 0.0
    %326 = vadd.xlane.f32.xlu0 %v325
    %v327 = vpop.xlane.xlu0 %326
    %v328 = vmul.f32 %v327, 0.5
    %v329 = vmax.f32 %v321, %v328
    %v330 = vsub.f32 %v321, %v329
    %v331 = vmul.f32 %v330, 1.442695
    %v332 = vpow.pop %v331
    %v333 = vsub.f32 %v328, %v329
    %v334 = vmul.f32 %v333, 1.442695
    %v335 = vpow.pop %v334
    %v336 = vadd.f32 %v332, %v335
    %v337 = vrcp.pop %v336
    %v338 = vmul.f32 %v332, %v143
    %v339 = vmul.f32 %v335, %v146
    %v340 = vadd.f32 %v338, %v339
    %v341 = vmul.f32 %v340, %v337
    %342 = vrot.lane.b32.xlu0 %v180, 116
    %v343 = vpop.permute.xlu0 %342
    %v345 = vsel %vm153, %v343, 0.0
    %346 = vadd.xlane.f32.xlu0 %v345
    %v347 = vpop.xlane.xlu0 %346
    %v348 = vmul.f32 %v347, 0.5
    %349 = vrot.lane.b32.xlu0 %v185, 116
    %v350 = vpop.permute.xlu0 %349
    %v352 = vsel %vm153, %v350, 0.0
    %353 = vadd.xlane.f32.xlu0 %v352
    %v354 = vpop.xlane.xlu0 %353
    %v355 = vmul.f32 %v354, 0.5
    %v356 = vmax.f32 %v348, %v355
    %v357 = vsub.f32 %v348, %v356
    %v358 = vmul.f32 %v357, 1.442695
    %v359 = vpow.pop %v358
    %v360 = vsub.f32 %v355, %v356
    %v361 = vmul.f32 %v360, 1.442695
    %v362 = vpow.pop %v361
    %v363 = vadd.f32 %v359, %v362
    %v364 = vrcp.pop %v363
    %v365 = vmul.f32 %v359, %v143
    %v366 = vmul.f32 %v362, %v146
    %v367 = vadd.f32 %v365, %v366
    %v368 = vmul.f32 %v367, %v364
    %369 = vrot.lane.b32.xlu0 %v152, 112
    %v370 = vpop.permute.xlu0 %369
    %v372 = vsel %vm153, %v370, 0.0
    %373 = vadd.xlane.f32.xlu0 %v372
    %v374 = vpop.xlane.xlu0 %373
    %v375 = vmul.f32 %v374, 0.5
    %376 = vrot.lane.b32.xlu0 %v162, 112
    %v377 = vpop.permute.xlu0 %376
    %v379 = vsel %vm153, %v377, 0.0
    %380 = vadd.xlane.f32.xlu0 %v379
    %v381 = vpop.xlane.xlu0 %380
    %v382 = vmul.f32 %v381, 0.5
    %v383 = vmax.f32 %v375, %v382
    %v384 = vsub.f32 %v375, %v383
    %v385 = vmul.f32 %v384, 1.442695
    %v386 = vpow.pop %v385
    %v387 = vsub.f32 %v382, %v383
    %v388 = vmul.f32 %v387, 1.442695
    %v389 = vpow.pop %v388
    %v390 = vadd.f32 %v386, %v389
    %v391 = vrcp.pop %v390
    %v392 = vmul.f32 %v386, %v143
    %v393 = vmul.f32 %v389, %v146
    %v394 = vadd.f32 %v392, %v393
    %v395 = vmul.f32 %v394, %v391
    %396 = vrot.lane.b32.xlu0 %v180, 112
    %v397 = vpop.permute.xlu0 %396
    %v399 = vsel %vm153, %v397, 0.0
    %400 = vadd.xlane.f32.xlu0 %v399
    %v401 = vpop.xlane.xlu0 %400
    %v402 = vmul.f32 %v401, 0.5
    %403 = vrot.lane.b32.xlu0 %v185, 112
    %v404 = vpop.permute.xlu0 %403
    %v406 = vsel %vm153, %v404, 0.0
    %407 = vadd.xlane.f32.xlu0 %v406
    %v408 = vpop.xlane.xlu0 %407
    %v409 = vmul.f32 %v408, 0.5
    %v410 = vmax.f32 %v402, %v409
    %v411 = vsub.f32 %v402, %v410
    %v412 = vmul.f32 %v411, 1.442695
    %v413 = vpow.pop %v412
    %v414 = vsub.f32 %v409, %v410
    %v415 = vmul.f32 %v414, 1.442695
    %v416 = vpow.pop %v415
    %v417 = vadd.f32 %v413, %v416
    %v418 = vrcp.pop %v417
    %v419 = vmul.f32 %v413, %v143
    %v420 = vmul.f32 %v416, %v146
    %v421 = vadd.f32 %v419, %v420
    %v422 = vmul.f32 %v421, %v418
    %423 = vrot.lane.b32.xlu0 %v152, 108
    %v424 = vpop.permute.xlu0 %423
    %v426 = vsel %vm153, %v424, 0.0
    %427 = vadd.xlane.f32.xlu0 %v426
    %v428 = vpop.xlane.xlu0 %427
    %v429 = vmul.f32 %v428, 0.5
    %430 = vrot.lane.b32.xlu0 %v162, 108
    %v431 = vpop.permute.xlu0 %430
    %v433 = vsel %vm153, %v431, 0.0
    %434 = vadd.xlane.f32.xlu0 %v433
    %v435 = vpop.xlane.xlu0 %434
    %v436 = vmul.f32 %v435, 0.5
    %v437 = vmax.f32 %v429, %v436
    %v438 = vsub.f32 %v429, %v437
    %v439 = vmul.f32 %v438, 1.442695
    %v440 = vpow.pop %v439
    %v441 = vsub.f32 %v436, %v437
    %v442 = vmul.f32 %v441, 1.442695
    %v443 = vpow.pop %v442
    %v444 = vadd.f32 %v440, %v443
    %v445 = vrcp.pop %v444
    %v446 = vmul.f32 %v440, %v143
    %v447 = vmul.f32 %v443, %v146
    %v448 = vadd.f32 %v446, %v447
    %v449 = vmul.f32 %v448, %v445
    %450 = vrot.lane.b32.xlu0 %v180, 108
    %v451 = vpop.permute.xlu0 %450
    %v453 = vsel %vm153, %v451, 0.0
    %454 = vadd.xlane.f32.xlu0 %v453
    %v455 = vpop.xlane.xlu0 %454
    %v456 = vmul.f32 %v455, 0.5
    %457 = vrot.lane.b32.xlu0 %v185, 108
    %v458 = vpop.permute.xlu0 %457
    %v460 = vsel %vm153, %v458, 0.0
    %461 = vadd.xlane.f32.xlu0 %v460
    %v462 = vpop.xlane.xlu0 %461
    %v463 = vmul.f32 %v462, 0.5
    %v464 = vmax.f32 %v456, %v463
    %v465 = vsub.f32 %v456, %v464
    %v466 = vmul.f32 %v465, 1.442695
    %v467 = vpow.pop %v466
    %v468 = vsub.f32 %v463, %v464
    %v469 = vmul.f32 %v468, 1.442695
    %v470 = vpow.pop %v469
    %v471 = vadd.f32 %v467, %v470
    %v472 = vrcp.pop %v471
    %v473 = vmul.f32 %v467, %v143
    %v474 = vmul.f32 %v470, %v146
    %v475 = vadd.f32 %v473, %v474
    %v476 = vmul.f32 %v475, %v472
    %477 = vrot.lane.b32.xlu0 %v152, 104
    %v478 = vpop.permute.xlu0 %477
    %v480 = vsel %vm153, %v478, 0.0
    %481 = vadd.xlane.f32.xlu0 %v480
    %v482 = vpop.xlane.xlu0 %481
    %v483 = vmul.f32 %v482, 0.5
    %484 = vrot.lane.b32.xlu0 %v162, 104
    %v485 = vpop.permute.xlu0 %484
    %v487 = vsel %vm153, %v485, 0.0
    %488 = vadd.xlane.f32.xlu0 %v487
    %v489 = vpop.xlane.xlu0 %488
    %v490 = vmul.f32 %v489, 0.5
    %v491 = vmax.f32 %v483, %v490
    %v492 = vsub.f32 %v483, %v491
    %v493 = vmul.f32 %v492, 1.442695
    %v494 = vpow.pop %v493
    %v495 = vsub.f32 %v490, %v491
    %v496 = vmul.f32 %v495, 1.442695
    %v497 = vpow.pop %v496
    %v498 = vadd.f32 %v494, %v497
    %v499 = vrcp.pop %v498
    %v500 = vmul.f32 %v494, %v143
    %v501 = vmul.f32 %v497, %v146
    %v502 = vadd.f32 %v500, %v501
    %v503 = vmul.f32 %v502, %v499
    %504 = vrot.lane.b32.xlu0 %v180, 104
    %v505 = vpop.permute.xlu0 %504
    %v507 = vsel %vm153, %v505, 0.0
    %508 = vadd.xlane.f32.xlu0 %v507
    %v509 = vpop.xlane.xlu0 %508
    %v510 = vmul.f32 %v509, 0.5
    %511 = vrot.lane.b32.xlu0 %v185, 104
    %v512 = vpop.permute.xlu0 %511
    %v514 = vsel %vm153, %v512, 0.0
    %515 = vadd.xlane.f32.xlu0 %v514
    %v516 = vpop.xlane.xlu0 %515
    %v517 = vmul.f32 %v516, 0.5
    %v518 = vmax.f32 %v510, %v517
    %v519 = vsub.f32 %v510, %v518
    %v520 = vmul.f32 %v519, 1.442695
    %v521 = vpow.pop %v520
    %v522 = vsub.f32 %v517, %v518
    %v523 = vmul.f32 %v522, 1.442695
    %v524 = vpow.pop %v523
    %v525 = vadd.f32 %v521, %v524
    %v526 = vrcp.pop %v525
    %v527 = vmul.f32 %v521, %v143
    %v528 = vmul.f32 %v524, %v146
    %v529 = vadd.f32 %v527, %v528
    %v530 = vmul.f32 %v529, %v526
    %531 = vrot.lane.b32.xlu0 %v152, 100
    %v532 = vpop.permute.xlu0 %531
    %v534 = vsel %vm153, %v532, 0.0
    %535 = vadd.xlane.f32.xlu0 %v534
    %v536 = vpop.xlane.xlu0 %535
    %v537 = vmul.f32 %v536, 0.5
    %538 = vrot.lane.b32.xlu0 %v162, 100
    %v539 = vpop.permute.xlu0 %538
    %v541 = vsel %vm153, %v539, 0.0
    %542 = vadd.xlane.f32.xlu0 %v541
    %v543 = vpop.xlane.xlu0 %542
    %v544 = vmul.f32 %v543, 0.5
    %v545 = vmax.f32 %v537, %v544
    %v546 = vsub.f32 %v537, %v545
    %v547 = vmul.f32 %v546, 1.442695
    %v548 = vpow.pop %v547
    %v549 = vsub.f32 %v544, %v545
    %v550 = vmul.f32 %v549, 1.442695
    %v551 = vpow.pop %v550
    %v552 = vadd.f32 %v548, %v551
    %v553 = vrcp.pop %v552
    %v554 = vmul.f32 %v548, %v143
    %v555 = vmul.f32 %v551, %v146
    %v556 = vadd.f32 %v554, %v555
    %v557 = vmul.f32 %v556, %v553
    %558 = vrot.lane.b32.xlu0 %v180, 100
    %v559 = vpop.permute.xlu0 %558
    %v561 = vsel %vm153, %v559, 0.0
    %562 = vadd.xlane.f32.xlu0 %v561
    %v563 = vpop.xlane.xlu0 %562
    %v564 = vmul.f32 %v563, 0.5
    %565 = vrot.lane.b32.xlu0 %v185, 100
    %v566 = vpop.permute.xlu0 %565
    %v568 = vsel %vm153, %v566, 0.0
    %569 = vadd.xlane.f32.xlu0 %v568
    %v570 = vpop.xlane.xlu0 %569
    %v571 = vmul.f32 %v570, 0.5
    %v572 = vmax.f32 %v564, %v571
    %v573 = vsub.f32 %v564, %v572
    %v574 = vmul.f32 %v573, 1.442695
    %v575 = vpow.pop %v574
    %v576 = vsub.f32 %v571, %v572
    %v577 = vmul.f32 %v576, 1.442695
    %v578 = vpow.pop %v577
    %v579 = vadd.f32 %v575, %v578
    %v580 = vrcp.pop %v579
    %v581 = vmul.f32 %v575, %v143
    %v582 = vmul.f32 %v578, %v146
    %v583 = vadd.f32 %v581, %v582
    %v584 = vmul.f32 %v583, %v580
    %586 = vrot.lane.b32.xlu0 %v179, 64
    %v587 = vpop.permute.xlu0 %586
    %590 = vrot.lane.b32.xlu0 %v231, 64
    %v591 = vpop.permute.xlu0 %590
    %594 = vrot.lane.b32.xlu0 %v287, 64
    %v595 = vpop.permute.xlu0 %594
    %598 = vrot.lane.b32.xlu0 %v341, 64
    %v599 = vpop.permute.xlu0 %598
    %602 = vrot.lane.b32.xlu0 %v395, 64
    %v603 = vpop.permute.xlu0 %602
    %606 = vrot.lane.b32.xlu0 %v449, 64
    %v607 = vpop.permute.xlu0 %606
    %610 = vrot.lane.b32.xlu0 %v503, 64
    %v611 = vpop.permute.xlu0 %610
    %614 = vrot.lane.b32.xlu0 %v557, 64
    %v615 = vpop.permute.xlu0 %614
    %v617 = vsel %vm153, %v587, %v591
    %vm618 = vcmask 64512
    %v619 = vsel %vm618, %v617, %v595
    %vm620 = vcmask 97280
    %v621 = vsel %vm620, %v619, %v599
    %vm622 = vcmask 130048
    %v623 = vsel %vm622, %v621, %v603
    %vm624 = vcmask 162816
    %v625 = vsel %vm624, %v623, %v607
    %vm626 = vcmask 195584
    %v627 = vsel %vm626, %v625, %v611
    %vm628 = vcmask 228352
    %v629 = vsel %vm628, %v627, %v615
    %631 = vrot.lane.b32.xlu0 %v202, 64
    %v632 = vpop.permute.xlu0 %631
    %635 = vrot.lane.b32.xlu0 %v260, 64
    %v636 = vpop.permute.xlu0 %635
    %639 = vrot.lane.b32.xlu0 %v314, 64
    %v640 = vpop.permute.xlu0 %639
    %643 = vrot.lane.b32.xlu0 %v368, 64
    %v644 = vpop.permute.xlu0 %643
    %647 = vrot.lane.b32.xlu0 %v422, 64
    %v648 = vpop.permute.xlu0 %647
    %651 = vrot.lane.b32.xlu0 %v476, 64
    %v652 = vpop.permute.xlu0 %651
    %655 = vrot.lane.b32.xlu0 %v530, 64
    %v656 = vpop.permute.xlu0 %655
    %659 = vrot.lane.b32.xlu0 %v584, 64
    %v660 = vpop.permute.xlu0 %659
    %v662 = vsel %vm153, %v632, %v636
    %v663 = vsel %vm618, %v662, %v640
    %v664 = vsel %vm620, %v663, %v644
    %v665 = vsel %vm622, %v664, %v648
    %v666 = vsel %vm624, %v665, %v652
    %v667 = vsel %vm626, %v666, %v656
    %v668 = vsel %vm628, %v667, %v660
    %v670 = vsel %vm118, %v629, 0
    %v673 = vsel %vm118, %v668, 0
    %675 = vmatpush.msra.mxu0 0.0
    %676 = vmatpush.msra.mxu0 0.0
    %677 = vmatpush.msra.mxu0 0.0
    %678 = vmatpush.msra.mxu0 0.0
    %679 = vmatpush.msra.mxu0 0.0
    %680 = vmatpush.msra.mxu0 0.0
    %681 = vmatpush.msra.mxu0 0.0
    %682 = vmatpush.msra.mxu0 0.0
    %683 = vmatpush.msra.mxu0 0.0
    %684 = vmatpush.msra.mxu0 0.0
    %685 = vmatpush.msra.mxu0 0.0
    %686 = vmatpush.msra.mxu0 0.0
    %687 = vmatpush.msra.mxu0 %v95
    %688 = vmatpush.msra.mxu0 %v94
    %689 = vmatpush.msra.mxu0 %v93
    %690 = vmatpush.msra.mxu0 %v92
    %691 = vmatmul.f32.gmra.mxu0 %v670
    %v692 = vpop.f32.mrf.mxu0
    %v693 = vadd.f32 0.0, %v692
    %694 = vmatmul.f32.gmra.mxu0 %v673
    %v695 = vpop.f32.mrf.mxu0
    %v696 = vadd.f32 0.0, %v695
    %697 = vdwg.mxu0
    %v698 = vadd.f32 %v85, %v693
    %v699 = vadd.f32 %v86, %v696
    %v701 = vperm.slane %v96, 0
    %v703 = vadd.f32 %v698, %v701
    %v704 = vadd.f32 %v699, %v701
    %v705 = vsel %vm118, %v703, 0.0
    %706 = vadd.xlane.f32.xlu0 %v705
    %v707 = vpop.xlane.xlu0 %706
    %v708 = vsel %vm118, %v704, 0.0
    %709 = vadd.xlane.f32.xlu0 %v708
    %v710 = vpop.xlane.xlu0 %709
    %v711 = vrcp.pop 32.0
    %v712 = vmul.f32 32.0, %v711
    %v713 = vsub.f32 1.0, %v712
    %v714 = vmul.f32 %v711, %v713
    %v715 = vadd.f32 %v711, %v714
    %vm716 = vweird.f32 %v711
    %v717 = vsel %vm716, %v711, %v715
    %v718 = vmul.f32 %v707, %v717
    %v719 = vmul.f32 %v710, %v717
    %v720 = vsub.f32 %v703, %v718
    %v721 = vsub.f32 %v704, %v719
    %v722 = vmul.f32 %v720, %v720
    %v723 = vmul.f32 %v721, %v721
    %v724 = vsel %vm118, %v722, 0.0
    %725 = vadd.xlane.f32.xlu0 %v724
    %v726 = vpop.xlane.xlu0 %725
    %v727 = vsel %vm118, %v723, 0.0
    %728 = vadd.xlane.f32.xlu0 %v727
    %v729 = vpop.xlane.xlu0 %728
    %v730 = vmul.f32 %v726, %v717
    %v731 = vmul.f32 %v729, %v717
    %v732 = vadd.f32 %v730, 1e-05
    %v733 = vadd.f32 %v731, 1e-05
    %v734 = vrsqrt.pop %v732
    %v735 = vmul.f32 %v734, %v732
    %v736 = vmul.f32 %v735, %v734
    %v737 = vmul.f32 0.5, %v736
    %v738 = vsub.f32 1.5, %v737
    %v739 = vmul.f32 %v734, %v738
    %vm740 = vweird.f32 %v732
    %vm741 = vweird.f32 %v734
    %vm742 = vmor %vm740, %vm741
    %v743 = vsel %vm742, %v734, %v739
    %v744 = vrsqrt.pop %v733
    %v745 = vmul.f32 %v744, %v733
    %v746 = vmul.f32 %v745, %v744
    %v747 = vmul.f32 0.5, %v746
    %v748 = vsub.f32 1.5, %v747
    %v749 = vmul.f32 %v744, %v748
    %vm750 = vweird.f32 %v733
    %vm751 = vweird.f32 %v744
    %vm752 = vmor %vm750, %vm751
    %v753 = vsel %vm752, %v744, %v749
    %v754 = vmul.f32 %v720, %v743
    %v755 = vmul.f32 %v721, %v753
    %v757 = vperm.slane %v97, 0
    %v759 = vmul.f32 %v754, %v757
    %v760 = vmul.f32 %v755, %v757
    %v762 = vperm.slane %v98, 0
    %v764 = vadd.f32 %v759, %v762
    %v765 = vadd.f32 %v760, %v762
    %v767 = vperm.slane %v103, 0
    %v770 = vsel %vm118, %v764, 0
    %v773 = vsel %vm118, %v765, 0
    %775 = vmatpush.msra.mxu0 0.0
    %776 = vmatpush.msra.mxu0 0.0
    %777 = vmatpush.msra.mxu0 0.0
    %778 = vmatpush.msra.mxu0 0.0
    %779 = vmatpush.msra.mxu0 0.0
    %780 = vmatpush.msra.mxu0 0.0
    %781 = vmatpush.msra.mxu0 0.0
    %782 = vmatpush.msra.mxu0 0.0
    %783 = vmatpush.msra.mxu0 0.0
    %784 = vmatpush.msra.mxu0 0.0
    %785 = vmatpush.msra.mxu0 0.0
    %786 = vmatpush.msra.mxu0 0.0
    %787 = vmatpush.msra.mxu0 %v102
    %788 = vmatpush.msra.mxu0 %v101
    %789 = vmatpush.msra.mxu0 %v100
    %790 = vmatpush.msra.mxu0 %v99
    %791 = vmatmul.f32.gmra.mxu0 %v770
    %v792 = vpop.f32.mrf.mxu0
    %v793 = vadd.f32 %v767, %v792
    %794 = vmatmul.f32.gmra.mxu0 %v773
    %v795 = vpop.f32.mrf.mxu0
    %v796 = vadd.f32 %v767, %v795
    %797 = vdwg.mxu0
    %v798 = vmax.f32 %v793, 0.0
    %v799 = vmax.f32 %v796, 0.0
    %v801 = vperm.slane %v112, 0
    %vm803 = vcmask 523264
    %v805 = vsel %vm803, %v798, 0
    %v808 = vsel %vm803, %v799, 0
    %810 = vmatpush.msra.mxu0 0.0
    %811 = vmatpush.msra.mxu0 0.0
    %812 = vmatpush.msra.mxu0 0.0
    %813 = vmatpush.msra.mxu0 0.0
    %814 = vmatpush.msra.mxu0 0.0
    %815 = vmatpush.msra.mxu0 0.0
    %816 = vmatpush.msra.mxu0 0.0
    %817 = vmatpush.msra.mxu0 0.0
    %818 = vmatpush.msra.mxu0 %v111
    %819 = vmatpush.msra.mxu0 %v110
    %820 = vmatpush.msra.mxu0 %v109
    %821 = vmatpush.msra.mxu0 %v108
    %822 = vmatpush.msra.mxu0 %v107
    %823 = vmatpush.msra.mxu0 %v106
    %824 = vmatpush.msra.mxu0 %v105
    %825 = vmatpush.msra.mxu0 %v104
    %826 = vmatmul.f32.gmra.mxu0 %v805
    %v827 = vpop.f32.mrf.mxu0
    %v828 = vadd.f32 %v801, %v827
    %829 = vmatmul.f32.gmra.mxu0 %v808
    %v830 = vpop.f32.mrf.mxu0
    %v831 = vadd.f32 %v801, %v830
    %832 = vdwg.mxu0
    %v833 = vadd.f32 %v764, %v828
    %v834 = vadd.f32 %v765, %v831
    %v835 = vsel %vm118, %v833, 0.0
    %836 = vadd.xlane.f32.xlu0 %v835
    %v837 = vpop.xlane.xlu0 %836
    %v838 = vsel %vm118, %v834, 0.0
    %839 = vadd.xlane.f32.xlu0 %v838
    %v840 = vpop.xlane.xlu0 %839
    %v841 = vmul.f32 %v837, %v717
    %v842 = vmul.f32 %v840, %v717
    %v843 = vsub.f32 %v833, %v841
    %v844 = vsub.f32 %v834, %v842
    %v845 = vmul.f32 %v843, %v843
    %v846 = vmul.f32 %v844, %v844
    %v847 = vsel %vm118, %v845, 0.0
    %848 = vadd.xlane.f32.xlu0 %v847
    %v849 = vpop.xlane.xlu0 %848
    %v850 = vsel %vm118, %v846, 0.0
    %851 = vadd.xlane.f32.xlu0 %v850
    %v852 = vpop.xlane.xlu0 %851
    %v853 = vmul.f32 %v849, %v717
    %v854 = vmul.f32 %v852, %v717
    %v855 = vadd.f32 %v853, 1e-05
    %v856 = vadd.f32 %v854, 1e-05
    %v857 = vrsqrt.pop %v855
    %v858 = vmul.f32 %v857, %v855
    %v859 = vmul.f32 %v858, %v857
    %v860 = vmul.f32 0.5, %v859
    %v861 = vsub.f32 1.5, %v860
    %v862 = vmul.f32 %v857, %v861
    %vm863 = vweird.f32 %v855
    %vm864 = vweird.f32 %v857
    %vm865 = vmor %vm863, %vm864
    %v866 = vsel %vm865, %v857, %v862
    %v867 = vrsqrt.pop %v856
    %v868 = vmul.f32 %v867, %v856
    %v869 = vmul.f32 %v868, %v867
    %v870 = vmul.f32 0.5, %v869
    %v871 = vsub.f32 1.5, %v870
    %v872 = vmul.f32 %v867, %v871
    %vm873 = vweird.f32 %v856
    %vm874 = vweird.f32 %v867
    %vm875 = vmor %vm873, %vm874
    %v876 = vsel %vm875, %v867, %v872
    %v877 = vmul.f32 %v843, %v866
    %v878 = vmul.f32 %v844, %v876
    %v880 = vperm.slane %v113, 0
    %v882 = vmul.f32 %v877, %v880
    %v883 = vmul.f32 %v878, %v880
    %v885 = vperm.slane %v114, 0
    %v887 = vadd.f32 %v882, %v885
    %v888 = vadd.f32 %v883, %v885
    %889 = vst.msk [vmem:[%s13] sm:$0xff] %vm118, %v887
    %890 = vst.msk [vmem:[%s13 + $0x8] sm:$0xff] %vm118, %v888
    // Predicated region
    $region66: #{custom_xlm_forward.10} parent=1 // pred_check
      _
    $region67: #{custom_xlm_forward.10} parent=1 // pred_check_branch
      %892 = sbr.rel (0) target = $region69
    $region68: #{custom_xlm_forward.10} parent=1 // pred_region
      _
    $region69: #{custom_xlm_forward.10} parent=1 // pred_fallthru
      _
    // Predicated region
    $region70: #{custom_xlm_forward.10} parent=1 // pred_check
      _
    $region71: #{custom_xlm_forward.10} parent=1 // pred_check_branch
      %894 = sbr.rel (0) target = $region73
    $region72: #{custom_xlm_forward.10} parent=1 // pred_region
      _
    $region73: #{custom_xlm_forward.10} parent=1 // pred_fallthru
      _
    %895 = vsyncpa [#allocation3], 1
    %896 = vsyncpa [#allocation5], 1

// kernel: custom_xlm_forward.8
$region0: #{custom_xlm_forward.8}
  #allocation0 [shape = 'u32[]', space=smem, size = 0x4, offset = 0x4, fixed_abs, tag = 'smem constant byte address 0x4 - core index']
  #allocation1 [shape = 'u32[72,128]{1,0:T(1,128)}', space=vmem, size = 0x9000, scoped, tag = 'internal scratch']
  %s0 = inlined_call_operand.vmem [shape: f32[16,32], index: 0, kind: input, shape index: {}]
  %s1 = inlined_call_operand.vmem [shape: f32[2,8], index: 1, kind: input, shape index: {}]
  %s2 = inlined_call_operand.vmem [shape: f32[16,1], index: 2, kind: input, shape index: {}]
  %s3 = inlined_call_operand.vmem [shape: f32[32,96], index: 3, kind: input, shape index: {}]
  %s4 = inlined_call_operand.vmem [shape: f32[1,96], index: 4, kind: input, shape index: {}]
  %s5 = inlined_call_operand.vmem [shape: f32[32,32], index: 5, kind: input, shape index: {}]
  %s6 = inlined_call_operand.vmem [shape: f32[1,32], index: 6, kind: input, shape index: {}]
  %s7 = inlined_call_operand.vmem [shape: f32[1,32], index: 7, kind: input, shape index: {}]
  %s8 = inlined_call_operand.vmem [shape: f32[1,32], index: 8, kind: input, shape index: {}]
  %s9 = inlined_call_operand.vmem [shape: f32[32,64], index: 9, kind: input, shape index: {}]
  %s10 = inlined_call_operand.vmem [shape: f32[1,64], index: 10, kind: input, shape index: {}]
  %s11 = inlined_call_operand.vmem [shape: f32[64,32], index: 11, kind: input, shape index: {}]
  %s12 = inlined_call_operand.vmem [shape: f32[1,32], index: 12, kind: input, shape index: {}]
  %s13 = inlined_call_operand.vmem [shape: f32[1,32], index: 13, kind: input, shape index: {}]
  %s14 = inlined_call_operand.vmem [shape: f32[1,32], index: 14, kind: input, shape index: {}]
  %s15 = inlined_call_operand.vmem [shape: f32[16,32], index: 15, kind: output, shape index: {}]
  %s16 = sld [smem:[#allocation0]]
  $region70: #{custom_xlm_forward.8} parent=0
    _
  %s18 = ssub.s32 1, %s16
  %s19 = scalar_select 0, %s18, %s16
  // Predicated region
  $region2: #{custom_xlm_forward.8} parent=0 // pred_check
    _
  $region3: #{custom_xlm_forward.8} parent=0 // pred_check_branch
    %21 = sbr.rel (0) target = $region5
  $region4: #{custom_xlm_forward.8} parent=0 // pred_region
    _
  $region5: #{custom_xlm_forward.8} parent=0 // pred_fallthru
    _
  // Predicated region
  $region6: #{custom_xlm_forward.8} parent=0 // pred_check
    _
  $region7: #{custom_xlm_forward.8} parent=0 // pred_check_branch
    %23 = sbr.rel (0) target = $region9
  $region8: #{custom_xlm_forward.8} parent=0 // pred_region
    _
  $region9: #{custom_xlm_forward.8} parent=0 // pred_fallthru
    _
  // Predicated region
  $region10: #{custom_xlm_forward.8} parent=0 // pred_check
    _
  $region11: #{custom_xlm_forward.8} parent=0 // pred_check_branch
    %25 = sbr.rel (0) target = $region13
  $region12: #{custom_xlm_forward.8} parent=0 // pred_region
    _
  $region13: #{custom_xlm_forward.8} parent=0 // pred_fallthru
    _
  // Predicated region
  $region14: #{custom_xlm_forward.8} parent=0 // pred_check
    _
  $region15: #{custom_xlm_forward.8} parent=0 // pred_check_branch
    %27 = sbr.rel (0) target = $region17
  $region16: #{custom_xlm_forward.8} parent=0 // pred_region
    _
  $region17: #{custom_xlm_forward.8} parent=0 // pred_fallthru
    _
  // Predicated region
  $region18: #{custom_xlm_forward.8} parent=0 // pred_check
    _
  $region19: #{custom_xlm_forward.8} parent=0 // pred_check_branch
    %29 = sbr.rel (0) target = $region21
  $region20: #{custom_xlm_forward.8} parent=0 // pred_region
    _
  $region21: #{custom_xlm_forward.8} parent=0 // pred_fallthru
    _
  // Predicated region
  $region22: #{custom_xlm_forward.8} parent=0 // pred_check
    _
  $region23: #{custom_xlm_forward.8} parent=0 // pred_check_branch
    %31 = sbr.rel (0) target = $region25
  $region24: #{custom_xlm_forward.8} parent=0 // pred_region
    _
  $region25: #{custom_xlm_forward.8} parent=0 // pred_fallthru
    _
  // Predicated region
  $region26: #{custom_xlm_forward.8} parent=0 // pred_check
    _
  $region27: #{custom_xlm_forward.8} parent=0 // pred_check_branch
    %33 = sbr.rel (0) target = $region29
  $region28: #{custom_xlm_forward.8} parent=0 // pred_region
    _
  $region29: #{custom_xlm_forward.8} parent=0 // pred_fallthru
    _
  // Predicated region
  $region30: #{custom_xlm_forward.8} parent=0 // pred_check
    _
  $region31: #{custom_xlm_forward.8} parent=0 // pred_check_branch
    %35 = sbr.rel (0) target = $region33
  $region32: #{custom_xlm_forward.8} parent=0 // pred_region
    _
  $region33: #{custom_xlm_forward.8} parent=0 // pred_fallthru
    _
  // Predicated region
  $region34: #{custom_xlm_forward.8} parent=0 // pred_check
    _
  $region35: #{custom_xlm_forward.8} parent=0 // pred_check_branch
    %37 = sbr.rel (0) target = $region37
  $region36: #{custom_xlm_forward.8} parent=0 // pred_region
    _
  $region37: #{custom_xlm_forward.8} parent=0 // pred_fallthru
    _
  // Predicated region
  $region38: #{custom_xlm_forward.8} parent=0 // pred_check
    _
  $region39: #{custom_xlm_forward.8} parent=0 // pred_check_branch
    %39 = sbr.rel (0) target = $region41
  $region40: #{custom_xlm_forward.8} parent=0 // pred_region
    _
  $region41: #{custom_xlm_forward.8} parent=0 // pred_fallthru
    _
  // Predicated region
  $region42: #{custom_xlm_forward.8} parent=0 // pred_check
    _
  $region43: #{custom_xlm_forward.8} parent=0 // pred_check_branch
    %41 = sbr.rel (0) target = $region45
  $region44: #{custom_xlm_forward.8} parent=0 // pred_region
    _
  $region45: #{custom_xlm_forward.8} parent=0 // pred_fallthru
    _
  // Predicated region
  $region46: #{custom_xlm_forward.8} parent=0 // pred_check
    _
  $region47: #{custom_xlm_forward.8} parent=0 // pred_check_branch
    %43 = sbr.rel (0) target = $region49
  $region48: #{custom_xlm_forward.8} parent=0 // pred_region
    _
  $region49: #{custom_xlm_forward.8} parent=0 // pred_fallthru
    _
  // Predicated region
  $region50: #{custom_xlm_forward.8} parent=0 // pred_check
    _
  $region51: #{custom_xlm_forward.8} parent=0 // pred_check_branch
    %45 = sbr.rel (0) target = $region53
  $region52: #{custom_xlm_forward.8} parent=0 // pred_region
    _
  $region53: #{custom_xlm_forward.8} parent=0 // pred_fallthru
    _
  // Predicated region
  $region54: #{custom_xlm_forward.8} parent=0 // pred_check
    _
  $region55: #{custom_xlm_forward.8} parent=0 // pred_check_branch
    %47 = sbr.rel (0) target = $region57
  $region56: #{custom_xlm_forward.8} parent=0 // pred_region
    _
  $region57: #{custom_xlm_forward.8} parent=0 // pred_fallthru
    _
  // Predicated region
  $region58: #{custom_xlm_forward.8} parent=0 // pred_check
    _
  $region59: #{custom_xlm_forward.8} parent=0 // pred_check_branch
    %49 = sbr.rel (0) target = $region61
  $region60: #{custom_xlm_forward.8} parent=0 // pred_region
    _
  $region61: #{custom_xlm_forward.8} parent=0 // pred_fallthru
    _
  %v50 = vld [vmem:[%s1] sm:$0x3]
  %v51 = vld [vmem:[%s0] sm:$0xff]
  %v52 = vld [vmem:[%s0 + $0x8] sm:$0xff]
  %v53 = vld [vmem:[%s3] sm:$0xff]
  %v54 = vld [vmem:[%s3 + $0x8] sm:$0xff]
  %v55 = vld [vmem:[%s3 + $0x10] sm:$0xff]
  %v56 = vld [vmem:[%s3 + $0x18] sm:$0xff]
  %v57 = vld [vmem:[%s4] sm:$0x1]
  %v58 = vld [vmem:[%s5] sm:$0xff]
  %v59 = vld [vmem:[%s5 + $0x8] sm:$0xff]
  %v60 = vld [vmem:[%s5 + $0x10] sm:$0xff]
  %v61 = vld [vmem:[%s5 + $0x18] sm:$0xff]
  %v62 = vld [vmem:[%s6] sm:$0x1]
  %v63 = vld [vmem:[%s7] sm:$0x1]
  %v64 = vld [vmem:[%s8] sm:$0x1]
  %v65 = vld [vmem:[%s9] sm:$0xff]
  %v66 = vld [vmem:[%s9 + $0x8] sm:$0xff]
  %v67 = vld [vmem:[%s9 + $0x10] sm:$0xff]
  %v68 = vld [vmem:[%s9 + $0x18] sm:$0xff]
  %v69 = vld [vmem:[%s10] sm:$0x1]
  %v70 = vld [vmem:[%s11] sm:$0xff]
  %v71 = vld [vmem:[%s11 + $0x8] sm:$0xff]
  %v72 = vld [vmem:[%s11 + $0x10] sm:$0xff]
  %v73 = vld [vmem:[%s11 + $0x18] sm:$0xff]
  %v74 = vld [vmem:[%s11 + $0x20] sm:$0xff]
  %v75 = vld [vmem:[%s11 + $0x28] sm:$0xff]
  %v76 = vld [vmem:[%s11 + $0x30] sm:$0xff]
  %v77 = vld [vmem:[%s11 + $0x38] sm:$0xff]
  %v78 = vld [vmem:[%s12] sm:$0x1]
  %v79 = vld [vmem:[%s13] sm:$0x1]
  %v80 = vld [vmem:[%s14] sm:$0x1]
  %v82 = vperm.slane %v57, 0
  %vm84 = vcmask 261120
  %v86 = vsel %vm84, %v51, 0
  %v89 = vsel %vm84, %v52, 0
  %91 = vmatpush.msra.mxu0 0.0
  %92 = vmatpush.msra.mxu0 0.0
  %93 = vmatpush.msra.mxu0 0.0
  %94 = vmatpush.msra.mxu0 0.0
  %95 = vmatpush.msra.mxu0 0.0
  %96 = vmatpush.msra.mxu0 0.0
  %97 = vmatpush.msra.mxu0 0.0
  %98 = vmatpush.msra.mxu0 0.0
  %99 = vmatpush.msra.mxu0 0.0
  %100 = vmatpush.msra.mxu0 0.0
  %101 = vmatpush.msra.mxu0 0.0
  %102 = vmatpush.msra.mxu0 0.0
  %103 = vmatpush.msra.mxu0 %v56
  %104 = vmatpush.msra.mxu0 %v55
  %105 = vmatpush.msra.mxu0 %v54
  %106 = vmatpush.msra.mxu0 %v53
  %107 = vmatmul.f32.gmra.mxu0 %v86
  %v108 = vpop.f32.mrf.mxu0
  %v109 = vadd.f32 %v82, %v108
  %110 = vmatmul.f32.gmra.mxu0 %v89
  %v111 = vpop.f32.mrf.mxu0
  %v112 = vadd.f32 %v82, %v111
  %113 = vdwg.mxu0
  %115 = vrot.lane.b32.xlu0 %v109, 96
  %v116 = vpop.permute.xlu0 %115
  %vm117 = vcmask 31744
  %v118 = vsel %vm117, %v109, 0
  %v120 = vsel %vm117, %v116, 0
  %122 = vmatpush.xpose.msra.mxu0 0.0
  %123 = vmatpush.xpose.msra.mxu0 0.0
  %124 = vmatpush.xpose.msra.mxu0 0.0
  %125 = vmatpush.xpose.msra.mxu0 0.0
  %126 = vmatpush.xpose.msra.mxu0 0.0
  %127 = vmatpush.xpose.msra.mxu0 0.0
  %128 = vmatpush.xpose.msra.mxu0 0.0
  %129 = vmatpush.xpose.msra.mxu0 0.0
  %130 = vmatpush.xpose.msra.mxu0 0.0
  %131 = vmatpush.xpose.msra.mxu0 0.0
  %132 = vmatpush.xpose.msra.mxu0 0.0
  %133 = vmatpush.xpose.msra.mxu0 0.0
  %134 = vmatpush.xpose.msra.mxu0 0.0
  %135 = vmatpush.xpose.msra.mxu0 0.0
  %136 = vmatpush.xpose.msra.mxu0 0.0
  %137 = vmatpush.xpose.msra.mxu0 %v120
  %138 = vmatmul.f32.gmra.mxu0 %v118
  %v139 = vpop.f32.mrf.mxu0
  %v140 = vadd.f32 0.0, %v139
  %141 = vdwg.mxu0
  %v142 = vmul.f32 %v140, 0.5
  %vm143 = vcmp.gt.f32.partialorder %v50, 0.0
  %v144 = vsel %vm143, 1, 0
  %v145 = vperm.slane %v144, 0
  %vm146 = vcmp.eq.s32.totalorder %v145, 1
  %v147 = vsel %vm146, %v142, -1e+09
  %vm148 = vcmask 64512
  %v149 = vsel %vm148, %v147, -inf
  %150 = vmax.xlane.f32.xlu0 %v149
  %v151 = vpop.xlane.xlu0 %150
  %v152 = vsub.f32 %v147, %v151
  %v153 = vmul.f32 %v152, 1.442695
  %v154 = vpow.pop %v153
  %v155 = vsel %vm148, %v154, 0.0
  %156 = vadd.xlane.f32.xlu0 %v155
  %v157 = vpop.xlane.xlu0 %156
  %v158 = vrcp.pop %v157
  %v159 = vmul.f32 %v154, %v158
  %160 = vrot.lane.b32.xlu0 %v109, 64
  %v161 = vpop.permute.xlu0 %160
  %v164 = vsel %vm148, %v159, 0
  %166 = vmatpush.msra.mxu0 0.0
  %167 = vmatpush.msra.mxu0 0.0
  %168 = vmatpush.msra.mxu0 0.0
  %169 = vmatpush.msra.mxu0 0.0
  %170 = vmatpush.msra.mxu0 0.0
  %171 = vmatpush.msra.mxu0 0.0
  %172 = vmatpush.msra.mxu0 0.0
  %173 = vmatpush.msra.mxu0 0.0
  %174 = vmatpush.msra.mxu0 0.0
  %175 = vmatpush.msra.mxu0 0.0
  %176 = vmatpush.msra.mxu0 0.0
  %177 = vmatpush.msra.mxu0 0.0
  %178 = vmatpush.msra.mxu0 0.0
  %179 = vmatpush.msra.mxu0 0.0
  %180 = vmatpush.msra.mxu0 0.0
  %181 = vmatpush.msra.mxu0 %v161
  %182 = vmatmul.f32.gmra.mxu0 %v164
  %v183 = vpop.f32.mrf.mxu0
  %v184 = vadd.f32 0.0, %v183
  %185 = vdwg.mxu0
  %186 = vrot.lane.b32.xlu0 %v109, 124
  %v187 = vpop.permute.xlu0 %186
  %188 = vrot.lane.b32.xlu0 %v109, 92
  %v189 = vpop.permute.xlu0 %188
  %v190 = vsel %vm117, %v187, 0
  %v192 = vsel %vm117, %v189, 0
  %194 = vmatpush.xpose.msra.mxu0 0.0
  %195 = vmatpush.xpose.msra.mxu0 0.0
  %196 = vmatpush.xpose.msra.mxu0 0.0
  %197 = vmatpush.xpose.msra.mxu0 0.0
  %198 = vmatpush.xpose.msra.mxu0 0.0
  %199 = vmatpush.xpose.msra.mxu0 0.0
  %200 = vmatpush.xpose.msra.mxu0 0.0
  %201 = vmatpush.xpose.msra.mxu0 0.0
  %202 = vmatpush.xpose.msra.mxu0 0.0
  %203 = vmatpush.xpose.msra.mxu0 0.0
  %204 = vmatpush.xpose.msra.mxu0 0.0
  %205 = vmatpush.xpose.msra.mxu0 0.0
  %206 = vmatpush.xpose.msra.mxu0 0.0
  %207 = vmatpush.xpose.msra.mxu0 0.0
  %208 = vmatpush.xpose.msra.mxu0 0.0
  %209 = vmatpush.xpose.msra.mxu0 %v192
  %210 = vmatmul.f32.gmra.mxu0 %v190
  %v211 = vpop.f32.mrf.mxu0
  %v212 = vadd.f32 0.0, %v211
  %213 = vdwg.mxu0
  %v214 = vmul.f32 %v212, 0.5
  %v215 = vsel %vm146, %v214, -1e+09
  %v216 = vsel %vm148, %v215, -inf
  %217 = vmax.xlane.f32.xlu0 %v216
  %v218 = vpop.xlane.xlu0 %217
  %v219 = vsub.f32 %v215, %v218
  %v220 = vmul.f32 %v219, 1.442695
  %v221 = vpow.pop %v220
  %v222 = vsel %vm148, %v221, 0.0
  %223 = vadd.xlane.f32.xlu0 %v222
  %v224 = vpop.xlane.xlu0 %223
  %v225 = vrcp.pop %v224
  %v226 = vmul.f32 %v221, %v225
  %227 = vrot.lane.b32.xlu0 %v109, 60
  %v228 = vpop.permute.xlu0 %227
  %v231 = vsel %vm148, %v226, 0
  %233 = vmatpush.msra.mxu0 0.0
  %234 = vmatpush.msra.mxu0 0.0
  %235 = vmatpush.msra.mxu0 0.0
  %236 = vmatpush.msra.mxu0 0.0
  %237 = vmatpush.msra.mxu0 0.0
  %238 = vmatpush.msra.mxu0 0.0
  %239 = vmatpush.msra.mxu0 0.0
  %240 = vmatpush.msra.mxu0 0.0
  %241 = vmatpush.msra.mxu0 0.0
  %242 = vmatpush.msra.mxu0 0.0
  %243 = vmatpush.msra.mxu0 0.0
  %244 = vmatpush.msra.mxu0 0.0
  %245 = vmatpush.msra.mxu0 0.0
  %246 = vmatpush.msra.mxu0 0.0
  %247 = vmatpush.msra.mxu0 0.0
  %248 = vmatpush.msra.mxu0 %v228
  %249 = vmatmul.f32.gmra.mxu0 %v231
  %v250 = vpop.f32.mrf.mxu0
  %v251 = vadd.f32 0.0, %v250
  %252 = vdwg.mxu0
  %253 = vrot.lane.b32.xlu0 %v109, 120
  %v254 = vpop.permute.xlu0 %253
  %255 = vrot.lane.b32.xlu0 %v109, 88
  %v256 = vpop.permute.xlu0 %255
  %v257 = vsel %vm117, %v254, 0
  %v259 = vsel %vm117, %v256, 0
  %261 = vmatpush.xpose.msra.mxu0 0.0
  %262 = vmatpush.xpose.msra.mxu0 0.0
  %263 = vmatpush.xpose.msra.mxu0 0.0
  %264 = vmatpush.xpose.msra.mxu0 0.0
  %265 = vmatpush.xpose.msra.mxu0 0.0
  %266 = vmatpush.xpose.msra.mxu0 0.0
  %267 = vmatpush.xpose.msra.mxu0 0.0
  %268 = vmatpush.xpose.msra.mxu0 0.0
  %269 = vmatpush.xpose.msra.mxu0 0.0
  %270 = vmatpush.xpose.msra.mxu0 0.0
  %271 = vmatpush.xpose.msra.mxu0 0.0
  %272 = vmatpush.xpose.msra.mxu0 0.0
  %273 = vmatpush.xpose.msra.mxu0 0.0
  %274 = vmatpush.xpose.msra.mxu0 0.0
  %275 = vmatpush.xpose.msra.mxu0 0.0
  %276 = vmatpush.xpose.msra.mxu0 %v259
  %277 = vmatmul.f32.gmra.mxu0 %v257
  %v278 = vpop.f32.mrf.mxu0
  %v279 = vadd.f32 0.0, %v278
  %280 = vdwg.mxu0
  %v281 = vmul.f32 %v279, 0.5
  %v282 = vsel %vm146, %v281, -1e+09
  %v283 = vsel %vm148, %v282, -inf
  %284 = vmax.xlane.f32.xlu0 %v283
  %v285 = vpop.xlane.xlu0 %284
  %v286 = vsub.f32 %v282, %v285
  %v287 = vmul.f32 %v286, 1.442695
  %v288 = vpow.pop %v287
  %v289 = vsel %vm148, %v288, 0.0
  %290 = vadd.xlane.f32.xlu0 %v289
  %v291 = vpop.xlane.xlu0 %290
  %v292 = vrcp.pop %v291
  %v293 = vmul.f32 %v288, %v292
  %294 = vrot.lane.b32.xlu0 %v109, 56
  %v295 = vpop.permute.xlu0 %294
  %v298 = vsel %vm148, %v293, 0
  %300 = vmatpush.msra.mxu0 0.0
  %301 = vmatpush.msra.mxu0 0.0
  %302 = vmatpush.msra.mxu0 0.0
  %303 = vmatpush.msra.mxu0 0.0
  %304 = vmatpush.msra.mxu0 0.0
  %305 = vmatpush.msra.mxu0 0.0
  %306 = vmatpush.msra.mxu0 0.0
  %307 = vmatpush.msra.mxu0 0.0
  %308 = vmatpush.msra.mxu0 0.0
  %309 = vmatpush.msra.mxu0 0.0
  %310 = vmatpush.msra.mxu0 0.0
  %311 = vmatpush.msra.mxu0 0.0
  %312 = vmatpush.msra.mxu0 0.0
  %313 = vmatpush.msra.mxu0 0.0
  %314 = vmatpush.msra.mxu0 0.0
  %315 = vmatpush.msra.mxu0 %v295
  %316 = vmatmul.f32.gmra.mxu0 %v298
  %v317 = vpop.f32.mrf.mxu0
  %v318 = vadd.f32 0.0, %v317
  %319 = vdwg.mxu0
  %320 = vrot.lane.b32.xlu0 %v109, 116
  %v321 = vpop.permute.xlu0 %320
  %322 = vrot.lane.b32.xlu0 %v109, 84
  %v323 = vpop.permute.xlu0 %322
  %v324 = vsel %vm117, %v321, 0
  %v326 = vsel %vm117, %v323, 0
  %328 = vmatpush.xpose.msra.mxu0 0.0
  %329 = vmatpush.xpose.msra.mxu0 0.0
  %330 = vmatpush.xpose.msra.mxu0 0.0
  %331 = vmatpush.xpose.msra.mxu0 0.0
  %332 = vmatpush.xpose.msra.mxu0 0.0
  %333 = vmatpush.xpose.msra.mxu0 0.0
  %334 = vmatpush.xpose.msra.mxu0 0.0
  %335 = vmatpush.xpose.msra.mxu0 0.0
  %336 = vmatpush.xpose.msra.mxu0 0.0
  %337 = vmatpush.xpose.msra.mxu0 0.0
  %338 = vmatpush.xpose.msra.mxu0 0.0
  %339 = vmatpush.xpose.msra.mxu0 0.0
  %340 = vmatpush.xpose.msra.mxu0 0.0
  %341 = vmatpush.xpose.msra.mxu0 0.0
  %342 = vmatpush.xpose.msra.mxu0 0.0
  %343 = vmatpush.xpose.msra.mxu0 %v326
  %344 = vmatmul.f32.gmra.mxu0 %v324
  %v345 = vpop.f32.mrf.mxu0
  %v346 = vadd.f32 0.0, %v345
  %347 = vdwg.mxu0
  %v348 = vmul.f32 %v346, 0.5
  %v349 = vsel %vm146, %v348, -1e+09
  %v350 = vsel %vm148, %v349, -inf
  %351 = vmax.xlane.f32.xlu0 %v350
  %v352 = vpop.xlane.xlu0 %351
  %v353 = vsub.f32 %v349, %v352
  %v354 = vmul.f32 %v353, 1.442695
  %v355 = vpow.pop %v354
  %v356 = vsel %vm148, %v355, 0.0
  %357 = vadd.xlane.f32.xlu0 %v356
  %v358 = vpop.xlane.xlu0 %357
  %v359 = vrcp.pop %v358
  %v360 = vmul.f32 %v355, %v359
  %361 = vrot.lane.b32.xlu0 %v109, 52
  %v362 = vpop.permute.xlu0 %361
  %v365 = vsel %vm148, %v360, 0
  %367 = vmatpush.msra.mxu0 0.0
  %368 = vmatpush.msra.mxu0 0.0
  %369 = vmatpush.msra.mxu0 0.0
  %370 = vmatpush.msra.mxu0 0.0
  %371 = vmatpush.msra.mxu0 0.0
  %372 = vmatpush.msra.mxu0 0.0
  %373 = vmatpush.msra.mxu0 0.0
  %374 = vmatpush.msra.mxu0 0.0
  %375 = vmatpush.msra.mxu0 0.0
  %376 = vmatpush.msra.mxu0 0.0
  %377 = vmatpush.msra.mxu0 0.0
  %378 = vmatpush.msra.mxu0 0.0
  %379 = vmatpush.msra.mxu0 0.0
  %380 = vmatpush.msra.mxu0 0.0
  %381 = vmatpush.msra.mxu0 0.0
  %382 = vmatpush.msra.mxu0 %v362
  %383 = vmatmul.f32.gmra.mxu0 %v365
  %v384 = vpop.f32.mrf.mxu0
  %v385 = vadd.f32 0.0, %v384
  %386 = vdwg.mxu0
  %387 = vrot.lane.b32.xlu0 %v109, 112
  %v388 = vpop.permute.xlu0 %387
  %389 = vrot.lane.b32.xlu0 %v109, 80
  %v390 = vpop.permute.xlu0 %389
  %v391 = vsel %vm117, %v388, 0
  %v393 = vsel %vm117, %v390, 0
  %395 = vmatpush.xpose.msra.mxu0 0.0
  %396 = vmatpush.xpose.msra.mxu0 0.0
  %397 = vmatpush.xpose.msra.mxu0 0.0
  %398 = vmatpush.xpose.msra.mxu0 0.0
  %399 = vmatpush.xpose.msra.mxu0 0.0
  %400 = vmatpush.xpose.msra.mxu0 0.0
  %401 = vmatpush.xpose.msra.mxu0 0.0
  %402 = vmatpush.xpose.msra.mxu0 0.0
  %403 = vmatpush.xpose.msra.mxu0 0.0
  %404 = vmatpush.xpose.msra.mxu0 0.0
  %405 = vmatpush.xpose.msra.mxu0 0.0
  %406 = vmatpush.xpose.msra.mxu0 0.0
  %407 = vmatpush.xpose.msra.mxu0 0.0
  %408 = vmatpush.xpose.msra.mxu0 0.0
  %409 = vmatpush.xpose.msra.mxu0 0.0
  %410 = vmatpush.xpose.msra.mxu0 %v393
  %411 = vmatmul.f32.gmra.mxu0 %v391
  %v412 = vpop.f32.mrf.mxu0
  %v413 = vadd.f32 0.0, %v412
  %414 = vdwg.mxu0
  %v415 = vmul.f32 %v413, 0.5
  %v416 = vsel %vm146, %v415, -1e+09
  %v417 = vsel %vm148, %v416, -inf
  %418 = vmax.xlane.f32.xlu0 %v417
  %v419 = vpop.xlane.xlu0 %418
  %v420 = vsub.f32 %v416, %v419
  %v421 = vmul.f32 %v420, 1.442695
  %v422 = vpow.pop %v421
  %v423 = vsel %vm148, %v422, 0.0
  %424 = vadd.xlane.f32.xlu0 %v423
  %v425 = vpop.xlane.xlu0 %424
  %v426 = vrcp.pop %v425
  %v427 = vmul.f32 %v422, %v426
  %428 = vrot.lane.b32.xlu0 %v109, 48
  %v429 = vpop.permute.xlu0 %428
  %v432 = vsel %vm148, %v427, 0
  %434 = vmatpush.msra.mxu0 0.0
  %435 = vmatpush.msra.mxu0 0.0
  %436 = vmatpush.msra.mxu0 0.0
  %437 = vmatpush.msra.mxu0 0.0
  %438 = vmatpush.msra.mxu0 0.0
  %439 = vmatpush.msra.mxu0 0.0
  %440 = vmatpush.msra.mxu0 0.0
  %441 = vmatpush.msra.mxu0 0.0
  %442 = vmatpush.msra.mxu0 0.0
  %443 = vmatpush.msra.mxu0 0.0
  %444 = vmatpush.msra.mxu0 0.0
  %445 = vmatpush.msra.mxu0 0.0
  %446 = vmatpush.msra.mxu0 0.0
  %447 = vmatpush.msra.mxu0 0.0
  %448 = vmatpush.msra.mxu0 0.0
  %449 = vmatpush.msra.mxu0 %v429
  %450 = vmatmul.f32.gmra.mxu0 %v432
  %v451 = vpop.f32.mrf.mxu0
  %v452 = vadd.f32 0.0, %v451
  %453 = vdwg.mxu0
  %454 = vrot.lane.b32.xlu0 %v109, 108
  %v455 = vpop.permute.xlu0 %454
  %456 = vrot.lane.b32.xlu0 %v109, 76
  %v457 = vpop.permute.xlu0 %456
  %v458 = vsel %vm117, %v455, 0
  %v460 = vsel %vm117, %v457, 0
  %462 = vmatpush.xpose.msra.mxu0 0.0
  %463 = vmatpush.xpose.msra.mxu0 0.0
  %464 = vmatpush.xpose.msra.mxu0 0.0
  %465 = vmatpush.xpose.msra.mxu0 0.0
  %466 = vmatpush.xpose.msra.mxu0 0.0
  %467 = vmatpush.xpose.msra.mxu0 0.0
  %468 = vmatpush.xpose.msra.mxu0 0.0
  %469 = vmatpush.xpose.msra.mxu0 0.0
  %470 = vmatpush.xpose.msra.mxu0 0.0
  %471 = vmatpush.xpose.msra.mxu0 0.0
  %472 = vmatpush.xpose.msra.mxu0 0.0
  %473 = vmatpush.xpose.msra.mxu0 0.0
  %474 = vmatpush.xpose.msra.mxu0 0.0
  %475 = vmatpush.xpose.msra.mxu0 0.0
  %476 = vmatpush.xpose.msra.mxu0 0.0
  %477 = vmatpush.xpose.msra.mxu0 %v460
  %478 = vmatmul.f32.gmra.mxu0 %v458
  %v479 = vpop.f32.mrf.mxu0
  %v480 = vadd.f32 0.0, %v479
  %481 = vdwg.mxu0
  %v482 = vmul.f32 %v480, 0.5
  %v483 = vsel %vm146, %v482, -1e+09
  %v484 = vsel %vm148, %v483, -inf
  %485 = vmax.xlane.f32.xlu0 %v484
  %v486 = vpop.xlane.xlu0 %485
  %v487 = vsub.f32 %v483, %v486
  %v488 = vmul.f32 %v487, 1.442695
  %v489 = vpow.pop %v488
  %v490 = vsel %vm148, %v489, 0.0
  %491 = vadd.xlane.f32.xlu0 %v490
  %v492 = vpop.xlane.xlu0 %491
  %v493 = vrcp.pop %v492
  %v494 = vmul.f32 %v489, %v493
  %495 = vrot.lane.b32.xlu0 %v109, 44
  %v496 = vpop.permute.xlu0 %495
  %v499 = vsel %vm148, %v494, 0
  %501 = vmatpush.msra.mxu0 0.0
  %502 = vmatpush.msra.mxu0 0.0
  %503 = vmatpush.msra.mxu0 0.0
  %504 = vmatpush.msra.mxu0 0.0
  %505 = vmatpush.msra.mxu0 0.0
  %506 = vmatpush.msra.mxu0 0.0
  %507 = vmatpush.msra.mxu0 0.0
  %508 = vmatpush.msra.mxu0 0.0
  %509 = vmatpush.msra.mxu0 0.0
  %510 = vmatpush.msra.mxu0 0.0
  %511 = vmatpush.msra.mxu0 0.0
  %512 = vmatpush.msra.mxu0 0.0
  %513 = vmatpush.msra.mxu0 0.0
  %514 = vmatpush.msra.mxu0 0.0
  %515 = vmatpush.msra.mxu0 0.0
  %516 = vmatpush.msra.mxu0 %v496
  %517 = vmatmul.f32.gmra.mxu0 %v499
  %v518 = vpop.f32.mrf.mxu0
  %v519 = vadd.f32 0.0, %v518
  %520 = vdwg.mxu0
  %521 = vrot.lane.b32.xlu0 %v109, 104
  %v522 = vpop.permute.xlu0 %521
  %523 = vrot.lane.b32.xlu0 %v109, 72
  %v524 = vpop.permute.xlu0 %523
  %v525 = vsel %vm117, %v522, 0
  %v527 = vsel %vm117, %v524, 0
  %529 = vmatpush.xpose.msra.mxu0 0.0
  %530 = vmatpush.xpose.msra.mxu0 0.0
  %531 = vmatpush.xpose.msra.mxu0 0.0
  %532 = vmatpush.xpose.msra.mxu0 0.0
  %533 = vmatpush.xpose.msra.mxu0 0.0
  %534 = vmatpush.xpose.msra.mxu0 0.0
  %535 = vmatpush.xpose.msra.mxu0 0.0
  %536 = vmatpush.xpose.msra.mxu0 0.0
  %537 = vmatpush.xpose.msra.mxu0 0.0
  %538 = vmatpush.xpose.msra.mxu0 0.0
  %539 = vmatpush.xpose.msra.mxu0 0.0
  %540 = vmatpush.xpose.msra.mxu0 0.0
  %541 = vmatpush.xpose.msra.mxu0 0.0
  %542 = vmatpush.xpose.msra.mxu0 0.0
  %543 = vmatpush.xpose.msra.mxu0 0.0
  %544 = vmatpush.xpose.msra.mxu0 %v527
  %545 = vmatmul.f32.gmra.mxu0 %v525
  %v546 = vpop.f32.mrf.mxu0
  %v547 = vadd.f32 0.0, %v546
  %548 = vdwg.mxu0
  %v549 = vmul.f32 %v547, 0.5
  %v550 = vsel %vm146, %v549, -1e+09
  %v551 = vsel %vm148, %v550, -inf
  %552 = vmax.xlane.f32.xlu0 %v551
  %v553 = vpop.xlane.xlu0 %552
  %v554 = vsub.f32 %v550, %v553
  %v555 = vmul.f32 %v554, 1.442695
  %v556 = vpow.pop %v555
  %v557 = vsel %vm148, %v556, 0.0
  %558 = vadd.xlane.f32.xlu0 %v557
  %v559 = vpop.xlane.xlu0 %558
  %v560 = vrcp.pop %v559
  %v561 = vmul.f32 %v556, %v560
  %562 = vrot.lane.b32.xlu0 %v109, 40
  %v563 = vpop.permute.xlu0 %562
  %v566 = vsel %vm148, %v561, 0
  %568 = vmatpush.msra.mxu0 0.0
  %569 = vmatpush.msra.mxu0 0.0
  %570 = vmatpush.msra.mxu0 0.0
  %571 = vmatpush.msra.mxu0 0.0
  %572 = vmatpush.msra.mxu0 0.0
  %573 = vmatpush.msra.mxu0 0.0
  %574 = vmatpush.msra.mxu0 0.0
  %575 = vmatpush.msra.mxu0 0.0
  %576 = vmatpush.msra.mxu0 0.0
  %577 = vmatpush.msra.mxu0 0.0
  %578 = vmatpush.msra.mxu0 0.0
  %579 = vmatpush.msra.mxu0 0.0
  %580 = vmatpush.msra.mxu0 0.0
  %581 = vmatpush.msra.mxu0 0.0
  %582 = vmatpush.msra.mxu0 0.0
  %583 = vmatpush.msra.mxu0 %v563
  %584 = vmatmul.f32.gmra.mxu0 %v566
  %v585 = vpop.f32.mrf.mxu0
  %v586 = vadd.f32 0.0, %v585
  %587 = vdwg.mxu0
  %588 = vrot.lane.b32.xlu0 %v109, 100
  %v589 = vpop.permute.xlu0 %588
  %590 = vrot.lane.b32.xlu0 %v109, 68
  %v591 = vpop.permute.xlu0 %590
  %v592 = vsel %vm117, %v589, 0
  %v594 = vsel %vm117, %v591, 0
  %596 = vmatpush.xpose.msra.mxu0 0.0
  %597 = vmatpush.xpose.msra.mxu0 0.0
  %598 = vmatpush.xpose.msra.mxu0 0.0
  %599 = vmatpush.xpose.msra.mxu0 0.0
  %600 = vmatpush.xpose.msra.mxu0 0.0
  %601 = vmatpush.xpose.msra.mxu0 0.0
  %602 = vmatpush.xpose.msra.mxu0 0.0
  %603 = vmatpush.xpose.msra.mxu0 0.0
  %604 = vmatpush.xpose.msra.mxu0 0.0
  %605 = vmatpush.xpose.msra.mxu0 0.0
  %606 = vmatpush.xpose.msra.mxu0 0.0
  %607 = vmatpush.xpose.msra.mxu0 0.0
  %608 = vmatpush.xpose.msra.mxu0 0.0
  %609 = vmatpush.xpose.msra.mxu0 0.0
  %610 = vmatpush.xpose.msra.mxu0 0.0
  %611 = vmatpush.xpose.msra.mxu0 %v594
  %612 = vmatmul.f32.gmra.mxu0 %v592
  %v613 = vpop.f32.mrf.mxu0
  %v614 = vadd.f32 0.0, %v613
  %615 = vdwg.mxu0
  %v616 = vmul.f32 %v614, 0.5
  %v617 = vsel %vm146, %v616, -1e+09
  %v618 = vsel %vm148, %v617, -inf
  %619 = vmax.xlane.f32.xlu0 %v618
  %v620 = vpop.xlane.xlu0 %619
  %v621 = vsub.f32 %v617, %v620
  %v622 = vmul.f32 %v621, 1.442695
  %v623 = vpow.pop %v622
  %v624 = vsel %vm148, %v623, 0.0
  %625 = vadd.xlane.f32.xlu0 %v624
  %v626 = vpop.xlane.xlu0 %625
  %v627 = vrcp.pop %v626
  %v628 = vmul.f32 %v623, %v627
  %629 = vrot.lane.b32.xlu0 %v109, 36
  %v630 = vpop.permute.xlu0 %629
  %v633 = vsel %vm148, %v628, 0
  %635 = vmatpush.msra.mxu0 0.0
  %636 = vmatpush.msra.mxu0 0.0
  %637 = vmatpush.msra.mxu0 0.0
  %638 = vmatpush.msra.mxu0 0.0
  %639 = vmatpush.msra.mxu0 0.0
  %640 = vmatpush.msra.mxu0 0.0
  %641 = vmatpush.msra.mxu0 0.0
  %642 = vmatpush.msra.mxu0 0.0
  %643 = vmatpush.msra.mxu0 0.0
  %644 = vmatpush.msra.mxu0 0.0
  %645 = vmatpush.msra.mxu0 0.0
  %646 = vmatpush.msra.mxu0 0.0
  %647 = vmatpush.msra.mxu0 0.0
  %648 = vmatpush.msra.mxu0 0.0
  %649 = vmatpush.msra.mxu0 0.0
  %650 = vmatpush.msra.mxu0 %v630
  %651 = vmatmul.f32.gmra.mxu0 %v633
  %v652 = vpop.f32.mrf.mxu0
  %v653 = vadd.f32 0.0, %v652
  %654 = vdwg.mxu0
  %656 = vrot.lane.b32.xlu0 %v251, 4
  %v657 = vpop.permute.xlu0 %656
  %660 = vrot.lane.b32.xlu0 %v318, 8
  %v661 = vpop.permute.xlu0 %660
  %664 = vrot.lane.b32.xlu0 %v385, 12
  %v665 = vpop.permute.xlu0 %664
  %668 = vrot.lane.b32.xlu0 %v452, 16
  %v669 = vpop.permute.xlu0 %668
  %672 = vrot.lane.b32.xlu0 %v519, 20
  %v673 = vpop.permute.xlu0 %672
  %676 = vrot.lane.b32.xlu0 %v586, 24
  %v677 = vpop.permute.xlu0 %676
  %680 = vrot.lane.b32.xlu0 %v653, 28
  %v681 = vpop.permute.xlu0 %680
  %v683 = vsel %vm117, %v184, %v657
  %v684 = vsel %vm148, %v683, %v661
  %vm685 = vcmask 97280
  %v686 = vsel %vm685, %v684, %v665
  %vm687 = vcmask 130048
  %v688 = vsel %vm687, %v686, %v669
  %vm689 = vcmask 162816
  %v690 = vsel %vm689, %v688, %v673
  %vm691 = vcmask 195584
  %v692 = vsel %vm691, %v690, %v677
  %vm693 = vcmask 228352
  %v694 = vsel %vm693, %v692, %v681
  %696 = vrot.lane.b32.xlu0 %v112, 96
  %v697 = vpop.permute.xlu0 %696
  %v698 = vsel %vm117, %v112, 0
  %v700 = vsel %vm117, %v697, 0
  %702 = vmatpush.xpose.msra.mxu0 0.0
  %703 = vmatpush.xpose.msra.mxu0 0.0
  %704 = vmatpush.xpose.msra.mxu0 0.0
  %705 = vmatpush.xpose.msra.mxu0 0.0
  %706 = vmatpush.xpose.msra.mxu0 0.0
  %707 = vmatpush.xpose.msra.mxu0 0.0
  %708 = vmatpush.xpose.msra.mxu0 0.0
  %709 = vmatpush.xpose.msra.mxu0 0.0
  %710 = vmatpush.xpose.msra.mxu0 0.0
  %711 = vmatpush.xpose.msra.mxu0 0.0
  %712 = vmatpush.xpose.msra.mxu0 0.0
  %713 = vmatpush.xpose.msra.mxu0 0.0
  %714 = vmatpush.xpose.msra.mxu0 0.0
  %715 = vmatpush.xpose.msra.mxu0 0.0
  %716 = vmatpush.xpose.msra.mxu0 0.0
  %717 = vmatpush.xpose.msra.mxu0 %v700
  %718 = vmatmul.f32.gmra.mxu0 %v698
  %v719 = vpop.f32.mrf.mxu0
  %v720 = vadd.f32 0.0, %v719
  %721 = vdwg.mxu0
  %v722 = vmul.f32 %v720, 0.5
  %v723 = vperm.slane %v144, 1
  %vm724 = vcmp.eq.s32.totalorder %v723, 1
  %v725 = vsel %vm724, %v722, -1e+09
  %v726 = vsel %vm148, %v725, -inf
  %727 = vmax.xlane.f32.xlu0 %v726
  %v728 = vpop.xlane.xlu0 %727
  %v729 = vsub.f32 %v725, %v728
  %v730 = vmul.f32 %v729, 1.442695
  %v731 = vpow.pop %v730
  %v732 = vsel %vm148, %v731, 0.0
  %733 = vadd.xlane.f32.xlu0 %v732
  %v734 = vpop.xlane.xlu0 %733
  %v735 = vrcp.pop %v734
  %v736 = vmul.f32 %v731, %v735
  %737 = vrot.lane.b32.xlu0 %v112, 64
  %v738 = vpop.permute.xlu0 %737
  %v741 = vsel %vm148, %v736, 0
  %743 = vmatpush.msra.mxu0 0.0
  %744 = vmatpush.msra.mxu0 0.0
  %745 = vmatpush.msra.mxu0 0.0
  %746 = vmatpush.msra.mxu0 0.0
  %747 = vmatpush.msra.mxu0 0.0
  %748 = vmatpush.msra.mxu0 0.0
  %749 = vmatpush.msra.mxu0 0.0
  %750 = vmatpush.msra.mxu0 0.0
  %751 = vmatpush.msra.mxu0 0.0
  %752 = vmatpush.msra.mxu0 0.0
  %753 = vmatpush.msra.mxu0 0.0
  %754 = vmatpush.msra.mxu0 0.0
  %755 = vmatpush.msra.mxu0 0.0
  %756 = vmatpush.msra.mxu0 0.0
  %757 = vmatpush.msra.mxu0 0.0
  %758 = vmatpush.msra.mxu0 %v738
  %759 = vmatmul.f32.gmra.mxu0 %v741
  %v760 = vpop.f32.mrf.mxu0
  %v761 = vadd.f32 0.0, %v760
  %762 = vdwg.mxu0
  %763 = vrot.lane.b32.xlu0 %v112, 124
  %v764 = vpop.permute.xlu0 %763
  %765 = vrot.lane.b32.xlu0 %v112, 92
  %v766 = vpop.permute.xlu0 %765
  %v767 = vsel %vm117, %v764, 0
  %v769 = vsel %vm117, %v766, 0
  %771 = vmatpush.xpose.msra.mxu0 0.0
  %772 = vmatpush.xpose.msra.mxu0 0.0
  %773 = vmatpush.xpose.msra.mxu0 0.0
  %774 = vmatpush.xpose.msra.mxu0 0.0
  %775 = vmatpush.xpose.msra.mxu0 0.0
  %776 = vmatpush.xpose.msra.mxu0 0.0
  %777 = vmatpush.xpose.msra.mxu0 0.0
  %778 = vmatpush.xpose.msra.mxu0 0.0
  %779 = vmatpush.xpose.msra.mxu0 0.0
  %780 = vmatpush.xpose.msra.mxu0 0.0
  %781 = vmatpush.xpose.msra.mxu0 0.0
  %782 = vmatpush.xpose.msra.mxu0 0.0
  %783 = vmatpush.xpose.msra.mxu0 0.0
  %784 = vmatpush.xpose.msra.mxu0 0.0
  %785 = vmatpush.xpose.msra.mxu0 0.0
  %786 = vmatpush.xpose.msra.mxu0 %v769
  %787 = vmatmul.f32.gmra.mxu0 %v767
  %v788 = vpop.f32.mrf.mxu0
  %v789 = vadd.f32 0.0, %v788
  %790 = vdwg.mxu0
  %v791 = vmul.f32 %v789, 0.5
  %v792 = vsel %vm724, %v791, -1e+09
  %v793 = vsel %vm148, %v792, -inf
  %794 = vmax.xlane.f32.xlu0 %v793
  %v795 = vpop.xlane.xlu0 %794
  %v796 = vsub.f32 %v792, %v795
  %v797 = vmul.f32 %v796, 1.442695
  %v798 = vpow.pop %v797
  %v799 = vsel %vm148, %v798, 0.0
  %800 = vadd.xlane.f32.xlu0 %v799
  %v801 = vpop.xlane.xlu0 %800
  %v802 = vrcp.pop %v801
  %v803 = vmul.f32 %v798, %v802
  %804 = vrot.lane.b32.xlu0 %v112, 60
  %v805 = vpop.permute.xlu0 %804
  %v808 = vsel %vm148, %v803, 0
  %810 = vmatpush.msra.mxu0 0.0
  %811 = vmatpush.msra.mxu0 0.0
  %812 = vmatpush.msra.mxu0 0.0
  %813 = vmatpush.msra.mxu0 0.0
  %814 = vmatpush.msra.mxu0 0.0
  %815 = vmatpush.msra.mxu0 0.0
  %816 = vmatpush.msra.mxu0 0.0
  %817 = vmatpush.msra.mxu0 0.0
  %818 = vmatpush.msra.mxu0 0.0
  %819 = vmatpush.msra.mxu0 0.0
  %820 = vmatpush.msra.mxu0 0.0
  %821 = vmatpush.msra.mxu0 0.0
  %822 = vmatpush.msra.mxu0 0.0
  %823 = vmatpush.msra.mxu0 0.0
  %824 = vmatpush.msra.mxu0 0.0
  %825 = vmatpush.msra.mxu0 %v805
  %826 = vmatmul.f32.gmra.mxu0 %v808
  %v827 = vpop.f32.mrf.mxu0
  %v828 = vadd.f32 0.0, %v827
  %829 = vdwg.mxu0
  %830 = vrot.lane.b32.xlu0 %v112, 120
  %v831 = vpop.permute.xlu0 %830
  %832 = vrot.lane.b32.xlu0 %v112, 88
  %v833 = vpop.permute.xlu0 %832
  %v834 = vsel %vm117, %v831, 0
  %v836 = vsel %vm117, %v833, 0
  %838 = vmatpush.xpose.msra.mxu0 0.0
  %839 = vmatpush.xpose.msra.mxu0 0.0
  %840 = vmatpush.xpose.msra.mxu0 0.0
  %841 = vmatpush.xpose.msra.mxu0 0.0
  %842 = vmatpush.xpose.msra.mxu0 0.0
  %843 = vmatpush.xpose.msra.mxu0 0.0
  %844 = vmatpush.xpose.msra.mxu0 0.0
  %845 = vmatpush.xpose.msra.mxu0 0.0
  %846 = vmatpush.xpose.msra.mxu0 0.0
  %847 = vmatpush.xpose.msra.mxu0 0.0
  %848 = vmatpush.xpose.msra.mxu0 0.0
  %849 = vmatpush.xpose.msra.mxu0 0.0
  %850 = vmatpush.xpose.msra.mxu0 0.0
  %851 = vmatpush.xpose.msra.mxu0 0.0
  %852 = vmatpush.xpose.msra.mxu0 0.0
  %853 = vmatpush.xpose.msra.mxu0 %v836
  %854 = vmatmul.f32.gmra.mxu0 %v834
  %v855 = vpop.f32.mrf.mxu0
  %v856 = vadd.f32 0.0, %v855
  %857 = vdwg.mxu0
  %v858 = vmul.f32 %v856, 0.5
  %v859 = vsel %vm724, %v858, -1e+09
  %v860 = vsel %vm148, %v859, -inf
  %861 = vmax.xlane.f32.xlu0 %v860
  %v862 = vpop.xlane.xlu0 %861
  %v863 = vsub.f32 %v859, %v862
  %v864 = vmul.f32 %v863, 1.442695
  %v865 = vpow.pop %v864
  %v866 = vsel %vm148, %v865, 0.0
  %867 = vadd.xlane.f32.xlu0 %v866
  %v868 = vpop.xlane.xlu0 %867
  %v869 = vrcp.pop %v868
  %v870 = vmul.f32 %v865, %v869
  %871 = vrot.lane.b32.xlu0 %v112, 56
  %v872 = vpop.permute.xlu0 %871
  %v875 = vsel %vm148, %v870, 0
  %877 = vmatpush.msra.mxu0 0.0
  %878 = vmatpush.msra.mxu0 0.0
  %879 = vmatpush.msra.mxu0 0.0
  %880 = vmatpush.msra.mxu0 0.0
  %881 = vmatpush.msra.mxu0 0.0
  %882 = vmatpush.msra.mxu0 0.0
  %883 = vmatpush.msra.mxu0 0.0
  %884 = vmatpush.msra.mxu0 0.0
  %885 = vmatpush.msra.mxu0 0.0
  %886 = vmatpush.msra.mxu0 0.0
  %887 = vmatpush.msra.mxu0 0.0
  %888 = vmatpush.msra.mxu0 0.0
  %889 = vmatpush.msra.mxu0 0.0
  %890 = vmatpush.msra.mxu0 0.0
  %891 = vmatpush.msra.mxu0 0.0
  %892 = vmatpush.msra.mxu0 %v872
  %893 = vmatmul.f32.gmra.mxu0 %v875
  %v894 = vpop.f32.mrf.mxu0
  %v895 = vadd.f32 0.0, %v894
  %896 = vdwg.mxu0
  %897 = vrot.lane.b32.xlu0 %v112, 116
  %v898 = vpop.permute.xlu0 %897
  %899 = vrot.lane.b32.xlu0 %v112, 84
  %v900 = vpop.permute.xlu0 %899
  %v901 = vsel %vm117, %v898, 0
  %v903 = vsel %vm117, %v900, 0
  %905 = vmatpush.xpose.msra.mxu0 0.0
  %906 = vmatpush.xpose.msra.mxu0 0.0
  %907 = vmatpush.xpose.msra.mxu0 0.0
  %908 = vmatpush.xpose.msra.mxu0 0.0
  %909 = vmatpush.xpose.msra.mxu0 0.0
  %910 = vmatpush.xpose.msra.mxu0 0.0
  %911 = vmatpush.xpose.msra.mxu0 0.0
  %912 = vmatpush.xpose.msra.mxu0 0.0
  %913 = vmatpush.xpose.msra.mxu0 0.0
  %914 = vmatpush.xpose.msra.mxu0 0.0
  %915 = vmatpush.xpose.msra.mxu0 0.0
  %916 = vmatpush.xpose.msra.mxu0 0.0
  %917 = vmatpush.xpose.msra.mxu0 0.0
  %918 = vmatpush.xpose.msra.mxu0 0.0
  %919 = vmatpush.xpose.msra.mxu0 0.0
  %920 = vmatpush.xpose.msra.mxu0 %v903
  %921 = vmatmul.f32.gmra.mxu0 %v901
  %v922 = vpop.f32.mrf.mxu0
  %v923 = vadd.f32 0.0, %v922
  %924 = vdwg.mxu0
  %v925 = vmul.f32 %v923, 0.5
  %v926 = vsel %vm724, %v925, -1e+09
  %v927 = vsel %vm148, %v926, -inf
  %928 = vmax.xlane.f32.xlu0 %v927
  %v929 = vpop.xlane.xlu0 %928
  %v930 = vsub.f32 %v926, %v929
  %v931 = vmul.f32 %v930, 1.442695
  %v932 = vpow.pop %v931
  %v933 = vsel %vm148, %v932, 0.0
  %934 = vadd.xlane.f32.xlu0 %v933
  %v935 = vpop.xlane.xlu0 %934
  %v936 = vrcp.pop %v935
  %v937 = vmul.f32 %v932, %v936
  %938 = vrot.lane.b32.xlu0 %v112, 52
  %v939 = vpop.permute.xlu0 %938
  %v942 = vsel %vm148, %v937, 0
  %944 = vmatpush.msra.mxu0 0.0
  %945 = vmatpush.msra.mxu0 0.0
  %946 = vmatpush.msra.mxu0 0.0
  %947 = vmatpush.msra.mxu0 0.0
  %948 = vmatpush.msra.mxu0 0.0
  %949 = vmatpush.msra.mxu0 0.0
  %950 = vmatpush.msra.mxu0 0.0
  %951 = vmatpush.msra.mxu0 0.0
  %952 = vmatpush.msra.mxu0 0.0
  %953 = vmatpush.msra.mxu0 0.0
  %954 = vmatpush.msra.mxu0 0.0
  %955 = vmatpush.msra.mxu0 0.0
  %956 = vmatpush.msra.mxu0 0.0
  %957 = vmatpush.msra.mxu0 0.0
  %958 = vmatpush.msra.mxu0 0.0
  %959 = vmatpush.msra.mxu0 %v939
  %960 = vmatmul.f32.gmra.mxu0 %v942
  %v961 = vpop.f32.mrf.mxu0
  %v962 = vadd.f32 0.0, %v961
  %963 = vdwg.mxu0
  %964 = vrot.lane.b32.xlu0 %v112, 112
  %v965 = vpop.permute.xlu0 %964
  %966 = vrot.lane.b32.xlu0 %v112, 80
  %v967 = vpop.permute.xlu0 %966
  %v968 = vsel %vm117, %v965, 0
  %v970 = vsel %vm117, %v967, 0
  %972 = vmatpush.xpose.msra.mxu0 0.0
  %973 = vmatpush.xpose.msra.mxu0 0.0
  %974 = vmatpush.xpose.msra.mxu0 0.0
  %975 = vmatpush.xpose.msra.mxu0 0.0
  %976 = vmatpush.xpose.msra.mxu0 0.0
  %977 = vmatpush.xpose.msra.mxu0 0.0
  %978 = vmatpush.xpose.msra.mxu0 0.0
  %979 = vmatpush.xpose.msra.mxu0 0.0
  %980 = vmatpush.xpose.msra.mxu0 0.0
  %981 = vmatpush.xpose.msra.mxu0 0.0
  %982 = vmatpush.xpose.msra.mxu0 0.0
  %983 = vmatpush.xpose.msra.mxu0 0.0
  %984 = vmatpush.xpose.msra.mxu0 0.0
  %985 = vmatpush.xpose.msra.mxu0 0.0
  %986 = vmatpush.xpose.msra.mxu0 0.0
  %987 = vmatpush.xpose.msra.mxu0 %v970
  %988 = vmatmul.f32.gmra.mxu0 %v968
  %v989 = vpop.f32.mrf.mxu0
  %v990 = vadd.f32 0.0, %v989
  %991 = vdwg.mxu0
  %v992 = vmul.f32 %v990, 0.5
  %v993 = vsel %vm724, %v992, -1e+09
  %v994 = vsel %vm148, %v993, -inf
  %995 = vmax.xlane.f32.xlu0 %v994
  %v996 = vpop.xlane.xlu0 %995
  %v997 = vsub.f32 %v993, %v996
  %v998 = vmul.f32 %v997, 1.442695
  %v999 = vpow.pop %v998
  %v1000 = vsel %vm148, %v999, 0.0
  %1001 = vadd.xlane.f32.xlu0 %v1000
  %v1002 = vpop.xlane.xlu0 %1001
  %v1003 = vrcp.pop %v1002
  %v1004 = vmul.f32 %v999, %v1003
  %1005 = vrot.lane.b32.xlu0 %v112, 48
  %v1006 = vpop.permute.xlu0 %1005
  %v1009 = vsel %vm148, %v1004, 0
  %1011 = vmatpush.msra.mxu0 0.0
  %1012 = vmatpush.msra.mxu0 0.0
  %1013 = vmatpush.msra.mxu0 0.0
  %1014 = vmatpush.msra.mxu0 0.0
  %1015 = vmatpush.msra.mxu0 0.0
  %1016 = vmatpush.msra.mxu0 0.0
  %1017 = vmatpush.msra.mxu0 0.0
  %1018 = vmatpush.msra.mxu0 0.0
  %1019 = vmatpush.msra.mxu0 0.0
  %1020 = vmatpush.msra.mxu0 0.0
  %1021 = vmatpush.msra.mxu0 0.0
  %1022 = vmatpush.msra.mxu0 0.0
  %1023 = vmatpush.msra.mxu0 0.0
  %1024 = vmatpush.msra.mxu0 0.0
  %1025 = vmatpush.msra.mxu0 0.0
  %1026 = vmatpush.msra.mxu0 %v1006
  %1027 = vmatmul.f32.gmra.mxu0 %v1009
  %v1028 = vpop.f32.mrf.mxu0
  %v1029 = vadd.f32 0.0, %v1028
  %1030 = vdwg.mxu0
  %1031 = vrot.lane.b32.xlu0 %v112, 108
  %v1032 = vpop.permute.xlu0 %1031
  %1033 = vrot.lane.b32.xlu0 %v112, 76
  %v1034 = vpop.permute.xlu0 %1033
  %v1035 = vsel %vm117, %v1032, 0
  %v1037 = vsel %vm117, %v1034, 0
  %1039 = vmatpush.xpose.msra.mxu0 0.0
  %1040 = vmatpush.xpose.msra.mxu0 0.0
  %1041 = vmatpush.xpose.msra.mxu0 0.0
  %1042 = vmatpush.xpose.msra.mxu0 0.0
  %1043 = vmatpush.xpose.msra.mxu0 0.0
  %1044 = vmatpush.xpose.msra.mxu0 0.0
  %1045 = vmatpush.xpose.msra.mxu0 0.0
  %1046 = vmatpush.xpose.msra.mxu0 0.0
  %1047 = vmatpush.xpose.msra.mxu0 0.0
  %1048 = vmatpush.xpose.msra.mxu0 0.0
  %1049 = vmatpush.xpose.msra.mxu0 0.0
  %1050 = vmatpush.xpose.msra.mxu0 0.0
  %1051 = vmatpush.xpose.msra.mxu0 0.0
  %1052 = vmatpush.xpose.msra.mxu0 0.0
  %1053 = vmatpush.xpose.msra.mxu0 0.0
  %1054 = vmatpush.xpose.msra.mxu0 %v1037
  %1055 = vmatmul.f32.gmra.mxu0 %v1035
  %v1056 = vpop.f32.mrf.mxu0
  %v1057 = vadd.f32 0.0, %v1056
  %1058 = vdwg.mxu0
  %v1059 = vmul.f32 %v1057, 0.5
  %v1060 = vsel %vm724, %v1059, -1e+09
  %v1061 = vsel %vm148, %v1060, -inf
  %1062 = vmax.xlane.f32.xlu0 %v1061
  %v1063 = vpop.xlane.xlu0 %1062
  %v1064 = vsub.f32 %v1060, %v1063
  %v1065 = vmul.f32 %v1064, 1.442695
  %v1066 = vpow.pop %v1065
  %v1067 = vsel %vm148, %v1066, 0.0
  %1068 = vadd.xlane.f32.xlu0 %v1067
  %v1069 = vpop.xlane.xlu0 %1068
  %v1070 = vrcp.pop %v1069
  %v1071 = vmul.f32 %v1066, %v1070
  %1072 = vrot.lane.b32.xlu0 %v112, 44
  %v1073 = vpop.permute.xlu0 %1072
  %v1076 = vsel %vm148, %v1071, 0
  %1078 = vmatpush.msra.mxu0 0.0
  %1079 = vmatpush.msra.mxu0 0.0
  %1080 = vmatpush.msra.mxu0 0.0
  %1081 = vmatpush.msra.mxu0 0.0
  %1082 = vmatpush.msra.mxu0 0.0
  %1083 = vmatpush.msra.mxu0 0.0
  %1084 = vmatpush.msra.mxu0 0.0
  %1085 = vmatpush.msra.mxu0 0.0
  %1086 = vmatpush.msra.mxu0 0.0
  %1087 = vmatpush.msra.mxu0 0.0
  %1088 = vmatpush.msra.mxu0 0.0
  %1089 = vmatpush.msra.mxu0 0.0
  %1090 = vmatpush.msra.mxu0 0.0
  %1091 = vmatpush.msra.mxu0 0.0
  %1092 = vmatpush.msra.mxu0 0.0
  %1093 = vmatpush.msra.mxu0 %v1073
  %1094 = vmatmul.f32.gmra.mxu0 %v1076
  %v1095 = vpop.f32.mrf.mxu0
  %v1096 = vadd.f32 0.0, %v1095
  %1097 = vdwg.mxu0
  %1098 = vrot.lane.b32.xlu0 %v112, 104
  %v1099 = vpop.permute.xlu0 %1098
  %1100 = vrot.lane.b32.xlu0 %v112, 72
  %v1101 = vpop.permute.xlu0 %1100
  %v1102 = vsel %vm117, %v1099, 0
  %v1104 = vsel %vm117, %v1101, 0
  %1106 = vmatpush.xpose.msra.mxu0 0.0
  %1107 = vmatpush.xpose.msra.mxu0 0.0
  %1108 = vmatpush.xpose.msra.mxu0 0.0
  %1109 = vmatpush.xpose.msra.mxu0 0.0
  %1110 = vmatpush.xpose.msra.mxu0 0.0
  %1111 = vmatpush.xpose.msra.mxu0 0.0
  %1112 = vmatpush.xpose.msra.mxu0 0.0
  %1113 = vmatpush.xpose.msra.mxu0 0.0
  %1114 = vmatpush.xpose.msra.mxu0 0.0
  %1115 = vmatpush.xpose.msra.mxu0 0.0
  %1116 = vmatpush.xpose.msra.mxu0 0.0
  %1117 = vmatpush.xpose.msra.mxu0 0.0
  %1118 = vmatpush.xpose.msra.mxu0 0.0
  %1119 = vmatpush.xpose.msra.mxu0 0.0
  %1120 = vmatpush.xpose.msra.mxu0 0.0
  %1121 = vmatpush.xpose.msra.mxu0 %v1104
  %1122 = vmatmul.f32.gmra.mxu0 %v1102
  %v1123 = vpop.f32.mrf.mxu0
  %v1124 = vadd.f32 0.0, %v1123
  %1125 = vdwg.mxu0
  %v1126 = vmul.f32 %v1124, 0.5
  %v1127 = vsel %vm724, %v1126, -1e+09
  %v1128 = vsel %vm148, %v1127, -inf
  %1129 = vmax.xlane.f32.xlu0 %v1128
  %v1130 = vpop.xlane.xlu0 %1129
  %v1131 = vsub.f32 %v1127, %v1130
  %v1132 = vmul.f32 %v1131, 1.442695
  %v1133 = vpow.pop %v1132
  %v1134 = vsel %vm148, %v1133, 0.0
  %1135 = vadd.xlane.f32.xlu0 %v1134
  %v1136 = vpop.xlane.xlu0 %1135
  %v1137 = vrcp.pop %v1136
  %v1138 = vmul.f32 %v1133, %v1137
  %1139 = vrot.lane.b32.xlu0 %v112, 40
  %v1140 = vpop.permute.xlu0 %1139
  %v1143 = vsel %vm148, %v1138, 0
  %1145 = vmatpush.msra.mxu0 0.0
  %1146 = vmatpush.msra.mxu0 0.0
  %1147 = vmatpush.msra.mxu0 0.0
  %1148 = vmatpush.msra.mxu0 0.0
  %1149 = vmatpush.msra.mxu0 0.0
  %1150 = vmatpush.msra.mxu0 0.0
  %1151 = vmatpush.msra.mxu0 0.0
  %1152 = vmatpush.msra.mxu0 0.0
  %1153 = vmatpush.msra.mxu0 0.0
  %1154 = vmatpush.msra.mxu0 0.0
  %1155 = vmatpush.msra.mxu0 0.0
  %1156 = vmatpush.msra.mxu0 0.0
  %1157 = vmatpush.msra.mxu0 0.0
  %1158 = vmatpush.msra.mxu0 0.0
  %1159 = vmatpush.msra.mxu0 0.0
  %1160 = vmatpush.msra.mxu0 %v1140
  %1161 = vmatmul.f32.gmra.mxu0 %v1143
  %v1162 = vpop.f32.mrf.mxu0
  %v1163 = vadd.f32 0.0, %v1162
  %1164 = vdwg.mxu0
  %1165 = vrot.lane.b32.xlu0 %v112, 100
  %v1166 = vpop.permute.xlu0 %1165
  %1167 = vrot.lane.b32.xlu0 %v112, 68
  %v1168 = vpop.permute.xlu0 %1167
  %v1169 = vsel %vm117, %v1166, 0
  %v1171 = vsel %vm117, %v1168, 0
  %1173 = vmatpush.xpose.msra.mxu0 0.0
  %1174 = vmatpush.xpose.msra.mxu0 0.0
  %1175 = vmatpush.xpose.msra.mxu0 0.0
  %1176 = vmatpush.xpose.msra.mxu0 0.0
  %1177 = vmatpush.xpose.msra.mxu0 0.0
  %1178 = vmatpush.xpose.msra.mxu0 0.0
  %1179 = vmatpush.xpose.msra.mxu0 0.0
  %1180 = vmatpush.xpose.msra.mxu0 0.0
  %1181 = vmatpush.xpose.msra.mxu0 0.0
  %1182 = vmatpush.xpose.msra.mxu0 0.0
  %1183 = vmatpush.xpose.msra.mxu0 0.0
  %1184 = vmatpush.xpose.msra.mxu0 0.0
  %1185 = vmatpush.xpose.msra.mxu0 0.0
  %1186 = vmatpush.xpose.msra.mxu0 0.0
  %1187 = vmatpush.xpose.msra.mxu0 0.0
  %1188 = vmatpush.xpose.msra.mxu0 %v1171
  %1189 = vmatmul.f32.gmra.mxu0 %v1169
  %v1190 = vpop.f32.mrf.mxu0
  %v1191 = vadd.f32 0.0, %v1190
  %1192 = vdwg.mxu0
  %v1193 = vmul.f32 %v1191, 0.5
  %v1194 = vsel %vm724, %v1193, -1e+09
  %v1195 = vsel %vm148, %v1194, -inf
  %1196 = vmax.xlane.f32.xlu0 %v1195
  %v1197 = vpop.xlane.xlu0 %1196
  %v1198 = vsub.f32 %v1194, %v1197
  %v1199 = vmul.f32 %v1198, 1.442695
  %v1200 = vpow.pop %v1199
  %v1201 = vsel %vm148, %v1200, 0.0
  %1202 = vadd.xlane.f32.xlu0 %v1201
  %v1203 = vpop.xlane.xlu0 %1202
  %v1204 = vrcp.pop %v1203
  %v1205 = vmul.f32 %v1200, %v1204
  %1206 = vrot.lane.b32.xlu0 %v112, 36
  %v1207 = vpop.permute.xlu0 %1206
  %v1210 = vsel %vm148, %v1205, 0
  %1212 = vmatpush.msra.mxu0 0.0
  %1213 = vmatpush.msra.mxu0 0.0
  %1214 = vmatpush.msra.mxu0 0.0
  %1215 = vmatpush.msra.mxu0 0.0
  %1216 = vmatpush.msra.mxu0 0.0
  %1217 = vmatpush.msra.mxu0 0.0
  %1218 = vmatpush.msra.mxu0 0.0
  %1219 = vmatpush.msra.mxu0 0.0
  %1220 = vmatpush.msra.mxu0 0.0
  %1221 = vmatpush.msra.mxu0 0.0
  %1222 = vmatpush.msra.mxu0 0.0
  %1223 = vmatpush.msra.mxu0 0.0
  %1224 = vmatpush.msra.mxu0 0.0
  %1225 = vmatpush.msra.mxu0 0.0
  %1226 = vmatpush.msra.mxu0 0.0
  %1227 = vmatpush.msra.mxu0 %v1207
  %1228 = vmatmul.f32.gmra.mxu0 %v1210
  %v1229 = vpop.f32.mrf.mxu0
  %v1230 = vadd.f32 0.0, %v1229
  %1231 = vdwg.mxu0
  %1233 = vrot.lane.b32.xlu0 %v828, 4
  %v1234 = vpop.permute.xlu0 %1233
  %1237 = vrot.lane.b32.xlu0 %v895, 8
  %v1238 = vpop.permute.xlu0 %1237
  %1241 = vrot.lane.b32.xlu0 %v962, 12
  %v1242 = vpop.permute.xlu0 %1241
  %1245 = vrot.lane.b32.xlu0 %v1029, 16
  %v1246 = vpop.permute.xlu0 %1245
  %1249 = vrot.lane.b32.xlu0 %v1096, 20
  %v1250 = vpop.permute.xlu0 %1249
  %1253 = vrot.lane.b32.xlu0 %v1163, 24
  %v1254 = vpop.permute.xlu0 %1253
  %1257 = vrot.lane.b32.xlu0 %v1230, 28
  %v1258 = vpop.permute.xlu0 %1257
  %v1260 = vsel %vm117, %v761, %v1234
  %v1261 = vsel %vm148, %v1260, %v1238
  %v1262 = vsel %vm685, %v1261, %v1242
  %v1263 = vsel %vm687, %v1262, %v1246
  %v1264 = vsel %vm689, %v1263, %v1250
  %v1265 = vsel %vm691, %v1264, %v1254
  %v1266 = vsel %vm693, %v1265, %v1258
  %v1268 = vsel %vm84, %v694, 0
  %v1271 = vsel %vm84, %v1266, 0
  %1273 = vmatpush.msra.mxu0 0.0
  %1274 = vmatpush.msra.mxu0 0.0
  %1275 = vmatpush.msra.mxu0 0.0
  %1276 = vmatpush.msra.mxu0 0.0
  %1277 = vmatpush.msra.mxu0 0.0
  %1278 = vmatpush.msra.mxu0 0.0
  %1279 = vmatpush.msra.mxu0 0.0
  %1280 = vmatpush.msra.mxu0 0.0
  %1281 = vmatpush.msra.mxu0 0.0
  %1282 = vmatpush.msra.mxu0 0.0
  %1283 = vmatpush.msra.mxu0 0.0
  %1284 = vmatpush.msra.mxu0 0.0
  %1285 = vmatpush.msra.mxu0 %v61
  %1286 = vmatpush.msra.mxu0 %v60
  %1287 = vmatpush.msra.mxu0 %v59
  %1288 = vmatpush.msra.mxu0 %v58
  %1289 = vmatmul.f32.gmra.mxu0 %v1268
  %v1290 = vpop.f32.mrf.mxu0
  %v1291 = vadd.f32 0.0, %v1290
  %1292 = vmatmul.f32.gmra.mxu0 %v1271
  %v1293 = vpop.f32.mrf.mxu0
  %v1294 = vadd.f32 0.0, %v1293
  %1295 = vdwg.mxu0
  %v1296 = vadd.f32 %v51, %v1291
  %v1297 = vadd.f32 %v52, %v1294
  %v1299 = vperm.slane %v62, 0
  %v1301 = vadd.f32 %v1296, %v1299
  %v1302 = vadd.f32 %v1297, %v1299
  %v1303 = vsel %vm84, %v1301, 0.0
  %1304 = vadd.xlane.f32.xlu0 %v1303
  %v1305 = vpop.xlane.xlu0 %1304
  %v1306 = vsel %vm84, %v1302, 0.0
  %1307 = vadd.xlane.f32.xlu0 %v1306
  %v1308 = vpop.xlane.xlu0 %1307
  %v1309 = vrcp.pop 32.0
  %v1310 = vmul.f32 32.0, %v1309
  %v1311 = vsub.f32 1.0, %v1310
  %v1312 = vmul.f32 %v1309, %v1311
  %v1313 = vadd.f32 %v1309, %v1312
  %vm1314 = vweird.f32 %v1309
  %v1315 = vsel %vm1314, %v1309, %v1313
  %v1316 = vmul.f32 %v1305, %v1315
  %v1317 = vmul.f32 %v1308, %v1315
  %v1318 = vsub.f32 %v1301, %v1316
  %v1319 = vsub.f32 %v1302, %v1317
  %v1320 = vmul.f32 %v1318, %v1318
  %v1321 = vmul.f32 %v1319, %v1319
  %v1322 = vsel %vm84, %v1320, 0.0
  %1323 = vadd.xlane.f32.xlu0 %v1322
  %v1324 = vpop.xlane.xlu0 %1323
  %v1325 = vsel %vm84, %v1321, 0.0
  %1326 = vadd.xlane.f32.xlu0 %v1325
  %v1327 = vpop.xlane.xlu0 %1326
  %v1328 = vmul.f32 %v1324, %v1315
  %v1329 = vmul.f32 %v1327, %v1315
  %v1330 = vadd.f32 %v1328, 1e-12
  %v1331 = vadd.f32 %v1329, 1e-12
  %v1332 = vrsqrt.pop %v1330
  %v1333 = vmul.f32 %v1332, %v1330
  %v1334 = vmul.f32 %v1333, %v1332
  %v1335 = vmul.f32 0.5, %v1334
  %v1336 = vsub.f32 1.5, %v1335
  %v1337 = vmul.f32 %v1332, %v1336
  %vm1338 = vweird.f32 %v1330
  %vm1339 = vweird.f32 %v1332
  %vm1340 = vmor %vm1338, %vm1339
  %v1341 = vsel %vm1340, %v1332, %v1337
  %v1342 = vrsqrt.pop %v1331
  %v1343 = vmul.f32 %v1342, %v1331
  %v1344 = vmul.f32 %v1343, %v1342
  %v1345 = vmul.f32 0.5, %v1344
  %v1346 = vsub.f32 1.5, %v1345
  %v1347 = vmul.f32 %v1342, %v1346
  %vm1348 = vweird.f32 %v1331
  %vm1349 = vweird.f32 %v1342
  %vm1350 = vmor %vm1348, %vm1349
  %v1351 = vsel %vm1350, %v1342, %v1347
  %v1352 = vmul.f32 %v1318, %v1341
  %v1353 = vmul.f32 %v1319, %v1351
  %v1355 = vperm.slane %v63, 0
  %v1357 = vmul.f32 %v1352, %v1355
  %v1358 = vmul.f32 %v1353, %v1355
  %v1360 = vperm.slane %v64, 0
  %v1362 = vadd.f32 %v1357, %v1360
  %v1363 = vadd.f32 %v1358, %v1360
  %v1365 = vperm.slane %v69, 0
  %v1368 = vsel %vm84, %v1362, 0
  %v1371 = vsel %vm84, %v1363, 0
  %1373 = vmatpush.msra.mxu0 0.0
  %1374 = vmatpush.msra.mxu0 0.0
  %1375 = vmatpush.msra.mxu0 0.0
  %1376 = vmatpush.msra.mxu0 0.0
  %1377 = vmatpush.msra.mxu0 0.0
  %1378 = vmatpush.msra.mxu0 0.0
  %1379 = vmatpush.msra.mxu0 0.0
  %1380 = vmatpush.msra.mxu0 0.0
  %1381 = vmatpush.msra.mxu0 0.0
  %1382 = vmatpush.msra.mxu0 0.0
  %1383 = vmatpush.msra.mxu0 0.0
  %1384 = vmatpush.msra.mxu0 0.0
  %1385 = vmatpush.msra.mxu0 %v68
  %1386 = vmatpush.msra.mxu0 %v67
  %1387 = vmatpush.msra.mxu0 %v66
  %1388 = vmatpush.msra.mxu0 %v65
  %1389 = vmatmul.f32.gmra.mxu0 %v1368
  %v1390 = vpop.f32.mrf.mxu0
  %v1391 = vadd.f32 %v1365, %v1390
  %1392 = vmatmul.f32.gmra.mxu0 %v1371
  %v1393 = vpop.f32.mrf.mxu0
  %v1394 = vadd.f32 %v1365, %v1393
  %1395 = vdwg.mxu0
  %v1396 = vmul.f32 %v1391, %v1391
  %v1397 = vmul.f32 %v1394, %v1394
  %v1398 = vmul.f32 %v1391, %v1396
  %v1399 = vmul.f32 %v1394, %v1397
  %v1400 = vmul.f32 %v1398, 0.044715
  %v1401 = vmul.f32 %v1399, 0.044715
  %v1402 = vadd.f32 %v1391, %v1400
  %v1403 = vadd.f32 %v1394, %v1401
  %v1404 = vmul.f32 %v1402, 0.7978846
  %v1405 = vmul.f32 %v1403, 0.7978846
  %v1406 = vtanh.pop %v1404
  %v1407 = vtanh.pop %v1405
  %v1408 = vadd.f32 %v1406, 1.0
  %v1409 = vadd.f32 %v1407, 1.0
  %v1410 = vmul.f32 %v1408, 0.5
  %v1411 = vmul.f32 %v1409, 0.5
  %v1412 = vmul.f32 %v1391, %v1410
  %v1413 = vmul.f32 %v1394, %v1411
  %v1415 = vperm.slane %v78, 0
  %vm1417 = vcmask 523264
  %v1419 = vsel %vm1417, %v1412, 0
  %v1422 = vsel %vm1417, %v1413, 0
  %1424 = vmatpush.msra.mxu0 0.0
  %1425 = vmatpush.msra.mxu0 0.0
  %1426 = vmatpush.msra.mxu0 0.0
  %1427 = vmatpush.msra.mxu0 0.0
  %1428 = vmatpush.msra.mxu0 0.0
  %1429 = vmatpush.msra.mxu0 0.0
  %1430 = vmatpush.msra.mxu0 0.0
  %1431 = vmatpush.msra.mxu0 0.0
  %1432 = vmatpush.msra.mxu0 %v77
  %1433 = vmatpush.msra.mxu0 %v76
  %1434 = vmatpush.msra.mxu0 %v75
  %1435 = vmatpush.msra.mxu0 %v74
  %1436 = vmatpush.msra.mxu0 %v73
  %1437 = vmatpush.msra.mxu0 %v72
  %1438 = vmatpush.msra.mxu0 %v71
  %1439 = vmatpush.msra.mxu0 %v70
  %1440 = vmatmul.f32.gmra.mxu0 %v1419
  %v1441 = vpop.f32.mrf.mxu0
  %v1442 = vadd.f32 %v1415, %v1441
  %1443 = vmatmul.f32.gmra.mxu0 %v1422
  %v1444 = vpop.f32.mrf.mxu0
  %v1445 = vadd.f32 %v1415, %v1444
  %1446 = vdwg.mxu0
  %v1447 = vadd.f32 %v1362, %v1442
  %v1448 = vadd.f32 %v1363, %v1445
  %v1449 = vsel %vm84, %v1447, 0.0
  %1450 = vadd.xlane.f32.xlu0 %v1449
  %v1451 = vpop.xlane.xlu0 %1450
  %v1452 = vsel %vm84, %v1448, 0.0
  %1453 = vadd.xlane.f32.xlu0 %v1452
  %v1454 = vpop.xlane.xlu0 %1453
  %v1455 = vmul.f32 %v1451, %v1315
  %v1456 = vmul.f32 %v1454, %v1315
  %v1457 = vsub.f32 %v1447, %v1455
  %v1458 = vsub.f32 %v1448, %v1456
  %v1459 = vmul.f32 %v1457, %v1457
  %v1460 = vmul.f32 %v1458, %v1458
  %v1461 = vsel %vm84, %v1459, 0.0
  %1462 = vadd.xlane.f32.xlu0 %v1461
  %v1463 = vpop.xlane.xlu0 %1462
  %v1464 = vsel %vm84, %v1460, 0.0
  %1465 = vadd.xlane.f32.xlu0 %v1464
  %v1466 = vpop.xlane.xlu0 %1465
  %v1467 = vmul.f32 %v1463, %v1315
  %v1468 = vmul.f32 %v1466, %v1315
  %v1469 = vadd.f32 %v1467, 1e-12
  %v1470 = vadd.f32 %v1468, 1e-12
  %v1471 = vrsqrt.pop %v1469
  %v1472 = vmul.f32 %v1471, %v1469
  %v1473 = vmul.f32 %v1472, %v1471
  %v1474 = vmul.f32 0.5, %v1473
  %v1475 = vsub.f32 1.5, %v1474
  %v1476 = vmul.f32 %v1471, %v1475
  %vm1477 = vweird.f32 %v1469
  %vm1478 = vweird.f32 %v1471
  %vm1479 = vmor %vm1477, %vm1478
  %v1480 = vsel %vm1479, %v1471, %v1476
  %v1481 = vrsqrt.pop %v1470
  %v1482 = vmul.f32 %v1481, %v1470
  %v1483 = vmul.f32 %v1482, %v1481
  %v1484 = vmul.f32 0.5, %v1483
  %v1485 = vsub.f32 1.5, %v1484
  %v1486 = vmul.f32 %v1481, %v1485
  %vm1487 = vweird.f32 %v1470
  %vm1488 = vweird.f32 %v1481
  %vm1489 = vmor %vm1487, %vm1488
  %v1490 = vsel %vm1489, %v1481, %v1486
  %v1491 = vmul.f32 %v1457, %v1480
  %v1492 = vmul.f32 %v1458, %v1490
  %v1494 = vperm.slane %v79, 0
  %v1496 = vmul.f32 %v1491, %v1494
  %v1497 = vmul.f32 %v1492, %v1494
  %v1499 = vperm.slane %v80, 0
  %v1501 = vadd.f32 %v1496, %v1499
  %v1502 = vadd.f32 %v1497, %v1499
  %v1503 = vld [vmem:[%s2] sm:$0xff]
  %v1504 = vld [vmem:[%s2 + $0x8] sm:$0xff]
  %1506 = vset.pattern.permute.xlu0 0
  %1507 = vperm.xlu0 %1506, %v1503
  %v1508 = vpop.permute.xlu0 %1507
  %1511 = vset.pattern.permute.xlu0 0
  %1512 = vperm.xlu0 %1511, %v1504
  %v1513 = vpop.permute.xlu0 %1512
  %v1515 = vmul.f32 %v1501, %v1508
  %v1516 = vmul.f32 %v1502, %v1513
  %1517 = vst.msk [vmem:[%s15] sm:$0xff] %vm84, %v1515
  %1518 = vst.msk [vmem:[%s15 + $0x8] sm:$0xff] %vm84, %v1516
  // Predicated region
  $region62: #{custom_xlm_forward.8} parent=0 // pred_check
    _
  $region63: #{custom_xlm_forward.8} parent=0 // pred_check_branch
    %1520 = sbr.rel (0) target = $region65
  $region64: #{custom_xlm_forward.8} parent=0 // pred_region
    _
  $region65: #{custom_xlm_forward.8} parent=0 // pred_fallthru
    _
  // Predicated region
  $region66: #{custom_xlm_forward.8} parent=0 // pred_check
    _
  $region67: #{custom_xlm_forward.8} parent=0 // pred_check_branch
    %1522 = sbr.rel (0) target = $region69
  $region68: #{custom_xlm_forward.8} parent=0 // pred_region
    _
  $region69: #{custom_xlm_forward.8} parent=0 // pred_fallthru
    _

// kernel: custom_xlm_forward.11
$region0: #{custom_xlm_forward.11}
  #allocation0 [shape = 'u32[]', space=smem, size = 0x4, offset = 0x4, fixed_abs, tag = 'smem constant byte address 0x4 - core index']
  #allocation1 [shape = 'u32[72,128]{1,0:T(1,128)}', space=vmem, size = 0x9000, scoped, tag = 'internal scratch']
  %s0 = inlined_call_operand.vmem [shape: f32[16,32], index: 0, kind: input, shape index: {}]
  %s1 = inlined_call_operand.vmem [shape: f32[32,96], index: 1, kind: input, shape index: {}]
  %s2 = inlined_call_operand.hbm [shape: f32[1,96], index: 2, kind: input, shape index: {}]
  %s3 = inlined_call_operand.vmem [shape: f32[32,32], index: 3, kind: input, shape index: {}]
  %s4 = inlined_call_operand.hbm [shape: f32[1,32], index: 4, kind: input, shape index: {}]
  %s5 = inlined_call_operand.hbm [shape: f32[1,32], index: 5, kind: input, shape index: {}]
  %s6 = inlined_call_operand.hbm [shape: f32[1,32], index: 6, kind: input, shape index: {}]
  %s7 = inlined_call_operand.vmem [shape: f32[32,64], index: 7, kind: input, shape index: {}]
  %s8 = inlined_call_operand.hbm [shape: f32[1,64], index: 8, kind: input, shape index: {}]
  %s9 = inlined_call_operand.vmem [shape: f32[64,32], index: 9, kind: input, shape index: {}]
  %s10 = inlined_call_operand.hbm [shape: f32[1,32], index: 10, kind: input, shape index: {}]
  %s11 = inlined_call_operand.hbm [shape: f32[1,32], index: 11, kind: input, shape index: {}]
  %s12 = inlined_call_operand.hbm [shape: f32[1,32], index: 12, kind: input, shape index: {}]
  %s13 = inlined_call_operand.vmem [shape: f32[16,32], index: 13, kind: output, shape index: {}]
  %s14 = sld [smem:[#allocation0]]
  $region94: #{custom_xlm_forward.11} parent=0
    _
  %s16 = ssub.s32 1, %s14
  %s17 = scalar_select 0, %s16, %s14
  $region1: #{custom_xlm_forward.11} parent=0
    #allocation2 [shape = 'u8[512]{0}', space=vmem, size = 0x400, scoped, tag = 'input window, operand 2, single buffered']
    #allocation3 [shape = 's32[1]{0}', space=sflag, size = 0x4, scoped, tag = 'scoped memory for custom_xlm_forward.11']
    #allocation4 [shape = 'u8[512]{0}', space=vmem, size = 0x400, scoped, tag = 'input window, operand 4, single buffered']
    #allocation5 [shape = 's32[1]{0}', space=sflag, size = 0x4, scoped, tag = 'scoped memory for custom_xlm_forward.11']
    #allocation6 [shape = 'u8[512]{0}', space=vmem, size = 0x400, scoped, tag = 'input window, operand 5, single buffered']
    #allocation7 [shape = 'u8[512]{0}', space=vmem, size = 0x400, scoped, tag = 'input window, operand 6, single buffered']
    #allocation8 [shape = 's32[1]{0}', space=sflag, size = 0x4, scoped, tag = 'scoped memory for custom_xlm_forward.11']
    #allocation9 [shape = 'u8[512]{0}', space=vmem, size = 0x400, scoped, tag = 'input window, operand 8, single buffered']
    #allocation10 [shape = 'u8[512]{0}', space=vmem, size = 0x400, scoped, tag = 'input window, operand 10, single buffered']
    #allocation11 [shape = 's32[1]{0}', space=sflag, size = 0x4, scoped, tag = 'scoped memory for custom_xlm_forward.11']
    #allocation12 [shape = 'u8[512]{0}', space=vmem, size = 0x400, scoped, tag = 'input window, operand 11, single buffered']
    #allocation13 [shape = 'u8[512]{0}', space=vmem, size = 0x400, scoped, tag = 'input window, operand 12, single buffered']
    #allocation14 [shape = 's32[1]{0}', space=sflag, size = 0x4, scoped, tag = 'scoped memory for custom_xlm_forward.11']
    %18 = vsyncpa [#allocation3], 0
    %19 = vsyncpa [#allocation5], 0
    %20 = vsyncpa [#allocation8], 0
    %21 = vsyncpa [#allocation11], 0
    %22 = vsyncpa [#allocation14], 0
    // Predicated region
    $region2: #{custom_xlm_forward.11} parent=1 // pred_check
      _
    $region3: #{custom_xlm_forward.11} parent=1 // pred_check_branch
      %24 = sbr.rel (0) target = $region5
    $region4: #{custom_xlm_forward.11} parent=1 // pred_region
      _
    $region5: #{custom_xlm_forward.11} parent=1 // pred_fallthru
      _
    // Predicated region
    $region6: #{custom_xlm_forward.11} parent=1 // pred_check
      _
    $region7: #{custom_xlm_forward.11} parent=1 // pred_check_branch
      %26 = sbr.rel (0) target = $region9
    $region8: #{custom_xlm_forward.11} parent=1 // pred_region
      _
    $region9: #{custom_xlm_forward.11} parent=1 // pred_fallthru
      _
    // Predicated region
    $region10: #{custom_xlm_forward.11} parent=1 // pred_check
      _
    $region11: #{custom_xlm_forward.11} parent=1 // pred_check_branch
      %28 = sbr.rel (0) target = $region13
    $region12: #{custom_xlm_forward.11} parent=1 // pred_region
      %30 = vsyncadd [#allocation3], 0
      %s32 = sshll.u32 %s2, 4
      %s33 = int_to_ptr.hbm [resolvable:$true] %s32
      %s34 = sshll.u32 [#allocation2], 4
      %s35 = int_to_ptr.vmem [resolvable:$true] %s34
      %37 = dma.hbm_to_vmem [thread:$0]  %s33, 16, %s35, [#allocation3]
    $region13: #{custom_xlm_forward.11} parent=1 // pred_fallthru
      _
    // Predicated region
    $region14: #{custom_xlm_forward.11} parent=1 // pred_check
      _
    $region15: #{custom_xlm_forward.11} parent=1 // pred_check_branch
      %39 = sbr.rel (0) target = $region17
    $region16: #{custom_xlm_forward.11} parent=1 // pred_region
      _
    $region17: #{custom_xlm_forward.11} parent=1 // pred_fallthru
      _
    // Predicated region
    $region18: #{custom_xlm_forward.11} parent=1 // pred_check
      _
    $region19: #{custom_xlm_forward.11} parent=1 // pred_check_branch
      %41 = sbr.rel (0) target = $region21
    $region20: #{custom_xlm_forward.11} parent=1 // pred_region
      %43 = vsyncadd [#allocation5], 0
      %s45 = sshll.u32 %s4, 4
      %s46 = int_to_ptr.hbm [resolvable:$true] %s45
      %s47 = sshll.u32 [#allocation4], 4
      %s48 = int_to_ptr.vmem [resolvable:$true] %s47
      %50 = dma.hbm_to_vmem [thread:$0]  %s46, 16, %s48, [#allocation5]
    $region21: #{custom_xlm_forward.11} parent=1 // pred_fallthru
      _
    // Predicated region
    $region22: #{custom_xlm_forward.11} parent=1 // pred_check
      _
    $region23: #{custom_xlm_forward.11} parent=1 // pred_check_branch
      %52 = sbr.rel (0) target = $region25
    $region24: #{custom_xlm_forward.11} parent=1 // pred_region
      %54 = vsyncadd [#allocation5], 0
      %s56 = sshll.u32 %s5, 4
      %s57 = int_to_ptr.hbm [resolvable:$true] %s56
      %s58 = sshll.u32 [#allocation6], 4
      %s59 = int_to_ptr.vmem [resolvable:$true] %s58
      %61 = dma.hbm_to_vmem [thread:$0]  %s57, 16, %s59, [#allocation5]
    $region25: #{custom_xlm_forward.11} parent=1 // pred_fallthru
      _
    // Predicated region
    $region26: #{custom_xlm_forward.11} parent=1 // pred_check
      _
    $region27: #{custom_xlm_forward.11} parent=1 // pred_check_branch
      %63 = sbr.rel (0) target = $region29
    $region28: #{custom_xlm_forward.11} parent=1 // pred_region
      %65 = vsyncadd [#allocation8], 0
      %s67 = sshll.u32 %s6, 4
      %s68 = int_to_ptr.hbm [resolvable:$true] %s67
      %s69 = sshll.u32 [#allocation7], 4
      %s70 = int_to_ptr.vmem [resolvable:$true] %s69
      %72 = dma.hbm_to_vmem [thread:$0]  %s68, 16, %s70, [#allocation8]
    $region29: #{custom_xlm_forward.11} parent=1 // pred_fallthru
      _
    // Predicated region
    $region30: #{custom_xlm_forward.11} parent=1 // pred_check
      _
    $region31: #{custom_xlm_forward.11} parent=1 // pred_check_branch
      %74 = sbr.rel (0) target = $region33
    $region32: #{custom_xlm_forward.11} parent=1 // pred_region
      _
    $region33: #{custom_xlm_forward.11} parent=1 // pred_fallthru
      _
    // Predicated region
    $region34: #{custom_xlm_forward.11} parent=1 // pred_check
      _
    $region35: #{custom_xlm_forward.11} parent=1 // pred_check_branch
      %76 = sbr.rel (0) target = $region37
    $region36: #{custom_xlm_forward.11} parent=1 // pred_region
      %78 = vsyncadd [#allocation8], 0
      %s80 = sshll.u32 %s8, 4
      %s81 = int_to_ptr.hbm [resolvable:$true] %s80
      %s82 = sshll.u32 [#allocation9], 4
      %s83 = int_to_ptr.vmem [resolvable:$true] %s82
      %85 = dma.hbm_to_vmem [thread:$0]  %s81, 16, %s83, [#allocation8]
    $region37: #{custom_xlm_forward.11} parent=1 // pred_fallthru
      _
    // Predicated region
    $region38: #{custom_xlm_forward.11} parent=1 // pred_check
      _
    $region39: #{custom_xlm_forward.11} parent=1 // pred_check_branch
      %87 = sbr.rel (0) target = $region41
    $region40: #{custom_xlm_forward.11} parent=1 // pred_region
      _
    $region41: #{custom_xlm_forward.11} parent=1 // pred_fallthru
      _
    // Predicated region
    $region42: #{custom_xlm_forward.11} parent=1 // pred_check
      _
    $region43: #{custom_xlm_forward.11} parent=1 // pred_check_branch
      %89 = sbr.rel (0) target = $region45
    $region44: #{custom_xlm_forward.11} parent=1 // pred_region
      %91 = vsyncadd [#allocation11], 0
      %s93 = sshll.u32 %s10, 4
      %s94 = int_to_ptr.hbm [resolvable:$true] %s93
      %s95 = sshll.u32 [#allocation10], 4
      %s96 = int_to_ptr.vmem [resolvable:$true] %s95
      %98 = dma.hbm_to_vmem [thread:$0]  %s94, 16, %s96, [#allocation11]
    $region45: #{custom_xlm_forward.11} parent=1 // pred_fallthru
      _
    // Predicated region
    $region46: #{custom_xlm_forward.11} parent=1 // pred_check
      _
    $region47: #{custom_xlm_forward.11} parent=1 // pred_check_branch
      %100 = sbr.rel (0) target = $region49
    $region48: #{custom_xlm_forward.11} parent=1 // pred_region
      %102 = vsyncadd [#allocation11], 0
      %s104 = sshll.u32 %s11, 4
      %s105 = int_to_ptr.hbm [resolvable:$true] %s104
      %s106 = sshll.u32 [#allocation12], 4
      %s107 = int_to_ptr.vmem [resolvable:$true] %s106
      %109 = dma.hbm_to_vmem [thread:$0]  %s105, 16, %s107, [#allocation11]
    $region49: #{custom_xlm_forward.11} parent=1 // pred_fallthru
      _
    // Predicated region
    $region50: #{custom_xlm_forward.11} parent=1 // pred_check
      _
    $region51: #{custom_xlm_forward.11} parent=1 // pred_check_branch
      %111 = sbr.rel (0) target = $region53
    $region52: #{custom_xlm_forward.11} parent=1 // pred_region
      %113 = vsyncadd [#allocation14], 0
      %s115 = sshll.u32 %s12, 4
      %s116 = int_to_ptr.hbm [resolvable:$true] %s115
      %s117 = sshll.u32 [#allocation13], 4
      %s118 = int_to_ptr.vmem [resolvable:$true] %s117
      %120 = dma.hbm_to_vmem [thread:$0]  %s116, 16, %s118, [#allocation14]
    $region53: #{custom_xlm_forward.11} parent=1 // pred_fallthru
      _
    // Predicated region
    $region54: #{custom_xlm_forward.11} parent=1 // pred_check
      _
    $region55: #{custom_xlm_forward.11} parent=1 // pred_check_branch
      %122 = sbr.rel (0) target = $region57
    $region56: #{custom_xlm_forward.11} parent=1 // pred_region
      %124 = dma.done [#allocation3], 16
    $region57: #{custom_xlm_forward.11} parent=1 // pred_fallthru
      _
    // Predicated region
    $region58: #{custom_xlm_forward.11} parent=1 // pred_check
      _
    $region59: #{custom_xlm_forward.11} parent=1 // pred_check_branch
      %126 = sbr.rel (0) target = $region61
    $region60: #{custom_xlm_forward.11} parent=1 // pred_region
      %128 = dma.done [#allocation5], 16
    $region61: #{custom_xlm_forward.11} parent=1 // pred_fallthru
      _
    // Predicated region
    $region62: #{custom_xlm_forward.11} parent=1 // pred_check
      _
    $region63: #{custom_xlm_forward.11} parent=1 // pred_check_branch
      %130 = sbr.rel (0) target = $region65
    $region64: #{custom_xlm_forward.11} parent=1 // pred_region
      %132 = dma.done [#allocation5], 16
    $region65: #{custom_xlm_forward.11} parent=1 // pred_fallthru
      _
    // Predicated region
    $region66: #{custom_xlm_forward.11} parent=1 // pred_check
      _
    $region67: #{custom_xlm_forward.11} parent=1 // pred_check_branch
      %134 = sbr.rel (0) target = $region69
    $region68: #{custom_xlm_forward.11} parent=1 // pred_region
      %136 = dma.done [#allocation8], 16
    $region69: #{custom_xlm_forward.11} parent=1 // pred_fallthru
      _
    // Predicated region
    $region70: #{custom_xlm_forward.11} parent=1 // pred_check
      _
    $region71: #{custom_xlm_forward.11} parent=1 // pred_check_branch
      %138 = sbr.rel (0) target = $region73
    $region72: #{custom_xlm_forward.11} parent=1 // pred_region
      %140 = dma.done [#allocation8], 16
    $region73: #{custom_xlm_forward.11} parent=1 // pred_fallthru
      _
    // Predicated region
    $region74: #{custom_xlm_forward.11} parent=1 // pred_check
      _
    $region75: #{custom_xlm_forward.11} parent=1 // pred_check_branch
      %142 = sbr.rel (0) target = $region77
    $region76: #{custom_xlm_forward.11} parent=1 // pred_region
      %144 = dma.done [#allocation11], 16
    $region77: #{custom_xlm_forward.11} parent=1 // pred_fallthru
      _
    // Predicated region
    $region78: #{custom_xlm_forward.11} parent=1 // pred_check
      _
    $region79: #{custom_xlm_forward.11} parent=1 // pred_check_branch
      %146 = sbr.rel (0) target = $region81
    $region80: #{custom_xlm_forward.11} parent=1 // pred_region
      %148 = dma.done [#allocation11], 16
    $region81: #{custom_xlm_forward.11} parent=1 // pred_fallthru
      _
    // Predicated region
    $region82: #{custom_xlm_forward.11} parent=1 // pred_check
      _
    $region83: #{custom_xlm_forward.11} parent=1 // pred_check_branch
      %150 = sbr.rel (0) target = $region85
    $region84: #{custom_xlm_forward.11} parent=1 // pred_region
      %152 = dma.done [#allocation14], 16
    $region85: #{custom_xlm_forward.11} parent=1 // pred_fallthru
      _
    %v153 = vld [vmem:[%s0] sm:$0xff]
    %v154 = vld [vmem:[%s0 + $0x8] sm:$0xff]
    %v155 = vld [vmem:[%s1] sm:$0xff]
    %v156 = vld [vmem:[%s1 + $0x8] sm:$0xff]
    %v157 = vld [vmem:[%s1 + $0x10] sm:$0xff]
    %v158 = vld [vmem:[%s1 + $0x18] sm:$0xff]
    %v159 = vld [vmem:[#allocation2] sm:$0x1]
    %v160 = vld [vmem:[%s3] sm:$0xff]
    %v161 = vld [vmem:[%s3 + $0x8] sm:$0xff]
    %v162 = vld [vmem:[%s3 + $0x10] sm:$0xff]
    %v163 = vld [vmem:[%s3 + $0x18] sm:$0xff]
    %v164 = vld [vmem:[#allocation4] sm:$0x1]
    %v165 = vld [vmem:[#allocation6] sm:$0x1]
    %v166 = vld [vmem:[#allocation7] sm:$0x1]
    %v167 = vld [vmem:[%s7] sm:$0xff]
    %v168 = vld [vmem:[%s7 + $0x8] sm:$0xff]
    %v169 = vld [vmem:[%s7 + $0x10] sm:$0xff]
    %v170 = vld [vmem:[%s7 + $0x18] sm:$0xff]
    %v171 = vld [vmem:[#allocation9] sm:$0x1]
    %v172 = vld [vmem:[%s9] sm:$0xff]
    %v173 = vld [vmem:[%s9 + $0x8] sm:$0xff]
    %v174 = vld [vmem:[%s9 + $0x10] sm:$0xff]
    %v175 = vld [vmem:[%s9 + $0x18] sm:$0xff]
    %v176 = vld [vmem:[%s9 + $0x20] sm:$0xff]
    %v177 = vld [vmem:[%s9 + $0x28] sm:$0xff]
    %v178 = vld [vmem:[%s9 + $0x30] sm:$0xff]
    %v179 = vld [vmem:[%s9 + $0x38] sm:$0xff]
    %v180 = vld [vmem:[#allocation10] sm:$0x1]
    %v181 = vld [vmem:[#allocation12] sm:$0x1]
    %v182 = vld [vmem:[#allocation13] sm:$0x1]
    %v184 = vperm.slane %v159, 0
    %vm186 = vcmask 261120
    %v188 = vsel %vm186, %v153, 0
    %v191 = vsel %vm186, %v154, 0
    %193 = vmatpush.msra.mxu0 0.0
    %194 = vmatpush.msra.mxu0 0.0
    %195 = vmatpush.msra.mxu0 0.0
    %196 = vmatpush.msra.mxu0 0.0
    %197 = vmatpush.msra.mxu0 0.0
    %198 = vmatpush.msra.mxu0 0.0
    %199 = vmatpush.msra.mxu0 0.0
    %200 = vmatpush.msra.mxu0 0.0
    %201 = vmatpush.msra.mxu0 0.0
    %202 = vmatpush.msra.mxu0 0.0
    %203 = vmatpush.msra.mxu0 0.0
    %204 = vmatpush.msra.mxu0 0.0
    %205 = vmatpush.msra.mxu0 %v158
    %206 = vmatpush.msra.mxu0 %v157
    %207 = vmatpush.msra.mxu0 %v156
    %208 = vmatpush.msra.mxu0 %v155
    %209 = vmatmul.f32.gmra.mxu0 %v188
    %v210 = vpop.f32.mrf.mxu0
    %v211 = vadd.f32 %v184, %v210
    %212 = vmatmul.f32.gmra.mxu0 %v191
    %v213 = vpop.f32.mrf.mxu0
    %v214 = vadd.f32 %v184, %v213
    %215 = vdwg.mxu0
    %217 = vrot.lane.b32.xlu0 %v211, 96
    %v218 = vpop.permute.xlu0 %217
    %v220 = vmul.f32 %v211, %v218
    %vm221 = vcmask 31744
    %v222 = vsel %vm221, %v220, 0.0
    %223 = vadd.xlane.f32.xlu0 %v222
    %v224 = vpop.xlane.xlu0 %223
    %v225 = vmul.f32 %v224, 0.5
    %227 = vrot.lane.b32.xlu0 %v214, 96
    %v228 = vpop.permute.xlu0 %227
    %v230 = vmul.f32 %v211, %v228
    %v231 = vsel %vm221, %v230, 0.0
    %232 = vadd.xlane.f32.xlu0 %v231
    %v233 = vpop.xlane.xlu0 %232
    %v234 = vmul.f32 %v233, 0.5
    %v235 = vmax.f32 %v225, %v234
    %v236 = vsub.f32 %v225, %v235
    %v237 = vmul.f32 %v236, 1.442695
    %v238 = vpow.pop %v237
    %v239 = vsub.f32 %v234, %v235
    %v240 = vmul.f32 %v239, 1.442695
    %v241 = vpow.pop %v240
    %v242 = vadd.f32 %v238, %v241
    %v243 = vrcp.pop %v242
    %v244 = vmul.f32 %v238, %v211
    %v245 = vmul.f32 %v241, %v214
    %v246 = vadd.f32 %v244, %v245
    %v247 = vmul.f32 %v246, %v243
    %v248 = vmul.f32 %v214, %v218
    %v249 = vsel %vm221, %v248, 0.0
    %250 = vadd.xlane.f32.xlu0 %v249
    %v251 = vpop.xlane.xlu0 %250
    %v252 = vmul.f32 %v251, 0.5
    %v253 = vmul.f32 %v214, %v228
    %v254 = vsel %vm221, %v253, 0.0
    %255 = vadd.xlane.f32.xlu0 %v254
    %v256 = vpop.xlane.xlu0 %255
    %v257 = vmul.f32 %v256, 0.5
    %v258 = vmax.f32 %v252, %v257
    %v259 = vsub.f32 %v252, %v258
    %v260 = vmul.f32 %v259, 1.442695
    %v261 = vpow.pop %v260
    %v262 = vsub.f32 %v257, %v258
    %v263 = vmul.f32 %v262, 1.442695
    %v264 = vpow.pop %v263
    %v265 = vadd.f32 %v261, %v264
    %v266 = vrcp.pop %v265
    %v267 = vmul.f32 %v261, %v211
    %v268 = vmul.f32 %v264, %v214
    %v269 = vadd.f32 %v267, %v268
    %v270 = vmul.f32 %v269, %v266
    %272 = vrot.lane.b32.xlu0 %v220, 124
    %v273 = vpop.permute.xlu0 %272
    %v275 = vsel %vm221, %v273, 0.0
    %276 = vadd.xlane.f32.xlu0 %v275
    %v277 = vpop.xlane.xlu0 %276
    %v278 = vmul.f32 %v277, 0.5
    %280 = vrot.lane.b32.xlu0 %v230, 124
    %v281 = vpop.permute.xlu0 %280
    %v283 = vsel %vm221, %v281, 0.0
    %284 = vadd.xlane.f32.xlu0 %v283
    %v285 = vpop.xlane.xlu0 %284
    %v286 = vmul.f32 %v285, 0.5
    %v287 = vmax.f32 %v278, %v286
    %v288 = vsub.f32 %v278, %v287
    %v289 = vmul.f32 %v288, 1.442695
    %v290 = vpow.pop %v289
    %v291 = vsub.f32 %v286, %v287
    %v292 = vmul.f32 %v291, 1.442695
    %v293 = vpow.pop %v292
    %v294 = vadd.f32 %v290, %v293
    %v295 = vrcp.pop %v294
    %v296 = vmul.f32 %v290, %v211
    %v297 = vmul.f32 %v293, %v214
    %v298 = vadd.f32 %v296, %v297
    %v299 = vmul.f32 %v298, %v295
    %301 = vrot.lane.b32.xlu0 %v248, 124
    %v302 = vpop.permute.xlu0 %301
    %v304 = vsel %vm221, %v302, 0.0
    %305 = vadd.xlane.f32.xlu0 %v304
    %v306 = vpop.xlane.xlu0 %305
    %v307 = vmul.f32 %v306, 0.5
    %309 = vrot.lane.b32.xlu0 %v253, 124
    %v310 = vpop.permute.xlu0 %309
    %v312 = vsel %vm221, %v310, 0.0
    %313 = vadd.xlane.f32.xlu0 %v312
    %v314 = vpop.xlane.xlu0 %313
    %v315 = vmul.f32 %v314, 0.5
    %v316 = vmax.f32 %v307, %v315
    %v317 = vsub.f32 %v307, %v316
    %v318 = vmul.f32 %v317, 1.442695
    %v319 = vpow.pop %v318
    %v320 = vsub.f32 %v315, %v316
    %v321 = vmul.f32 %v320, 1.442695
    %v322 = vpow.pop %v321
    %v323 = vadd.f32 %v319, %v322
    %v324 = vrcp.pop %v323
    %v325 = vmul.f32 %v319, %v211
    %v326 = vmul.f32 %v322, %v214
    %v327 = vadd.f32 %v325, %v326
    %v328 = vmul.f32 %v327, %v324
    %329 = vrot.lane.b32.xlu0 %v220, 120
    %v330 = vpop.permute.xlu0 %329
    %v332 = vsel %vm221, %v330, 0.0
    %333 = vadd.xlane.f32.xlu0 %v332
    %v334 = vpop.xlane.xlu0 %333
    %v335 = vmul.f32 %v334, 0.5
    %336 = vrot.lane.b32.xlu0 %v230, 120
    %v337 = vpop.permute.xlu0 %336
    %v339 = vsel %vm221, %v337, 0.0
    %340 = vadd.xlane.f32.xlu0 %v339
    %v341 = vpop.xlane.xlu0 %340
    %v342 = vmul.f32 %v341, 0.5
    %v343 = vmax.f32 %v335, %v342
    %v344 = vsub.f32 %v335, %v343
    %v345 = vmul.f32 %v344, 1.442695
    %v346 = vpow.pop %v345
    %v347 = vsub.f32 %v342, %v343
    %v348 = vmul.f32 %v347, 1.442695
    %v349 = vpow.pop %v348
    %v350 = vadd.f32 %v346, %v349
    %v351 = vrcp.pop %v350
    %v352 = vmul.f32 %v346, %v211
    %v353 = vmul.f32 %v349, %v214
    %v354 = vadd.f32 %v352, %v353
    %v355 = vmul.f32 %v354, %v351
    %356 = vrot.lane.b32.xlu0 %v248, 120
    %v357 = vpop.permute.xlu0 %356
    %v359 = vsel %vm221, %v357, 0.0
    %360 = vadd.xlane.f32.xlu0 %v359
    %v361 = vpop.xlane.xlu0 %360
    %v362 = vmul.f32 %v361, 0.5
    %363 = vrot.lane.b32.xlu0 %v253, 120
    %v364 = vpop.permute.xlu0 %363
    %v366 = vsel %vm221, %v364, 0.0
    %367 = vadd.xlane.f32.xlu0 %v366
    %v368 = vpop.xlane.xlu0 %367
    %v369 = vmul.f32 %v368, 0.5
    %v370 = vmax.f32 %v362, %v369
    %v371 = vsub.f32 %v362, %v370
    %v372 = vmul.f32 %v371, 1.442695
    %v373 = vpow.pop %v372
    %v374 = vsub.f32 %v369, %v370
    %v375 = vmul.f32 %v374, 1.442695
    %v376 = vpow.pop %v375
    %v377 = vadd.f32 %v373, %v376
    %v378 = vrcp.pop %v377
    %v379 = vmul.f32 %v373, %v211
    %v380 = vmul.f32 %v376, %v214
    %v381 = vadd.f32 %v379, %v380
    %v382 = vmul.f32 %v381, %v378
    %383 = vrot.lane.b32.xlu0 %v220, 116
    %v384 = vpop.permute.xlu0 %383
    %v386 = vsel %vm221, %v384, 0.0
    %387 = vadd.xlane.f32.xlu0 %v386
    %v388 = vpop.xlane.xlu0 %387
    %v389 = vmul.f32 %v388, 0.5
    %390 = vrot.lane.b32.xlu0 %v230, 116
    %v391 = vpop.permute.xlu0 %390
    %v393 = vsel %vm221, %v391, 0.0
    %394 = vadd.xlane.f32.xlu0 %v393
    %v395 = vpop.xlane.xlu0 %394
    %v396 = vmul.f32 %v395, 0.5
    %v397 = vmax.f32 %v389, %v396
    %v398 = vsub.f32 %v389, %v397
    %v399 = vmul.f32 %v398, 1.442695
    %v400 = vpow.pop %v399
    %v401 = vsub.f32 %v396, %v397
    %v402 = vmul.f32 %v401, 1.442695
    %v403 = vpow.pop %v402
    %v404 = vadd.f32 %v400, %v403
    %v405 = vrcp.pop %v404
    %v406 = vmul.f32 %v400, %v211
    %v407 = vmul.f32 %v403, %v214
    %v408 = vadd.f32 %v406, %v407
    %v409 = vmul.f32 %v408, %v405
    %410 = vrot.lane.b32.xlu0 %v248, 116
    %v411 = vpop.permute.xlu0 %410
    %v413 = vsel %vm221, %v411, 0.0
    %414 = vadd.xlane.f32.xlu0 %v413
    %v415 = vpop.xlane.xlu0 %414
    %v416 = vmul.f32 %v415, 0.5
    %417 = vrot.lane.b32.xlu0 %v253, 116
    %v418 = vpop.permute.xlu0 %417
    %v420 = vsel %vm221, %v418, 0.0
    %421 = vadd.xlane.f32.xlu0 %v420
    %v422 = vpop.xlane.xlu0 %421
    %v423 = vmul.f32 %v422, 0.5
    %v424 = vmax.f32 %v416, %v423
    %v425 = vsub.f32 %v416, %v424
    %v426 = vmul.f32 %v425, 1.442695
    %v427 = vpow.pop %v426
    %v428 = vsub.f32 %v423, %v424
    %v429 = vmul.f32 %v428, 1.442695
    %v430 = vpow.pop %v429
    %v431 = vadd.f32 %v427, %v430
    %v432 = vrcp.pop %v431
    %v433 = vmul.f32 %v427, %v211
    %v434 = vmul.f32 %v430, %v214
    %v435 = vadd.f32 %v433, %v434
    %v436 = vmul.f32 %v435, %v432
    %437 = vrot.lane.b32.xlu0 %v220, 112
    %v438 = vpop.permute.xlu0 %437
    %v440 = vsel %vm221, %v438, 0.0
    %441 = vadd.xlane.f32.xlu0 %v440
    %v442 = vpop.xlane.xlu0 %441
    %v443 = vmul.f32 %v442, 0.5
    %444 = vrot.lane.b32.xlu0 %v230, 112
    %v445 = vpop.permute.xlu0 %444
    %v447 = vsel %vm221, %v445, 0.0
    %448 = vadd.xlane.f32.xlu0 %v447
    %v449 = vpop.xlane.xlu0 %448
    %v450 = vmul.f32 %v449, 0.5
    %v451 = vmax.f32 %v443, %v450
    %v452 = vsub.f32 %v443, %v451
    %v453 = vmul.f32 %v452, 1.442695
    %v454 = vpow.pop %v453
    %v455 = vsub.f32 %v450, %v451
    %v456 = vmul.f32 %v455, 1.442695
    %v457 = vpow.pop %v456
    %v458 = vadd.f32 %v454, %v457
    %v459 = vrcp.pop %v458
    %v460 = vmul.f32 %v454, %v211
    %v461 = vmul.f32 %v457, %v214
    %v462 = vadd.f32 %v460, %v461
    %v463 = vmul.f32 %v462, %v459
    %464 = vrot.lane.b32.xlu0 %v248, 112
    %v465 = vpop.permute.xlu0 %464
    %v467 = vsel %vm221, %v465, 0.0
    %468 = vadd.xlane.f32.xlu0 %v467
    %v469 = vpop.xlane.xlu0 %468
    %v470 = vmul.f32 %v469, 0.5
    %471 = vrot.lane.b32.xlu0 %v253, 112
    %v472 = vpop.permute.xlu0 %471
    %v474 = vsel %vm221, %v472, 0.0
    %475 = vadd.xlane.f32.xlu0 %v474
    %v476 = vpop.xlane.xlu0 %475
    %v477 = vmul.f32 %v476, 0.5
    %v478 = vmax.f32 %v470, %v477
    %v479 = vsub.f32 %v470, %v478
    %v480 = vmul.f32 %v479, 1.442695
    %v481 = vpow.pop %v480
    %v482 = vsub.f32 %v477, %v478
    %v483 = vmul.f32 %v482, 1.442695
    %v484 = vpow.pop %v483
    %v485 = vadd.f32 %v481, %v484
    %v486 = vrcp.pop %v485
    %v487 = vmul.f32 %v481, %v211
    %v488 = vmul.f32 %v484, %v214
    %v489 = vadd.f32 %v487, %v488
    %v490 = vmul.f32 %v489, %v486
    %491 = vrot.lane.b32.xlu0 %v220, 108
    %v492 = vpop.permute.xlu0 %491
    %v494 = vsel %vm221, %v492, 0.0
    %495 = vadd.xlane.f32.xlu0 %v494
    %v496 = vpop.xlane.xlu0 %495
    %v497 = vmul.f32 %v496, 0.5
    %498 = vrot.lane.b32.xlu0 %v230, 108
    %v499 = vpop.permute.xlu0 %498
    %v501 = vsel %vm221, %v499, 0.0
    %502 = vadd.xlane.f32.xlu0 %v501
    %v503 = vpop.xlane.xlu0 %502
    %v504 = vmul.f32 %v503, 0.5
    %v505 = vmax.f32 %v497, %v504
    %v506 = vsub.f32 %v497, %v505
    %v507 = vmul.f32 %v506, 1.442695
    %v508 = vpow.pop %v507
    %v509 = vsub.f32 %v504, %v505
    %v510 = vmul.f32 %v509, 1.442695
    %v511 = vpow.pop %v510
    %v512 = vadd.f32 %v508, %v511
    %v513 = vrcp.pop %v512
    %v514 = vmul.f32 %v508, %v211
    %v515 = vmul.f32 %v511, %v214
    %v516 = vadd.f32 %v514, %v515
    %v517 = vmul.f32 %v516, %v513
    %518 = vrot.lane.b32.xlu0 %v248, 108
    %v519 = vpop.permute.xlu0 %518
    %v521 = vsel %vm221, %v519, 0.0
    %522 = vadd.xlane.f32.xlu0 %v521
    %v523 = vpop.xlane.xlu0 %522
    %v524 = vmul.f32 %v523, 0.5
    %525 = vrot.lane.b32.xlu0 %v253, 108
    %v526 = vpop.permute.xlu0 %525
    %v528 = vsel %vm221, %v526, 0.0
    %529 = vadd.xlane.f32.xlu0 %v528
    %v530 = vpop.xlane.xlu0 %529
    %v531 = vmul.f32 %v530, 0.5
    %v532 = vmax.f32 %v524, %v531
    %v533 = vsub.f32 %v524, %v532
    %v534 = vmul.f32 %v533, 1.442695
    %v535 = vpow.pop %v534
    %v536 = vsub.f32 %v531, %v532
    %v537 = vmul.f32 %v536, 1.442695
    %v538 = vpow.pop %v537
    %v539 = vadd.f32 %v535, %v538
    %v540 = vrcp.pop %v539
    %v541 = vmul.f32 %v535, %v211
    %v542 = vmul.f32 %v538, %v214
    %v543 = vadd.f32 %v541, %v542
    %v544 = vmul.f32 %v543, %v540
    %545 = vrot.lane.b32.xlu0 %v220, 104
    %v546 = vpop.permute.xlu0 %545
    %v548 = vsel %vm221, %v546, 0.0
    %549 = vadd.xlane.f32.xlu0 %v548
    %v550 = vpop.xlane.xlu0 %549
    %v551 = vmul.f32 %v550, 0.5
    %552 = vrot.lane.b32.xlu0 %v230, 104
    %v553 = vpop.permute.xlu0 %552
    %v555 = vsel %vm221, %v553, 0.0
    %556 = vadd.xlane.f32.xlu0 %v555
    %v557 = vpop.xlane.xlu0 %556
    %v558 = vmul.f32 %v557, 0.5
    %v559 = vmax.f32 %v551, %v558
    %v560 = vsub.f32 %v551, %v559
    %v561 = vmul.f32 %v560, 1.442695
    %v562 = vpow.pop %v561
    %v563 = vsub.f32 %v558, %v559
    %v564 = vmul.f32 %v563, 1.442695
    %v565 = vpow.pop %v564
    %v566 = vadd.f32 %v562, %v565
    %v567 = vrcp.pop %v566
    %v568 = vmul.f32 %v562, %v211
    %v569 = vmul.f32 %v565, %v214
    %v570 = vadd.f32 %v568, %v569
    %v571 = vmul.f32 %v570, %v567
    %572 = vrot.lane.b32.xlu0 %v248, 104
    %v573 = vpop.permute.xlu0 %572
    %v575 = vsel %vm221, %v573, 0.0
    %576 = vadd.xlane.f32.xlu0 %v575
    %v577 = vpop.xlane.xlu0 %576
    %v578 = vmul.f32 %v577, 0.5
    %579 = vrot.lane.b32.xlu0 %v253, 104
    %v580 = vpop.permute.xlu0 %579
    %v582 = vsel %vm221, %v580, 0.0
    %583 = vadd.xlane.f32.xlu0 %v582
    %v584 = vpop.xlane.xlu0 %583
    %v585 = vmul.f32 %v584, 0.5
    %v586 = vmax.f32 %v578, %v585
    %v587 = vsub.f32 %v578, %v586
    %v588 = vmul.f32 %v587, 1.442695
    %v589 = vpow.pop %v588
    %v590 = vsub.f32 %v585, %v586
    %v591 = vmul.f32 %v590, 1.442695
    %v592 = vpow.pop %v591
    %v593 = vadd.f32 %v589, %v592
    %v594 = vrcp.pop %v593
    %v595 = vmul.f32 %v589, %v211
    %v596 = vmul.f32 %v592, %v214
    %v597 = vadd.f32 %v595, %v596
    %v598 = vmul.f32 %v597, %v594
    %599 = vrot.lane.b32.xlu0 %v220, 100
    %v600 = vpop.permute.xlu0 %599
    %v602 = vsel %vm221, %v600, 0.0
    %603 = vadd.xlane.f32.xlu0 %v602
    %v604 = vpop.xlane.xlu0 %603
    %v605 = vmul.f32 %v604, 0.5
    %606 = vrot.lane.b32.xlu0 %v230, 100
    %v607 = vpop.permute.xlu0 %606
    %v609 = vsel %vm221, %v607, 0.0
    %610 = vadd.xlane.f32.xlu0 %v609
    %v611 = vpop.xlane.xlu0 %610
    %v612 = vmul.f32 %v611, 0.5
    %v613 = vmax.f32 %v605, %v612
    %v614 = vsub.f32 %v605, %v613
    %v615 = vmul.f32 %v614, 1.442695
    %v616 = vpow.pop %v615
    %v617 = vsub.f32 %v612, %v613
    %v618 = vmul.f32 %v617, 1.442695
    %v619 = vpow.pop %v618
    %v620 = vadd.f32 %v616, %v619
    %v621 = vrcp.pop %v620
    %v622 = vmul.f32 %v616, %v211
    %v623 = vmul.f32 %v619, %v214
    %v624 = vadd.f32 %v622, %v623
    %v625 = vmul.f32 %v624, %v621
    %626 = vrot.lane.b32.xlu0 %v248, 100
    %v627 = vpop.permute.xlu0 %626
    %v629 = vsel %vm221, %v627, 0.0
    %630 = vadd.xlane.f32.xlu0 %v629
    %v631 = vpop.xlane.xlu0 %630
    %v632 = vmul.f32 %v631, 0.5
    %633 = vrot.lane.b32.xlu0 %v253, 100
    %v634 = vpop.permute.xlu0 %633
    %v636 = vsel %vm221, %v634, 0.0
    %637 = vadd.xlane.f32.xlu0 %v636
    %v638 = vpop.xlane.xlu0 %637
    %v639 = vmul.f32 %v638, 0.5
    %v640 = vmax.f32 %v632, %v639
    %v641 = vsub.f32 %v632, %v640
    %v642 = vmul.f32 %v641, 1.442695
    %v643 = vpow.pop %v642
    %v644 = vsub.f32 %v639, %v640
    %v645 = vmul.f32 %v644, 1.442695
    %v646 = vpow.pop %v645
    %v647 = vadd.f32 %v643, %v646
    %v648 = vrcp.pop %v647
    %v649 = vmul.f32 %v643, %v211
    %v650 = vmul.f32 %v646, %v214
    %v651 = vadd.f32 %v649, %v650
    %v652 = vmul.f32 %v651, %v648
    %654 = vrot.lane.b32.xlu0 %v247, 64
    %v655 = vpop.permute.xlu0 %654
    %658 = vrot.lane.b32.xlu0 %v299, 64
    %v659 = vpop.permute.xlu0 %658
    %662 = vrot.lane.b32.xlu0 %v355, 64
    %v663 = vpop.permute.xlu0 %662
    %666 = vrot.lane.b32.xlu0 %v409, 64
    %v667 = vpop.permute.xlu0 %666
    %670 = vrot.lane.b32.xlu0 %v463, 64
    %v671 = vpop.permute.xlu0 %670
    %674 = vrot.lane.b32.xlu0 %v517, 64
    %v675 = vpop.permute.xlu0 %674
    %678 = vrot.lane.b32.xlu0 %v571, 64
    %v679 = vpop.permute.xlu0 %678
    %682 = vrot.lane.b32.xlu0 %v625, 64
    %v683 = vpop.permute.xlu0 %682
    %v685 = vsel %vm221, %v655, %v659
    %vm686 = vcmask 64512
    %v687 = vsel %vm686, %v685, %v663
    %vm688 = vcmask 97280
    %v689 = vsel %vm688, %v687, %v667
    %vm690 = vcmask 130048
    %v691 = vsel %vm690, %v689, %v671
    %vm692 = vcmask 162816
    %v693 = vsel %vm692, %v691, %v675
    %vm694 = vcmask 195584
    %v695 = vsel %vm694, %v693, %v679
    %vm696 = vcmask 228352
    %v697 = vsel %vm696, %v695, %v683
    %699 = vrot.lane.b32.xlu0 %v270, 64
    %v700 = vpop.permute.xlu0 %699
    %703 = vrot.lane.b32.xlu0 %v328, 64
    %v704 = vpop.permute.xlu0 %703
    %707 = vrot.lane.b32.xlu0 %v382, 64
    %v708 = vpop.permute.xlu0 %707
    %711 = vrot.lane.b32.xlu0 %v436, 64
    %v712 = vpop.permute.xlu0 %711
    %715 = vrot.lane.b32.xlu0 %v490, 64
    %v716 = vpop.permute.xlu0 %715
    %719 = vrot.lane.b32.xlu0 %v544, 64
    %v720 = vpop.permute.xlu0 %719
    %723 = vrot.lane.b32.xlu0 %v598, 64
    %v724 = vpop.permute.xlu0 %723
    %727 = vrot.lane.b32.xlu0 %v652, 64
    %v728 = vpop.permute.xlu0 %727
    %v730 = vsel %vm221, %v700, %v704
    %v731 = vsel %vm686, %v730, %v708
    %v732 = vsel %vm688, %v731, %v712
    %v733 = vsel %vm690, %v732, %v716
    %v734 = vsel %vm692, %v733, %v720
    %v735 = vsel %vm694, %v734, %v724
    %v736 = vsel %vm696, %v735, %v728
    %v738 = vsel %vm186, %v697, 0
    %v741 = vsel %vm186, %v736, 0
    %743 = vmatpush.msra.mxu0 0.0
    %744 = vmatpush.msra.mxu0 0.0
    %745 = vmatpush.msra.mxu0 0.0
    %746 = vmatpush.msra.mxu0 0.0
    %747 = vmatpush.msra.mxu0 0.0
    %748 = vmatpush.msra.mxu0 0.0
    %749 = vmatpush.msra.mxu0 0.0
    %750 = vmatpush.msra.mxu0 0.0
    %751 = vmatpush.msra.mxu0 0.0
    %752 = vmatpush.msra.mxu0 0.0
    %753 = vmatpush.msra.mxu0 0.0
    %754 = vmatpush.msra.mxu0 0.0
    %755 = vmatpush.msra.mxu0 %v163
    %756 = vmatpush.msra.mxu0 %v162
    %757 = vmatpush.msra.mxu0 %v161
    %758 = vmatpush.msra.mxu0 %v160
    %759 = vmatmul.f32.gmra.mxu0 %v738
    %v760 = vpop.f32.mrf.mxu0
    %v761 = vadd.f32 0.0, %v760
    %762 = vmatmul.f32.gmra.mxu0 %v741
    %v763 = vpop.f32.mrf.mxu0
    %v764 = vadd.f32 0.0, %v763
    %765 = vdwg.mxu0
    %v766 = vadd.f32 %v153, %v761
    %v767 = vadd.f32 %v154, %v764
    %v769 = vperm.slane %v164, 0
    %v771 = vadd.f32 %v766, %v769
    %v772 = vadd.f32 %v767, %v769
    %v773 = vsel %vm186, %v771, 0.0
    %774 = vadd.xlane.f32.xlu0 %v773
    %v775 = vpop.xlane.xlu0 %774
    %v776 = vsel %vm186, %v772, 0.0
    %777 = vadd.xlane.f32.xlu0 %v776
    %v778 = vpop.xlane.xlu0 %777
    %v779 = vrcp.pop 32.0
    %v780 = vmul.f32 32.0, %v779
    %v781 = vsub.f32 1.0, %v780
    %v782 = vmul.f32 %v779, %v781
    %v783 = vadd.f32 %v779, %v782
    %vm784 = vweird.f32 %v779
    %v785 = vsel %vm784, %v779, %v783
    %v786 = vmul.f32 %v775, %v785
    %v787 = vmul.f32 %v778, %v785
    %v788 = vsub.f32 %v771, %v786
    %v789 = vsub.f32 %v772, %v787
    %v790 = vmul.f32 %v788, %v788
    %v791 = vmul.f32 %v789, %v789
    %v792 = vsel %vm186, %v790, 0.0
    %793 = vadd.xlane.f32.xlu0 %v792
    %v794 = vpop.xlane.xlu0 %793
    %v795 = vsel %vm186, %v791, 0.0
    %796 = vadd.xlane.f32.xlu0 %v795
    %v797 = vpop.xlane.xlu0 %796
    %v798 = vmul.f32 %v794, %v785
    %v799 = vmul.f32 %v797, %v785
    %v800 = vadd.f32 %v798, 1e-05
    %v801 = vadd.f32 %v799, 1e-05
    %v802 = vrsqrt.pop %v800
    %v803 = vmul.f32 %v802, %v800
    %v804 = vmul.f32 %v803, %v802
    %v805 = vmul.f32 0.5, %v804
    %v806 = vsub.f32 1.5, %v805
    %v807 = vmul.f32 %v802, %v806
    %vm808 = vweird.f32 %v800
    %vm809 = vweird.f32 %v802
    %vm810 = vmor %vm808, %vm809
    %v811 = vsel %vm810, %v802, %v807
    %v812 = vrsqrt.pop %v801
    %v813 = vmul.f32 %v812, %v801
    %v814 = vmul.f32 %v813, %v812
    %v815 = vmul.f32 0.5, %v814
    %v816 = vsub.f32 1.5, %v815
    %v817 = vmul.f32 %v812, %v816
    %vm818 = vweird.f32 %v801
    %vm819 = vweird.f32 %v812
    %vm820 = vmor %vm818, %vm819
    %v821 = vsel %vm820, %v812, %v817
    %v822 = vmul.f32 %v788, %v811
    %v823 = vmul.f32 %v789, %v821
    %v825 = vperm.slane %v165, 0
    %v827 = vmul.f32 %v822, %v825
    %v828 = vmul.f32 %v823, %v825
    %v830 = vperm.slane %v166, 0
    %v832 = vadd.f32 %v827, %v830
    %v833 = vadd.f32 %v828, %v830
    %v835 = vperm.slane %v171, 0
    %v838 = vsel %vm186, %v832, 0
    %v841 = vsel %vm186, %v833, 0
    %843 = vmatpush.msra.mxu0 0.0
    %844 = vmatpush.msra.mxu0 0.0
    %845 = vmatpush.msra.mxu0 0.0
    %846 = vmatpush.msra.mxu0 0.0
    %847 = vmatpush.msra.mxu0 0.0
    %848 = vmatpush.msra.mxu0 0.0
    %849 = vmatpush.msra.mxu0 0.0
    %850 = vmatpush.msra.mxu0 0.0
    %851 = vmatpush.msra.mxu0 0.0
    %852 = vmatpush.msra.mxu0 0.0
    %853 = vmatpush.msra.mxu0 0.0
    %854 = vmatpush.msra.mxu0 0.0
    %855 = vmatpush.msra.mxu0 %v170
    %856 = vmatpush.msra.mxu0 %v169
    %857 = vmatpush.msra.mxu0 %v168
    %858 = vmatpush.msra.mxu0 %v167
    %859 = vmatmul.f32.gmra.mxu0 %v838
    %v860 = vpop.f32.mrf.mxu0
    %v861 = vadd.f32 %v835, %v860
    %862 = vmatmul.f32.gmra.mxu0 %v841
    %v863 = vpop.f32.mrf.mxu0
    %v864 = vadd.f32 %v835, %v863
    %865 = vdwg.mxu0
    %v866 = vmax.f32 %v861, 0.0
    %v867 = vmax.f32 %v864, 0.0
    %v869 = vperm.slane %v180, 0
    %vm871 = vcmask 523264
    %v873 = vsel %vm871, %v866, 0
    %v876 = vsel %vm871, %v867, 0
    %878 = vmatpush.msra.mxu0 0.0
    %879 = vmatpush.msra.mxu0 0.0
    %880 = vmatpush.msra.mxu0 0.0
    %881 = vmatpush.msra.mxu0 0.0
    %882 = vmatpush.msra.mxu0 0.0
    %883 = vmatpush.msra.mxu0 0.0
    %884 = vmatpush.msra.mxu0 0.0
    %885 = vmatpush.msra.mxu0 0.0
    %886 = vmatpush.msra.mxu0 %v179
    %887 = vmatpush.msra.mxu0 %v178
    %888 = vmatpush.msra.mxu0 %v177
    %889 = vmatpush.msra.mxu0 %v176
    %890 = vmatpush.msra.mxu0 %v175
    %891 = vmatpush.msra.mxu0 %v174
    %892 = vmatpush.msra.mxu0 %v173
    %893 = vmatpush.msra.mxu0 %v172
    %894 = vmatmul.f32.gmra.mxu0 %v873
    %v895 = vpop.f32.mrf.mxu0
    %v896 = vadd.f32 %v869, %v895
    %897 = vmatmul.f32.gmra.mxu0 %v876
    %v898 = vpop.f32.mrf.mxu0
    %v899 = vadd.f32 %v869, %v898
    %900 = vdwg.mxu0
    %v901 = vadd.f32 %v832, %v896
    %v902 = vadd.f32 %v833, %v899
    %v903 = vsel %vm186, %v901, 0.0
    %904 = vadd.xlane.f32.xlu0 %v903
    %v905 = vpop.xlane.xlu0 %904
    %v906 = vsel %vm186, %v902, 0.0
    %907 = vadd.xlane.f32.xlu0 %v906
    %v908 = vpop.xlane.xlu0 %907
    %v909 = vmul.f32 %v905, %v785
    %v910 = vmul.f32 %v908, %v785
    %v911 = vsub.f32 %v901, %v909
    %v912 = vsub.f32 %v902, %v910
    %v913 = vmul.f32 %v911, %v911
    %v914 = vmul.f32 %v912, %v912
    %v915 = vsel %vm186, %v913, 0.0
    %916 = vadd.xlane.f32.xlu0 %v915
    %v917 = vpop.xlane.xlu0 %916
    %v918 = vsel %vm186, %v914, 0.0
    %919 = vadd.xlane.f32.xlu0 %v918
    %v920 = vpop.xlane.xlu0 %919
    %v921 = vmul.f32 %v917, %v785
    %v922 = vmul.f32 %v920, %v785
    %v923 = vadd.f32 %v921, 1e-05
    %v924 = vadd.f32 %v922, 1e-05
    %v925 = vrsqrt.pop %v923
    %v926 = vmul.f32 %v925, %v923
    %v927 = vmul.f32 %v926, %v925
    %v928 = vmul.f32 0.5, %v927
    %v929 = vsub.f32 1.5, %v928
    %v930 = vmul.f32 %v925, %v929
    %vm931 = vweird.f32 %v923
    %vm932 = vweird.f32 %v925
    %vm933 = vmor %vm931, %vm932
    %v934 = vsel %vm933, %v925, %v930
    %v935 = vrsqrt.pop %v924
    %v936 = vmul.f32 %v935, %v924
    %v937 = vmul.f32 %v936, %v935
    %v938 = vmul.f32 0.5, %v937
    %v939 = vsub.f32 1.5, %v938
    %v940 = vmul.f32 %v935, %v939
    %vm941 = vweird.f32 %v924
    %vm942 = vweird.f32 %v935
    %vm943 = vmor %vm941, %vm942
    %v944 = vsel %vm943, %v935, %v940
    %v945 = vmul.f32 %v911, %v934
    %v946 = vmul.f32 %v912, %v944
    %v948 = vperm.slane %v181, 0
    %v950 = vmul.f32 %v945, %v948
    %v951 = vmul.f32 %v946, %v948
    %v953 = vperm.slane %v182, 0
    %v955 = vadd.f32 %v950, %v953
    %v956 = vadd.f32 %v951, %v953
    %957 = vst.msk [vmem:[%s13] sm:$0xff] %vm186, %v955
    %958 = vst.msk [vmem:[%s13 + $0x8] sm:$0xff] %vm186, %v956
    // Predicated region
    $region86: #{custom_xlm_forward.11} parent=1 // pred_check
      _
    $region87: #{custom_xlm_forward.11} parent=1 // pred_check_branch
      %960 = sbr.rel (0) target = $region89
    $region88: #{custom_xlm_forward.11} parent=1 // pred_region
      _
    $region89: #{custom_xlm_forward.11} parent=1 // pred_fallthru
      _
    // Predicated region
    $region90: #{custom_xlm_forward.11} parent=1 // pred_check
      _
    $region91: #{custom_xlm_forward.11} parent=1 // pred_check_branch
      %962 = sbr.rel (0) target = $region93
    $region92: #{custom_xlm_forward.11} parent=1 // pred_region
      _
    $region93: #{custom_xlm_forward.11} parent=1 // pred_fallthru
      _
    %963 = vsyncpa [#allocation3], 1
    %964 = vsyncpa [#allocation5], 1
    %965 = vsyncpa [#allocation8], 1
    %966 = vsyncpa [#allocation11], 1
    %967 = vsyncpa [#allocation14], 1

// kernel: custom_xlm_forward.13
$region0: #{custom_xlm_forward.13}
  #allocation0 [shape = 'u32[]', space=smem, size = 0x4, offset = 0x4, fixed_abs, tag = 'smem constant byte address 0x4 - core index']
  #allocation1 [shape = 'u32[72,128]{1,0:T(1,128)}', space=vmem, size = 0x9000, scoped, tag = 'internal scratch']
  %s0 = inlined_call_operand.vmem [shape: f32[16,32], index: 0, kind: input, shape index: {}]
  %s1 = inlined_call_operand.vmem [shape: f32[32,96], index: 1, kind: input, shape index: {}]
  %s2 = inlined_call_operand.vmem [shape: f32[1,96], index: 2, kind: input, shape index: {}]
  %s3 = inlined_call_operand.vmem [shape: f32[32,32], index: 3, kind: input, shape index: {}]
  %s4 = inlined_call_operand.vmem [shape: f32[1,32], index: 4, kind: input, shape index: {}]
  %s5 = inlined_call_operand.vmem [shape: f32[1,32], index: 5, kind: input, shape index: {}]
  %s6 = inlined_call_operand.vmem [shape: f32[1,32], index: 6, kind: input, shape index: {}]
  %s7 = inlined_call_operand.vmem [shape: f32[32,64], index: 7, kind: input, shape index: {}]
  %s8 = inlined_call_operand.vmem [shape: f32[1,64], index: 8, kind: input, shape index: {}]
  %s9 = inlined_call_operand.vmem [shape: f32[64,32], index: 9, kind: input, shape index: {}]
  %s10 = inlined_call_operand.vmem [shape: f32[1,32], index: 10, kind: input, shape index: {}]
  %s11 = inlined_call_operand.vmem [shape: f32[1,32], index: 11, kind: input, shape index: {}]
  %s12 = inlined_call_operand.vmem [shape: f32[1,32], index: 12, kind: input, shape index: {}]
  %s13 = inlined_call_operand.vmem [shape: f32[32,3], index: 13, kind: input, shape index: {}]
  %s14 = inlined_call_operand.vmem [shape: f32[1,3], index: 14, kind: input, shape index: {}]
  %s15 = inlined_call_operand.hbm [shape: f32[2,3], index: 15, kind: output, shape index: {}]
  %s16 = sld [smem:[#allocation0]]
  $region70: #{custom_xlm_forward.13} parent=0
    _
  %s18 = ssub.s32 1, %s16
  %s19 = scalar_select 0, %s18, %s16
  $region1: #{custom_xlm_forward.13} parent=0
    #allocation2 [shape = 'u8[1024]{0}', space=vmem, size = 0x400, scoped, tag = 'output window, operand 0, single buffered']
    #allocation3 [shape = 's32[1]{0}', space=sflag, size = 0x4, scoped, tag = 'scoped memory for custom_xlm_forward.13']
    %20 = vsyncpa [#allocation3], 0
    // Predicated region
    $region2: #{custom_xlm_forward.13} parent=1 // pred_check
      _
    $region3: #{custom_xlm_forward.13} parent=1 // pred_check_branch
      %22 = sbr.rel (0) target = $region5
    $region4: #{custom_xlm_forward.13} parent=1 // pred_region
      _
    $region5: #{custom_xlm_forward.13} parent=1 // pred_fallthru
      _
    // Predicated region
    $region6: #{custom_xlm_forward.13} parent=1 // pred_check
      _
    $region7: #{custom_xlm_forward.13} parent=1 // pred_check_branch
      %24 = sbr.rel (0) target = $region9
    $region8: #{custom_xlm_forward.13} parent=1 // pred_region
      _
    $region9: #{custom_xlm_forward.13} parent=1 // pred_fallthru
      _
    // Predicated region
    $region10: #{custom_xlm_forward.13} parent=1 // pred_check
      _
    $region11: #{custom_xlm_forward.13} parent=1 // pred_check_branch
      %26 = sbr.rel (0) target = $region13
    $region12: #{custom_xlm_forward.13} parent=1 // pred_region
      _
    $region13: #{custom_xlm_forward.13} parent=1 // pred_fallthru
      _
    // Predicated region
    $region14: #{custom_xlm_forward.13} parent=1 // pred_check
      _
    $region15: #{custom_xlm_forward.13} parent=1 // pred_check_branch
      %28 = sbr.rel (0) target = $region17
    $region16: #{custom_xlm_forward.13} parent=1 // pred_region
      _
    $region17: #{custom_xlm_forward.13} parent=1 // pred_fallthru
      _
    // Predicated region
    $region18: #{custom_xlm_forward.13} parent=1 // pred_check
      _
    $region19: #{custom_xlm_forward.13} parent=1 // pred_check_branch
      %30 = sbr.rel (0) target = $region21
    $region20: #{custom_xlm_forward.13} parent=1 // pred_region
      _
    $region21: #{custom_xlm_forward.13} parent=1 // pred_fallthru
      _
    // Predicated region
    $region22: #{custom_xlm_forward.13} parent=1 // pred_check
      _
    $region23: #{custom_xlm_forward.13} parent=1 // pred_check_branch
      %32 = sbr.rel (0) target = $region25
    $region24: #{custom_xlm_forward.13} parent=1 // pred_region
      _
    $region25: #{custom_xlm_forward.13} parent=1 // pred_fallthru
      _
    // Predicated region
    $region26: #{custom_xlm_forward.13} parent=1 // pred_check
      _
    $region27: #{custom_xlm_forward.13} parent=1 // pred_check_branch
      %34 = sbr.rel (0) target = $region29
    $region28: #{custom_xlm_forward.13} parent=1 // pred_region
      _
    $region29: #{custom_xlm_forward.13} parent=1 // pred_fallthru
      _
    // Predicated region
    $region30: #{custom_xlm_forward.13} parent=1 // pred_check
      _
    $region31: #{custom_xlm_forward.13} parent=1 // pred_check_branch
      %36 = sbr.rel (0) target = $region33
    $region32: #{custom_xlm_forward.13} parent=1 // pred_region
      _
    $region33: #{custom_xlm_forward.13} parent=1 // pred_fallthru
      _
    // Predicated region
    $region34: #{custom_xlm_forward.13} parent=1 // pred_check
      _
    $region35: #{custom_xlm_forward.13} parent=1 // pred_check_branch
      %38 = sbr.rel (0) target = $region37
    $region36: #{custom_xlm_forward.13} parent=1 // pred_region
      _
    $region37: #{custom_xlm_forward.13} parent=1 // pred_fallthru
      _
    // Predicated region
    $region38: #{custom_xlm_forward.13} parent=1 // pred_check
      _
    $region39: #{custom_xlm_forward.13} parent=1 // pred_check_branch
      %40 = sbr.rel (0) target = $region41
    $region40: #{custom_xlm_forward.13} parent=1 // pred_region
      _
    $region41: #{custom_xlm_forward.13} parent=1 // pred_fallthru
      _
    // Predicated region
    $region42: #{custom_xlm_forward.13} parent=1 // pred_check
      _
    $region43: #{custom_xlm_forward.13} parent=1 // pred_check_branch
      %42 = sbr.rel (0) target = $region45
    $region44: #{custom_xlm_forward.13} parent=1 // pred_region
      _
    $region45: #{custom_xlm_forward.13} parent=1 // pred_fallthru
      _
    // Predicated region
    $region46: #{custom_xlm_forward.13} parent=1 // pred_check
      _
    $region47: #{custom_xlm_forward.13} parent=1 // pred_check_branch
      %44 = sbr.rel (0) target = $region49
    $region48: #{custom_xlm_forward.13} parent=1 // pred_region
      _
    $region49: #{custom_xlm_forward.13} parent=1 // pred_fallthru
      _
    // Predicated region
    $region50: #{custom_xlm_forward.13} parent=1 // pred_check
      _
    $region51: #{custom_xlm_forward.13} parent=1 // pred_check_branch
      %46 = sbr.rel (0) target = $region53
    $region52: #{custom_xlm_forward.13} parent=1 // pred_region
      _
    $region53: #{custom_xlm_forward.13} parent=1 // pred_fallthru
      _
    // Predicated region
    $region54: #{custom_xlm_forward.13} parent=1 // pred_check
      _
    $region55: #{custom_xlm_forward.13} parent=1 // pred_check_branch
      %48 = sbr.rel (0) target = $region57
    $region56: #{custom_xlm_forward.13} parent=1 // pred_region
      _
    $region57: #{custom_xlm_forward.13} parent=1 // pred_fallthru
      _
    // Predicated region
    $region58: #{custom_xlm_forward.13} parent=1 // pred_check
      _
    $region59: #{custom_xlm_forward.13} parent=1 // pred_check_branch
      %50 = sbr.rel (0) target = $region61
    $region60: #{custom_xlm_forward.13} parent=1 // pred_region
      _
    $region61: #{custom_xlm_forward.13} parent=1 // pred_fallthru
      _
    %v51 = vld [vmem:[%s0] sm:$0xff]
    %v52 = vld [vmem:[%s0 + $0x8] sm:$0xff]
    %v53 = vld [vmem:[%s1] sm:$0xff]
    %v54 = vld [vmem:[%s1 + $0x8] sm:$0xff]
    %v55 = vld [vmem:[%s1 + $0x10] sm:$0xff]
    %v56 = vld [vmem:[%s1 + $0x18] sm:$0xff]
    %v57 = vld [vmem:[%s2] sm:$0x1]
    %v58 = vld [vmem:[%s3] sm:$0xff]
    %v59 = vld [vmem:[%s3 + $0x8] sm:$0xff]
    %v60 = vld [vmem:[%s3 + $0x10] sm:$0xff]
    %v61 = vld [vmem:[%s3 + $0x18] sm:$0xff]
    %v62 = vld [vmem:[%s4] sm:$0x1]
    %v63 = vld [vmem:[%s5] sm:$0x1]
    %v64 = vld [vmem:[%s6] sm:$0x1]
    %v65 = vld [vmem:[%s7] sm:$0xff]
    %v66 = vld [vmem:[%s7 + $0x8] sm:$0xff]
    %v67 = vld [vmem:[%s7 + $0x10] sm:$0xff]
    %v68 = vld [vmem:[%s7 + $0x18] sm:$0xff]
    %v69 = vld [vmem:[%s8] sm:$0x1]
    %v70 = vld [vmem:[%s9] sm:$0xff]
    %v71 = vld [vmem:[%s9 + $0x8] sm:$0xff]
    %v72 = vld [vmem:[%s9 + $0x10] sm:$0xff]
    %v73 = vld [vmem:[%s9 + $0x18] sm:$0xff]
    %v74 = vld [vmem:[%s9 + $0x20] sm:$0xff]
    %v75 = vld [vmem:[%s9 + $0x28] sm:$0xff]
    %v76 = vld [vmem:[%s9 + $0x30] sm:$0xff]
    %v77 = vld [vmem:[%s9 + $0x38] sm:$0xff]
    %v78 = vld [vmem:[%s10] sm:$0x1]
    %v79 = vld [vmem:[%s11] sm:$0x1]
    %v80 = vld [vmem:[%s12] sm:$0x1]
    %v82 = vperm.slane %v57, 0
    %vm84 = vcmask 261120
    %v86 = vsel %vm84, %v51, 0
    %v89 = vsel %vm84, %v52, 0
    %91 = vmatpush.msra.mxu0 0.0
    %92 = vmatpush.msra.mxu0 0.0
    %93 = vmatpush.msra.mxu0 0.0
    %94 = vmatpush.msra.mxu0 0.0
    %95 = vmatpush.msra.mxu0 0.0
    %96 = vmatpush.msra.mxu0 0.0
    %97 = vmatpush.msra.mxu0 0.0
    %98 = vmatpush.msra.mxu0 0.0
    %99 = vmatpush.msra.mxu0 0.0
    %100 = vmatpush.msra.mxu0 0.0
    %101 = vmatpush.msra.mxu0 0.0
    %102 = vmatpush.msra.mxu0 0.0
    %103 = vmatpush.msra.mxu0 %v56
    %104 = vmatpush.msra.mxu0 %v55
    %105 = vmatpush.msra.mxu0 %v54
    %106 = vmatpush.msra.mxu0 %v53
    %107 = vmatmul.f32.gmra.mxu0 %v86
    %v108 = vpop.f32.mrf.mxu0
    %v109 = vadd.f32 %v82, %v108
    %110 = vmatmul.f32.gmra.mxu0 %v89
    %v111 = vpop.f32.mrf.mxu0
    %v112 = vadd.f32 %v82, %v111
    %113 = vdwg.mxu0
    %115 = vrot.lane.b32.xlu0 %v109, 96
    %v116 = vpop.permute.xlu0 %115
    %v118 = vmul.f32 %v109, %v116
    %vm119 = vcmask 31744
    %v120 = vsel %vm119, %v118, 0.0
    %121 = vadd.xlane.f32.xlu0 %v120
    %v122 = vpop.xlane.xlu0 %121
    %v123 = vmul.f32 %v122, 0.5
    %125 = vrot.lane.b32.xlu0 %v112, 96
    %v126 = vpop.permute.xlu0 %125
    %v128 = vmul.f32 %v109, %v126
    %v129 = vsel %vm119, %v128, 0.0
    %130 = vadd.xlane.f32.xlu0 %v129
    %v131 = vpop.xlane.xlu0 %130
    %v132 = vmul.f32 %v131, 0.5
    %v133 = vmax.f32 %v123, %v132
    %v134 = vsub.f32 %v123, %v133
    %v135 = vmul.f32 %v134, 1.442695
    %v136 = vpow.pop %v135
    %v137 = vsub.f32 %v132, %v133
    %v138 = vmul.f32 %v137, 1.442695
    %v139 = vpow.pop %v138
    %v140 = vadd.f32 %v136, %v139
    %v141 = vrcp.pop %v140
    %v142 = vmul.f32 %v136, %v109
    %v143 = vmul.f32 %v139, %v112
    %v144 = vadd.f32 %v142, %v143
    %v145 = vmul.f32 %v144, %v141
    %v146 = vmul.f32 %v112, %v116
    %v147 = vsel %vm119, %v146, 0.0
    %148 = vadd.xlane.f32.xlu0 %v147
    %v149 = vpop.xlane.xlu0 %148
    %v150 = vmul.f32 %v149, 0.5
    %v151 = vmul.f32 %v112, %v126
    %v152 = vsel %vm119, %v151, 0.0
    %153 = vadd.xlane.f32.xlu0 %v152
    %v154 = vpop.xlane.xlu0 %153
    %v155 = vmul.f32 %v154, 0.5
    %v156 = vmax.f32 %v150, %v155
    %v157 = vsub.f32 %v150, %v156
    %v158 = vmul.f32 %v157, 1.442695
    %v159 = vpow.pop %v158
    %v160 = vsub.f32 %v155, %v156
    %v161 = vmul.f32 %v160, 1.442695
    %v162 = vpow.pop %v161
    %v163 = vadd.f32 %v159, %v162
    %v164 = vrcp.pop %v163
    %v165 = vmul.f32 %v159, %v109
    %v166 = vmul.f32 %v162, %v112
    %v167 = vadd.f32 %v165, %v166
    %v168 = vmul.f32 %v167, %v164
    %170 = vrot.lane.b32.xlu0 %v118, 124
    %v171 = vpop.permute.xlu0 %170
    %v173 = vsel %vm119, %v171, 0.0
    %174 = vadd.xlane.f32.xlu0 %v173
    %v175 = vpop.xlane.xlu0 %174
    %v176 = vmul.f32 %v175, 0.5
    %178 = vrot.lane.b32.xlu0 %v128, 124
    %v179 = vpop.permute.xlu0 %178
    %v181 = vsel %vm119, %v179, 0.0
    %182 = vadd.xlane.f32.xlu0 %v181
    %v183 = vpop.xlane.xlu0 %182
    %v184 = vmul.f32 %v183, 0.5
    %v185 = vmax.f32 %v176, %v184
    %v186 = vsub.f32 %v176, %v185
    %v187 = vmul.f32 %v186, 1.442695
    %v188 = vpow.pop %v187
    %v189 = vsub.f32 %v184, %v185
    %v190 = vmul.f32 %v189, 1.442695
    %v191 = vpow.pop %v190
    %v192 = vadd.f32 %v188, %v191
    %v193 = vrcp.pop %v192
    %v194 = vmul.f32 %v188, %v109
    %v195 = vmul.f32 %v191, %v112
    %v196 = vadd.f32 %v194, %v195
    %v197 = vmul.f32 %v196, %v193
    %199 = vrot.lane.b32.xlu0 %v146, 124
    %v200 = vpop.permute.xlu0 %199
    %v202 = vsel %vm119, %v200, 0.0
    %203 = vadd.xlane.f32.xlu0 %v202
    %v204 = vpop.xlane.xlu0 %203
    %v205 = vmul.f32 %v204, 0.5
    %207 = vrot.lane.b32.xlu0 %v151, 124
    %v208 = vpop.permute.xlu0 %207
    %v210 = vsel %vm119, %v208, 0.0
    %211 = vadd.xlane.f32.xlu0 %v210
    %v212 = vpop.xlane.xlu0 %211
    %v213 = vmul.f32 %v212, 0.5
    %v214 = vmax.f32 %v205, %v213
    %v215 = vsub.f32 %v205, %v214
    %v216 = vmul.f32 %v215, 1.442695
    %v217 = vpow.pop %v216
    %v218 = vsub.f32 %v213, %v214
    %v219 = vmul.f32 %v218, 1.442695
    %v220 = vpow.pop %v219
    %v221 = vadd.f32 %v217, %v220
    %v222 = vrcp.pop %v221
    %v223 = vmul.f32 %v217, %v109
    %v224 = vmul.f32 %v220, %v112
    %v225 = vadd.f32 %v223, %v224
    %v226 = vmul.f32 %v225, %v222
    %227 = vrot.lane.b32.xlu0 %v118, 120
    %v228 = vpop.permute.xlu0 %227
    %v230 = vsel %vm119, %v228, 0.0
    %231 = vadd.xlane.f32.xlu0 %v230
    %v232 = vpop.xlane.xlu0 %231
    %v233 = vmul.f32 %v232, 0.5
    %234 = vrot.lane.b32.xlu0 %v128, 120
    %v235 = vpop.permute.xlu0 %234
    %v237 = vsel %vm119, %v235, 0.0
    %238 = vadd.xlane.f32.xlu0 %v237
    %v239 = vpop.xlane.xlu0 %238
    %v240 = vmul.f32 %v239, 0.5
    %v241 = vmax.f32 %v233, %v240
    %v242 = vsub.f32 %v233, %v241
    %v243 = vmul.f32 %v242, 1.442695
    %v244 = vpow.pop %v243
    %v245 = vsub.f32 %v240, %v241
    %v246 = vmul.f32 %v245, 1.442695
    %v247 = vpow.pop %v246
    %v248 = vadd.f32 %v244, %v247
    %v249 = vrcp.pop %v248
    %v250 = vmul.f32 %v244, %v109
    %v251 = vmul.f32 %v247, %v112
    %v252 = vadd.f32 %v250, %v251
    %v253 = vmul.f32 %v252, %v249
    %254 = vrot.lane.b32.xlu0 %v146, 120
    %v255 = vpop.permute.xlu0 %254
    %v257 = vsel %vm119, %v255, 0.0
    %258 = vadd.xlane.f32.xlu0 %v257
    %v259 = vpop.xlane.xlu0 %258
    %v260 = vmul.f32 %v259, 0.5
    %261 = vrot.lane.b32.xlu0 %v151, 120
    %v262 = vpop.permute.xlu0 %261
    %v264 = vsel %vm119, %v262, 0.0
    %265 = vadd.xlane.f32.xlu0 %v264
    %v266 = vpop.xlane.xlu0 %265
    %v267 = vmul.f32 %v266, 0.5
    %v268 = vmax.f32 %v260, %v267
    %v269 = vsub.f32 %v260, %v268
    %v270 = vmul.f32 %v269, 1.442695
    %v271 = vpow.pop %v270
    %v272 = vsub.f32 %v267, %v268
    %v273 = vmul.f32 %v272, 1.442695
    %v274 = vpow.pop %v273
    %v275 = vadd.f32 %v271, %v274
    %v276 = vrcp.pop %v275
    %v277 = vmul.f32 %v271, %v109
    %v278 = vmul.f32 %v274, %v112
    %v279 = vadd.f32 %v277, %v278
    %v280 = vmul.f32 %v279, %v276
    %281 = vrot.lane.b32.xlu0 %v118, 116
    %v282 = vpop.permute.xlu0 %281
    %v284 = vsel %vm119, %v282, 0.0
    %285 = vadd.xlane.f32.xlu0 %v284
    %v286 = vpop.xlane.xlu0 %285
    %v287 = vmul.f32 %v286, 0.5
    %288 = vrot.lane.b32.xlu0 %v128, 116
    %v289 = vpop.permute.xlu0 %288
    %v291 = vsel %vm119, %v289, 0.0
    %292 = vadd.xlane.f32.xlu0 %v291
    %v293 = vpop.xlane.xlu0 %292
    %v294 = vmul.f32 %v293, 0.5
    %v295 = vmax.f32 %v287, %v294
    %v296 = vsub.f32 %v287, %v295
    %v297 = vmul.f32 %v296, 1.442695
    %v298 = vpow.pop %v297
    %v299 = vsub.f32 %v294, %v295
    %v300 = vmul.f32 %v299, 1.442695
    %v301 = vpow.pop %v300
    %v302 = vadd.f32 %v298, %v301
    %v303 = vrcp.pop %v302
    %v304 = vmul.f32 %v298, %v109
    %v305 = vmul.f32 %v301, %v112
    %v306 = vadd.f32 %v304, %v305
    %v307 = vmul.f32 %v306, %v303
    %308 = vrot.lane.b32.xlu0 %v146, 116
    %v309 = vpop.permute.xlu0 %308
    %v311 = vsel %vm119, %v309, 0.0
    %312 = vadd.xlane.f32.xlu0 %v311
    %v313 = vpop.xlane.xlu0 %312
    %v314 = vmul.f32 %v313, 0.5
    %315 = vrot.lane.b32.xlu0 %v151, 116
    %v316 = vpop.permute.xlu0 %315
    %v318 = vsel %vm119, %v316, 0.0
    %319 = vadd.xlane.f32.xlu0 %v318
    %v320 = vpop.xlane.xlu0 %319
    %v321 = vmul.f32 %v320, 0.5
    %v322 = vmax.f32 %v314, %v321
    %v323 = vsub.f32 %v314, %v322
    %v324 = vmul.f32 %v323, 1.442695
    %v325 = vpow.pop %v324
    %v326 = vsub.f32 %v321, %v322
    %v327 = vmul.f32 %v326, 1.442695
    %v328 = vpow.pop %v327
    %v329 = vadd.f32 %v325, %v328
    %v330 = vrcp.pop %v329
    %v331 = vmul.f32 %v325, %v109
    %v332 = vmul.f32 %v328, %v112
    %v333 = vadd.f32 %v331, %v332
    %v334 = vmul.f32 %v333, %v330
    %335 = vrot.lane.b32.xlu0 %v118, 112
    %v336 = vpop.permute.xlu0 %335
    %v338 = vsel %vm119, %v336, 0.0
    %339 = vadd.xlane.f32.xlu0 %v338
    %v340 = vpop.xlane.xlu0 %339
    %v341 = vmul.f32 %v340, 0.5
    %342 = vrot.lane.b32.xlu0 %v128, 112
    %v343 = vpop.permute.xlu0 %342
    %v345 = vsel %vm119, %v343, 0.0
    %346 = vadd.xlane.f32.xlu0 %v345
    %v347 = vpop.xlane.xlu0 %346
    %v348 = vmul.f32 %v347, 0.5
    %v349 = vmax.f32 %v341, %v348
    %v350 = vsub.f32 %v341, %v349
    %v351 = vmul.f32 %v350, 1.442695
    %v352 = vpow.pop %v351
    %v353 = vsub.f32 %v348, %v349
    %v354 = vmul.f32 %v353, 1.442695
    %v355 = vpow.pop %v354
    %v356 = vadd.f32 %v352, %v355
    %v357 = vrcp.pop %v356
    %v358 = vmul.f32 %v352, %v109
    %v359 = vmul.f32 %v355, %v112
    %v360 = vadd.f32 %v358, %v359
    %v361 = vmul.f32 %v360, %v357
    %362 = vrot.lane.b32.xlu0 %v146, 112
    %v363 = vpop.permute.xlu0 %362
    %v365 = vsel %vm119, %v363, 0.0
    %366 = vadd.xlane.f32.xlu0 %v365
    %v367 = vpop.xlane.xlu0 %366
    %v368 = vmul.f32 %v367, 0.5
    %369 = vrot.lane.b32.xlu0 %v151, 112
    %v370 = vpop.permute.xlu0 %369
    %v372 = vsel %vm119, %v370, 0.0
    %373 = vadd.xlane.f32.xlu0 %v372
    %v374 = vpop.xlane.xlu0 %373
    %v375 = vmul.f32 %v374, 0.5
    %v376 = vmax.f32 %v368, %v375
    %v377 = vsub.f32 %v368, %v376
    %v378 = vmul.f32 %v377, 1.442695
    %v379 = vpow.pop %v378
    %v380 = vsub.f32 %v375, %v376
    %v381 = vmul.f32 %v380, 1.442695
    %v382 = vpow.pop %v381
    %v383 = vadd.f32 %v379, %v382
    %v384 = vrcp.pop %v383
    %v385 = vmul.f32 %v379, %v109
    %v386 = vmul.f32 %v382, %v112
    %v387 = vadd.f32 %v385, %v386
    %v388 = vmul.f32 %v387, %v384
    %389 = vrot.lane.b32.xlu0 %v118, 108
    %v390 = vpop.permute.xlu0 %389
    %v392 = vsel %vm119, %v390, 0.0
    %393 = vadd.xlane.f32.xlu0 %v392
    %v394 = vpop.xlane.xlu0 %393
    %v395 = vmul.f32 %v394, 0.5
    %396 = vrot.lane.b32.xlu0 %v128, 108
    %v397 = vpop.permute.xlu0 %396
    %v399 = vsel %vm119, %v397, 0.0
    %400 = vadd.xlane.f32.xlu0 %v399
    %v401 = vpop.xlane.xlu0 %400
    %v402 = vmul.f32 %v401, 0.5
    %v403 = vmax.f32 %v395, %v402
    %v404 = vsub.f32 %v395, %v403
    %v405 = vmul.f32 %v404, 1.442695
    %v406 = vpow.pop %v405
    %v407 = vsub.f32 %v402, %v403
    %v408 = vmul.f32 %v407, 1.442695
    %v409 = vpow.pop %v408
    %v410 = vadd.f32 %v406, %v409
    %v411 = vrcp.pop %v410
    %v412 = vmul.f32 %v406, %v109
    %v413 = vmul.f32 %v409, %v112
    %v414 = vadd.f32 %v412, %v413
    %v415 = vmul.f32 %v414, %v411
    %416 = vrot.lane.b32.xlu0 %v146, 108
    %v417 = vpop.permute.xlu0 %416
    %v419 = vsel %vm119, %v417, 0.0
    %420 = vadd.xlane.f32.xlu0 %v419
    %v421 = vpop.xlane.xlu0 %420
    %v422 = vmul.f32 %v421, 0.5
    %423 = vrot.lane.b32.xlu0 %v151, 108
    %v424 = vpop.permute.xlu0 %423
    %v426 = vsel %vm119, %v424, 0.0
    %427 = vadd.xlane.f32.xlu0 %v426
    %v428 = vpop.xlane.xlu0 %427
    %v429 = vmul.f32 %v428, 0.5
    %v430 = vmax.f32 %v422, %v429
    %v431 = vsub.f32 %v422, %v430
    %v432 = vmul.f32 %v431, 1.442695
    %v433 = vpow.pop %v432
    %v434 = vsub.f32 %v429, %v430
    %v435 = vmul.f32 %v434, 1.442695
    %v436 = vpow.pop %v435
    %v437 = vadd.f32 %v433, %v436
    %v438 = vrcp.pop %v437
    %v439 = vmul.f32 %v433, %v109
    %v440 = vmul.f32 %v436, %v112
    %v441 = vadd.f32 %v439, %v440
    %v442 = vmul.f32 %v441, %v438
    %443 = vrot.lane.b32.xlu0 %v118, 104
    %v444 = vpop.permute.xlu0 %443
    %v446 = vsel %vm119, %v444, 0.0
    %447 = vadd.xlane.f32.xlu0 %v446
    %v448 = vpop.xlane.xlu0 %447
    %v449 = vmul.f32 %v448, 0.5
    %450 = vrot.lane.b32.xlu0 %v128, 104
    %v451 = vpop.permute.xlu0 %450
    %v453 = vsel %vm119, %v451, 0.0
    %454 = vadd.xlane.f32.xlu0 %v453
    %v455 = vpop.xlane.xlu0 %454
    %v456 = vmul.f32 %v455, 0.5
    %v457 = vmax.f32 %v449, %v456
    %v458 = vsub.f32 %v449, %v457
    %v459 = vmul.f32 %v458, 1.442695
    %v460 = vpow.pop %v459
    %v461 = vsub.f32 %v456, %v457
    %v462 = vmul.f32 %v461, 1.442695
    %v463 = vpow.pop %v462
    %v464 = vadd.f32 %v460, %v463
    %v465 = vrcp.pop %v464
    %v466 = vmul.f32 %v460, %v109
    %v467 = vmul.f32 %v463, %v112
    %v468 = vadd.f32 %v466, %v467
    %v469 = vmul.f32 %v468, %v465
    %470 = vrot.lane.b32.xlu0 %v146, 104
    %v471 = vpop.permute.xlu0 %470
    %v473 = vsel %vm119, %v471, 0.0
    %474 = vadd.xlane.f32.xlu0 %v473
    %v475 = vpop.xlane.xlu0 %474
    %v476 = vmul.f32 %v475, 0.5
    %477 = vrot.lane.b32.xlu0 %v151, 104
    %v478 = vpop.permute.xlu0 %477
    %v480 = vsel %vm119, %v478, 0.0
    %481 = vadd.xlane.f32.xlu0 %v480
    %v482 = vpop.xlane.xlu0 %481
    %v483 = vmul.f32 %v482, 0.5
    %v484 = vmax.f32 %v476, %v483
    %v485 = vsub.f32 %v476, %v484
    %v486 = vmul.f32 %v485, 1.442695
    %v487 = vpow.pop %v486
    %v488 = vsub.f32 %v483, %v484
    %v489 = vmul.f32 %v488, 1.442695
    %v490 = vpow.pop %v489
    %v491 = vadd.f32 %v487, %v490
    %v492 = vrcp.pop %v491
    %v493 = vmul.f32 %v487, %v109
    %v494 = vmul.f32 %v490, %v112
    %v495 = vadd.f32 %v493, %v494
    %v496 = vmul.f32 %v495, %v492
    %497 = vrot.lane.b32.xlu0 %v118, 100
    %v498 = vpop.permute.xlu0 %497
    %v500 = vsel %vm119, %v498, 0.0
    %501 = vadd.xlane.f32.xlu0 %v500
    %v502 = vpop.xlane.xlu0 %501
    %v503 = vmul.f32 %v502, 0.5
    %504 = vrot.lane.b32.xlu0 %v128, 100
    %v505 = vpop.permute.xlu0 %504
    %v507 = vsel %vm119, %v505, 0.0
    %508 = vadd.xlane.f32.xlu0 %v507
    %v509 = vpop.xlane.xlu0 %508
    %v510 = vmul.f32 %v509, 0.5
    %v511 = vmax.f32 %v503, %v510
    %v512 = vsub.f32 %v503, %v511
    %v513 = vmul.f32 %v512, 1.442695
    %v514 = vpow.pop %v513
    %v515 = vsub.f32 %v510, %v511
    %v516 = vmul.f32 %v515, 1.442695
    %v517 = vpow.pop %v516
    %v518 = vadd.f32 %v514, %v517
    %v519 = vrcp.pop %v518
    %v520 = vmul.f32 %v514, %v109
    %v521 = vmul.f32 %v517, %v112
    %v522 = vadd.f32 %v520, %v521
    %v523 = vmul.f32 %v522, %v519
    %524 = vrot.lane.b32.xlu0 %v146, 100
    %v525 = vpop.permute.xlu0 %524
    %v527 = vsel %vm119, %v525, 0.0
    %528 = vadd.xlane.f32.xlu0 %v527
    %v529 = vpop.xlane.xlu0 %528
    %v530 = vmul.f32 %v529, 0.5
    %531 = vrot.lane.b32.xlu0 %v151, 100
    %v532 = vpop.permute.xlu0 %531
    %v534 = vsel %vm119, %v532, 0.0
    %535 = vadd.xlane.f32.xlu0 %v534
    %v536 = vpop.xlane.xlu0 %535
    %v537 = vmul.f32 %v536, 0.5
    %v538 = vmax.f32 %v530, %v537
    %v539 = vsub.f32 %v530, %v538
    %v540 = vmul.f32 %v539, 1.442695
    %v541 = vpow.pop %v540
    %v542 = vsub.f32 %v537, %v538
    %v543 = vmul.f32 %v542, 1.442695
    %v544 = vpow.pop %v543
    %v545 = vadd.f32 %v541, %v544
    %v546 = vrcp.pop %v545
    %v547 = vmul.f32 %v541, %v109
    %v548 = vmul.f32 %v544, %v112
    %v549 = vadd.f32 %v547, %v548
    %v550 = vmul.f32 %v549, %v546
    %552 = vrot.lane.b32.xlu0 %v145, 64
    %v553 = vpop.permute.xlu0 %552
    %556 = vrot.lane.b32.xlu0 %v197, 64
    %v557 = vpop.permute.xlu0 %556
    %560 = vrot.lane.b32.xlu0 %v253, 64
    %v561 = vpop.permute.xlu0 %560
    %564 = vrot.lane.b32.xlu0 %v307, 64
    %v565 = vpop.permute.xlu0 %564
    %568 = vrot.lane.b32.xlu0 %v361, 64
    %v569 = vpop.permute.xlu0 %568
    %572 = vrot.lane.b32.xlu0 %v415, 64
    %v573 = vpop.permute.xlu0 %572
    %576 = vrot.lane.b32.xlu0 %v469, 64
    %v577 = vpop.permute.xlu0 %576
    %580 = vrot.lane.b32.xlu0 %v523, 64
    %v581 = vpop.permute.xlu0 %580
    %v583 = vsel %vm119, %v553, %v557
    %vm584 = vcmask 64512
    %v585 = vsel %vm584, %v583, %v561
    %vm586 = vcmask 97280
    %v587 = vsel %vm586, %v585, %v565
    %vm588 = vcmask 130048
    %v589 = vsel %vm588, %v587, %v569
    %vm590 = vcmask 162816
    %v591 = vsel %vm590, %v589, %v573
    %vm592 = vcmask 195584
    %v593 = vsel %vm592, %v591, %v577
    %vm594 = vcmask 228352
    %v595 = vsel %vm594, %v593, %v581
    %597 = vrot.lane.b32.xlu0 %v168, 64
    %v598 = vpop.permute.xlu0 %597
    %601 = vrot.lane.b32.xlu0 %v226, 64
    %v602 = vpop.permute.xlu0 %601
    %605 = vrot.lane.b32.xlu0 %v280, 64
    %v606 = vpop.permute.xlu0 %605
    %609 = vrot.lane.b32.xlu0 %v334, 64
    %v610 = vpop.permute.xlu0 %609
    %613 = vrot.lane.b32.xlu0 %v388, 64
    %v614 = vpop.permute.xlu0 %613
    %617 = vrot.lane.b32.xlu0 %v442, 64
    %v618 = vpop.permute.xlu0 %617
    %621 = vrot.lane.b32.xlu0 %v496, 64
    %v622 = vpop.permute.xlu0 %621
    %625 = vrot.lane.b32.xlu0 %v550, 64
    %v626 = vpop.permute.xlu0 %625
    %v628 = vsel %vm119, %v598, %v602
    %v629 = vsel %vm584, %v628, %v606
    %v630 = vsel %vm586, %v629, %v610
    %v631 = vsel %vm588, %v630, %v614
    %v632 = vsel %vm590, %v631, %v618
    %v633 = vsel %vm592, %v632, %v622
    %v634 = vsel %vm594, %v633, %v626
    %v636 = vsel %vm84, %v595, 0
    %v639 = vsel %vm84, %v634, 0
    %641 = vmatpush.msra.mxu0 0.0
    %642 = vmatpush.msra.mxu0 0.0
    %643 = vmatpush.msra.mxu0 0.0
    %644 = vmatpush.msra.mxu0 0.0
    %645 = vmatpush.msra.mxu0 0.0
    %646 = vmatpush.msra.mxu0 0.0
    %647 = vmatpush.msra.mxu0 0.0
    %648 = vmatpush.msra.mxu0 0.0
    %649 = vmatpush.msra.mxu0 0.0
    %650 = vmatpush.msra.mxu0 0.0
    %651 = vmatpush.msra.mxu0 0.0
    %652 = vmatpush.msra.mxu0 0.0
    %653 = vmatpush.msra.mxu0 %v61
    %654 = vmatpush.msra.mxu0 %v60
    %655 = vmatpush.msra.mxu0 %v59
    %656 = vmatpush.msra.mxu0 %v58
    %657 = vmatmul.f32.gmra.mxu0 %v636
    %v658 = vpop.f32.mrf.mxu0
    %v659 = vadd.f32 0.0, %v658
    %660 = vmatmul.f32.gmra.mxu0 %v639
    %v661 = vpop.f32.mrf.mxu0
    %v662 = vadd.f32 0.0, %v661
    %663 = vdwg.mxu0
    %v664 = vadd.f32 %v51, %v659
    %v665 = vadd.f32 %v52, %v662
    %v667 = vperm.slane %v62, 0
    %v669 = vadd.f32 %v664, %v667
    %v670 = vadd.f32 %v665, %v667
    %v671 = vsel %vm84, %v669, 0.0
    %672 = vadd.xlane.f32.xlu0 %v671
    %v673 = vpop.xlane.xlu0 %672
    %v674 = vsel %vm84, %v670, 0.0
    %675 = vadd.xlane.f32.xlu0 %v674
    %v676 = vpop.xlane.xlu0 %675
    %v677 = vrcp.pop 32.0
    %v678 = vmul.f32 32.0, %v677
    %v679 = vsub.f32 1.0, %v678
    %v680 = vmul.f32 %v677, %v679
    %v681 = vadd.f32 %v677, %v680
    %vm682 = vweird.f32 %v677
    %v683 = vsel %vm682, %v677, %v681
    %v684 = vmul.f32 %v673, %v683
    %v685 = vmul.f32 %v676, %v683
    %v686 = vsub.f32 %v669, %v684
    %v687 = vsub.f32 %v670, %v685
    %v688 = vmul.f32 %v686, %v686
    %v689 = vmul.f32 %v687, %v687
    %v690 = vsel %vm84, %v688, 0.0
    %691 = vadd.xlane.f32.xlu0 %v690
    %v692 = vpop.xlane.xlu0 %691
    %v693 = vsel %vm84, %v689, 0.0
    %694 = vadd.xlane.f32.xlu0 %v693
    %v695 = vpop.xlane.xlu0 %694
    %v696 = vmul.f32 %v692, %v683
    %v697 = vmul.f32 %v695, %v683
    %v698 = vadd.f32 %v696, 1e-05
    %v699 = vadd.f32 %v697, 1e-05
    %v700 = vrsqrt.pop %v698
    %v701 = vmul.f32 %v700, %v698
    %v702 = vmul.f32 %v701, %v700
    %v703 = vmul.f32 0.5, %v702
    %v704 = vsub.f32 1.5, %v703
    %v705 = vmul.f32 %v700, %v704
    %vm706 = vweird.f32 %v698
    %vm707 = vweird.f32 %v700
    %vm708 = vmor %vm706, %vm707
    %v709 = vsel %vm708, %v700, %v705
    %v710 = vrsqrt.pop %v699
    %v711 = vmul.f32 %v710, %v699
    %v712 = vmul.f32 %v711, %v710
    %v713 = vmul.f32 0.5, %v712
    %v714 = vsub.f32 1.5, %v713
    %v715 = vmul.f32 %v710, %v714
    %vm716 = vweird.f32 %v699
    %vm717 = vweird.f32 %v710
    %vm718 = vmor %vm716, %vm717
    %v719 = vsel %vm718, %v710, %v715
    %v720 = vmul.f32 %v686, %v709
    %v721 = vmul.f32 %v687, %v719
    %v723 = vperm.slane %v63, 0
    %v725 = vmul.f32 %v720, %v723
    %v726 = vmul.f32 %v721, %v723
    %v728 = vperm.slane %v64, 0
    %v730 = vadd.f32 %v725, %v728
    %v731 = vadd.f32 %v726, %v728
    %v733 = vperm.slane %v69, 0
    %v736 = vsel %vm84, %v730, 0
    %v739 = vsel %vm84, %v731, 0
    %741 = vmatpush.msra.mxu0 0.0
    %742 = vmatpush.msra.mxu0 0.0
    %743 = vmatpush.msra.mxu0 0.0
    %744 = vmatpush.msra.mxu0 0.0
    %745 = vmatpush.msra.mxu0 0.0
    %746 = vmatpush.msra.mxu0 0.0
    %747 = vmatpush.msra.mxu0 0.0
    %748 = vmatpush.msra.mxu0 0.0
    %749 = vmatpush.msra.mxu0 0.0
    %750 = vmatpush.msra.mxu0 0.0
    %751 = vmatpush.msra.mxu0 0.0
    %752 = vmatpush.msra.mxu0 0.0
    %753 = vmatpush.msra.mxu0 %v68
    %754 = vmatpush.msra.mxu0 %v67
    %755 = vmatpush.msra.mxu0 %v66
    %756 = vmatpush.msra.mxu0 %v65
    %757 = vmatmul.f32.gmra.mxu0 %v736
    %v758 = vpop.f32.mrf.mxu0
    %v759 = vadd.f32 %v733, %v758
    %760 = vmatmul.f32.gmra.mxu0 %v739
    %v761 = vpop.f32.mrf.mxu0
    %v762 = vadd.f32 %v733, %v761
    %763 = vdwg.mxu0
    %v764 = vmax.f32 %v759, 0.0
    %v765 = vmax.f32 %v762, 0.0
    %v767 = vperm.slane %v78, 0
    %vm769 = vcmask 523264
    %v771 = vsel %vm769, %v764, 0
    %v774 = vsel %vm769, %v765, 0
    %776 = vmatpush.msra.mxu0 0.0
    %777 = vmatpush.msra.mxu0 0.0
    %778 = vmatpush.msra.mxu0 0.0
    %779 = vmatpush.msra.mxu0 0.0
    %780 = vmatpush.msra.mxu0 0.0
    %781 = vmatpush.msra.mxu0 0.0
    %782 = vmatpush.msra.mxu0 0.0
    %783 = vmatpush.msra.mxu0 0.0
    %784 = vmatpush.msra.mxu0 %v77
    %785 = vmatpush.msra.mxu0 %v76
    %786 = vmatpush.msra.mxu0 %v75
    %787 = vmatpush.msra.mxu0 %v74
    %788 = vmatpush.msra.mxu0 %v73
    %789 = vmatpush.msra.mxu0 %v72
    %790 = vmatpush.msra.mxu0 %v71
    %791 = vmatpush.msra.mxu0 %v70
    %792 = vmatmul.f32.gmra.mxu0 %v771
    %v793 = vpop.f32.mrf.mxu0
    %v794 = vadd.f32 %v767, %v793
    %795 = vmatmul.f32.gmra.mxu0 %v774
    %v796 = vpop.f32.mrf.mxu0
    %v797 = vadd.f32 %v767, %v796
    %798 = vdwg.mxu0
    %v799 = vadd.f32 %v730, %v794
    %v800 = vadd.f32 %v731, %v797
    %v801 = vsel %vm84, %v799, 0.0
    %802 = vadd.xlane.f32.xlu0 %v801
    %v803 = vpop.xlane.xlu0 %802
    %v804 = vsel %vm84, %v800, 0.0
    %805 = vadd.xlane.f32.xlu0 %v804
    %v806 = vpop.xlane.xlu0 %805
    %v807 = vmul.f32 %v803, %v683
    %v808 = vmul.f32 %v806, %v683
    %v809 = vsub.f32 %v799, %v807
    %v810 = vsub.f32 %v800, %v808
    %v811 = vmul.f32 %v809, %v809
    %v812 = vmul.f32 %v810, %v810
    %v813 = vsel %vm84, %v811, 0.0
    %814 = vadd.xlane.f32.xlu0 %v813
    %v815 = vpop.xlane.xlu0 %814
    %v816 = vsel %vm84, %v812, 0.0
    %817 = vadd.xlane.f32.xlu0 %v816
    %v818 = vpop.xlane.xlu0 %817
    %v819 = vmul.f32 %v815, %v683
    %v820 = vmul.f32 %v818, %v683
    %v821 = vadd.f32 %v819, 1e-05
    %v822 = vadd.f32 %v820, 1e-05
    %v823 = vrsqrt.pop %v821
    %v824 = vmul.f32 %v823, %v821
    %v825 = vmul.f32 %v824, %v823
    %v826 = vmul.f32 0.5, %v825
    %v827 = vsub.f32 1.5, %v826
    %v828 = vmul.f32 %v823, %v827
    %vm829 = vweird.f32 %v821
    %vm830 = vweird.f32 %v823
    %vm831 = vmor %vm829, %vm830
    %v832 = vsel %vm831, %v823, %v828
    %v833 = vrsqrt.pop %v822
    %v834 = vmul.f32 %v833, %v822
    %v835 = vmul.f32 %v834, %v833
    %v836 = vmul.f32 0.5, %v835
    %v837 = vsub.f32 1.5, %v836
    %v838 = vmul.f32 %v833, %v837
    %vm839 = vweird.f32 %v822
    %vm840 = vweird.f32 %v833
    %vm841 = vmor %vm839, %vm840
    %v842 = vsel %vm841, %v833, %v838
    %v843 = vmul.f32 %v809, %v832
    %v844 = vmul.f32 %v810, %v842
    %v846 = vperm.slane %v79, 0
    %v848 = vmul.f32 %v843, %v846
    %v849 = vmul.f32 %v844, %v846
    %v851 = vperm.slane %v80, 0
    %v853 = vadd.f32 %v848, %v851
    %v854 = vadd.f32 %v849, %v851
    %v856 = vrot.slane %v854, 7
    %vm858 = vcmask 1040384
    %v859 = vsel %vm858, %v853, %v856
    %v860 = vld [vmem:[%s13] sm:$0xff]
    %v861 = vld [vmem:[%s13 + $0x8] sm:$0xff]
    %v862 = vld [vmem:[%s13 + $0x10] sm:$0xff]
    %v863 = vld [vmem:[%s13 + $0x18] sm:$0xff]
    %v864 = vld [vmem:[%s14] sm:$0x1]
    %v866 = vperm.slane %v864, 0
    %v869 = vsel %vm84, %v859, 0
    %871 = vmatpush.msra.mxu0 0.0
    %872 = vmatpush.msra.mxu0 0.0
    %873 = vmatpush.msra.mxu0 0.0
    %874 = vmatpush.msra.mxu0 0.0
    %875 = vmatpush.msra.mxu0 0.0
    %876 = vmatpush.msra.mxu0 0.0
    %877 = vmatpush.msra.mxu0 0.0
    %878 = vmatpush.msra.mxu0 0.0
    %879 = vmatpush.msra.mxu0 0.0
    %880 = vmatpush.msra.mxu0 0.0
    %881 = vmatpush.msra.mxu0 0.0
    %882 = vmatpush.msra.mxu0 0.0
    %883 = vmatpush.msra.mxu0 %v863
    %884 = vmatpush.msra.mxu0 %v862
    %885 = vmatpush.msra.mxu0 %v861
    %886 = vmatpush.msra.mxu0 %v860
    %887 = vmatmul.f32.gmra.mxu0 %v869
    %v888 = vpop.f32.mrf.mxu0
    %v889 = vadd.f32 %v866, %v888
    %890 = vdwg.mxu0
    %vm891 = vcmask 17408
    %892 = vst.msk [vmem:[#allocation2] sm:$0x3] %vm891, %v889
    // Predicated region
    $region62: #{custom_xlm_forward.13} parent=1 // pred_check
      _
    $region63: #{custom_xlm_forward.13} parent=1 // pred_check_branch
      %894 = sbr.rel (0) target = $region65
    $region64: #{custom_xlm_forward.13} parent=1 // pred_region
      %896 = vsyncadd [#allocation3], 0
      %s898 = sshll.u32 [#allocation2], 4
      %s899 = int_to_ptr.vmem [resolvable:$true] %s898
      %s900 = sshll.u32 %s15, 4
      %s901 = int_to_ptr.hbm [resolvable:$true] %s900
      %903 = dma.vmem_to_hbm [thread:$0]  %s899, 32, %s901, [#allocation3]
    $region65: #{custom_xlm_forward.13} parent=1 // pred_fallthru
      _
    // Predicated region
    $region66: #{custom_xlm_forward.13} parent=1 // pred_check
      _
    $region67: #{custom_xlm_forward.13} parent=1 // pred_check_branch
      %905 = sbr.rel (0) target = $region69
    $region68: #{custom_xlm_forward.13} parent=1 // pred_region
      %907 = dma.done [#allocation3], 32
    $region69: #{custom_xlm_forward.13} parent=1 // pred_fallthru
      _
    %908 = vsyncpa [#allocation3], 1

</llo_original>
